<compile_context>
chip_gen: v7x
topology: tpu7x:2x2x1
jax: 0.10.0
libtpu: 0.0.40
codegen_flags: <defaults>
</compile_context>

<pallas_src>
import functools
from typing import NamedTuple

import numpy as np
import jax
import jax.numpy as jnp
from jax.experimental import pallas as pl
from jax.experimental.pallas import tpu as pltpu

BN_EPS = 1e-5
F32 = jnp.float32
BF16 = jnp.bfloat16
_VMEM_LIMIT = 32 * 1024 * 1024  # safe on v5e / v6e / v7x scoped-VMEM budgets


class LCZConfig(NamedTuple):
    T: int     # time steps
    C: int     # channel_amp
    R: int     # FTB r_channel
    D: int     # feat_dim (112)
    DP: int    # feat_dim padded to 128 lanes
    KA: int    # stem frequency kernel (7)
    KD: int    # amp_conv frequency kernel (5)
    K1D: int   # FTB Conv1d kernel (9)
    NB: int    # num TSB blocks


WEIGHT_ORDER = (
    "dshift",
    "stem_wa", "stem_sa", "stem_wb", "stem_sb",
    "ftb_w1", "ftb_s1", "ftb_w1d", "ftb_s1d", "ftb_wfc",
    "ftb_w2a", "ftb_w2b", "ftb_s2",
    "amp1_w", "amp1_s", "amp2_w", "amp2_s", "amp3_w", "amp3_s",
    "fc1_w", "fc1_b", "fc2_w", "fc2_b", "fc3_w", "fc3_b",
)


# ---------------------------------------------------------------------------
# Fused whole-network kernel (one grid step per batch item).
# Activation layout: [T*C, DP] slab, rows ordered (t, c), frequency on lanes.
# ---------------------------------------------------------------------------
def _lcznet_kernel(
        x_ref, dshift_ref,
        stem_wa_ref, stem_sa_ref, stem_wb_ref, stem_sb_ref,
        ftb_w1_ref, ftb_s1_ref, ftb_w1d_ref, ftb_s1d_ref, ftb_wfc_ref,
        ftb_w2a_ref, ftb_w2b_ref, ftb_s2_ref,
        amp1_w_ref, amp1_s_ref, amp2_w_ref, amp2_s_ref, amp3_w_ref, amp3_s_ref,
        fc1_w_ref, fc1_b_ref, fc2_w_ref, fc2_b_ref, fc3_w_ref, fc3_b_ref,
        o_ref, *, T, C, R, K1D, KA, KD, NB):
    TC = T * C
    c0 = dshift_ref.shape[0] // 2      # center of the frequency-shift bank

    def relu(v):
        return jnp.maximum(v, 0.0)

    def wmm(w, act):
        # weight (bf16, prepared host-side) x activation, f32 MXU accumulation
        return jnp.dot(w, act.astype(BF16), preferred_element_type=F32)

    def dstack(slab, ntaps):
        # Frequency-axis im2col: stack `ntaps` lane-shifted, zero-padded copies
        # of `slab` along rows.  Shifts are done on the MXU with precomputed
        # 0/1 matrices (which also zero the padding lanes >= D), so no masked
        # lane ops or cross-lane rotates are needed.
        half = ntaps // 2
        parts = []
        for i in range(ntaps):
            s = i - half
            parts.append(jnp.dot(slab.astype(BF16), dshift_ref[c0 + s],
                                 preferred_element_type=F32))
        return jnp.concatenate(parts, axis=0)

    def ftb(f, slab):
        # conv1 (1x1, C->R) + BN + ReLU, batched over T as a single matmul
        c1 = relu(wmm(ftb_w1_ref[f], slab) + ftb_s1_ref[f])          # [T*R, DP]
        # Conv1d(R*D -> C, k=9, pad=4) over T + BN + ReLU: accumulate the tap
        # products first, then ONE lane+sublane reduction per time step.
        pad = K1D // 2
        gate_rows = []
        for t in range(T):
            acc = jnp.zeros((C, R, c1.shape[1]), F32)
            for j in range(K1D):
                tt = t + j - pad
                if tt < 0 or tt >= T:
                    continue                                  # zero pad along T
                acc = acc + (ftb_w1d_ref[f * K1D + j]
                             * c1[tt * R:(tt + 1) * R, :][None])
            g = jnp.sum(jnp.sum(acc, axis=2), axis=1, keepdims=True)  # [C, 1]
            gate_rows.append(relu(g + ftb_s1d_ref[f]))
        gate = jnp.concatenate(gate_rows, axis=0)                     # [TC, 1]
        att = gate * slab                                             # attention
        att = jnp.dot(att.astype(BF16), ftb_wfc_ref[f],
                      preferred_element_type=F32)                     # freq_fc
        # conv2 (1x1 over the [att, input] concat) split into two matmuls
        out = (wmm(ftb_w2a_ref[f], att) + wmm(ftb_w2b_ref[f], slab)
               + ftb_s2_ref[f])
        return relu(out)

    # ---- stem: Conv2d(1,C,(7,1)) -> Conv2d(C,C,(1,7))  (+ BN + ReLU each) ---
    x = x_ref[0]                                                      # [T, DP]
    f1 = relu(wmm(stem_wa_ref[...], dstack(x, KA)) + stem_sa_ref[...])
    f1 = relu(wmm(stem_wb_ref[...], f1) + stem_sb_ref[...])           # [TC, DP]

    # ---- TSB stack: every block consumes f1; only the last reaches the head
    f2 = f1
    for nb in range(NB):
        a = ftb(2 * nb, f1)                                           # ftb1
        a = relu(wmm(amp1_w_ref[nb], dstack(a, KD)) + amp1_s_ref[nb])  # 5x5
        a = relu(wmm(amp2_w_ref[nb], a) + amp2_s_ref[nb])              # 1x25
        a = relu(wmm(amp3_w_ref[nb], dstack(a, KD)) + amp3_s_ref[nb])  # 5x5
        f2 = ftb(2 * nb + 1, a)                                        # ftb2

    # ---- classifier head: fc1 -> ReLU -> fc2 -> ReLU -> fc3 -> sigmoid -----
    h = fc1_b_ref[...]                                                # [1, n1]
    for p in range(TC):
        h = h + jnp.dot(f2[p:p + 1, :].astype(BF16), fc1_w_ref[p],
                        preferred_element_type=F32)
    h = relu(h)
    h = relu(jnp.dot(h.astype(BF16), fc2_w_ref[...],
                     preferred_element_type=F32) + fc2_b_ref[...])
    z = jnp.dot(h.astype(BF16), fc3_w_ref[...],
                preferred_element_type=F32) + fc3_b_ref[...]
    o_ref[0] = 1.0 / (1.0 + jnp.exp(-z))                              # exact sigmoid


# ---------------------------------------------------------------------------
# Jitted forward: layout transform + a single pallas_call.
# ---------------------------------------------------------------------------
@functools.partial(jax.jit, static_argnames=("cfg",))
def lcznet_forward(weights, img, *, cfg):
    """img: [B, feat_dim, T] -> [B, num_classes]."""
    B, d_real, t_real = img.shape
    assert t_real == cfg.T and d_real == cfg.D
    # internal layout: frequency on the 128-lane axis, (time, channel) on rows
    x = jnp.transpose(img, (0, 2, 1)).astype(F32)               # [B, T, D]
    x = jnp.pad(x, ((0, 0), (0, 0), (0, cfg.DP - d_real)))      # [B, T, DP]

    w_list = [weights[k] for k in WEIGHT_ORDER]
    nc = weights["fc3_b"].shape[-1]

    kernel = functools.partial(
        _lcznet_kernel, T=cfg.T, C=cfg.C, R=cfg.R, K1D=cfg.K1D,
        KA=cfg.KA, KD=cfg.KD, NB=cfg.NB)

    def full_spec(a):
        nd = a.ndim
        return pl.BlockSpec(a.shape, lambda b: (0,) * nd)

    in_specs = [pl.BlockSpec((1, cfg.T, cfg.DP), lambda b: (b, 0, 0))]
    in_specs += [full_spec(w) for w in w_list]

    out = pl.pallas_call(
        kernel,
        out_shape=jax.ShapeDtypeStruct((B, 1, nc), F32),
        grid=(B,),
        in_specs=in_specs,
        out_specs=pl.BlockSpec((1, 1, nc), lambda b: (b, 0, 0)),
        compiler_params=pltpu.CompilerParams(
            dimension_semantics=("parallel",),
            vmem_limit_bytes=_VMEM_LIMIT),
    )(x, *w_list)
    return out[:, 0, :]


# ---------------------------------------------------------------------------
# One-time host-side weight preparation (runs OUTSIDE the jitted forward).
# ---------------------------------------------------------------------------
def _bn_fold_np(gamma, beta, bias):
    """Eval-mode BN (running_mean=0, running_var=1) folded with the conv bias."""
    gamma = np.asarray(gamma, np.float32)
    beta = np.asarray(beta, np.float32)
    bias = np.asarray(bias, np.float32)
    scale = gamma / np.sqrt(1.0 + BN_EPS)
    return scale, beta + scale * bias


def _time_conv_matrix(w, T, pad):
    """w: [Cout, Cin, Kt] -> [T*Cout, T*Cin] matrix applying the (zero padded)
    time-axis convolution to a [T*Cin, D] slab with rows ordered (t, c)."""
    cout, cin, kt = w.shape
    m = np.zeros((T * cout, T * cin), np.float32)
    for t in range(T):
        for t2 in range(T):
            j = t2 - t + pad
            if 0 <= j < kt:
                m[t * cout:(t + 1) * cout, t2 * cin:(t2 + 1) * cin] = w[:, :, j]
    return m


def _stem_freq_matrix(w, T):
    """w: [C, KA] (single input channel) -> [T*C, KA*T] matrix consuming KA
    lane-shifted copies of the [T, D] input stacked along rows."""
    c, ka = w.shape
    m = np.zeros((T * c, ka * T), np.float32)
    for i in range(ka):
        for t in range(T):
            m[t * c:(t + 1) * c, i * T + t] = w[:, i]
    return m


def _conv5x5_matrix(w, T):
    """w: [Cout, Cin, KD, KT] -> [T*Cout, KD*T*Cin] matrix consuming KD
    lane-shifted copies of the activation slab stacked along rows."""
    cout, cin, kd, kt = w.shape
    tci = T * cin
    m = np.zeros((T * cout, kd * tci), np.float32)
    for i in range(kd):
        m[:, i * tci:(i + 1) * tci] = _time_conv_matrix(w[:, :, i, :], T, kt // 2)
    return m


def _shift_matrices(nsh, D, DP):
    """Bank of [DP, DP] 0/1 matrices; index (nsh//2 + s) shifts the frequency
    axis by s with exact zero padding and zeros out the padding lanes >= D."""
    s_mats = np.zeros((nsh, DP, DP), np.float32)
    half = nsh // 2
    for i in range(nsh):
        s = i - half
        for d in range(D):
            src = d + s
            if 0 <= src < D:
                s_mats[i, src, d] = 1.0
    return s_mats


def _prep_conv_np(p, T, time_only):
    w = np.asarray(p["w"], np.float32)
    c = w.shape[0]
    sc, sh = _bn_fold_np(p["gamma"], p["beta"], p["b"])
    wf = w * sc[:, None, None, None]
    if time_only:
        m = _time_conv_matrix(wf[:, :, 0, :], T, w.shape[3] // 2)
    else:
        m = _conv5x5_matrix(wf, T)
    return m, np.tile(sh.reshape(c, 1), (T, 1))


def _prep_ftb_np(p, T, C, D, DP):
    # conv1 (1x1, C -> R)
    w1 = np.asarray(p["conv1"]["w"], np.float32)[:, :, 0, 0]        # [R, C]
    R = w1.shape[0]
    sc, sh = _bn_fold_np(p["conv1"]["gamma"], p["conv1"]["beta"], p["conv1"]["b"])
    w1big = _time_conv_matrix((w1 * sc[:, None])[:, :, None], T, 0)  # [T*R, T*C]
    s1big = np.tile(sh.reshape(R, 1), (T, 1))
    # conv1d (R*D -> C, k=9) over time
    w1d = np.asarray(p["conv1d"]["w"], np.float32)                   # [C, R*D, K]
    k1d = w1d.shape[-1]
    sc, sh = _bn_fold_np(p["conv1d"]["gamma"], p["conv1d"]["beta"], p["conv1d"]["b"])
    w1d = (w1d * sc[:, None, None]).reshape(C, R, D, k1d)
    w1dp = np.zeros((k1d, C, R, DP), np.float32)
    w1dp[:, :, :, :D] = np.transpose(w1d, (3, 0, 1, 2))
    s1d = sh.reshape(C, 1)
    # freq_fc (no bias): y = x @ W.T, zero-padded to 128x128
    wfc = np.asarray(p["freq_fc"]["w"], np.float32)
    wfcp = np.zeros((DP, DP), np.float32)
    wfcp[:D, :D] = wfc.T
    # conv2 (1x1, 2C -> C) split over the concat
    w2 = np.asarray(p["conv2"]["w"], np.float32)[:, :, 0, 0]         # [C, 2C]
    sc, sh = _bn_fold_np(p["conv2"]["gamma"], p["conv2"]["beta"], p["conv2"]["b"])
    w2 = w2 * sc[:, None]
    w2a = _time_conv_matrix(w2[:, :C, None], T, 0)
    w2b = _time_conv_matrix(w2[:, C:, None], T, 0)
    s2big = np.tile(sh.reshape(C, 1), (T, 1))
    return (dict(w1=w1big, s1=s1big, w1d=w1dp, s1d=s1d, wfc=wfcp,
                 w2a=w2a, w2b=w2b, s2=s2big), R, k1d)


def prepare_params(params, T):
    """One-time weight prep: BN folding, time-conv matrices, frequency padding
    to 128 lanes, bf16 casts and the fc1 column permutation."""
    C = int(np.asarray(params["conv1_a"]["w"]).shape[0])
    D = int(np.asarray(params["tsbs"][0]["ftb1"]["freq_fc"]["w"]).shape[0])
    DP = ((D + 127) // 128) * 128
    NB = len(params["tsbs"])

    # stem
    p_a = params["conv1_a"]
    w_a = np.asarray(p_a["w"], np.float32)                          # [C,1,KA,1]
    KA = int(w_a.shape[2])
    sc_a, sh_a = _bn_fold_np(p_a["gamma"], p_a["beta"], p_a["b"])
    stem_wa = _stem_freq_matrix(w_a[:, 0, :, 0] * sc_a[:, None], T)
    stem_sa = np.tile(sh_a.reshape(C, 1), (T, 1))
    stem_wb, stem_sb = _prep_conv_np(params["conv1_b"], T, time_only=True)

    # TSBs
    ftbs, amps1, amps2, amps3 = [], [], [], []
    R = k1d = 0
    for tp in params["tsbs"]:
        for name in ("ftb1", "ftb2"):
            fw, R, k1d = _prep_ftb_np(tp[name], T, C, D, DP)
            ftbs.append(fw)
        amps1.append(_prep_conv_np(tp["amp_conv1"], T, time_only=False))
        amps2.append(_prep_conv_np(tp["amp_conv2"], T, time_only=True))
        amps3.append(_prep_conv_np(tp["amp_conv3"], T, time_only=False))
    KD = int(np.asarray(params["tsbs"][0]["amp_conv1"]["w"]).shape[2])
    NF = len(ftbs)

    def fstack(key):
        return np.stack([f[key] for f in ftbs], axis=0)

    dshift = _shift_matrices(max(KA, KD), D, DP)

    # head: fc1 columns permuted to the kernel's (t, c, d) flatten,
    # zero rows for the padding lanes d >= D
    w1 = np.asarray(params["fc1"]["w"], np.float32)                  # [n1, C*D*T]
    n1 = w1.shape[0]
    fc1_w = np.zeros((T * C, DP, n1), np.float32)
    fc1_w[:, :D, :] = np.transpose(
        w1.reshape(n1, C, D, T), (3, 1, 2, 0)).reshape(T * C, D, n1)

    weights = {
        "dshift": jnp.asarray(dshift, BF16),
        "stem_wa": jnp.asarray(stem_wa, BF16),
        "stem_sa": jnp.asarray(stem_sa, F32),
        "stem_wb": jnp.asarray(stem_wb, BF16),
        "stem_sb": jnp.asarray(stem_sb, F32),
        "ftb_w1": jnp.asarray(fstack("w1"), BF16),
        "ftb_s1": jnp.asarray(fstack("s1"), F32),
        "ftb_w1d": jnp.asarray(fstack("w1d").reshape(NF * k1d, C, R, DP), F32),
        "ftb_s1d": jnp.asarray(fstack("s1d"), F32),
        "ftb_wfc": jnp.asarray(fstack("wfc"), BF16),
        "ftb_w2a": jnp.asarray(fstack("w2a"), BF16),
        "ftb_w2b": jnp.asarray(fstack("w2b"), BF16),
        "ftb_s2": jnp.asarray(fstack("s2"), F32),
        "amp1_w": jnp.asarray(np.stack([a[0] for a in amps1]), BF16),
        "amp1_s": jnp.asarray(np.stack([a[1] for a in amps1]), F32),
        "amp2_w": jnp.asarray(np.stack([a[0] for a in amps2]), BF16),
        "amp2_s": jnp.asarray(np.stack([a[1] for a in amps2]), F32),
        "amp3_w": jnp.asarray(np.stack([a[0] for a in amps3]), BF16),
        "amp3_s": jnp.asarray(np.stack([a[1] for a in amps3]), F32),
        "fc1_w": jnp.asarray(fc1_w, BF16),
        "fc1_b": jnp.asarray(
            np.asarray(params["fc1"]["b"], np.float32).reshape(1, -1), F32),
        "fc2_w": jnp.asarray(np.asarray(params["fc2"]["w"], np.float32).T, BF16),
        "fc2_b": jnp.asarray(
            np.asarray(params["fc2"]["b"], np.float32).reshape(1, -1), F32),
        "fc3_w": jnp.asarray(np.asarray(params["fc3"]["w"], np.float32).T, BF16),
        "fc3_b": jnp.asarray(
            np.asarray(params["fc3"]["b"], np.float32).reshape(1, -1), F32),
    }
    cfg = LCZConfig(T=T, C=C, R=int(R), D=D, DP=DP, KA=KA, KD=KD,
                    K1D=int(k1d), NB=NB)
    return weights, cfg


# ---------------------------------------------------------------------------
# Deterministic parameter construction (PyTorch layouts)
# ---------------------------------------------------------------------------
def _conv2d_params(key, cout, cin, kh, kw):
    k1, k2 = jax.random.split(key)
    return {"w": jax.random.normal(k1, (cout, cin, kh, kw), F32) * 0.1,
            "b": jax.random.normal(k2, (cout,), F32) * 0.1,
            "gamma": jnp.ones((cout,), F32),
            "beta": jnp.zeros((cout,), F32)}


def _conv1d_params(key, cout, cin, k):
    k1, k2 = jax.random.split(key)
    return {"w": jax.random.normal(k1, (cout, cin, k), F32) * 0.05,
            "b": jax.random.normal(k2, (cout,), F32) * 0.05,
            "gamma": jnp.ones((cout,), F32),
            "beta": jnp.zeros((cout,), F32)}


def _linear_params(key, nout, nin, bias=True):
    k1, k2 = jax.random.split(key)
    p = {"w": jax.random.normal(k1, (nout, nin), F32) * 0.05}
    p["b"] = (jax.random.normal(k2, (nout,), F32) * 0.05) if bias \
        else jnp.zeros((nout,), F32)
    return p


def _ftb_params(key, input_dim, in_channel, r_channel=5):
    k = jax.random.split(key, 4)
    return {
        "conv1": _conv2d_params(k[0], r_channel, in_channel, 1, 1),
        "conv1d": _conv1d_params(k[1], in_channel, r_channel * input_dim, 9),
        "freq_fc": _linear_params(k[2], input_dim, input_dim, bias=False),
        "conv2": _conv2d_params(k[3], in_channel, 2 * in_channel, 1, 1),
    }


def _tsb_params(key, input_dim, channel_amp):
    k = jax.random.split(key, 5)
    return {
        "ftb1": _ftb_params(k[0], input_dim, channel_amp),
        "amp_conv1": _conv2d_params(k[1], channel_amp, channel_amp, 5, 5),
        "amp_conv2": _conv2d_params(k[2], channel_amp, channel_amp, 1, 25),
        "amp_conv3": _conv2d_params(k[3], channel_amp, channel_amp, 5, 5),
        "ftb2": _ftb_params(k[4], input_dim, channel_amp),
    }


def init_lcznet_params(key, num_classes, channel_amp, num_blocks, feat_dim, rnn_nums):
    k = jax.random.split(key, 5 + num_blocks)
    return {
        "conv1_a": _conv2d_params(k[0], channel_amp, 1, 7, 1),
        "conv1_b": _conv2d_params(k[1], channel_amp, channel_amp, 1, 7),
        "tsbs": [_tsb_params(k[2 + i], feat_dim, channel_amp)
                 for i in range(num_blocks)],
        "fc1": _linear_params(k[2 + num_blocks], 100, rnn_nums),
        "fc2": _linear_params(k[3 + num_blocks], 33, 100),
        "fc3": _linear_params(k[4 + num_blocks], num_classes, 33),
    }


# ---------------------------------------------------------------------------
if __name__ == "__main__":
    # feat_dim is hard-coded to 112 in LCZNet (conv1d / freq_fc require D==112);
    # rnn_nums is chosen so the flatten -> Linear(rnn_nums, 100) is well-defined.
    B, feat_dim, T = 2, 112, 4
    channel_amp, num_blocks, num_classes = 4, 2, 3
    rnn_nums = channel_amp * feat_dim * T  # 1792

    key = jax.random.PRNGKey(0)
    pkey, xkey = jax.random.split(key)
    params = init_lcznet_params(pkey, num_classes, channel_amp, num_blocks,
                                feat_dim, rnn_nums)
    weights, cfg = prepare_params(params, T=T)        # one-time host-side prep
    img = jax.random.normal(xkey, (B, feat_dim, T), F32)

    out = lcznet_forward(weights, img, cfg=cfg)
    out = jax.block_until_ready(out)
    assert out.shape == (B, num_classes)
    assert bool(jnp.all(jnp.isfinite(out)))
    print("KERNEL_OK")
</pallas_src>

<mosaic_0001>
module attributes {stable_mosaic.version = 11 : i64} {
  func.func @_lcznet_kernel(%arg0: i32, %arg1: memref<1x4x128xf32, #tpu.memory_space<vmem>>, %arg2: memref<7x128x128xbf16, #tpu.memory_space<vmem>>, %arg3: memref<16x28xbf16, #tpu.memory_space<vmem>>, %arg4: memref<16x1xf32, #tpu.memory_space<vmem>>, %arg5: memref<16x16xbf16, #tpu.memory_space<vmem>>, %arg6: memref<16x1xf32, #tpu.memory_space<vmem>>, %arg7: memref<4x20x16xbf16, #tpu.memory_space<vmem>>, %arg8: memref<4x20x1xf32, #tpu.memory_space<vmem>>, %arg9: memref<36x4x5x128xf32, #tpu.memory_space<vmem>>, %arg10: memref<4x4x1xf32, #tpu.memory_space<vmem>>, %arg11: memref<4x128x128xbf16, #tpu.memory_space<vmem>>, %arg12: memref<4x16x16xbf16, #tpu.memory_space<vmem>>, %arg13: memref<4x16x16xbf16, #tpu.memory_space<vmem>>, %arg14: memref<4x16x1xf32, #tpu.memory_space<vmem>>, %arg15: memref<2x16x80xbf16, #tpu.memory_space<vmem>>, %arg16: memref<2x16x1xf32, #tpu.memory_space<vmem>>, %arg17: memref<2x16x16xbf16, #tpu.memory_space<vmem>>, %arg18: memref<2x16x1xf32, #tpu.memory_space<vmem>>, %arg19: memref<2x16x80xbf16, #tpu.memory_space<vmem>>, %arg20: memref<2x16x1xf32, #tpu.memory_space<vmem>>, %arg21: memref<16x128x100xbf16, #tpu.memory_space<vmem>>, %arg22: memref<1x100xf32, #tpu.memory_space<vmem>>, %arg23: memref<100x33xbf16, #tpu.memory_space<vmem>>, %arg24: memref<1x33xf32, #tpu.memory_space<vmem>>, %arg25: memref<33x3xbf16, #tpu.memory_space<vmem>>, %arg26: memref<1x3xf32, #tpu.memory_space<vmem>>, %arg27: memref<1x1x3xf32, #tpu.memory_space<vmem>>) attributes {dimension_semantics = [#tpu.dimension_semantics<parallel>], iteration_bounds = array<i64: 2>, scalar_prefetch = 0 : i64, scratch_operands = 0 : i64, tpu.core_type = #tpu.core_type<tc>, window_params = [{transform_indices = @transform_0, window_bounds = array<i64: 1, 4, 128>}, {pipeline_mode = #tpu.pipeline_mode<synchronous>, transform_indices = @transform_1, window_bounds = array<i64: 7, 128, 128>}, {pipeline_mode = #tpu.pipeline_mode<synchronous>, transform_indices = @transform_2, window_bounds = array<i64: 16, 28>}, {pipeline_mode = #tpu.pipeline_mode<synchronous>, transform_indices = @transform_3, window_bounds = array<i64: 16, 1>}, {pipeline_mode = #tpu.pipeline_mode<synchronous>, transform_indices = @transform_4, window_bounds = array<i64: 16, 16>}, {pipeline_mode = #tpu.pipeline_mode<synchronous>, transform_indices = @transform_5, window_bounds = array<i64: 16, 1>}, {pipeline_mode = #tpu.pipeline_mode<synchronous>, transform_indices = @transform_6, window_bounds = array<i64: 4, 20, 16>}, {pipeline_mode = #tpu.pipeline_mode<synchronous>, transform_indices = @transform_7, window_bounds = array<i64: 4, 20, 1>}, {pipeline_mode = #tpu.pipeline_mode<synchronous>, transform_indices = @transform_8, window_bounds = array<i64: 36, 4, 5, 128>}, {pipeline_mode = #tpu.pipeline_mode<synchronous>, transform_indices = @transform_9, window_bounds = array<i64: 4, 4, 1>}, {pipeline_mode = #tpu.pipeline_mode<synchronous>, transform_indices = @transform_10, window_bounds = array<i64: 4, 128, 128>}, {pipeline_mode = #tpu.pipeline_mode<synchronous>, transform_indices = @transform_11, window_bounds = array<i64: 4, 16, 16>}, {pipeline_mode = #tpu.pipeline_mode<synchronous>, transform_indices = @transform_12, window_bounds = array<i64: 4, 16, 16>}, {pipeline_mode = #tpu.pipeline_mode<synchronous>, transform_indices = @transform_13, window_bounds = array<i64: 4, 16, 1>}, {pipeline_mode = #tpu.pipeline_mode<synchronous>, transform_indices = @transform_14, window_bounds = array<i64: 2, 16, 80>}, {pipeline_mode = #tpu.pipeline_mode<synchronous>, transform_indices = @transform_15, window_bounds = array<i64: 2, 16, 1>}, {pipeline_mode = #tpu.pipeline_mode<synchronous>, transform_indices = @transform_16, window_bounds = array<i64: 2, 16, 16>}, {pipeline_mode = #tpu.pipeline_mode<synchronous>, transform_indices = @transform_17, window_bounds = array<i64: 2, 16, 1>}, {pipeline_mode = #tpu.pipeline_mode<synchronous>, transform_indices = @transform_18, window_bounds = array<i64: 2, 16, 80>}, {pipeline_mode = #tpu.pipeline_mode<synchronous>, transform_indices = @transform_19, window_bounds = array<i64: 2, 16, 1>}, {pipeline_mode = #tpu.pipeline_mode<synchronous>, transform_indices = @transform_20, window_bounds = array<i64: 16, 128, 100>}, {pipeline_mode = #tpu.pipeline_mode<synchronous>, transform_indices = @transform_21, window_bounds = array<i64: 1, 100>}, {pipeline_mode = #tpu.pipeline_mode<synchronous>, transform_indices = @transform_22, window_bounds = array<i64: 100, 33>}, {pipeline_mode = #tpu.pipeline_mode<synchronous>, transform_indices = @transform_23, window_bounds = array<i64: 1, 33>}, {pipeline_mode = #tpu.pipeline_mode<synchronous>, transform_indices = @transform_24, window_bounds = array<i64: 33, 3>}, {pipeline_mode = #tpu.pipeline_mode<synchronous>, transform_indices = @transform_25, window_bounds = array<i64: 1, 3>}, {transform_indices = @transform_26, window_bounds = array<i64: 1, 1, 3>}]} {
    %c0 = arith.constant 0 : index
    %c0_0 = arith.constant 0 : index
    %c0_1 = arith.constant 0 : index
    %0 = vector.load %arg1[%c0, %c0_0, %c0_1] : memref<1x4x128xf32, #tpu.memory_space<vmem>>, vector<1x4x128xf32>
    %1 = vector.shape_cast %0 : vector<1x4x128xf32> to vector<4x128xf32>
    %c0_2 = arith.constant 0 : index
    %c0_3 = arith.constant 0 : index
    %2 = vector.load %arg3[%c0_2, %c0_3] : memref<16x28xbf16, #tpu.memory_space<vmem>>, vector<16x28xbf16>
    %3 = arith.truncf %1 : vector<4x128xf32> to vector<4x128xbf16>
    %c0_4 = arith.constant 0 : index
    %c0_5 = arith.constant 0 : index
    %c0_6 = arith.constant 0 : index
    %4 = vector.load %arg2[%c0_4, %c0_5, %c0_6] : memref<7x128x128xbf16, #tpu.memory_space<vmem>>, vector<1x128x128xbf16>
    %5 = vector.shape_cast %4 : vector<1x128x128xbf16> to vector<128x128xbf16>
    %cst = arith.constant dense<0.000000e+00> : vector<4x128xf32>
    %6 = tpu.matmul %3, %5, %cst {dimension_numbers = #tpu.dot_dimension_numbers<[1], [0], [0], [1], [0, 0, 1, 1], [], []>} : vector<4x128xbf16>, vector<128x128xbf16>, vector<4x128xf32> -> vector<4x128xf32>
    %7 = arith.truncf %1 : vector<4x128xf32> to vector<4x128xbf16>
    %c1 = arith.constant 1 : index
    %c0_7 = arith.constant 0 : index
    %c0_8 = arith.constant 0 : index
    %8 = vector.load %arg2[%c1, %c0_7, %c0_8] : memref<7x128x128xbf16, #tpu.memory_space<vmem>>, vector<1x128x128xbf16>
    %9 = vector.shape_cast %8 : vector<1x128x128xbf16> to vector<128x128xbf16>
    %cst_9 = arith.constant dense<0.000000e+00> : vector<4x128xf32>
    %10 = tpu.matmul %7, %9, %cst_9 {dimension_numbers = #tpu.dot_dimension_numbers<[1], [0], [0], [1], [0, 0, 1, 1], [], []>} : vector<4x128xbf16>, vector<128x128xbf16>, vector<4x128xf32> -> vector<4x128xf32>
    %11 = arith.truncf %1 : vector<4x128xf32> to vector<4x128xbf16>
    %c2 = arith.constant 2 : index
    %c0_10 = arith.constant 0 : index
    %c0_11 = arith.constant 0 : index
    %12 = vector.load %arg2[%c2, %c0_10, %c0_11] : memref<7x128x128xbf16, #tpu.memory_space<vmem>>, vector<1x128x128xbf16>
    %13 = vector.shape_cast %12 : vector<1x128x128xbf16> to vector<128x128xbf16>
    %cst_12 = arith.constant dense<0.000000e+00> : vector<4x128xf32>
    %14 = tpu.matmul %11, %13, %cst_12 {dimension_numbers = #tpu.dot_dimension_numbers<[1], [0], [0], [1], [0, 0, 1, 1], [], []>} : vector<4x128xbf16>, vector<128x128xbf16>, vector<4x128xf32> -> vector<4x128xf32>
    %15 = arith.truncf %1 : vector<4x128xf32> to vector<4x128xbf16>
    %c3 = arith.constant 3 : index
    %c0_13 = arith.constant 0 : index
    %c0_14 = arith.constant 0 : index
    %16 = vector.load %arg2[%c3, %c0_13, %c0_14] : memref<7x128x128xbf16, #tpu.memory_space<vmem>>, vector<1x128x128xbf16>
    %17 = vector.shape_cast %16 : vector<1x128x128xbf16> to vector<128x128xbf16>
    %cst_15 = arith.constant dense<0.000000e+00> : vector<4x128xf32>
    %18 = tpu.matmul %15, %17, %cst_15 {dimension_numbers = #tpu.dot_dimension_numbers<[1], [0], [0], [1], [0, 0, 1, 1], [], []>} : vector<4x128xbf16>, vector<128x128xbf16>, vector<4x128xf32> -> vector<4x128xf32>
    %19 = arith.truncf %1 : vector<4x128xf32> to vector<4x128xbf16>
    %c4 = arith.constant 4 : index
    %c0_16 = arith.constant 0 : index
    %c0_17 = arith.constant 0 : index
    %20 = vector.load %arg2[%c4, %c0_16, %c0_17] : memref<7x128x128xbf16, #tpu.memory_space<vmem>>, vector<1x128x128xbf16>
    %21 = vector.shape_cast %20 : vector<1x128x128xbf16> to vector<128x128xbf16>
    %cst_18 = arith.constant dense<0.000000e+00> : vector<4x128xf32>
    %22 = tpu.matmul %19, %21, %cst_18 {dimension_numbers = #tpu.dot_dimension_numbers<[1], [0], [0], [1], [0, 0, 1, 1], [], []>} : vector<4x128xbf16>, vector<128x128xbf16>, vector<4x128xf32> -> vector<4x128xf32>
    %23 = arith.truncf %1 : vector<4x128xf32> to vector<4x128xbf16>
    %c5 = arith.constant 5 : index
    %c0_19 = arith.constant 0 : index
    %c0_20 = arith.constant 0 : index
    %24 = vector.load %arg2[%c5, %c0_19, %c0_20] : memref<7x128x128xbf16, #tpu.memory_space<vmem>>, vector<1x128x128xbf16>
    %25 = vector.shape_cast %24 : vector<1x128x128xbf16> to vector<128x128xbf16>
    %cst_21 = arith.constant dense<0.000000e+00> : vector<4x128xf32>
    %26 = tpu.matmul %23, %25, %cst_21 {dimension_numbers = #tpu.dot_dimension_numbers<[1], [0], [0], [1], [0, 0, 1, 1], [], []>} : vector<4x128xbf16>, vector<128x128xbf16>, vector<4x128xf32> -> vector<4x128xf32>
    %27 = arith.truncf %1 : vector<4x128xf32> to vector<4x128xbf16>
    %c6 = arith.constant 6 : index
    %c0_22 = arith.constant 0 : index
    %c0_23 = arith.constant 0 : index
    %28 = vector.load %arg2[%c6, %c0_22, %c0_23] : memref<7x128x128xbf16, #tpu.memory_space<vmem>>, vector<1x128x128xbf16>
    %29 = vector.shape_cast %28 : vector<1x128x128xbf16> to vector<128x128xbf16>
    %cst_24 = arith.constant dense<0.000000e+00> : vector<4x128xf32>
    %30 = tpu.matmul %27, %29, %cst_24 {dimension_numbers = #tpu.dot_dimension_numbers<[1], [0], [0], [1], [0, 0, 1, 1], [], []>} : vector<4x128xbf16>, vector<128x128xbf16>, vector<4x128xf32> -> vector<4x128xf32>
    %31 = tpu.concatenate %6, %10, %14, %18, %22, %26, %30 in 0 : vector<4x128xf32>, vector<4x128xf32>, vector<4x128xf32>, vector<4x128xf32>, vector<4x128xf32>, vector<4x128xf32>, vector<4x128xf32> -> vector<28x128xf32>
    %32 = arith.truncf %31 : vector<28x128xf32> to vector<28x128xbf16>
    %cst_25 = arith.constant dense<0.000000e+00> : vector<16x128xf32>
    %33 = tpu.matmul %2, %32, %cst_25 {dimension_numbers = #tpu.dot_dimension_numbers<[1], [0], [0], [1], [0, 0, 1, 1], [], []>} : vector<16x28xbf16>, vector<28x128xbf16>, vector<16x128xf32> -> vector<16x128xf32>
    %c0_26 = arith.constant 0 : index
    %c0_27 = arith.constant 0 : index
    %34 = vector.load %arg4[%c0_26, %c0_27] : memref<16x1xf32, #tpu.memory_space<vmem>>, vector<16x1xf32>
    %35 = vector.broadcast %34 : vector<16x1xf32> to vector<16x128xf32>
    %36 = arith.addf %33, %35 : vector<16x128xf32>
    %cst_28 = arith.constant 0.000000e+00 : f32
    %37 = vector.broadcast %cst_28 : f32 to vector<16x128xf32>
    %38 = arith.maximumf %36, %37 : vector<16x128xf32>
    %c0_29 = arith.constant 0 : index
    %c0_30 = arith.constant 0 : index
    %39 = vector.load %arg5[%c0_29, %c0_30] : memref<16x16xbf16, #tpu.memory_space<vmem>>, vector<16x16xbf16>
    %40 = arith.truncf %38 : vector<16x128xf32> to vector<16x128xbf16>
    %cst_31 = arith.constant dense<0.000000e+00> : vector<16x128xf32>
    %41 = tpu.matmul %39, %40, %cst_31 {dimension_numbers = #tpu.dot_dimension_numbers<[1], [0], [0], [1], [0, 0, 1, 1], [], []>} : vector<16x16xbf16>, vector<16x128xbf16>, vector<16x128xf32> -> vector<16x128xf32>
    %c0_32 = arith.constant 0 : index
    %c0_33 = arith.constant 0 : index
    %42 = vector.load %arg6[%c0_32, %c0_33] : memref<16x1xf32, #tpu.memory_space<vmem>>, vector<16x1xf32>
    %43 = vector.broadcast %42 : vector<16x1xf32> to vector<16x128xf32>
    %44 = arith.addf %41, %43 : vector<16x128xf32>
    %cst_34 = arith.constant 0.000000e+00 : f32
    %45 = vector.broadcast %cst_34 : f32 to vector<16x128xf32>
    %46 = arith.maximumf %44, %45 : vector<16x128xf32>
    %c2_35 = arith.constant 2 : index
    %c0_36 = arith.constant 0 : index
    %c0_37 = arith.constant 0 : index
    %47 = vector.load %arg7[%c2_35, %c0_36, %c0_37] : memref<4x20x16xbf16, #tpu.memory_space<vmem>>, vector<1x20x16xbf16>
    %48 = vector.shape_cast %47 : vector<1x20x16xbf16> to vector<20x16xbf16>
    %49 = arith.truncf %46 : vector<16x128xf32> to vector<16x128xbf16>
    %cst_38 = arith.constant dense<0.000000e+00> : vector<20x128xf32>
    %50 = tpu.matmul %48, %49, %cst_38 {dimension_numbers = #tpu.dot_dimension_numbers<[1], [0], [0], [1], [0, 0, 1, 1], [], []>} : vector<20x16xbf16>, vector<16x128xbf16>, vector<20x128xf32> -> vector<20x128xf32>
    %c2_39 = arith.constant 2 : index
    %c0_40 = arith.constant 0 : index
    %c0_41 = arith.constant 0 : index
    %51 = vector.load %arg8[%c2_39, %c0_40, %c0_41] : memref<4x20x1xf32, #tpu.memory_space<vmem>>, vector<1x20x1xf32>
    %52 = vector.shape_cast %51 : vector<1x20x1xf32> to vector<20x1xf32>
    %53 = vector.broadcast %52 : vector<20x1xf32> to vector<20x128xf32>
    %54 = arith.addf %50, %53 : vector<20x128xf32>
    %cst_42 = arith.constant 0.000000e+00 : f32
    %55 = vector.broadcast %cst_42 : f32 to vector<20x128xf32>
    %56 = arith.maximumf %54, %55 : vector<20x128xf32>
    %cst_43 = arith.constant 0.000000e+00 : f32
    %57 = vector.broadcast %cst_43 : f32 to vector<4x5x128xf32>
    %c22 = arith.constant 22 : index
    %c0_44 = arith.constant 0 : index
    %c0_45 = arith.constant 0 : index
    %c0_46 = arith.constant 0 : index
    %58 = vector.load %arg9[%c22, %c0_44, %c0_45, %c0_46] : memref<36x4x5x128xf32, #tpu.memory_space<vmem>>, vector<1x4x5x128xf32>
    %59 = vector.shape_cast %58 : vector<1x4x5x128xf32> to vector<4x5x128xf32>
    %60 = vector.extract_strided_slice %56 {offsets = [0, 0], sizes = [5, 128], strides = [1, 1]} : vector<20x128xf32> to vector<5x128xf32>
    %61 = vector.shape_cast %60 : vector<5x128xf32> to vector<1x5x128xf32>
    %62 = vector.broadcast %61 : vector<1x5x128xf32> to vector<4x5x128xf32>
    %63 = arith.mulf %59, %62 : vector<4x5x128xf32>
    %64 = arith.addf %57, %63 : vector<4x5x128xf32>
    %c23 = arith.constant 23 : index
    %c0_47 = arith.constant 0 : index
    %c0_48 = arith.constant 0 : index
    %c0_49 = arith.constant 0 : index
    %65 = vector.load %arg9[%c23, %c0_47, %c0_48, %c0_49] : memref<36x4x5x128xf32, #tpu.memory_space<vmem>>, vector<1x4x5x128xf32>
    %66 = vector.shape_cast %65 : vector<1x4x5x128xf32> to vector<4x5x128xf32>
    %67 = vector.extract_strided_slice %56 {offsets = [5, 0], sizes = [5, 128], strides = [1, 1]} : vector<20x128xf32> to vector<5x128xf32>
    %68 = vector.shape_cast %67 : vector<5x128xf32> to vector<1x5x128xf32>
    %69 = vector.broadcast %68 : vector<1x5x128xf32> to vector<4x5x128xf32>
    %70 = arith.mulf %66, %69 : vector<4x5x128xf32>
    %71 = arith.addf %64, %70 : vector<4x5x128xf32>
    %c24 = arith.constant 24 : index
    %c0_50 = arith.constant 0 : index
    %c0_51 = arith.constant 0 : index
    %c0_52 = arith.constant 0 : index
    %72 = vector.load %arg9[%c24, %c0_50, %c0_51, %c0_52] : memref<36x4x5x128xf32, #tpu.memory_space<vmem>>, vector<1x4x5x128xf32>
    %73 = vector.shape_cast %72 : vector<1x4x5x128xf32> to vector<4x5x128xf32>
    %74 = vector.extract_strided_slice %56 {offsets = [10, 0], sizes = [5, 128], strides = [1, 1]} : vector<20x128xf32> to vector<5x128xf32>
    %75 = vector.shape_cast %74 : vector<5x128xf32> to vector<1x5x128xf32>
    %76 = vector.broadcast %75 : vector<1x5x128xf32> to vector<4x5x128xf32>
    %77 = arith.mulf %73, %76 : vector<4x5x128xf32>
    %78 = arith.addf %71, %77 : vector<4x5x128xf32>
    %c25 = arith.constant 25 : index
    %c0_53 = arith.constant 0 : index
    %c0_54 = arith.constant 0 : index
    %c0_55 = arith.constant 0 : index
    %79 = vector.load %arg9[%c25, %c0_53, %c0_54, %c0_55] : memref<36x4x5x128xf32, #tpu.memory_space<vmem>>, vector<1x4x5x128xf32>
    %80 = vector.shape_cast %79 : vector<1x4x5x128xf32> to vector<4x5x128xf32>
    %81 = vector.extract_strided_slice %56 {offsets = [15, 0], sizes = [5, 128], strides = [1, 1]} : vector<20x128xf32> to vector<5x128xf32>
    %82 = vector.shape_cast %81 : vector<5x128xf32> to vector<1x5x128xf32>
    %83 = vector.broadcast %82 : vector<1x5x128xf32> to vector<4x5x128xf32>
    %84 = arith.mulf %80, %83 : vector<4x5x128xf32>
    %85 = arith.addf %78, %84 : vector<4x5x128xf32>
    %cst_56 = arith.constant dense<0.000000e+00> : vector<4x5xf32>
    %86 = vector.multi_reduction <add>, %85, %cst_56 [2] : vector<4x5x128xf32> to vector<4x5xf32>
    %cst_57 = arith.constant dense<0.000000e+00> : vector<4xf32>
    %87 = vector.multi_reduction <add>, %86, %cst_57 [1] : vector<4x5xf32> to vector<4xf32>
    %88 = vector.shape_cast %87 : vector<4xf32> to vector<4x1xf32>
    %c2_58 = arith.constant 2 : index
    %c0_59 = arith.constant 0 : index
    %c0_60 = arith.constant 0 : index
    %89 = vector.load %arg10[%c2_58, %c0_59, %c0_60] : memref<4x4x1xf32, #tpu.memory_space<vmem>>, vector<1x4x1xf32>
    %90 = vector.shape_cast %89 : vector<1x4x1xf32> to vector<4x1xf32>
    %91 = arith.addf %88, %90 : vector<4x1xf32>
    %cst_61 = arith.constant 0.000000e+00 : f32
    %92 = vector.broadcast %cst_61 : f32 to vector<4x1xf32>
    %93 = arith.maximumf %91, %92 : vector<4x1xf32>
    %cst_62 = arith.constant 0.000000e+00 : f32
    %94 = vector.broadcast %cst_62 : f32 to vector<4x5x128xf32>
    %c21 = arith.constant 21 : index
    %c0_63 = arith.constant 0 : index
    %c0_64 = arith.constant 0 : index
    %c0_65 = arith.constant 0 : index
    %95 = vector.load %arg9[%c21, %c0_63, %c0_64, %c0_65] : memref<36x4x5x128xf32, #tpu.memory_space<vmem>>, vector<1x4x5x128xf32>
    %96 = vector.shape_cast %95 : vector<1x4x5x128xf32> to vector<4x5x128xf32>
    %97 = vector.extract_strided_slice %56 {offsets = [0, 0], sizes = [5, 128], strides = [1, 1]} : vector<20x128xf32> to vector<5x128xf32>
    %98 = vector.shape_cast %97 : vector<5x128xf32> to vector<1x5x128xf32>
    %99 = vector.broadcast %98 : vector<1x5x128xf32> to vector<4x5x128xf32>
    %100 = arith.mulf %96, %99 : vector<4x5x128xf32>
    %101 = arith.addf %94, %100 : vector<4x5x128xf32>
    %c22_66 = arith.constant 22 : index
    %c0_67 = arith.constant 0 : index
    %c0_68 = arith.constant 0 : index
    %c0_69 = arith.constant 0 : index
    %102 = vector.load %arg9[%c22_66, %c0_67, %c0_68, %c0_69] : memref<36x4x5x128xf32, #tpu.memory_space<vmem>>, vector<1x4x5x128xf32>
    %103 = vector.shape_cast %102 : vector<1x4x5x128xf32> to vector<4x5x128xf32>
    %104 = vector.extract_strided_slice %56 {offsets = [5, 0], sizes = [5, 128], strides = [1, 1]} : vector<20x128xf32> to vector<5x128xf32>
    %105 = vector.shape_cast %104 : vector<5x128xf32> to vector<1x5x128xf32>
    %106 = vector.broadcast %105 : vector<1x5x128xf32> to vector<4x5x128xf32>
    %107 = arith.mulf %103, %106 : vector<4x5x128xf32>
    %108 = arith.addf %101, %107 : vector<4x5x128xf32>
    %c23_70 = arith.constant 23 : index
    %c0_71 = arith.constant 0 : index
    %c0_72 = arith.constant 0 : index
    %c0_73 = arith.constant 0 : index
    %109 = vector.load %arg9[%c23_70, %c0_71, %c0_72, %c0_73] : memref<36x4x5x128xf32, #tpu.memory_space<vmem>>, vector<1x4x5x128xf32>
    %110 = vector.shape_cast %109 : vector<1x4x5x128xf32> to vector<4x5x128xf32>
    %111 = vector.extract_strided_slice %56 {offsets = [10, 0], sizes = [5, 128], strides = [1, 1]} : vector<20x128xf32> to vector<5x128xf32>
    %112 = vector.shape_cast %111 : vector<5x128xf32> to vector<1x5x128xf32>
    %113 = vector.broadcast %112 : vector<1x5x128xf32> to vector<4x5x128xf32>
    %114 = arith.mulf %110, %113 : vector<4x5x128xf32>
    %115 = arith.addf %108, %114 : vector<4x5x128xf32>
    %c24_74 = arith.constant 24 : index
    %c0_75 = arith.constant 0 : index
    %c0_76 = arith.constant 0 : index
    %c0_77 = arith.constant 0 : index
    %116 = vector.load %arg9[%c24_74, %c0_75, %c0_76, %c0_77] : memref<36x4x5x128xf32, #tpu.memory_space<vmem>>, vector<1x4x5x128xf32>
    %117 = vector.shape_cast %116 : vector<1x4x5x128xf32> to vector<4x5x128xf32>
    %118 = vector.extract_strided_slice %56 {offsets = [15, 0], sizes = [5, 128], strides = [1, 1]} : vector<20x128xf32> to vector<5x128xf32>
    %119 = vector.shape_cast %118 : vector<5x128xf32> to vector<1x5x128xf32>
    %120 = vector.broadcast %119 : vector<1x5x128xf32> to vector<4x5x128xf32>
    %121 = arith.mulf %117, %120 : vector<4x5x128xf32>
    %122 = arith.addf %115, %121 : vector<4x5x128xf32>
    %cst_78 = arith.constant dense<0.000000e+00> : vector<4x5xf32>
    %123 = vector.multi_reduction <add>, %122, %cst_78 [2] : vector<4x5x128xf32> to vector<4x5xf32>
    %cst_79 = arith.constant dense<0.000000e+00> : vector<4xf32>
    %124 = vector.multi_reduction <add>, %123, %cst_79 [1] : vector<4x5xf32> to vector<4xf32>
    %125 = vector.shape_cast %124 : vector<4xf32> to vector<4x1xf32>
    %c2_80 = arith.constant 2 : index
    %c0_81 = arith.constant 0 : index
    %c0_82 = arith.constant 0 : index
    %126 = vector.load %arg10[%c2_80, %c0_81, %c0_82] : memref<4x4x1xf32, #tpu.memory_space<vmem>>, vector<1x4x1xf32>
    %127 = vector.shape_cast %126 : vector<1x4x1xf32> to vector<4x1xf32>
    %128 = arith.addf %125, %127 : vector<4x1xf32>
    %cst_83 = arith.constant 0.000000e+00 : f32
    %129 = vector.broadcast %cst_83 : f32 to vector<4x1xf32>
    %130 = arith.maximumf %128, %129 : vector<4x1xf32>
    %cst_84 = arith.constant 0.000000e+00 : f32
    %131 = vector.broadcast %cst_84 : f32 to vector<4x5x128xf32>
    %c20 = arith.constant 20 : index
    %c0_85 = arith.constant 0 : index
    %c0_86 = arith.constant 0 : index
    %c0_87 = arith.constant 0 : index
    %132 = vector.load %arg9[%c20, %c0_85, %c0_86, %c0_87] : memref<36x4x5x128xf32, #tpu.memory_space<vmem>>, vector<1x4x5x128xf32>
    %133 = vector.shape_cast %132 : vector<1x4x5x128xf32> to vector<4x5x128xf32>
    %134 = vector.extract_strided_slice %56 {offsets = [0, 0], sizes = [5, 128], strides = [1, 1]} : vector<20x128xf32> to vector<5x128xf32>
    %135 = vector.shape_cast %134 : vector<5x128xf32> to vector<1x5x128xf32>
    %136 = vector.broadcast %135 : vector<1x5x128xf32> to vector<4x5x128xf32>
    %137 = arith.mulf %133, %136 : vector<4x5x128xf32>
    %138 = arith.addf %131, %137 : vector<4x5x128xf32>
    %c21_88 = arith.constant 21 : index
    %c0_89 = arith.constant 0 : index
    %c0_90 = arith.constant 0 : index
    %c0_91 = arith.constant 0 : index
    %139 = vector.load %arg9[%c21_88, %c0_89, %c0_90, %c0_91] : memref<36x4x5x128xf32, #tpu.memory_space<vmem>>, vector<1x4x5x128xf32>
    %140 = vector.shape_cast %139 : vector<1x4x5x128xf32> to vector<4x5x128xf32>
    %141 = vector.extract_strided_slice %56 {offsets = [5, 0], sizes = [5, 128], strides = [1, 1]} : vector<20x128xf32> to vector<5x128xf32>
    %142 = vector.shape_cast %141 : vector<5x128xf32> to vector<1x5x128xf32>
    %143 = vector.broadcast %142 : vector<1x5x128xf32> to vector<4x5x128xf32>
    %144 = arith.mulf %140, %143 : vector<4x5x128xf32>
    %145 = arith.addf %138, %144 : vector<4x5x128xf32>
    %c22_92 = arith.constant 22 : index
    %c0_93 = arith.constant 0 : index
    %c0_94 = arith.constant 0 : index
    %c0_95 = arith.constant 0 : index
    %146 = vector.load %arg9[%c22_92, %c0_93, %c0_94, %c0_95] : memref<36x4x5x128xf32, #tpu.memory_space<vmem>>, vector<1x4x5x128xf32>
    %147 = vector.shape_cast %146 : vector<1x4x5x128xf32> to vector<4x5x128xf32>
    %148 = vector.extract_strided_slice %56 {offsets = [10, 0], sizes = [5, 128], strides = [1, 1]} : vector<20x128xf32> to vector<5x128xf32>
    %149 = vector.shape_cast %148 : vector<5x128xf32> to vector<1x5x128xf32>
    %150 = vector.broadcast %149 : vector<1x5x128xf32> to vector<4x5x128xf32>
    %151 = arith.mulf %147, %150 : vector<4x5x128xf32>
    %152 = arith.addf %145, %151 : vector<4x5x128xf32>
    %c23_96 = arith.constant 23 : index
    %c0_97 = arith.constant 0 : index
    %c0_98 = arith.constant 0 : index
    %c0_99 = arith.constant 0 : index
    %153 = vector.load %arg9[%c23_96, %c0_97, %c0_98, %c0_99] : memref<36x4x5x128xf32, #tpu.memory_space<vmem>>, vector<1x4x5x128xf32>
    %154 = vector.shape_cast %153 : vector<1x4x5x128xf32> to vector<4x5x128xf32>
    %155 = vector.extract_strided_slice %56 {offsets = [15, 0], sizes = [5, 128], strides = [1, 1]} : vector<20x128xf32> to vector<5x128xf32>
    %156 = vector.shape_cast %155 : vector<5x128xf32> to vector<1x5x128xf32>
    %157 = vector.broadcast %156 : vector<1x5x128xf32> to vector<4x5x128xf32>
    %158 = arith.mulf %154, %157 : vector<4x5x128xf32>
    %159 = arith.addf %152, %158 : vector<4x5x128xf32>
    %cst_100 = arith.constant dense<0.000000e+00> : vector<4x5xf32>
    %160 = vector.multi_reduction <add>, %159, %cst_100 [2] : vector<4x5x128xf32> to vector<4x5xf32>
    %cst_101 = arith.constant dense<0.000000e+00> : vector<4xf32>
    %161 = vector.multi_reduction <add>, %160, %cst_101 [1] : vector<4x5xf32> to vector<4xf32>
    %162 = vector.shape_cast %161 : vector<4xf32> to vector<4x1xf32>
    %c2_102 = arith.constant 2 : index
    %c0_103 = arith.constant 0 : index
    %c0_104 = arith.constant 0 : index
    %163 = vector.load %arg10[%c2_102, %c0_103, %c0_104] : memref<4x4x1xf32, #tpu.memory_space<vmem>>, vector<1x4x1xf32>
    %164 = vector.shape_cast %163 : vector<1x4x1xf32> to vector<4x1xf32>
    %165 = arith.addf %162, %164 : vector<4x1xf32>
    %cst_105 = arith.constant 0.000000e+00 : f32
    %166 = vector.broadcast %cst_105 : f32 to vector<4x1xf32>
    %167 = arith.maximumf %165, %166 : vector<4x1xf32>
    %cst_106 = arith.constant 0.000000e+00 : f32
    %168 = vector.broadcast %cst_106 : f32 to vector<4x5x128xf32>
    %c19 = arith.constant 19 : index
    %c0_107 = arith.constant 0 : index
    %c0_108 = arith.constant 0 : index
    %c0_109 = arith.constant 0 : index
    %169 = vector.load %arg9[%c19, %c0_107, %c0_108, %c0_109] : memref<36x4x5x128xf32, #tpu.memory_space<vmem>>, vector<1x4x5x128xf32>
    %170 = vector.shape_cast %169 : vector<1x4x5x128xf32> to vector<4x5x128xf32>
    %171 = vector.extract_strided_slice %56 {offsets = [0, 0], sizes = [5, 128], strides = [1, 1]} : vector<20x128xf32> to vector<5x128xf32>
    %172 = vector.shape_cast %171 : vector<5x128xf32> to vector<1x5x128xf32>
    %173 = vector.broadcast %172 : vector<1x5x128xf32> to vector<4x5x128xf32>
    %174 = arith.mulf %170, %173 : vector<4x5x128xf32>
    %175 = arith.addf %168, %174 : vector<4x5x128xf32>
    %c20_110 = arith.constant 20 : index
    %c0_111 = arith.constant 0 : index
    %c0_112 = arith.constant 0 : index
    %c0_113 = arith.constant 0 : index
    %176 = vector.load %arg9[%c20_110, %c0_111, %c0_112, %c0_113] : memref<36x4x5x128xf32, #tpu.memory_space<vmem>>, vector<1x4x5x128xf32>
    %177 = vector.shape_cast %176 : vector<1x4x5x128xf32> to vector<4x5x128xf32>
    %178 = vector.extract_strided_slice %56 {offsets = [5, 0], sizes = [5, 128], strides = [1, 1]} : vector<20x128xf32> to vector<5x128xf32>
    %179 = vector.shape_cast %178 : vector<5x128xf32> to vector<1x5x128xf32>
    %180 = vector.broadcast %179 : vector<1x5x128xf32> to vector<4x5x128xf32>
    %181 = arith.mulf %177, %180 : vector<4x5x128xf32>
    %182 = arith.addf %175, %181 : vector<4x5x128xf32>
    %c21_114 = arith.constant 21 : index
    %c0_115 = arith.constant 0 : index
    %c0_116 = arith.constant 0 : index
    %c0_117 = arith.constant 0 : index
    %183 = vector.load %arg9[%c21_114, %c0_115, %c0_116, %c0_117] : memref<36x4x5x128xf32, #tpu.memory_space<vmem>>, vector<1x4x5x128xf32>
    %184 = vector.shape_cast %183 : vector<1x4x5x128xf32> to vector<4x5x128xf32>
    %185 = vector.extract_strided_slice %56 {offsets = [10, 0], sizes = [5, 128], strides = [1, 1]} : vector<20x128xf32> to vector<5x128xf32>
    %186 = vector.shape_cast %185 : vector<5x128xf32> to vector<1x5x128xf32>
    %187 = vector.broadcast %186 : vector<1x5x128xf32> to vector<4x5x128xf32>
    %188 = arith.mulf %184, %187 : vector<4x5x128xf32>
    %189 = arith.addf %182, %188 : vector<4x5x128xf32>
    %c22_118 = arith.constant 22 : index
    %c0_119 = arith.constant 0 : index
    %c0_120 = arith.constant 0 : index
    %c0_121 = arith.constant 0 : index
    %190 = vector.load %arg9[%c22_118, %c0_119, %c0_120, %c0_121] : memref<36x4x5x128xf32, #tpu.memory_space<vmem>>, vector<1x4x5x128xf32>
    %191 = vector.shape_cast %190 : vector<1x4x5x128xf32> to vector<4x5x128xf32>
    %192 = vector.extract_strided_slice %56 {offsets = [15, 0], sizes = [5, 128], strides = [1, 1]} : vector<20x128xf32> to vector<5x128xf32>
    %193 = vector.shape_cast %192 : vector<5x128xf32> to vector<1x5x128xf32>
    %194 = vector.broadcast %193 : vector<1x5x128xf32> to vector<4x5x128xf32>
    %195 = arith.mulf %191, %194 : vector<4x5x128xf32>
    %196 = arith.addf %189, %195 : vector<4x5x128xf32>
    %cst_122 = arith.constant dense<0.000000e+00> : vector<4x5xf32>
    %197 = vector.multi_reduction <add>, %196, %cst_122 [2] : vector<4x5x128xf32> to vector<4x5xf32>
    %cst_123 = arith.constant dense<0.000000e+00> : vector<4xf32>
    %198 = vector.multi_reduction <add>, %197, %cst_123 [1] : vector<4x5xf32> to vector<4xf32>
    %199 = vector.shape_cast %198 : vector<4xf32> to vector<4x1xf32>
    %c2_124 = arith.constant 2 : index
    %c0_125 = arith.constant 0 : index
    %c0_126 = arith.constant 0 : index
    %200 = vector.load %arg10[%c2_124, %c0_125, %c0_126] : memref<4x4x1xf32, #tpu.memory_space<vmem>>, vector<1x4x1xf32>
    %201 = vector.shape_cast %200 : vector<1x4x1xf32> to vector<4x1xf32>
    %202 = arith.addf %199, %201 : vector<4x1xf32>
    %cst_127 = arith.constant 0.000000e+00 : f32
    %203 = vector.broadcast %cst_127 : f32 to vector<4x1xf32>
    %204 = arith.maximumf %202, %203 : vector<4x1xf32>
    %205 = tpu.concatenate %93, %130, %167, %204 in 0 : vector<4x1xf32>, vector<4x1xf32>, vector<4x1xf32>, vector<4x1xf32> -> vector<16x1xf32>
    %206 = vector.broadcast %205 : vector<16x1xf32> to vector<16x128xf32>
    %207 = arith.mulf %206, %46 : vector<16x128xf32>
    %208 = arith.truncf %207 : vector<16x128xf32> to vector<16x128xbf16>
    %c2_128 = arith.constant 2 : index
    %c0_129 = arith.constant 0 : index
    %c0_130 = arith.constant 0 : index
    %209 = vector.load %arg11[%c2_128, %c0_129, %c0_130] : memref<4x128x128xbf16, #tpu.memory_space<vmem>>, vector<1x128x128xbf16>
    %210 = vector.shape_cast %209 : vector<1x128x128xbf16> to vector<128x128xbf16>
    %cst_131 = arith.constant dense<0.000000e+00> : vector<16x128xf32>
    %211 = tpu.matmul %208, %210, %cst_131 {dimension_numbers = #tpu.dot_dimension_numbers<[1], [0], [0], [1], [0, 0, 1, 1], [], []>} : vector<16x128xbf16>, vector<128x128xbf16>, vector<16x128xf32> -> vector<16x128xf32>
    %c2_132 = arith.constant 2 : index
    %c0_133 = arith.constant 0 : index
    %c0_134 = arith.constant 0 : index
    %212 = vector.load %arg12[%c2_132, %c0_133, %c0_134] : memref<4x16x16xbf16, #tpu.memory_space<vmem>>, vector<1x16x16xbf16>
    %213 = vector.shape_cast %212 : vector<1x16x16xbf16> to vector<16x16xbf16>
    %214 = arith.truncf %211 : vector<16x128xf32> to vector<16x128xbf16>
    %cst_135 = arith.constant dense<0.000000e+00> : vector<16x128xf32>
    %215 = tpu.matmul %213, %214, %cst_135 {dimension_numbers = #tpu.dot_dimension_numbers<[1], [0], [0], [1], [0, 0, 1, 1], [], []>} : vector<16x16xbf16>, vector<16x128xbf16>, vector<16x128xf32> -> vector<16x128xf32>
    %c2_136 = arith.constant 2 : index
    %c0_137 = arith.constant 0 : index
    %c0_138 = arith.constant 0 : index
    %216 = vector.load %arg13[%c2_136, %c0_137, %c0_138] : memref<4x16x16xbf16, #tpu.memory_space<vmem>>, vector<1x16x16xbf16>
    %217 = vector.shape_cast %216 : vector<1x16x16xbf16> to vector<16x16xbf16>
    %218 = arith.truncf %46 : vector<16x128xf32> to vector<16x128xbf16>
    %cst_139 = arith.constant dense<0.000000e+00> : vector<16x128xf32>
    %219 = tpu.matmul %217, %218, %cst_139 {dimension_numbers = #tpu.dot_dimension_numbers<[1], [0], [0], [1], [0, 0, 1, 1], [], []>} : vector<16x16xbf16>, vector<16x128xbf16>, vector<16x128xf32> -> vector<16x128xf32>
    %220 = arith.addf %215, %219 : vector<16x128xf32>
    %c2_140 = arith.constant 2 : index
    %c0_141 = arith.constant 0 : index
    %c0_142 = arith.constant 0 : index
    %221 = vector.load %arg14[%c2_140, %c0_141, %c0_142] : memref<4x16x1xf32, #tpu.memory_space<vmem>>, vector<1x16x1xf32>
    %222 = vector.shape_cast %221 : vector<1x16x1xf32> to vector<16x1xf32>
    %223 = vector.broadcast %222 : vector<16x1xf32> to vector<16x128xf32>
    %224 = arith.addf %220, %223 : vector<16x128xf32>
    %cst_143 = arith.constant 0.000000e+00 : f32
    %225 = vector.broadcast %cst_143 : f32 to vector<16x128xf32>
    %226 = arith.maximumf %224, %225 : vector<16x128xf32>
    %c1_144 = arith.constant 1 : index
    %c0_145 = arith.constant 0 : index
    %c0_146 = arith.constant 0 : index
    %227 = vector.load %arg15[%c1_144, %c0_145, %c0_146] : memref<2x16x80xbf16, #tpu.memory_space<vmem>>, vector<1x16x80xbf16>
    %228 = vector.shape_cast %227 : vector<1x16x80xbf16> to vector<16x80xbf16>
    %229 = arith.truncf %226 : vector<16x128xf32> to vector<16x128xbf16>
    %c1_147 = arith.constant 1 : index
    %c0_148 = arith.constant 0 : index
    %c0_149 = arith.constant 0 : index
    %230 = vector.load %arg2[%c1_147, %c0_148, %c0_149] : memref<7x128x128xbf16, #tpu.memory_space<vmem>>, vector<1x128x128xbf16>
    %231 = vector.shape_cast %230 : vector<1x128x128xbf16> to vector<128x128xbf16>
    %cst_150 = arith.constant dense<0.000000e+00> : vector<16x128xf32>
    %232 = tpu.matmul %229, %231, %cst_150 {dimension_numbers = #tpu.dot_dimension_numbers<[1], [0], [0], [1], [0, 0, 1, 1], [], []>} : vector<16x128xbf16>, vector<128x128xbf16>, vector<16x128xf32> -> vector<16x128xf32>
    %233 = arith.truncf %226 : vector<16x128xf32> to vector<16x128xbf16>
    %c2_151 = arith.constant 2 : index
    %c0_152 = arith.constant 0 : index
    %c0_153 = arith.constant 0 : index
    %234 = vector.load %arg2[%c2_151, %c0_152, %c0_153] : memref<7x128x128xbf16, #tpu.memory_space<vmem>>, vector<1x128x128xbf16>
    %235 = vector.shape_cast %234 : vector<1x128x128xbf16> to vector<128x128xbf16>
    %cst_154 = arith.constant dense<0.000000e+00> : vector<16x128xf32>
    %236 = tpu.matmul %233, %235, %cst_154 {dimension_numbers = #tpu.dot_dimension_numbers<[1], [0], [0], [1], [0, 0, 1, 1], [], []>} : vector<16x128xbf16>, vector<128x128xbf16>, vector<16x128xf32> -> vector<16x128xf32>
    %237 = arith.truncf %226 : vector<16x128xf32> to vector<16x128xbf16>
    %c3_155 = arith.constant 3 : index
    %c0_156 = arith.constant 0 : index
    %c0_157 = arith.constant 0 : index
    %238 = vector.load %arg2[%c3_155, %c0_156, %c0_157] : memref<7x128x128xbf16, #tpu.memory_space<vmem>>, vector<1x128x128xbf16>
    %239 = vector.shape_cast %238 : vector<1x128x128xbf16> to vector<128x128xbf16>
    %cst_158 = arith.constant dense<0.000000e+00> : vector<16x128xf32>
    %240 = tpu.matmul %237, %239, %cst_158 {dimension_numbers = #tpu.dot_dimension_numbers<[1], [0], [0], [1], [0, 0, 1, 1], [], []>} : vector<16x128xbf16>, vector<128x128xbf16>, vector<16x128xf32> -> vector<16x128xf32>
    %241 = arith.truncf %226 : vector<16x128xf32> to vector<16x128xbf16>
    %c4_159 = arith.constant 4 : index
    %c0_160 = arith.constant 0 : index
    %c0_161 = arith.constant 0 : index
    %242 = vector.load %arg2[%c4_159, %c0_160, %c0_161] : memref<7x128x128xbf16, #tpu.memory_space<vmem>>, vector<1x128x128xbf16>
    %243 = vector.shape_cast %242 : vector<1x128x128xbf16> to vector<128x128xbf16>
    %cst_162 = arith.constant dense<0.000000e+00> : vector<16x128xf32>
    %244 = tpu.matmul %241, %243, %cst_162 {dimension_numbers = #tpu.dot_dimension_numbers<[1], [0], [0], [1], [0, 0, 1, 1], [], []>} : vector<16x128xbf16>, vector<128x128xbf16>, vector<16x128xf32> -> vector<16x128xf32>
    %245 = arith.truncf %226 : vector<16x128xf32> to vector<16x128xbf16>
    %c5_163 = arith.constant 5 : index
    %c0_164 = arith.constant 0 : index
    %c0_165 = arith.constant 0 : index
    %246 = vector.load %arg2[%c5_163, %c0_164, %c0_165] : memref<7x128x128xbf16, #tpu.memory_space<vmem>>, vector<1x128x128xbf16>
    %247 = vector.shape_cast %246 : vector<1x128x128xbf16> to vector<128x128xbf16>
    %cst_166 = arith.constant dense<0.000000e+00> : vector<16x128xf32>
    %248 = tpu.matmul %245, %247, %cst_166 {dimension_numbers = #tpu.dot_dimension_numbers<[1], [0], [0], [1], [0, 0, 1, 1], [], []>} : vector<16x128xbf16>, vector<128x128xbf16>, vector<16x128xf32> -> vector<16x128xf32>
    %249 = tpu.concatenate %232, %236, %240, %244, %248 in 0 : vector<16x128xf32>, vector<16x128xf32>, vector<16x128xf32>, vector<16x128xf32>, vector<16x128xf32> -> vector<80x128xf32>
    %250 = arith.truncf %249 : vector<80x128xf32> to vector<80x128xbf16>
    %cst_167 = arith.constant dense<0.000000e+00> : vector<16x128xf32>
    %251 = tpu.matmul %228, %250, %cst_167 {dimension_numbers = #tpu.dot_dimension_numbers<[1], [0], [0], [1], [0, 0, 1, 1], [], []>} : vector<16x80xbf16>, vector<80x128xbf16>, vector<16x128xf32> -> vector<16x128xf32>
    %c1_168 = arith.constant 1 : index
    %c0_169 = arith.constant 0 : index
    %c0_170 = arith.constant 0 : index
    %252 = vector.load %arg16[%c1_168, %c0_169, %c0_170] : memref<2x16x1xf32, #tpu.memory_space<vmem>>, vector<1x16x1xf32>
    %253 = vector.shape_cast %252 : vector<1x16x1xf32> to vector<16x1xf32>
    %254 = vector.broadcast %253 : vector<16x1xf32> to vector<16x128xf32>
    %255 = arith.addf %251, %254 : vector<16x128xf32>
    %cst_171 = arith.constant 0.000000e+00 : f32
    %256 = vector.broadcast %cst_171 : f32 to vector<16x128xf32>
    %257 = arith.maximumf %255, %256 : vector<16x128xf32>
    %c1_172 = arith.constant 1 : index
    %c0_173 = arith.constant 0 : index
    %c0_174 = arith.constant 0 : index
    %258 = vector.load %arg17[%c1_172, %c0_173, %c0_174] : memref<2x16x16xbf16, #tpu.memory_space<vmem>>, vector<1x16x16xbf16>
    %259 = vector.shape_cast %258 : vector<1x16x16xbf16> to vector<16x16xbf16>
    %260 = arith.truncf %257 : vector<16x128xf32> to vector<16x128xbf16>
    %cst_175 = arith.constant dense<0.000000e+00> : vector<16x128xf32>
    %261 = tpu.matmul %259, %260, %cst_175 {dimension_numbers = #tpu.dot_dimension_numbers<[1], [0], [0], [1], [0, 0, 1, 1], [], []>} : vector<16x16xbf16>, vector<16x128xbf16>, vector<16x128xf32> -> vector<16x128xf32>
    %c1_176 = arith.constant 1 : index
    %c0_177 = arith.constant 0 : index
    %c0_178 = arith.constant 0 : index
    %262 = vector.load %arg18[%c1_176, %c0_177, %c0_178] : memref<2x16x1xf32, #tpu.memory_space<vmem>>, vector<1x16x1xf32>
    %263 = vector.shape_cast %262 : vector<1x16x1xf32> to vector<16x1xf32>
    %264 = vector.broadcast %263 : vector<16x1xf32> to vector<16x128xf32>
    %265 = arith.addf %261, %264 : vector<16x128xf32>
    %cst_179 = arith.constant 0.000000e+00 : f32
    %266 = vector.broadcast %cst_179 : f32 to vector<16x128xf32>
    %267 = arith.maximumf %265, %266 : vector<16x128xf32>
    %c1_180 = arith.constant 1 : index
    %c0_181 = arith.constant 0 : index
    %c0_182 = arith.constant 0 : index
    %268 = vector.load %arg19[%c1_180, %c0_181, %c0_182] : memref<2x16x80xbf16, #tpu.memory_space<vmem>>, vector<1x16x80xbf16>
    %269 = vector.shape_cast %268 : vector<1x16x80xbf16> to vector<16x80xbf16>
    %270 = arith.truncf %267 : vector<16x128xf32> to vector<16x128xbf16>
    %c1_183 = arith.constant 1 : index
    %c0_184 = arith.constant 0 : index
    %c0_185 = arith.constant 0 : index
    %271 = vector.load %arg2[%c1_183, %c0_184, %c0_185] : memref<7x128x128xbf16, #tpu.memory_space<vmem>>, vector<1x128x128xbf16>
    %272 = vector.shape_cast %271 : vector<1x128x128xbf16> to vector<128x128xbf16>
    %cst_186 = arith.constant dense<0.000000e+00> : vector<16x128xf32>
    %273 = tpu.matmul %270, %272, %cst_186 {dimension_numbers = #tpu.dot_dimension_numbers<[1], [0], [0], [1], [0, 0, 1, 1], [], []>} : vector<16x128xbf16>, vector<128x128xbf16>, vector<16x128xf32> -> vector<16x128xf32>
    %274 = arith.truncf %267 : vector<16x128xf32> to vector<16x128xbf16>
    %c2_187 = arith.constant 2 : index
    %c0_188 = arith.constant 0 : index
    %c0_189 = arith.constant 0 : index
    %275 = vector.load %arg2[%c2_187, %c0_188, %c0_189] : memref<7x128x128xbf16, #tpu.memory_space<vmem>>, vector<1x128x128xbf16>
    %276 = vector.shape_cast %275 : vector<1x128x128xbf16> to vector<128x128xbf16>
    %cst_190 = arith.constant dense<0.000000e+00> : vector<16x128xf32>
    %277 = tpu.matmul %274, %276, %cst_190 {dimension_numbers = #tpu.dot_dimension_numbers<[1], [0], [0], [1], [0, 0, 1, 1], [], []>} : vector<16x128xbf16>, vector<128x128xbf16>, vector<16x128xf32> -> vector<16x128xf32>
    %278 = arith.truncf %267 : vector<16x128xf32> to vector<16x128xbf16>
    %c3_191 = arith.constant 3 : index
    %c0_192 = arith.constant 0 : index
    %c0_193 = arith.constant 0 : index
    %279 = vector.load %arg2[%c3_191, %c0_192, %c0_193] : memref<7x128x128xbf16, #tpu.memory_space<vmem>>, vector<1x128x128xbf16>
    %280 = vector.shape_cast %279 : vector<1x128x128xbf16> to vector<128x128xbf16>
    %cst_194 = arith.constant dense<0.000000e+00> : vector<16x128xf32>
    %281 = tpu.matmul %278, %280, %cst_194 {dimension_numbers = #tpu.dot_dimension_numbers<[1], [0], [0], [1], [0, 0, 1, 1], [], []>} : vector<16x128xbf16>, vector<128x128xbf16>, vector<16x128xf32> -> vector<16x128xf32>
    %282 = arith.truncf %267 : vector<16x128xf32> to vector<16x128xbf16>
    %c4_195 = arith.constant 4 : index
    %c0_196 = arith.constant 0 : index
    %c0_197 = arith.constant 0 : index
    %283 = vector.load %arg2[%c4_195, %c0_196, %c0_197] : memref<7x128x128xbf16, #tpu.memory_space<vmem>>, vector<1x128x128xbf16>
    %284 = vector.shape_cast %283 : vector<1x128x128xbf16> to vector<128x128xbf16>
    %cst_198 = arith.constant dense<0.000000e+00> : vector<16x128xf32>
    %285 = tpu.matmul %282, %284, %cst_198 {dimension_numbers = #tpu.dot_dimension_numbers<[1], [0], [0], [1], [0, 0, 1, 1], [], []>} : vector<16x128xbf16>, vector<128x128xbf16>, vector<16x128xf32> -> vector<16x128xf32>
    %286 = arith.truncf %267 : vector<16x128xf32> to vector<16x128xbf16>
    %c5_199 = arith.constant 5 : index
    %c0_200 = arith.constant 0 : index
    %c0_201 = arith.constant 0 : index
    %287 = vector.load %arg2[%c5_199, %c0_200, %c0_201] : memref<7x128x128xbf16, #tpu.memory_space<vmem>>, vector<1x128x128xbf16>
    %288 = vector.shape_cast %287 : vector<1x128x128xbf16> to vector<128x128xbf16>
    %cst_202 = arith.constant dense<0.000000e+00> : vector<16x128xf32>
    %289 = tpu.matmul %286, %288, %cst_202 {dimension_numbers = #tpu.dot_dimension_numbers<[1], [0], [0], [1], [0, 0, 1, 1], [], []>} : vector<16x128xbf16>, vector<128x128xbf16>, vector<16x128xf32> -> vector<16x128xf32>
    %290 = tpu.concatenate %273, %277, %281, %285, %289 in 0 : vector<16x128xf32>, vector<16x128xf32>, vector<16x128xf32>, vector<16x128xf32>, vector<16x128xf32> -> vector<80x128xf32>
    %291 = arith.truncf %290 : vector<80x128xf32> to vector<80x128xbf16>
    %cst_203 = arith.constant dense<0.000000e+00> : vector<16x128xf32>
    %292 = tpu.matmul %269, %291, %cst_203 {dimension_numbers = #tpu.dot_dimension_numbers<[1], [0], [0], [1], [0, 0, 1, 1], [], []>} : vector<16x80xbf16>, vector<80x128xbf16>, vector<16x128xf32> -> vector<16x128xf32>
    %c1_204 = arith.constant 1 : index
    %c0_205 = arith.constant 0 : index
    %c0_206 = arith.constant 0 : index
    %293 = vector.load %arg20[%c1_204, %c0_205, %c0_206] : memref<2x16x1xf32, #tpu.memory_space<vmem>>, vector<1x16x1xf32>
    %294 = vector.shape_cast %293 : vector<1x16x1xf32> to vector<16x1xf32>
    %295 = vector.broadcast %294 : vector<16x1xf32> to vector<16x128xf32>
    %296 = arith.addf %292, %295 : vector<16x128xf32>
    %cst_207 = arith.constant 0.000000e+00 : f32
    %297 = vector.broadcast %cst_207 : f32 to vector<16x128xf32>
    %298 = arith.maximumf %296, %297 : vector<16x128xf32>
    %c3_208 = arith.constant 3 : index
    %c0_209 = arith.constant 0 : index
    %c0_210 = arith.constant 0 : index
    %299 = vector.load %arg7[%c3_208, %c0_209, %c0_210] : memref<4x20x16xbf16, #tpu.memory_space<vmem>>, vector<1x20x16xbf16>
    %300 = vector.shape_cast %299 : vector<1x20x16xbf16> to vector<20x16xbf16>
    %301 = arith.truncf %298 : vector<16x128xf32> to vector<16x128xbf16>
    %cst_211 = arith.constant dense<0.000000e+00> : vector<20x128xf32>
    %302 = tpu.matmul %300, %301, %cst_211 {dimension_numbers = #tpu.dot_dimension_numbers<[1], [0], [0], [1], [0, 0, 1, 1], [], []>} : vector<20x16xbf16>, vector<16x128xbf16>, vector<20x128xf32> -> vector<20x128xf32>
    %c3_212 = arith.constant 3 : index
    %c0_213 = arith.constant 0 : index
    %c0_214 = arith.constant 0 : index
    %303 = vector.load %arg8[%c3_212, %c0_213, %c0_214] : memref<4x20x1xf32, #tpu.memory_space<vmem>>, vector<1x20x1xf32>
    %304 = vector.shape_cast %303 : vector<1x20x1xf32> to vector<20x1xf32>
    %305 = vector.broadcast %304 : vector<20x1xf32> to vector<20x128xf32>
    %306 = arith.addf %302, %305 : vector<20x128xf32>
    %cst_215 = arith.constant 0.000000e+00 : f32
    %307 = vector.broadcast %cst_215 : f32 to vector<20x128xf32>
    %308 = arith.maximumf %306, %307 : vector<20x128xf32>
    %cst_216 = arith.constant 0.000000e+00 : f32
    %309 = vector.broadcast %cst_216 : f32 to vector<4x5x128xf32>
    %c31 = arith.constant 31 : index
    %c0_217 = arith.constant 0 : index
    %c0_218 = arith.constant 0 : index
    %c0_219 = arith.constant 0 : index
    %310 = vector.load %arg9[%c31, %c0_217, %c0_218, %c0_219] : memref<36x4x5x128xf32, #tpu.memory_space<vmem>>, vector<1x4x5x128xf32>
    %311 = vector.shape_cast %310 : vector<1x4x5x128xf32> to vector<4x5x128xf32>
    %312 = vector.extract_strided_slice %308 {offsets = [0, 0], sizes = [5, 128], strides = [1, 1]} : vector<20x128xf32> to vector<5x128xf32>
    %313 = vector.shape_cast %312 : vector<5x128xf32> to vector<1x5x128xf32>
    %314 = vector.broadcast %313 : vector<1x5x128xf32> to vector<4x5x128xf32>
    %315 = arith.mulf %311, %314 : vector<4x5x128xf32>
    %316 = arith.addf %309, %315 : vector<4x5x128xf32>
    %c32 = arith.constant 32 : index
    %c0_220 = arith.constant 0 : index
    %c0_221 = arith.constant 0 : index
    %c0_222 = arith.constant 0 : index
    %317 = vector.load %arg9[%c32, %c0_220, %c0_221, %c0_222] : memref<36x4x5x128xf32, #tpu.memory_space<vmem>>, vector<1x4x5x128xf32>
    %318 = vector.shape_cast %317 : vector<1x4x5x128xf32> to vector<4x5x128xf32>
    %319 = vector.extract_strided_slice %308 {offsets = [5, 0], sizes = [5, 128], strides = [1, 1]} : vector<20x128xf32> to vector<5x128xf32>
    %320 = vector.shape_cast %319 : vector<5x128xf32> to vector<1x5x128xf32>
    %321 = vector.broadcast %320 : vector<1x5x128xf32> to vector<4x5x128xf32>
    %322 = arith.mulf %318, %321 : vector<4x5x128xf32>
    %323 = arith.addf %316, %322 : vector<4x5x128xf32>
    %c33 = arith.constant 33 : index
    %c0_223 = arith.constant 0 : index
    %c0_224 = arith.constant 0 : index
    %c0_225 = arith.constant 0 : index
    %324 = vector.load %arg9[%c33, %c0_223, %c0_224, %c0_225] : memref<36x4x5x128xf32, #tpu.memory_space<vmem>>, vector<1x4x5x128xf32>
    %325 = vector.shape_cast %324 : vector<1x4x5x128xf32> to vector<4x5x128xf32>
    %326 = vector.extract_strided_slice %308 {offsets = [10, 0], sizes = [5, 128], strides = [1, 1]} : vector<20x128xf32> to vector<5x128xf32>
    %327 = vector.shape_cast %326 : vector<5x128xf32> to vector<1x5x128xf32>
    %328 = vector.broadcast %327 : vector<1x5x128xf32> to vector<4x5x128xf32>
    %329 = arith.mulf %325, %328 : vector<4x5x128xf32>
    %330 = arith.addf %323, %329 : vector<4x5x128xf32>
    %c34 = arith.constant 34 : index
    %c0_226 = arith.constant 0 : index
    %c0_227 = arith.constant 0 : index
    %c0_228 = arith.constant 0 : index
    %331 = vector.load %arg9[%c34, %c0_226, %c0_227, %c0_228] : memref<36x4x5x128xf32, #tpu.memory_space<vmem>>, vector<1x4x5x128xf32>
    %332 = vector.shape_cast %331 : vector<1x4x5x128xf32> to vector<4x5x128xf32>
    %333 = vector.extract_strided_slice %308 {offsets = [15, 0], sizes = [5, 128], strides = [1, 1]} : vector<20x128xf32> to vector<5x128xf32>
    %334 = vector.shape_cast %333 : vector<5x128xf32> to vector<1x5x128xf32>
    %335 = vector.broadcast %334 : vector<1x5x128xf32> to vector<4x5x128xf32>
    %336 = arith.mulf %332, %335 : vector<4x5x128xf32>
    %337 = arith.addf %330, %336 : vector<4x5x128xf32>
    %cst_229 = arith.constant dense<0.000000e+00> : vector<4x5xf32>
    %338 = vector.multi_reduction <add>, %337, %cst_229 [2] : vector<4x5x128xf32> to vector<4x5xf32>
    %cst_230 = arith.constant dense<0.000000e+00> : vector<4xf32>
    %339 = vector.multi_reduction <add>, %338, %cst_230 [1] : vector<4x5xf32> to vector<4xf32>
    %340 = vector.shape_cast %339 : vector<4xf32> to vector<4x1xf32>
    %c3_231 = arith.constant 3 : index
    %c0_232 = arith.constant 0 : index
    %c0_233 = arith.constant 0 : index
    %341 = vector.load %arg10[%c3_231, %c0_232, %c0_233] : memref<4x4x1xf32, #tpu.memory_space<vmem>>, vector<1x4x1xf32>
    %342 = vector.shape_cast %341 : vector<1x4x1xf32> to vector<4x1xf32>
    %343 = arith.addf %340, %342 : vector<4x1xf32>
    %cst_234 = arith.constant 0.000000e+00 : f32
    %344 = vector.broadcast %cst_234 : f32 to vector<4x1xf32>
    %345 = arith.maximumf %343, %344 : vector<4x1xf32>
    %cst_235 = arith.constant 0.000000e+00 : f32
    %346 = vector.broadcast %cst_235 : f32 to vector<4x5x128xf32>
    %c30 = arith.constant 30 : index
    %c0_236 = arith.constant 0 : index
    %c0_237 = arith.constant 0 : index
    %c0_238 = arith.constant 0 : index
    %347 = vector.load %arg9[%c30, %c0_236, %c0_237, %c0_238] : memref<36x4x5x128xf32, #tpu.memory_space<vmem>>, vector<1x4x5x128xf32>
    %348 = vector.shape_cast %347 : vector<1x4x5x128xf32> to vector<4x5x128xf32>
    %349 = vector.extract_strided_slice %308 {offsets = [0, 0], sizes = [5, 128], strides = [1, 1]} : vector<20x128xf32> to vector<5x128xf32>
    %350 = vector.shape_cast %349 : vector<5x128xf32> to vector<1x5x128xf32>
    %351 = vector.broadcast %350 : vector<1x5x128xf32> to vector<4x5x128xf32>
    %352 = arith.mulf %348, %351 : vector<4x5x128xf32>
    %353 = arith.addf %346, %352 : vector<4x5x128xf32>
    %c31_239 = arith.constant 31 : index
    %c0_240 = arith.constant 0 : index
    %c0_241 = arith.constant 0 : index
    %c0_242 = arith.constant 0 : index
    %354 = vector.load %arg9[%c31_239, %c0_240, %c0_241, %c0_242] : memref<36x4x5x128xf32, #tpu.memory_space<vmem>>, vector<1x4x5x128xf32>
    %355 = vector.shape_cast %354 : vector<1x4x5x128xf32> to vector<4x5x128xf32>
    %356 = vector.extract_strided_slice %308 {offsets = [5, 0], sizes = [5, 128], strides = [1, 1]} : vector<20x128xf32> to vector<5x128xf32>
    %357 = vector.shape_cast %356 : vector<5x128xf32> to vector<1x5x128xf32>
    %358 = vector.broadcast %357 : vector<1x5x128xf32> to vector<4x5x128xf32>
    %359 = arith.mulf %355, %358 : vector<4x5x128xf32>
    %360 = arith.addf %353, %359 : vector<4x5x128xf32>
    %c32_243 = arith.constant 32 : index
    %c0_244 = arith.constant 0 : index
    %c0_245 = arith.constant 0 : index
    %c0_246 = arith.constant 0 : index
    %361 = vector.load %arg9[%c32_243, %c0_244, %c0_245, %c0_246] : memref<36x4x5x128xf32, #tpu.memory_space<vmem>>, vector<1x4x5x128xf32>
    %362 = vector.shape_cast %361 : vector<1x4x5x128xf32> to vector<4x5x128xf32>
    %363 = vector.extract_strided_slice %308 {offsets = [10, 0], sizes = [5, 128], strides = [1, 1]} : vector<20x128xf32> to vector<5x128xf32>
    %364 = vector.shape_cast %363 : vector<5x128xf32> to vector<1x5x128xf32>
    %365 = vector.broadcast %364 : vector<1x5x128xf32> to vector<4x5x128xf32>
    %366 = arith.mulf %362, %365 : vector<4x5x128xf32>
    %367 = arith.addf %360, %366 : vector<4x5x128xf32>
    %c33_247 = arith.constant 33 : index
    %c0_248 = arith.constant 0 : index
    %c0_249 = arith.constant 0 : index
    %c0_250 = arith.constant 0 : index
    %368 = vector.load %arg9[%c33_247, %c0_248, %c0_249, %c0_250] : memref<36x4x5x128xf32, #tpu.memory_space<vmem>>, vector<1x4x5x128xf32>
    %369 = vector.shape_cast %368 : vector<1x4x5x128xf32> to vector<4x5x128xf32>
    %370 = vector.extract_strided_slice %308 {offsets = [15, 0], sizes = [5, 128], strides = [1, 1]} : vector<20x128xf32> to vector<5x128xf32>
    %371 = vector.shape_cast %370 : vector<5x128xf32> to vector<1x5x128xf32>
    %372 = vector.broadcast %371 : vector<1x5x128xf32> to vector<4x5x128xf32>
    %373 = arith.mulf %369, %372 : vector<4x5x128xf32>
    %374 = arith.addf %367, %373 : vector<4x5x128xf32>
    %cst_251 = arith.constant dense<0.000000e+00> : vector<4x5xf32>
    %375 = vector.multi_reduction <add>, %374, %cst_251 [2] : vector<4x5x128xf32> to vector<4x5xf32>
    %cst_252 = arith.constant dense<0.000000e+00> : vector<4xf32>
    %376 = vector.multi_reduction <add>, %375, %cst_252 [1] : vector<4x5xf32> to vector<4xf32>
    %377 = vector.shape_cast %376 : vector<4xf32> to vector<4x1xf32>
    %c3_253 = arith.constant 3 : index
    %c0_254 = arith.constant 0 : index
    %c0_255 = arith.constant 0 : index
    %378 = vector.load %arg10[%c3_253, %c0_254, %c0_255] : memref<4x4x1xf32, #tpu.memory_space<vmem>>, vector<1x4x1xf32>
    %379 = vector.shape_cast %378 : vector<1x4x1xf32> to vector<4x1xf32>
    %380 = arith.addf %377, %379 : vector<4x1xf32>
    %cst_256 = arith.constant 0.000000e+00 : f32
    %381 = vector.broadcast %cst_256 : f32 to vector<4x1xf32>
    %382 = arith.maximumf %380, %381 : vector<4x1xf32>
    %cst_257 = arith.constant 0.000000e+00 : f32
    %383 = vector.broadcast %cst_257 : f32 to vector<4x5x128xf32>
    %c29 = arith.constant 29 : index
    %c0_258 = arith.constant 0 : index
    %c0_259 = arith.constant 0 : index
    %c0_260 = arith.constant 0 : index
    %384 = vector.load %arg9[%c29, %c0_258, %c0_259, %c0_260] : memref<36x4x5x128xf32, #tpu.memory_space<vmem>>, vector<1x4x5x128xf32>
    %385 = vector.shape_cast %384 : vector<1x4x5x128xf32> to vector<4x5x128xf32>
    %386 = vector.extract_strided_slice %308 {offsets = [0, 0], sizes = [5, 128], strides = [1, 1]} : vector<20x128xf32> to vector<5x128xf32>
    %387 = vector.shape_cast %386 : vector<5x128xf32> to vector<1x5x128xf32>
    %388 = vector.broadcast %387 : vector<1x5x128xf32> to vector<4x5x128xf32>
    %389 = arith.mulf %385, %388 : vector<4x5x128xf32>
    %390 = arith.addf %383, %389 : vector<4x5x128xf32>
    %c30_261 = arith.constant 30 : index
    %c0_262 = arith.constant 0 : index
    %c0_263 = arith.constant 0 : index
    %c0_264 = arith.constant 0 : index
    %391 = vector.load %arg9[%c30_261, %c0_262, %c0_263, %c0_264] : memref<36x4x5x128xf32, #tpu.memory_space<vmem>>, vector<1x4x5x128xf32>
    %392 = vector.shape_cast %391 : vector<1x4x5x128xf32> to vector<4x5x128xf32>
    %393 = vector.extract_strided_slice %308 {offsets = [5, 0], sizes = [5, 128], strides = [1, 1]} : vector<20x128xf32> to vector<5x128xf32>
    %394 = vector.shape_cast %393 : vector<5x128xf32> to vector<1x5x128xf32>
    %395 = vector.broadcast %394 : vector<1x5x128xf32> to vector<4x5x128xf32>
    %396 = arith.mulf %392, %395 : vector<4x5x128xf32>
    %397 = arith.addf %390, %396 : vector<4x5x128xf32>
    %c31_265 = arith.constant 31 : index
    %c0_266 = arith.constant 0 : index
    %c0_267 = arith.constant 0 : index
    %c0_268 = arith.constant 0 : index
    %398 = vector.load %arg9[%c31_265, %c0_266, %c0_267, %c0_268] : memref<36x4x5x128xf32, #tpu.memory_space<vmem>>, vector<1x4x5x128xf32>
    %399 = vector.shape_cast %398 : vector<1x4x5x128xf32> to vector<4x5x128xf32>
    %400 = vector.extract_strided_slice %308 {offsets = [10, 0], sizes = [5, 128], strides = [1, 1]} : vector<20x128xf32> to vector<5x128xf32>
    %401 = vector.shape_cast %400 : vector<5x128xf32> to vector<1x5x128xf32>
    %402 = vector.broadcast %401 : vector<1x5x128xf32> to vector<4x5x128xf32>
    %403 = arith.mulf %399, %402 : vector<4x5x128xf32>
    %404 = arith.addf %397, %403 : vector<4x5x128xf32>
    %c32_269 = arith.constant 32 : index
    %c0_270 = arith.constant 0 : index
    %c0_271 = arith.constant 0 : index
    %c0_272 = arith.constant 0 : index
    %405 = vector.load %arg9[%c32_269, %c0_270, %c0_271, %c0_272] : memref<36x4x5x128xf32, #tpu.memory_space<vmem>>, vector<1x4x5x128xf32>
    %406 = vector.shape_cast %405 : vector<1x4x5x128xf32> to vector<4x5x128xf32>
    %407 = vector.extract_strided_slice %308 {offsets = [15, 0], sizes = [5, 128], strides = [1, 1]} : vector<20x128xf32> to vector<5x128xf32>
    %408 = vector.shape_cast %407 : vector<5x128xf32> to vector<1x5x128xf32>
    %409 = vector.broadcast %408 : vector<1x5x128xf32> to vector<4x5x128xf32>
    %410 = arith.mulf %406, %409 : vector<4x5x128xf32>
    %411 = arith.addf %404, %410 : vector<4x5x128xf32>
    %cst_273 = arith.constant dense<0.000000e+00> : vector<4x5xf32>
    %412 = vector.multi_reduction <add>, %411, %cst_273 [2] : vector<4x5x128xf32> to vector<4x5xf32>
    %cst_274 = arith.constant dense<0.000000e+00> : vector<4xf32>
    %413 = vector.multi_reduction <add>, %412, %cst_274 [1] : vector<4x5xf32> to vector<4xf32>
    %414 = vector.shape_cast %413 : vector<4xf32> to vector<4x1xf32>
    %c3_275 = arith.constant 3 : index
    %c0_276 = arith.constant 0 : index
    %c0_277 = arith.constant 0 : index
    %415 = vector.load %arg10[%c3_275, %c0_276, %c0_277] : memref<4x4x1xf32, #tpu.memory_space<vmem>>, vector<1x4x1xf32>
    %416 = vector.shape_cast %415 : vector<1x4x1xf32> to vector<4x1xf32>
    %417 = arith.addf %414, %416 : vector<4x1xf32>
    %cst_278 = arith.constant 0.000000e+00 : f32
    %418 = vector.broadcast %cst_278 : f32 to vector<4x1xf32>
    %419 = arith.maximumf %417, %418 : vector<4x1xf32>
    %cst_279 = arith.constant 0.000000e+00 : f32
    %420 = vector.broadcast %cst_279 : f32 to vector<4x5x128xf32>
    %c28 = arith.constant 28 : index
    %c0_280 = arith.constant 0 : index
    %c0_281 = arith.constant 0 : index
    %c0_282 = arith.constant 0 : index
    %421 = vector.load %arg9[%c28, %c0_280, %c0_281, %c0_282] : memref<36x4x5x128xf32, #tpu.memory_space<vmem>>, vector<1x4x5x128xf32>
    %422 = vector.shape_cast %421 : vector<1x4x5x128xf32> to vector<4x5x128xf32>
    %423 = vector.extract_strided_slice %308 {offsets = [0, 0], sizes = [5, 128], strides = [1, 1]} : vector<20x128xf32> to vector<5x128xf32>
    %424 = vector.shape_cast %423 : vector<5x128xf32> to vector<1x5x128xf32>
    %425 = vector.broadcast %424 : vector<1x5x128xf32> to vector<4x5x128xf32>
    %426 = arith.mulf %422, %425 : vector<4x5x128xf32>
    %427 = arith.addf %420, %426 : vector<4x5x128xf32>
    %c29_283 = arith.constant 29 : index
    %c0_284 = arith.constant 0 : index
    %c0_285 = arith.constant 0 : index
    %c0_286 = arith.constant 0 : index
    %428 = vector.load %arg9[%c29_283, %c0_284, %c0_285, %c0_286] : memref<36x4x5x128xf32, #tpu.memory_space<vmem>>, vector<1x4x5x128xf32>
    %429 = vector.shape_cast %428 : vector<1x4x5x128xf32> to vector<4x5x128xf32>
    %430 = vector.extract_strided_slice %308 {offsets = [5, 0], sizes = [5, 128], strides = [1, 1]} : vector<20x128xf32> to vector<5x128xf32>
    %431 = vector.shape_cast %430 : vector<5x128xf32> to vector<1x5x128xf32>
    %432 = vector.broadcast %431 : vector<1x5x128xf32> to vector<4x5x128xf32>
    %433 = arith.mulf %429, %432 : vector<4x5x128xf32>
    %434 = arith.addf %427, %433 : vector<4x5x128xf32>
    %c30_287 = arith.constant 30 : index
    %c0_288 = arith.constant 0 : index
    %c0_289 = arith.constant 0 : index
    %c0_290 = arith.constant 0 : index
    %435 = vector.load %arg9[%c30_287, %c0_288, %c0_289, %c0_290] : memref<36x4x5x128xf32, #tpu.memory_space<vmem>>, vector<1x4x5x128xf32>
    %436 = vector.shape_cast %435 : vector<1x4x5x128xf32> to vector<4x5x128xf32>
    %437 = vector.extract_strided_slice %308 {offsets = [10, 0], sizes = [5, 128], strides = [1, 1]} : vector<20x128xf32> to vector<5x128xf32>
    %438 = vector.shape_cast %437 : vector<5x128xf32> to vector<1x5x128xf32>
    %439 = vector.broadcast %438 : vector<1x5x128xf32> to vector<4x5x128xf32>
    %440 = arith.mulf %436, %439 : vector<4x5x128xf32>
    %441 = arith.addf %434, %440 : vector<4x5x128xf32>
    %c31_291 = arith.constant 31 : index
    %c0_292 = arith.constant 0 : index
    %c0_293 = arith.constant 0 : index
    %c0_294 = arith.constant 0 : index
    %442 = vector.load %arg9[%c31_291, %c0_292, %c0_293, %c0_294] : memref<36x4x5x128xf32, #tpu.memory_space<vmem>>, vector<1x4x5x128xf32>
    %443 = vector.shape_cast %442 : vector<1x4x5x128xf32> to vector<4x5x128xf32>
    %444 = vector.extract_strided_slice %308 {offsets = [15, 0], sizes = [5, 128], strides = [1, 1]} : vector<20x128xf32> to vector<5x128xf32>
    %445 = vector.shape_cast %444 : vector<5x128xf32> to vector<1x5x128xf32>
    %446 = vector.broadcast %445 : vector<1x5x128xf32> to vector<4x5x128xf32>
    %447 = arith.mulf %443, %446 : vector<4x5x128xf32>
    %448 = arith.addf %441, %447 : vector<4x5x128xf32>
    %cst_295 = arith.constant dense<0.000000e+00> : vector<4x5xf32>
    %449 = vector.multi_reduction <add>, %448, %cst_295 [2] : vector<4x5x128xf32> to vector<4x5xf32>
    %cst_296 = arith.constant dense<0.000000e+00> : vector<4xf32>
    %450 = vector.multi_reduction <add>, %449, %cst_296 [1] : vector<4x5xf32> to vector<4xf32>
    %451 = vector.shape_cast %450 : vector<4xf32> to vector<4x1xf32>
    %c3_297 = arith.constant 3 : index
    %c0_298 = arith.constant 0 : index
    %c0_299 = arith.constant 0 : index
    %452 = vector.load %arg10[%c3_297, %c0_298, %c0_299] : memref<4x4x1xf32, #tpu.memory_space<vmem>>, vector<1x4x1xf32>
    %453 = vector.shape_cast %452 : vector<1x4x1xf32> to vector<4x1xf32>
    %454 = arith.addf %451, %453 : vector<4x1xf32>
    %cst_300 = arith.constant 0.000000e+00 : f32
    %455 = vector.broadcast %cst_300 : f32 to vector<4x1xf32>
    %456 = arith.maximumf %454, %455 : vector<4x1xf32>
    %457 = tpu.concatenate %345, %382, %419, %456 in 0 : vector<4x1xf32>, vector<4x1xf32>, vector<4x1xf32>, vector<4x1xf32> -> vector<16x1xf32>
    %458 = vector.broadcast %457 : vector<16x1xf32> to vector<16x128xf32>
    %459 = arith.mulf %458, %298 : vector<16x128xf32>
    %460 = arith.truncf %459 : vector<16x128xf32> to vector<16x128xbf16>
    %c3_301 = arith.constant 3 : index
    %c0_302 = arith.constant 0 : index
    %c0_303 = arith.constant 0 : index
    %461 = vector.load %arg11[%c3_301, %c0_302, %c0_303] : memref<4x128x128xbf16, #tpu.memory_space<vmem>>, vector<1x128x128xbf16>
    %462 = vector.shape_cast %461 : vector<1x128x128xbf16> to vector<128x128xbf16>
    %cst_304 = arith.constant dense<0.000000e+00> : vector<16x128xf32>
    %463 = tpu.matmul %460, %462, %cst_304 {dimension_numbers = #tpu.dot_dimension_numbers<[1], [0], [0], [1], [0, 0, 1, 1], [], []>} : vector<16x128xbf16>, vector<128x128xbf16>, vector<16x128xf32> -> vector<16x128xf32>
    %c3_305 = arith.constant 3 : index
    %c0_306 = arith.constant 0 : index
    %c0_307 = arith.constant 0 : index
    %464 = vector.load %arg12[%c3_305, %c0_306, %c0_307] : memref<4x16x16xbf16, #tpu.memory_space<vmem>>, vector<1x16x16xbf16>
    %465 = vector.shape_cast %464 : vector<1x16x16xbf16> to vector<16x16xbf16>
    %466 = arith.truncf %463 : vector<16x128xf32> to vector<16x128xbf16>
    %cst_308 = arith.constant dense<0.000000e+00> : vector<16x128xf32>
    %467 = tpu.matmul %465, %466, %cst_308 {dimension_numbers = #tpu.dot_dimension_numbers<[1], [0], [0], [1], [0, 0, 1, 1], [], []>} : vector<16x16xbf16>, vector<16x128xbf16>, vector<16x128xf32> -> vector<16x128xf32>
    %c3_309 = arith.constant 3 : index
    %c0_310 = arith.constant 0 : index
    %c0_311 = arith.constant 0 : index
    %468 = vector.load %arg13[%c3_309, %c0_310, %c0_311] : memref<4x16x16xbf16, #tpu.memory_space<vmem>>, vector<1x16x16xbf16>
    %469 = vector.shape_cast %468 : vector<1x16x16xbf16> to vector<16x16xbf16>
    %470 = arith.truncf %298 : vector<16x128xf32> to vector<16x128xbf16>
    %cst_312 = arith.constant dense<0.000000e+00> : vector<16x128xf32>
    %471 = tpu.matmul %469, %470, %cst_312 {dimension_numbers = #tpu.dot_dimension_numbers<[1], [0], [0], [1], [0, 0, 1, 1], [], []>} : vector<16x16xbf16>, vector<16x128xbf16>, vector<16x128xf32> -> vector<16x128xf32>
    %472 = arith.addf %467, %471 : vector<16x128xf32>
    %c3_313 = arith.constant 3 : index
    %c0_314 = arith.constant 0 : index
    %c0_315 = arith.constant 0 : index
    %473 = vector.load %arg14[%c3_313, %c0_314, %c0_315] : memref<4x16x1xf32, #tpu.memory_space<vmem>>, vector<1x16x1xf32>
    %474 = vector.shape_cast %473 : vector<1x16x1xf32> to vector<16x1xf32>
    %475 = vector.broadcast %474 : vector<16x1xf32> to vector<16x128xf32>
    %476 = arith.addf %472, %475 : vector<16x128xf32>
    %cst_316 = arith.constant 0.000000e+00 : f32
    %477 = vector.broadcast %cst_316 : f32 to vector<16x128xf32>
    %478 = arith.maximumf %476, %477 : vector<16x128xf32>
    %c0_317 = arith.constant 0 : index
    %c0_318 = arith.constant 0 : index
    %479 = vector.load %arg22[%c0_317, %c0_318] : memref<1x100xf32, #tpu.memory_space<vmem>>, vector<1x100xf32>
    %480 = vector.extract_strided_slice %478 {offsets = [0, 0], sizes = [1, 128], strides = [1, 1]} : vector<16x128xf32> to vector<1x128xf32>
    %481 = arith.truncf %480 : vector<1x128xf32> to vector<1x128xbf16>
    %c0_319 = arith.constant 0 : index
    %c0_320 = arith.constant 0 : index
    %c0_321 = arith.constant 0 : index
    %482 = vector.load %arg21[%c0_319, %c0_320, %c0_321] : memref<16x128x100xbf16, #tpu.memory_space<vmem>>, vector<1x128x100xbf16>
    %483 = vector.shape_cast %482 : vector<1x128x100xbf16> to vector<128x100xbf16>
    %cst_322 = arith.constant dense<0.000000e+00> : vector<1x100xf32>
    %484 = tpu.matmul %481, %483, %cst_322 {dimension_numbers = #tpu.dot_dimension_numbers<[1], [0], [0], [1], [0, 0, 1, 1], [], []>} : vector<1x128xbf16>, vector<128x100xbf16>, vector<1x100xf32> -> vector<1x100xf32>
    %485 = arith.addf %479, %484 : vector<1x100xf32>
    %486 = vector.extract_strided_slice %478 {offsets = [1, 0], sizes = [1, 128], strides = [1, 1]} : vector<16x128xf32> to vector<1x128xf32>
    %487 = arith.truncf %486 : vector<1x128xf32> to vector<1x128xbf16>
    %c1_323 = arith.constant 1 : index
    %c0_324 = arith.constant 0 : index
    %c0_325 = arith.constant 0 : index
    %488 = vector.load %arg21[%c1_323, %c0_324, %c0_325] : memref<16x128x100xbf16, #tpu.memory_space<vmem>>, vector<1x128x100xbf16>
    %489 = vector.shape_cast %488 : vector<1x128x100xbf16> to vector<128x100xbf16>
    %cst_326 = arith.constant dense<0.000000e+00> : vector<1x100xf32>
    %490 = tpu.matmul %487, %489, %cst_326 {dimension_numbers = #tpu.dot_dimension_numbers<[1], [0], [0], [1], [0, 0, 1, 1], [], []>} : vector<1x128xbf16>, vector<128x100xbf16>, vector<1x100xf32> -> vector<1x100xf32>
    %491 = arith.addf %485, %490 : vector<1x100xf32>
    %492 = vector.extract_strided_slice %478 {offsets = [2, 0], sizes = [1, 128], strides = [1, 1]} : vector<16x128xf32> to vector<1x128xf32>
    %493 = arith.truncf %492 : vector<1x128xf32> to vector<1x128xbf16>
    %c2_327 = arith.constant 2 : index
    %c0_328 = arith.constant 0 : index
    %c0_329 = arith.constant 0 : index
    %494 = vector.load %arg21[%c2_327, %c0_328, %c0_329] : memref<16x128x100xbf16, #tpu.memory_space<vmem>>, vector<1x128x100xbf16>
    %495 = vector.shape_cast %494 : vector<1x128x100xbf16> to vector<128x100xbf16>
    %cst_330 = arith.constant dense<0.000000e+00> : vector<1x100xf32>
    %496 = tpu.matmul %493, %495, %cst_330 {dimension_numbers = #tpu.dot_dimension_numbers<[1], [0], [0], [1], [0, 0, 1, 1], [], []>} : vector<1x128xbf16>, vector<128x100xbf16>, vector<1x100xf32> -> vector<1x100xf32>
    %497 = arith.addf %491, %496 : vector<1x100xf32>
    %498 = vector.extract_strided_slice %478 {offsets = [3, 0], sizes = [1, 128], strides = [1, 1]} : vector<16x128xf32> to vector<1x128xf32>
    %499 = arith.truncf %498 : vector<1x128xf32> to vector<1x128xbf16>
    %c3_331 = arith.constant 3 : index
    %c0_332 = arith.constant 0 : index
    %c0_333 = arith.constant 0 : index
    %500 = vector.load %arg21[%c3_331, %c0_332, %c0_333] : memref<16x128x100xbf16, #tpu.memory_space<vmem>>, vector<1x128x100xbf16>
    %501 = vector.shape_cast %500 : vector<1x128x100xbf16> to vector<128x100xbf16>
    %cst_334 = arith.constant dense<0.000000e+00> : vector<1x100xf32>
    %502 = tpu.matmul %499, %501, %cst_334 {dimension_numbers = #tpu.dot_dimension_numbers<[1], [0], [0], [1], [0, 0, 1, 1], [], []>} : vector<1x128xbf16>, vector<128x100xbf16>, vector<1x100xf32> -> vector<1x100xf32>
    %503 = arith.addf %497, %502 : vector<1x100xf32>
    %504 = vector.extract_strided_slice %478 {offsets = [4, 0], sizes = [1, 128], strides = [1, 1]} : vector<16x128xf32> to vector<1x128xf32>
    %505 = arith.truncf %504 : vector<1x128xf32> to vector<1x128xbf16>
    %c4_335 = arith.constant 4 : index
    %c0_336 = arith.constant 0 : index
    %c0_337 = arith.constant 0 : index
    %506 = vector.load %arg21[%c4_335, %c0_336, %c0_337] : memref<16x128x100xbf16, #tpu.memory_space<vmem>>, vector<1x128x100xbf16>
    %507 = vector.shape_cast %506 : vector<1x128x100xbf16> to vector<128x100xbf16>
    %cst_338 = arith.constant dense<0.000000e+00> : vector<1x100xf32>
    %508 = tpu.matmul %505, %507, %cst_338 {dimension_numbers = #tpu.dot_dimension_numbers<[1], [0], [0], [1], [0, 0, 1, 1], [], []>} : vector<1x128xbf16>, vector<128x100xbf16>, vector<1x100xf32> -> vector<1x100xf32>
    %509 = arith.addf %503, %508 : vector<1x100xf32>
    %510 = vector.extract_strided_slice %478 {offsets = [5, 0], sizes = [1, 128], strides = [1, 1]} : vector<16x128xf32> to vector<1x128xf32>
    %511 = arith.truncf %510 : vector<1x128xf32> to vector<1x128xbf16>
    %c5_339 = arith.constant 5 : index
    %c0_340 = arith.constant 0 : index
    %c0_341 = arith.constant 0 : index
    %512 = vector.load %arg21[%c5_339, %c0_340, %c0_341] : memref<16x128x100xbf16, #tpu.memory_space<vmem>>, vector<1x128x100xbf16>
    %513 = vector.shape_cast %512 : vector<1x128x100xbf16> to vector<128x100xbf16>
    %cst_342 = arith.constant dense<0.000000e+00> : vector<1x100xf32>
    %514 = tpu.matmul %511, %513, %cst_342 {dimension_numbers = #tpu.dot_dimension_numbers<[1], [0], [0], [1], [0, 0, 1, 1], [], []>} : vector<1x128xbf16>, vector<128x100xbf16>, vector<1x100xf32> -> vector<1x100xf32>
    %515 = arith.addf %509, %514 : vector<1x100xf32>
    %516 = vector.extract_strided_slice %478 {offsets = [6, 0], sizes = [1, 128], strides = [1, 1]} : vector<16x128xf32> to vector<1x128xf32>
    %517 = arith.truncf %516 : vector<1x128xf32> to vector<1x128xbf16>
    %c6_343 = arith.constant 6 : index
    %c0_344 = arith.constant 0 : index
    %c0_345 = arith.constant 0 : index
    %518 = vector.load %arg21[%c6_343, %c0_344, %c0_345] : memref<16x128x100xbf16, #tpu.memory_space<vmem>>, vector<1x128x100xbf16>
    %519 = vector.shape_cast %518 : vector<1x128x100xbf16> to vector<128x100xbf16>
    %cst_346 = arith.constant dense<0.000000e+00> : vector<1x100xf32>
    %520 = tpu.matmul %517, %519, %cst_346 {dimension_numbers = #tpu.dot_dimension_numbers<[1], [0], [0], [1], [0, 0, 1, 1], [], []>} : vector<1x128xbf16>, vector<128x100xbf16>, vector<1x100xf32> -> vector<1x100xf32>
    %521 = arith.addf %515, %520 : vector<1x100xf32>
    %522 = vector.extract_strided_slice %478 {offsets = [7, 0], sizes = [1, 128], strides = [1, 1]} : vector<16x128xf32> to vector<1x128xf32>
    %523 = arith.truncf %522 : vector<1x128xf32> to vector<1x128xbf16>
    %c7 = arith.constant 7 : index
    %c0_347 = arith.constant 0 : index
    %c0_348 = arith.constant 0 : index
    %524 = vector.load %arg21[%c7, %c0_347, %c0_348] : memref<16x128x100xbf16, #tpu.memory_space<vmem>>, vector<1x128x100xbf16>
    %525 = vector.shape_cast %524 : vector<1x128x100xbf16> to vector<128x100xbf16>
    %cst_349 = arith.constant dense<0.000000e+00> : vector<1x100xf32>
    %526 = tpu.matmul %523, %525, %cst_349 {dimension_numbers = #tpu.dot_dimension_numbers<[1], [0], [0], [1], [0, 0, 1, 1], [], []>} : vector<1x128xbf16>, vector<128x100xbf16>, vector<1x100xf32> -> vector<1x100xf32>
    %527 = arith.addf %521, %526 : vector<1x100xf32>
    %528 = vector.extract_strided_slice %478 {offsets = [8, 0], sizes = [1, 128], strides = [1, 1]} : vector<16x128xf32> to vector<1x128xf32>
    %529 = arith.truncf %528 : vector<1x128xf32> to vector<1x128xbf16>
    %c8 = arith.constant 8 : index
    %c0_350 = arith.constant 0 : index
    %c0_351 = arith.constant 0 : index
    %530 = vector.load %arg21[%c8, %c0_350, %c0_351] : memref<16x128x100xbf16, #tpu.memory_space<vmem>>, vector<1x128x100xbf16>
    %531 = vector.shape_cast %530 : vector<1x128x100xbf16> to vector<128x100xbf16>
    %cst_352 = arith.constant dense<0.000000e+00> : vector<1x100xf32>
    %532 = tpu.matmul %529, %531, %cst_352 {dimension_numbers = #tpu.dot_dimension_numbers<[1], [0], [0], [1], [0, 0, 1, 1], [], []>} : vector<1x128xbf16>, vector<128x100xbf16>, vector<1x100xf32> -> vector<1x100xf32>
    %533 = arith.addf %527, %532 : vector<1x100xf32>
    %534 = vector.extract_strided_slice %478 {offsets = [9, 0], sizes = [1, 128], strides = [1, 1]} : vector<16x128xf32> to vector<1x128xf32>
    %535 = arith.truncf %534 : vector<1x128xf32> to vector<1x128xbf16>
    %c9 = arith.constant 9 : index
    %c0_353 = arith.constant 0 : index
    %c0_354 = arith.constant 0 : index
    %536 = vector.load %arg21[%c9, %c0_353, %c0_354] : memref<16x128x100xbf16, #tpu.memory_space<vmem>>, vector<1x128x100xbf16>
    %537 = vector.shape_cast %536 : vector<1x128x100xbf16> to vector<128x100xbf16>
    %cst_355 = arith.constant dense<0.000000e+00> : vector<1x100xf32>
    %538 = tpu.matmul %535, %537, %cst_355 {dimension_numbers = #tpu.dot_dimension_numbers<[1], [0], [0], [1], [0, 0, 1, 1], [], []>} : vector<1x128xbf16>, vector<128x100xbf16>, vector<1x100xf32> -> vector<1x100xf32>
    %539 = arith.addf %533, %538 : vector<1x100xf32>
    %540 = vector.extract_strided_slice %478 {offsets = [10, 0], sizes = [1, 128], strides = [1, 1]} : vector<16x128xf32> to vector<1x128xf32>
    %541 = arith.truncf %540 : vector<1x128xf32> to vector<1x128xbf16>
    %c10 = arith.constant 10 : index
    %c0_356 = arith.constant 0 : index
    %c0_357 = arith.constant 0 : index
    %542 = vector.load %arg21[%c10, %c0_356, %c0_357] : memref<16x128x100xbf16, #tpu.memory_space<vmem>>, vector<1x128x100xbf16>
    %543 = vector.shape_cast %542 : vector<1x128x100xbf16> to vector<128x100xbf16>
    %cst_358 = arith.constant dense<0.000000e+00> : vector<1x100xf32>
    %544 = tpu.matmul %541, %543, %cst_358 {dimension_numbers = #tpu.dot_dimension_numbers<[1], [0], [0], [1], [0, 0, 1, 1], [], []>} : vector<1x128xbf16>, vector<128x100xbf16>, vector<1x100xf32> -> vector<1x100xf32>
    %545 = arith.addf %539, %544 : vector<1x100xf32>
    %546 = vector.extract_strided_slice %478 {offsets = [11, 0], sizes = [1, 128], strides = [1, 1]} : vector<16x128xf32> to vector<1x128xf32>
    %547 = arith.truncf %546 : vector<1x128xf32> to vector<1x128xbf16>
    %c11 = arith.constant 11 : index
    %c0_359 = arith.constant 0 : index
    %c0_360 = arith.constant 0 : index
    %548 = vector.load %arg21[%c11, %c0_359, %c0_360] : memref<16x128x100xbf16, #tpu.memory_space<vmem>>, vector<1x128x100xbf16>
    %549 = vector.shape_cast %548 : vector<1x128x100xbf16> to vector<128x100xbf16>
    %cst_361 = arith.constant dense<0.000000e+00> : vector<1x100xf32>
    %550 = tpu.matmul %547, %549, %cst_361 {dimension_numbers = #tpu.dot_dimension_numbers<[1], [0], [0], [1], [0, 0, 1, 1], [], []>} : vector<1x128xbf16>, vector<128x100xbf16>, vector<1x100xf32> -> vector<1x100xf32>
    %551 = arith.addf %545, %550 : vector<1x100xf32>
    %552 = vector.extract_strided_slice %478 {offsets = [12, 0], sizes = [1, 128], strides = [1, 1]} : vector<16x128xf32> to vector<1x128xf32>
    %553 = arith.truncf %552 : vector<1x128xf32> to vector<1x128xbf16>
    %c12 = arith.constant 12 : index
    %c0_362 = arith.constant 0 : index
    %c0_363 = arith.constant 0 : index
    %554 = vector.load %arg21[%c12, %c0_362, %c0_363] : memref<16x128x100xbf16, #tpu.memory_space<vmem>>, vector<1x128x100xbf16>
    %555 = vector.shape_cast %554 : vector<1x128x100xbf16> to vector<128x100xbf16>
    %cst_364 = arith.constant dense<0.000000e+00> : vector<1x100xf32>
    %556 = tpu.matmul %553, %555, %cst_364 {dimension_numbers = #tpu.dot_dimension_numbers<[1], [0], [0], [1], [0, 0, 1, 1], [], []>} : vector<1x128xbf16>, vector<128x100xbf16>, vector<1x100xf32> -> vector<1x100xf32>
    %557 = arith.addf %551, %556 : vector<1x100xf32>
    %558 = vector.extract_strided_slice %478 {offsets = [13, 0], sizes = [1, 128], strides = [1, 1]} : vector<16x128xf32> to vector<1x128xf32>
    %559 = arith.truncf %558 : vector<1x128xf32> to vector<1x128xbf16>
    %c13 = arith.constant 13 : index
    %c0_365 = arith.constant 0 : index
    %c0_366 = arith.constant 0 : index
    %560 = vector.load %arg21[%c13, %c0_365, %c0_366] : memref<16x128x100xbf16, #tpu.memory_space<vmem>>, vector<1x128x100xbf16>
    %561 = vector.shape_cast %560 : vector<1x128x100xbf16> to vector<128x100xbf16>
    %cst_367 = arith.constant dense<0.000000e+00> : vector<1x100xf32>
    %562 = tpu.matmul %559, %561, %cst_367 {dimension_numbers = #tpu.dot_dimension_numbers<[1], [0], [0], [1], [0, 0, 1, 1], [], []>} : vector<1x128xbf16>, vector<128x100xbf16>, vector<1x100xf32> -> vector<1x100xf32>
    %563 = arith.addf %557, %562 : vector<1x100xf32>
    %564 = vector.extract_strided_slice %478 {offsets = [14, 0], sizes = [1, 128], strides = [1, 1]} : vector<16x128xf32> to vector<1x128xf32>
    %565 = arith.truncf %564 : vector<1x128xf32> to vector<1x128xbf16>
    %c14 = arith.constant 14 : index
    %c0_368 = arith.constant 0 : index
    %c0_369 = arith.constant 0 : index
    %566 = vector.load %arg21[%c14, %c0_368, %c0_369] : memref<16x128x100xbf16, #tpu.memory_space<vmem>>, vector<1x128x100xbf16>
    %567 = vector.shape_cast %566 : vector<1x128x100xbf16> to vector<128x100xbf16>
    %cst_370 = arith.constant dense<0.000000e+00> : vector<1x100xf32>
    %568 = tpu.matmul %565, %567, %cst_370 {dimension_numbers = #tpu.dot_dimension_numbers<[1], [0], [0], [1], [0, 0, 1, 1], [], []>} : vector<1x128xbf16>, vector<128x100xbf16>, vector<1x100xf32> -> vector<1x100xf32>
    %569 = arith.addf %563, %568 : vector<1x100xf32>
    %570 = vector.extract_strided_slice %478 {offsets = [15, 0], sizes = [1, 128], strides = [1, 1]} : vector<16x128xf32> to vector<1x128xf32>
    %571 = arith.truncf %570 : vector<1x128xf32> to vector<1x128xbf16>
    %c15 = arith.constant 15 : index
    %c0_371 = arith.constant 0 : index
    %c0_372 = arith.constant 0 : index
    %572 = vector.load %arg21[%c15, %c0_371, %c0_372] : memref<16x128x100xbf16, #tpu.memory_space<vmem>>, vector<1x128x100xbf16>
    %573 = vector.shape_cast %572 : vector<1x128x100xbf16> to vector<128x100xbf16>
    %cst_373 = arith.constant dense<0.000000e+00> : vector<1x100xf32>
    %574 = tpu.matmul %571, %573, %cst_373 {dimension_numbers = #tpu.dot_dimension_numbers<[1], [0], [0], [1], [0, 0, 1, 1], [], []>} : vector<1x128xbf16>, vector<128x100xbf16>, vector<1x100xf32> -> vector<1x100xf32>
    %575 = arith.addf %569, %574 : vector<1x100xf32>
    %cst_374 = arith.constant 0.000000e+00 : f32
    %576 = vector.broadcast %cst_374 : f32 to vector<1x100xf32>
    %577 = arith.maximumf %575, %576 : vector<1x100xf32>
    %578 = arith.truncf %577 : vector<1x100xf32> to vector<1x100xbf16>
    %c0_375 = arith.constant 0 : index
    %c0_376 = arith.constant 0 : index
    %579 = vector.load %arg23[%c0_375, %c0_376] : memref<100x33xbf16, #tpu.memory_space<vmem>>, vector<100x33xbf16>
    %cst_377 = arith.constant dense<0.000000e+00> : vector<1x33xf32>
    %580 = tpu.matmul %578, %579, %cst_377 {dimension_numbers = #tpu.dot_dimension_numbers<[1], [0], [0], [1], [0, 0, 1, 1], [], []>} : vector<1x100xbf16>, vector<100x33xbf16>, vector<1x33xf32> -> vector<1x33xf32>
    %c0_378 = arith.constant 0 : index
    %c0_379 = arith.constant 0 : index
    %581 = vector.load %arg24[%c0_378, %c0_379] : memref<1x33xf32, #tpu.memory_space<vmem>>, vector<1x33xf32>
    %582 = arith.addf %580, %581 : vector<1x33xf32>
    %cst_380 = arith.constant 0.000000e+00 : f32
    %583 = vector.broadcast %cst_380 : f32 to vector<1x33xf32>
    %584 = arith.maximumf %582, %583 : vector<1x33xf32>
    %585 = arith.truncf %584 : vector<1x33xf32> to vector<1x33xbf16>
    %c0_381 = arith.constant 0 : index
    %c0_382 = arith.constant 0 : index
    %586 = vector.load %arg25[%c0_381, %c0_382] : memref<33x3xbf16, #tpu.memory_space<vmem>>, vector<33x3xbf16>
    %cst_383 = arith.constant dense<0.000000e+00> : vector<1x3xf32>
    %587 = tpu.matmul %585, %586, %cst_383 {dimension_numbers = #tpu.dot_dimension_numbers<[1], [0], [0], [1], [0, 0, 1, 1], [], []>} : vector<1x33xbf16>, vector<33x3xbf16>, vector<1x3xf32> -> vector<1x3xf32>
    %c0_384 = arith.constant 0 : index
    %c0_385 = arith.constant 0 : index
    %588 = vector.load %arg26[%c0_384, %c0_385] : memref<1x3xf32, #tpu.memory_space<vmem>>, vector<1x3xf32>
    %589 = arith.addf %587, %588 : vector<1x3xf32>
    %cst_386 = arith.constant 0.000000e+00 : f32
    %590 = vector.broadcast %cst_386 : f32 to vector<1x3xf32>
    %591 = arith.subf %590, %589 : vector<1x3xf32>
    %592 = math.exp %591 : vector<1x3xf32>
    %cst_387 = arith.constant 1.000000e+00 : f32
    %593 = vector.broadcast %cst_387 : f32 to vector<1x3xf32>
    %594 = arith.addf %593, %592 : vector<1x3xf32>
    %cst_388 = arith.constant 1.000000e+00 : f32
    %595 = vector.broadcast %cst_388 : f32 to vector<1x3xf32>
    %596 = arith.divf %595, %594 : vector<1x3xf32>
    %c0_389 = arith.constant 0 : index
    %c0_390 = arith.constant 0 : index
    %c0_391 = arith.constant 0 : index
    %597 = vector.load %arg27[%c0_389, %c0_390, %c0_391] : memref<1x1x3xf32, #tpu.memory_space<vmem>>, vector<1x1x3xf32>
    %598 = vector.shape_cast %597 : vector<1x1x3xf32> to vector<1x3xf32>
    %599 = vector.shape_cast %596 : vector<1x3xf32> to vector<1x1x3xf32>
    tpu.vector_store %arg27[%c0_389, %c0_390, %c0_391], %599 {strides = array<i32>} : memref<1x1x3xf32, #tpu.memory_space<vmem>>, vector<1x1x3xf32>,
    return
  }
  func.func @transform_0(%arg0: i32) -> (i32, i32, i32) {
    %c0_i32 = arith.constant 0 : i32
    %c0_i32_0 = arith.constant 0 : i32
    %c0_i32_1 = arith.constant 0 : i32
    return %arg0, %c0_i32, %c0_i32_0 : i32, i32, i32
  }
  func.func @transform_1(%arg0: i32) -> (i32, i32, i32) {
    %c0_i32 = arith.constant 0 : i32
    %c0_i32_0 = arith.constant 0 : i32
    %c0_i32_1 = arith.constant 0 : i32
    %c0_i32_2 = arith.constant 0 : i32
    return %c0_i32, %c0_i32_0, %c0_i32_1 : i32, i32, i32
  }
  func.func @transform_2(%arg0: i32) -> (i32, i32) {
    %c0_i32 = arith.constant 0 : i32
    %c0_i32_0 = arith.constant 0 : i32
    %c0_i32_1 = arith.constant 0 : i32
    return %c0_i32, %c0_i32_0 : i32, i32
  }
  func.func @transform_3(%arg0: i32) -> (i32, i32) {
    %c0_i32 = arith.constant 0 : i32
    %c0_i32_0 = arith.constant 0 : i32
    %c0_i32_1 = arith.constant 0 : i32
    return %c0_i32, %c0_i32_0 : i32, i32
  }
  func.func @transform_4(%arg0: i32) -> (i32, i32) {
    %c0_i32 = arith.constant 0 : i32
    %c0_i32_0 = arith.constant 0 : i32
    %c0_i32_1 = arith.constant 0 : i32
    return %c0_i32, %c0_i32_0 : i32, i32
  }
  func.func @transform_5(%arg0: i32) -> (i32, i32) {
    %c0_i32 = arith.constant 0 : i32
    %c0_i32_0 = arith.constant 0 : i32
    %c0_i32_1 = arith.constant 0 : i32
    return %c0_i32, %c0_i32_0 : i32, i32
  }
  func.func @transform_6(%arg0: i32) -> (i32, i32, i32) {
    %c0_i32 = arith.constant 0 : i32
    %c0_i32_0 = arith.constant 0 : i32
    %c0_i32_1 = arith.constant 0 : i32
    %c0_i32_2 = arith.constant 0 : i32
    return %c0_i32, %c0_i32_0, %c0_i32_1 : i32, i32, i32
  }
  func.func @transform_7(%arg0: i32) -> (i32, i32, i32) {
    %c0_i32 = arith.constant 0 : i32
    %c0_i32_0 = arith.constant 0 : i32
    %c0_i32_1 = arith.constant 0 : i32
    %c0_i32_2 = arith.constant 0 : i32
    return %c0_i32, %c0_i32_0, %c0_i32_1 : i32, i32, i32
  }
  func.func @transform_8(%arg0: i32) -> (i32, i32, i32, i32) {
    %c0_i32 = arith.constant 0 : i32
    %c0_i32_0 = arith.constant 0 : i32
    %c0_i32_1 = arith.constant 0 : i32
    %c0_i32_2 = arith.constant 0 : i32
    %c0_i32_3 = arith.constant 0 : i32
    return %c0_i32, %c0_i32_0, %c0_i32_1, %c0_i32_2 : i32, i32, i32, i32
  }
  func.func @transform_9(%arg0: i32) -> (i32, i32, i32) {
    %c0_i32 = arith.constant 0 : i32
    %c0_i32_0 = arith.constant 0 : i32
    %c0_i32_1 = arith.constant 0 : i32
    %c0_i32_2 = arith.constant 0 : i32
    return %c0_i32, %c0_i32_0, %c0_i32_1 : i32, i32, i32
  }
  func.func @transform_10(%arg0: i32) -> (i32, i32, i32) {
    %c0_i32 = arith.constant 0 : i32
    %c0_i32_0 = arith.constant 0 : i32
    %c0_i32_1 = arith.constant 0 : i32
    %c0_i32_2 = arith.constant 0 : i32
    return %c0_i32, %c0_i32_0, %c0_i32_1 : i32, i32, i32
  }
  func.func @transform_11(%arg0: i32) -> (i32, i32, i32) {
    %c0_i32 = arith.constant 0 : i32
    %c0_i32_0 = arith.constant 0 : i32
    %c0_i32_1 = arith.constant 0 : i32
    %c0_i32_2 = arith.constant 0 : i32
    return %c0_i32, %c0_i32_0, %c0_i32_1 : i32, i32, i32
  }
  func.func @transform_12(%arg0: i32) -> (i32, i32, i32) {
    %c0_i32 = arith.constant 0 : i32
    %c0_i32_0 = arith.constant 0 : i32
    %c0_i32_1 = arith.constant 0 : i32
    %c0_i32_2 = arith.constant 0 : i32
    return %c0_i32, %c0_i32_0, %c0_i32_1 : i32, i32, i32
  }
  func.func @transform_13(%arg0: i32) -> (i32, i32, i32) {
    %c0_i32 = arith.constant 0 : i32
    %c0_i32_0 = arith.constant 0 : i32
    %c0_i32_1 = arith.constant 0 : i32
    %c0_i32_2 = arith.constant 0 : i32
    return %c0_i32, %c0_i32_0, %c0_i32_1 : i32, i32, i32
  }
  func.func @transform_14(%arg0: i32) -> (i32, i32, i32) {
    %c0_i32 = arith.constant 0 : i32
    %c0_i32_0 = arith.constant 0 : i32
    %c0_i32_1 = arith.constant 0 : i32
    %c0_i32_2 = arith.constant 0 : i32
    return %c0_i32, %c0_i32_0, %c0_i32_1 : i32, i32, i32
  }
  func.func @transform_15(%arg0: i32) -> (i32, i32, i32) {
    %c0_i32 = arith.constant 0 : i32
    %c0_i32_0 = arith.constant 0 : i32
    %c0_i32_1 = arith.constant 0 : i32
    %c0_i32_2 = arith.constant 0 : i32
    return %c0_i32, %c0_i32_0, %c0_i32_1 : i32, i32, i32
  }
  func.func @transform_16(%arg0: i32) -> (i32, i32, i32) {
    %c0_i32 = arith.constant 0 : i32
    %c0_i32_0 = arith.constant 0 : i32
    %c0_i32_1 = arith.constant 0 : i32
    %c0_i32_2 = arith.constant 0 : i32
    return %c0_i32, %c0_i32_0, %c0_i32_1 : i32, i32, i32
  }
  func.func @transform_17(%arg0: i32) -> (i32, i32, i32) {
    %c0_i32 = arith.constant 0 : i32
    %c0_i32_0 = arith.constant 0 : i32
    %c0_i32_1 = arith.constant 0 : i32
    %c0_i32_2 = arith.constant 0 : i32
    return %c0_i32, %c0_i32_0, %c0_i32_1 : i32, i32, i32
  }
  func.func @transform_18(%arg0: i32) -> (i32, i32, i32) {
    %c0_i32 = arith.constant 0 : i32
    %c0_i32_0 = arith.constant 0 : i32
    %c0_i32_1 = arith.constant 0 : i32
    %c0_i32_2 = arith.constant 0 : i32
    return %c0_i32, %c0_i32_0, %c0_i32_1 : i32, i32, i32
  }
  func.func @transform_19(%arg0: i32) -> (i32, i32, i32) {
    %c0_i32 = arith.constant 0 : i32
    %c0_i32_0 = arith.constant 0 : i32
    %c0_i32_1 = arith.constant 0 : i32
    %c0_i32_2 = arith.constant 0 : i32
    return %c0_i32, %c0_i32_0, %c0_i32_1 : i32, i32, i32
  }
  func.func @transform_20(%arg0: i32) -> (i32, i32, i32) {
    %c0_i32 = arith.constant 0 : i32
    %c0_i32_0 = arith.constant 0 : i32
    %c0_i32_1 = arith.constant 0 : i32
    %c0_i32_2 = arith.constant 0 : i32
    return %c0_i32, %c0_i32_0, %c0_i32_1 : i32, i32, i32
  }
  func.func @transform_21(%arg0: i32) -> (i32, i32) {
    %c0_i32 = arith.constant 0 : i32
    %c0_i32_0 = arith.constant 0 : i32
    %c0_i32_1 = arith.constant 0 : i32
    return %c0_i32, %c0_i32_0 : i32, i32
  }
  func.func @transform_22(%arg0: i32) -> (i32, i32) {
    %c0_i32 = arith.constant 0 : i32
    %c0_i32_0 = arith.constant 0 : i32
    %c0_i32_1 = arith.constant 0 : i32
    return %c0_i32, %c0_i32_0 : i32, i32
  }
  func.func @transform_23(%arg0: i32) -> (i32, i32) {
    %c0_i32 = arith.constant 0 : i32
    %c0_i32_0 = arith.constant 0 : i32
    %c0_i32_1 = arith.constant 0 : i32
    return %c0_i32, %c0_i32_0 : i32, i32
  }
  func.func @transform_24(%arg0: i32) -> (i32, i32) {
    %c0_i32 = arith.constant 0 : i32
    %c0_i32_0 = arith.constant 0 : i32
    %c0_i32_1 = arith.constant 0 : i32
    return %c0_i32, %c0_i32_0 : i32, i32
  }
  func.func @transform_25(%arg0: i32) -> (i32, i32) {
    %c0_i32 = arith.constant 0 : i32
    %c0_i32_0 = arith.constant 0 : i32
    %c0_i32_1 = arith.constant 0 : i32
    return %c0_i32, %c0_i32_0 : i32, i32
  }
  func.func @transform_26(%arg0: i32) -> (i32, i32, i32) {
    %c0_i32 = arith.constant 0 : i32
    %c0_i32_0 = arith.constant 0 : i32
    %c0_i32_1 = arith.constant 0 : i32
    return %arg0, %c0_i32, %c0_i32_0 : i32, i32, i32
  }
}

</mosaic_0001>

<llo_original>
// kernel: lcznet_forward.1
$region0: #{lcznet_forward.1}
  #allocation0 [shape = 'u32[]', space=smem, size = 0x4, offset = 0x4, fixed_abs, tag = 'smem constant byte address 0x4 - core index']
  #allocation1 [shape = 'u32[144,128]{1,0:T(1,128)}', space=vmem, size = 0x12000, scoped, tag = 'internal scratch']
  %s0 = inlined_call_operand.vmem [shape: f32[2,4,128], index: 0, kind: input, shape index: {}]
  %s1 = inlined_call_operand.vmem [shape: bf16[7,128,128], index: 1, kind: input, shape index: {}]
  %s2 = inlined_call_operand.vmem [shape: bf16[16,28], index: 2, kind: input, shape index: {}]
  %s3 = inlined_call_operand.vmem [shape: f32[16,1], index: 3, kind: input, shape index: {}]
  %s4 = inlined_call_operand.vmem [shape: bf16[16,16], index: 4, kind: input, shape index: {}]
  %s5 = inlined_call_operand.vmem [shape: f32[16,1], index: 5, kind: input, shape index: {}]
  %s6 = inlined_call_operand.vmem [shape: bf16[4,20,16], index: 6, kind: input, shape index: {}]
  %s7 = inlined_call_operand.vmem [shape: f32[4,20,1], index: 7, kind: input, shape index: {}]
  %s8 = inlined_call_operand.vmem [shape: f32[36,4,5,128], index: 8, kind: input, shape index: {}]
  %s9 = inlined_call_operand.vmem [shape: f32[4,4,1], index: 9, kind: input, shape index: {}]
  %s10 = inlined_call_operand.vmem [shape: bf16[4,128,128], index: 10, kind: input, shape index: {}]
  %s11 = inlined_call_operand.vmem [shape: bf16[4,16,16], index: 11, kind: input, shape index: {}]
  %s12 = inlined_call_operand.vmem [shape: bf16[4,16,16], index: 12, kind: input, shape index: {}]
  %s13 = inlined_call_operand.vmem [shape: f32[4,16,1], index: 13, kind: input, shape index: {}]
  %s14 = inlined_call_operand.vmem [shape: bf16[2,16,80], index: 14, kind: input, shape index: {}]
  %s15 = inlined_call_operand.vmem [shape: f32[2,16,1], index: 15, kind: input, shape index: {}]
  %s16 = inlined_call_operand.vmem [shape: bf16[2,16,16], index: 16, kind: input, shape index: {}]
  %s17 = inlined_call_operand.vmem [shape: f32[2,16,1], index: 17, kind: input, shape index: {}]
  %s18 = inlined_call_operand.vmem [shape: bf16[2,16,80], index: 18, kind: input, shape index: {}]
  %s19 = inlined_call_operand.vmem [shape: f32[2,16,1], index: 19, kind: input, shape index: {}]
  %s20 = inlined_call_operand.vmem [shape: bf16[16,128,100], index: 20, kind: input, shape index: {}]
  %s21 = inlined_call_operand.vmem [shape: f32[1,100], index: 21, kind: input, shape index: {}]
  %s22 = inlined_call_operand.vmem [shape: bf16[100,33], index: 22, kind: input, shape index: {}]
  %s23 = inlined_call_operand.vmem [shape: f32[1,33], index: 23, kind: input, shape index: {}]
  %s24 = inlined_call_operand.vmem [shape: bf16[33,3], index: 24, kind: input, shape index: {}]
  %s25 = inlined_call_operand.vmem [shape: f32[1,3], index: 25, kind: input, shape index: {}]
  %s26 = inlined_call_operand.hbm [shape: f32[2,1,3], index: 26, kind: output, shape index: {}]
  %s27 = sld [smem:[#allocation0]]
  $region137: #{lcznet_forward.1} parent=0
    _
  %s29 = ssub.s32 1, %s27
  %s30 = scalar_select 0, %s29, %s27
  $region1: #{lcznet_forward.1} parent=0
    #allocation2 [shape = 'u8[1024]{0}', space=vmem, size = 0x400, scoped, tag = 'output window, operand 0']
    #allocation3 [shape = 's32[2]{0}', space=sflag, size = 0x8, scoped, tag = 'scoped memory for lcznet_forward.1']
    %31 = vsyncpa [#allocation3], 0
    %s32 = scalar_lea.sflag [#allocation3], 1
    %33 = vsyncpa %s32, 0
    loop: start=0, step=1, limit=4
    $region2: #{lcznet_forward.1} parent=1 // loop_pre_header
      _
    $region3: #{lcznet_forward.1} parent=1 // loop_header
      %s35 = sphi 0, %s39
      %p36 = scmp.ge.s32.totalorder %s35, 4
      %s45 = sphi 0, %s47
      %s48 = sphi 0, %s45
      %s49 = sphi 0, %s48
      %s65 = sphi 0, %s49
      %s69 = sphi 0, %s69
      %s71 = sphi 0, %s69
      %s72 = sphi 0, %s71
      %s86 = sphi 0, %s72
      %s90 = sphi 0, %s90
      %s92 = sphi 0, %s90
      %s93 = sphi 0, %s92
      %s107 = sphi 0, %s93
      %s111 = sphi 0, %s111
      %s113 = sphi 0, %s111
      %s114 = sphi 0, %s113
      %s128 = sphi 0, %s114
      %s132 = sphi 0, %s132
      %s134 = sphi 0, %s132
      %s135 = sphi 0, %s134
      %s149 = sphi 0, %s135
      %s153 = sphi 0, %s153
      %s155 = sphi 0, %s153
      %s156 = sphi 0, %s155
      %s170 = sphi 0, %s156
      %s174 = sphi 0, %s174
      %s176 = sphi 0, %s174
      %s177 = sphi 0, %s176
      %s191 = sphi 0, %s177
      %s195 = sphi 0, %s195
      %s197 = sphi 0, %s195
      %s198 = sphi 0, %s197
      %s212 = sphi 0, %s198
      %s216 = sphi 0, %s216
      %s218 = sphi 0, %s216
      %s219 = sphi 0, %s218
      %s233 = sphi 0, %s219
      %s237 = sphi 0, %s237
      %s239 = sphi 0, %s237
      %s240 = sphi 0, %s239
      %s254 = sphi 0, %s240
      %s258 = sphi 0, %s258
      %s260 = sphi 0, %s258
      %s261 = sphi 0, %s260
      %s275 = sphi 0, %s261
      %s279 = sphi 0, %s279
      %s281 = sphi 0, %s279
      %s282 = sphi 0, %s281
      %s296 = sphi 0, %s282
      %s300 = sphi 0, %s300
      %s302 = sphi 0, %s300
      %s303 = sphi 0, %s302
      %s317 = sphi 0, %s303
      %s321 = sphi 0, %s321
      %s323 = sphi 0, %s321
      %s324 = sphi 0, %s323
      %s338 = sphi 0, %s324
      %s342 = sphi 0, %s342
      %s344 = sphi 0, %s342
      %s345 = sphi 0, %s344
      %s359 = sphi 0, %s345
      %s363 = sphi 0, %s363
      %s365 = sphi 0, %s363
      %s366 = sphi 0, %s365
      %s380 = sphi 0, %s366
      %s384 = sphi 0, %s384
      %s386 = sphi 0, %s384
      %s387 = sphi 0, %s386
      %s401 = sphi 0, %s387
      %s405 = sphi 0, %s405
      %s407 = sphi 0, %s405
      %s408 = sphi 0, %s407
      %s422 = sphi 0, %s408
      %s426 = sphi 0, %s426
      %s428 = sphi 0, %s426
      %s429 = sphi 0, %s428
      %s443 = sphi 0, %s429
      %s447 = sphi 0, %s447
      %s449 = sphi 0, %s447
      %s450 = sphi 0, %s449
      %s464 = sphi 0, %s450
      %s468 = sphi 0, %s468
      %s470 = sphi 0, %s468
      %s471 = sphi 0, %s470
      %s485 = sphi 0, %s471
      %s489 = sphi 0, %s489
      %s491 = sphi 0, %s489
      %s492 = sphi 0, %s491
      %s506 = sphi 0, %s492
      %s510 = sphi 0, %s510
      %s512 = sphi 0, %s510
      %s513 = sphi 0, %s512
      %s527 = sphi 0, %s513
      %s531 = sphi 0, %s531
      %s533 = sphi 0, %s531
      %s534 = sphi 0, %s533
      %s548 = sphi 0, %s534
      %s552 = sphi 0, %s552
      %s554 = sphi 0, %s552
      %s555 = sphi 0, %s554
      %s569 = sphi 0, %s555
      %s573 = sphi 0, %s573
      %s575 = sphi 0, %s573
      %s576 = sphi 0, %s575
      %s590 = sphi 0, %s576
      %s596 = sphi 0, %s598
      %s599 = sphi 0, %s596
      %s600 = sphi 0, %s599
      %s616 = sphi 0, %s600
    $region4: #{lcznet_forward.1} parent=1 // loop_header_branch
      %38 = sbr.rel (%p36) target = $region8
    $region5: #{lcznet_forward.1} parent=1 // loop_body
      %s40 = ssub.s32 %s35, 1
      %s41 = ssub.s32 %s35, 2
      %s42 = sadd.s32 %s35, 1
      %s43 = ssub.s32 %s35, %s42
      %p44 = scmp.eq.s32.totalorder %s43, 0
      %s46 = sadd.s32 %s45, 1
      %s47 = scalar_select %p44, %s45, %s46
      %p50 = pneg %p44
      %p51 = scmp.eq.s32.totalorder %s35, 1
      %p52 = por %p50, %p51
      %p53 = scmp.ne.s32.totalorder %s45, %s48
      %p54 = scmp.eq.s32.totalorder %s35, 0
      %p55 = por %p53, %p54
      %p56 = scmp.ne.s32.totalorder %s45, %s48
      %p57 = scmp.eq.s32.totalorder %s40, 1
      %p58 = por %p56, %p57
      %p59 = scmp.ne.s32.totalorder %s48, %s49
      %p60 = scmp.eq.s32.totalorder %s40, 0
      %p61 = por %p59, %p60
      %p62 = scmp.ne.s32.totalorder %s48, %s49
      %p63 = scmp.eq.s32.totalorder %s41, 1
      %p64 = por %p62, %p63
      %p66 = scmp.ne.s32.totalorder %s49, %s65
      %p67 = scmp.eq.s32.totalorder %s41, 0
      %p68 = por %p66, %p67
      %s70 = sadd.s32 %s69, 1
      %p73 = scmp.eq.s32.totalorder %s35, 1
      %p74 = scmp.ne.s32.totalorder %s69, %s71
      %p75 = scmp.eq.s32.totalorder %s35, 0
      %p76 = por %p74, %p75
      %p77 = scmp.ne.s32.totalorder %s69, %s71
      %p78 = scmp.eq.s32.totalorder %s40, 1
      %p79 = por %p77, %p78
      %p80 = scmp.ne.s32.totalorder %s71, %s72
      %p81 = scmp.eq.s32.totalorder %s40, 0
      %p82 = por %p80, %p81
      %p83 = scmp.ne.s32.totalorder %s71, %s72
      %p84 = scmp.eq.s32.totalorder %s41, 1
      %p85 = por %p83, %p84
      %p87 = scmp.ne.s32.totalorder %s72, %s86
      %p88 = scmp.eq.s32.totalorder %s41, 0
      %p89 = por %p87, %p88
      %s91 = sadd.s32 %s90, 1
      %p94 = scmp.eq.s32.totalorder %s35, 1
      %p95 = scmp.ne.s32.totalorder %s90, %s92
      %p96 = scmp.eq.s32.totalorder %s35, 0
      %p97 = por %p95, %p96
      %p98 = scmp.ne.s32.totalorder %s90, %s92
      %p99 = scmp.eq.s32.totalorder %s40, 1
      %p100 = por %p98, %p99
      %p101 = scmp.ne.s32.totalorder %s92, %s93
      %p102 = scmp.eq.s32.totalorder %s40, 0
      %p103 = por %p101, %p102
      %p104 = scmp.ne.s32.totalorder %s92, %s93
      %p105 = scmp.eq.s32.totalorder %s41, 1
      %p106 = por %p104, %p105
      %p108 = scmp.ne.s32.totalorder %s93, %s107
      %p109 = scmp.eq.s32.totalorder %s41, 0
      %p110 = por %p108, %p109
      %s112 = sadd.s32 %s111, 1
      %p115 = scmp.eq.s32.totalorder %s35, 1
      %p116 = scmp.ne.s32.totalorder %s111, %s113
      %p117 = scmp.eq.s32.totalorder %s35, 0
      %p118 = por %p116, %p117
      %p119 = scmp.ne.s32.totalorder %s111, %s113
      %p120 = scmp.eq.s32.totalorder %s40, 1
      %p121 = por %p119, %p120
      %p122 = scmp.ne.s32.totalorder %s113, %s114
      %p123 = scmp.eq.s32.totalorder %s40, 0
      %p124 = por %p122, %p123
      %p125 = scmp.ne.s32.totalorder %s113, %s114
      %p126 = scmp.eq.s32.totalorder %s41, 1
      %p127 = por %p125, %p126
      %p129 = scmp.ne.s32.totalorder %s114, %s128
      %p130 = scmp.eq.s32.totalorder %s41, 0
      %p131 = por %p129, %p130
      %s133 = sadd.s32 %s132, 1
      %p136 = scmp.eq.s32.totalorder %s35, 1
      %p137 = scmp.ne.s32.totalorder %s132, %s134
      %p138 = scmp.eq.s32.totalorder %s35, 0
      %p139 = por %p137, %p138
      %p140 = scmp.ne.s32.totalorder %s132, %s134
      %p141 = scmp.eq.s32.totalorder %s40, 1
      %p142 = por %p140, %p141
      %p143 = scmp.ne.s32.totalorder %s134, %s135
      %p144 = scmp.eq.s32.totalorder %s40, 0
      %p145 = por %p143, %p144
      %p146 = scmp.ne.s32.totalorder %s134, %s135
      %p147 = scmp.eq.s32.totalorder %s41, 1
      %p148 = por %p146, %p147
      %p150 = scmp.ne.s32.totalorder %s135, %s149
      %p151 = scmp.eq.s32.totalorder %s41, 0
      %p152 = por %p150, %p151
      %s154 = sadd.s32 %s153, 1
      %p157 = scmp.eq.s32.totalorder %s35, 1
      %p158 = scmp.ne.s32.totalorder %s153, %s155
      %p159 = scmp.eq.s32.totalorder %s35, 0
      %p160 = por %p158, %p159
      %p161 = scmp.ne.s32.totalorder %s153, %s155
      %p162 = scmp.eq.s32.totalorder %s40, 1
      %p163 = por %p161, %p162
      %p164 = scmp.ne.s32.totalorder %s155, %s156
      %p165 = scmp.eq.s32.totalorder %s40, 0
      %p166 = por %p164, %p165
      %p167 = scmp.ne.s32.totalorder %s155, %s156
      %p168 = scmp.eq.s32.totalorder %s41, 1
      %p169 = por %p167, %p168
      %p171 = scmp.ne.s32.totalorder %s156, %s170
      %p172 = scmp.eq.s32.totalorder %s41, 0
      %p173 = por %p171, %p172
      %s175 = sadd.s32 %s174, 1
      %p178 = scmp.eq.s32.totalorder %s35, 1
      %p179 = scmp.ne.s32.totalorder %s174, %s176
      %p180 = scmp.eq.s32.totalorder %s35, 0
      %p181 = por %p179, %p180
      %p182 = scmp.ne.s32.totalorder %s174, %s176
      %p183 = scmp.eq.s32.totalorder %s40, 1
      %p184 = por %p182, %p183
      %p185 = scmp.ne.s32.totalorder %s176, %s177
      %p186 = scmp.eq.s32.totalorder %s40, 0
      %p187 = por %p185, %p186
      %p188 = scmp.ne.s32.totalorder %s176, %s177
      %p189 = scmp.eq.s32.totalorder %s41, 1
      %p190 = por %p188, %p189
      %p192 = scmp.ne.s32.totalorder %s177, %s191
      %p193 = scmp.eq.s32.totalorder %s41, 0
      %p194 = por %p192, %p193
      %s196 = sadd.s32 %s195, 1
      %p199 = scmp.eq.s32.totalorder %s35, 1
      %p200 = scmp.ne.s32.totalorder %s195, %s197
      %p201 = scmp.eq.s32.totalorder %s35, 0
      %p202 = por %p200, %p201
      %p203 = scmp.ne.s32.totalorder %s195, %s197
      %p204 = scmp.eq.s32.totalorder %s40, 1
      %p205 = por %p203, %p204
      %p206 = scmp.ne.s32.totalorder %s197, %s198
      %p207 = scmp.eq.s32.totalorder %s40, 0
      %p208 = por %p206, %p207
      %p209 = scmp.ne.s32.totalorder %s197, %s198
      %p210 = scmp.eq.s32.totalorder %s41, 1
      %p211 = por %p209, %p210
      %p213 = scmp.ne.s32.totalorder %s198, %s212
      %p214 = scmp.eq.s32.totalorder %s41, 0
      %p215 = por %p213, %p214
      %s217 = sadd.s32 %s216, 1
      %p220 = scmp.eq.s32.totalorder %s35, 1
      %p221 = scmp.ne.s32.totalorder %s216, %s218
      %p222 = scmp.eq.s32.totalorder %s35, 0
      %p223 = por %p221, %p222
      %p224 = scmp.ne.s32.totalorder %s216, %s218
      %p225 = scmp.eq.s32.totalorder %s40, 1
      %p226 = por %p224, %p225
      %p227 = scmp.ne.s32.totalorder %s218, %s219
      %p228 = scmp.eq.s32.totalorder %s40, 0
      %p229 = por %p227, %p228
      %p230 = scmp.ne.s32.totalorder %s218, %s219
      %p231 = scmp.eq.s32.totalorder %s41, 1
      %p232 = por %p230, %p231
      %p234 = scmp.ne.s32.totalorder %s219, %s233
      %p235 = scmp.eq.s32.totalorder %s41, 0
      %p236 = por %p234, %p235
      %s238 = sadd.s32 %s237, 1
      %p241 = scmp.eq.s32.totalorder %s35, 1
      %p242 = scmp.ne.s32.totalorder %s237, %s239
      %p243 = scmp.eq.s32.totalorder %s35, 0
      %p244 = por %p242, %p243
      %p245 = scmp.ne.s32.totalorder %s237, %s239
      %p246 = scmp.eq.s32.totalorder %s40, 1
      %p247 = por %p245, %p246
      %p248 = scmp.ne.s32.totalorder %s239, %s240
      %p249 = scmp.eq.s32.totalorder %s40, 0
      %p250 = por %p248, %p249
      %p251 = scmp.ne.s32.totalorder %s239, %s240
      %p252 = scmp.eq.s32.totalorder %s41, 1
      %p253 = por %p251, %p252
      %p255 = scmp.ne.s32.totalorder %s240, %s254
      %p256 = scmp.eq.s32.totalorder %s41, 0
      %p257 = por %p255, %p256
      %s259 = sadd.s32 %s258, 1
      %p262 = scmp.eq.s32.totalorder %s35, 1
      %p263 = scmp.ne.s32.totalorder %s258, %s260
      %p264 = scmp.eq.s32.totalorder %s35, 0
      %p265 = por %p263, %p264
      %p266 = scmp.ne.s32.totalorder %s258, %s260
      %p267 = scmp.eq.s32.totalorder %s40, 1
      %p268 = por %p266, %p267
      %p269 = scmp.ne.s32.totalorder %s260, %s261
      %p270 = scmp.eq.s32.totalorder %s40, 0
      %p271 = por %p269, %p270
      %p272 = scmp.ne.s32.totalorder %s260, %s261
      %p273 = scmp.eq.s32.totalorder %s41, 1
      %p274 = por %p272, %p273
      %p276 = scmp.ne.s32.totalorder %s261, %s275
      %p277 = scmp.eq.s32.totalorder %s41, 0
      %p278 = por %p276, %p277
      %s280 = sadd.s32 %s279, 1
      %p283 = scmp.eq.s32.totalorder %s35, 1
      %p284 = scmp.ne.s32.totalorder %s279, %s281
      %p285 = scmp.eq.s32.totalorder %s35, 0
      %p286 = por %p284, %p285
      %p287 = scmp.ne.s32.totalorder %s279, %s281
      %p288 = scmp.eq.s32.totalorder %s40, 1
      %p289 = por %p287, %p288
      %p290 = scmp.ne.s32.totalorder %s281, %s282
      %p291 = scmp.eq.s32.totalorder %s40, 0
      %p292 = por %p290, %p291
      %p293 = scmp.ne.s32.totalorder %s281, %s282
      %p294 = scmp.eq.s32.totalorder %s41, 1
      %p295 = por %p293, %p294
      %p297 = scmp.ne.s32.totalorder %s282, %s296
      %p298 = scmp.eq.s32.totalorder %s41, 0
      %p299 = por %p297, %p298
      %s301 = sadd.s32 %s300, 1
      %p304 = scmp.eq.s32.totalorder %s35, 1
      %p305 = scmp.ne.s32.totalorder %s300, %s302
      %p306 = scmp.eq.s32.totalorder %s35, 0
      %p307 = por %p305, %p306
      %p308 = scmp.ne.s32.totalorder %s300, %s302
      %p309 = scmp.eq.s32.totalorder %s40, 1
      %p310 = por %p308, %p309
      %p311 = scmp.ne.s32.totalorder %s302, %s303
      %p312 = scmp.eq.s32.totalorder %s40, 0
      %p313 = por %p311, %p312
      %p314 = scmp.ne.s32.totalorder %s302, %s303
      %p315 = scmp.eq.s32.totalorder %s41, 1
      %p316 = por %p314, %p315
      %p318 = scmp.ne.s32.totalorder %s303, %s317
      %p319 = scmp.eq.s32.totalorder %s41, 0
      %p320 = por %p318, %p319
      %s322 = sadd.s32 %s321, 1
      %p325 = scmp.eq.s32.totalorder %s35, 1
      %p326 = scmp.ne.s32.totalorder %s321, %s323
      %p327 = scmp.eq.s32.totalorder %s35, 0
      %p328 = por %p326, %p327
      %p329 = scmp.ne.s32.totalorder %s321, %s323
      %p330 = scmp.eq.s32.totalorder %s40, 1
      %p331 = por %p329, %p330
      %p332 = scmp.ne.s32.totalorder %s323, %s324
      %p333 = scmp.eq.s32.totalorder %s40, 0
      %p334 = por %p332, %p333
      %p335 = scmp.ne.s32.totalorder %s323, %s324
      %p336 = scmp.eq.s32.totalorder %s41, 1
      %p337 = por %p335, %p336
      %p339 = scmp.ne.s32.totalorder %s324, %s338
      %p340 = scmp.eq.s32.totalorder %s41, 0
      %p341 = por %p339, %p340
      %s343 = sadd.s32 %s342, 1
      %p346 = scmp.eq.s32.totalorder %s35, 1
      %p347 = scmp.ne.s32.totalorder %s342, %s344
      %p348 = scmp.eq.s32.totalorder %s35, 0
      %p349 = por %p347, %p348
      %p350 = scmp.ne.s32.totalorder %s342, %s344
      %p351 = scmp.eq.s32.totalorder %s40, 1
      %p352 = por %p350, %p351
      %p353 = scmp.ne.s32.totalorder %s344, %s345
      %p354 = scmp.eq.s32.totalorder %s40, 0
      %p355 = por %p353, %p354
      %p356 = scmp.ne.s32.totalorder %s344, %s345
      %p357 = scmp.eq.s32.totalorder %s41, 1
      %p358 = por %p356, %p357
      %p360 = scmp.ne.s32.totalorder %s345, %s359
      %p361 = scmp.eq.s32.totalorder %s41, 0
      %p362 = por %p360, %p361
      %s364 = sadd.s32 %s363, 1
      %p367 = scmp.eq.s32.totalorder %s35, 1
      %p368 = scmp.ne.s32.totalorder %s363, %s365
      %p369 = scmp.eq.s32.totalorder %s35, 0
      %p370 = por %p368, %p369
      %p371 = scmp.ne.s32.totalorder %s363, %s365
      %p372 = scmp.eq.s32.totalorder %s40, 1
      %p373 = por %p371, %p372
      %p374 = scmp.ne.s32.totalorder %s365, %s366
      %p375 = scmp.eq.s32.totalorder %s40, 0
      %p376 = por %p374, %p375
      %p377 = scmp.ne.s32.totalorder %s365, %s366
      %p378 = scmp.eq.s32.totalorder %s41, 1
      %p379 = por %p377, %p378
      %p381 = scmp.ne.s32.totalorder %s366, %s380
      %p382 = scmp.eq.s32.totalorder %s41, 0
      %p383 = por %p381, %p382
      %s385 = sadd.s32 %s384, 1
      %p388 = scmp.eq.s32.totalorder %s35, 1
      %p389 = scmp.ne.s32.totalorder %s384, %s386
      %p390 = scmp.eq.s32.totalorder %s35, 0
      %p391 = por %p389, %p390
      %p392 = scmp.ne.s32.totalorder %s384, %s386
      %p393 = scmp.eq.s32.totalorder %s40, 1
      %p394 = por %p392, %p393
      %p395 = scmp.ne.s32.totalorder %s386, %s387
      %p396 = scmp.eq.s32.totalorder %s40, 0
      %p397 = por %p395, %p396
      %p398 = scmp.ne.s32.totalorder %s386, %s387
      %p399 = scmp.eq.s32.totalorder %s41, 1
      %p400 = por %p398, %p399
      %p402 = scmp.ne.s32.totalorder %s387, %s401
      %p403 = scmp.eq.s32.totalorder %s41, 0
      %p404 = por %p402, %p403
      %s406 = sadd.s32 %s405, 1
      %p409 = scmp.eq.s32.totalorder %s35, 1
      %p410 = scmp.ne.s32.totalorder %s405, %s407
      %p411 = scmp.eq.s32.totalorder %s35, 0
      %p412 = por %p410, %p411
      %p413 = scmp.ne.s32.totalorder %s405, %s407
      %p414 = scmp.eq.s32.totalorder %s40, 1
      %p415 = por %p413, %p414
      %p416 = scmp.ne.s32.totalorder %s407, %s408
      %p417 = scmp.eq.s32.totalorder %s40, 0
      %p418 = por %p416, %p417
      %p419 = scmp.ne.s32.totalorder %s407, %s408
      %p420 = scmp.eq.s32.totalorder %s41, 1
      %p421 = por %p419, %p420
      %p423 = scmp.ne.s32.totalorder %s408, %s422
      %p424 = scmp.eq.s32.totalorder %s41, 0
      %p425 = por %p423, %p424
      %s427 = sadd.s32 %s426, 1
      %p430 = scmp.eq.s32.totalorder %s35, 1
      %p431 = scmp.ne.s32.totalorder %s426, %s428
      %p432 = scmp.eq.s32.totalorder %s35, 0
      %p433 = por %p431, %p432
      %p434 = scmp.ne.s32.totalorder %s426, %s428
      %p435 = scmp.eq.s32.totalorder %s40, 1
      %p436 = por %p434, %p435
      %p437 = scmp.ne.s32.totalorder %s428, %s429
      %p438 = scmp.eq.s32.totalorder %s40, 0
      %p439 = por %p437, %p438
      %p440 = scmp.ne.s32.totalorder %s428, %s429
      %p441 = scmp.eq.s32.totalorder %s41, 1
      %p442 = por %p440, %p441
      %p444 = scmp.ne.s32.totalorder %s429, %s443
      %p445 = scmp.eq.s32.totalorder %s41, 0
      %p446 = por %p444, %p445
      %s448 = sadd.s32 %s447, 1
      %p451 = scmp.eq.s32.totalorder %s35, 1
      %p452 = scmp.ne.s32.totalorder %s447, %s449
      %p453 = scmp.eq.s32.totalorder %s35, 0
      %p454 = por %p452, %p453
      %p455 = scmp.ne.s32.totalorder %s447, %s449
      %p456 = scmp.eq.s32.totalorder %s40, 1
      %p457 = por %p455, %p456
      %p458 = scmp.ne.s32.totalorder %s449, %s450
      %p459 = scmp.eq.s32.totalorder %s40, 0
      %p460 = por %p458, %p459
      %p461 = scmp.ne.s32.totalorder %s449, %s450
      %p462 = scmp.eq.s32.totalorder %s41, 1
      %p463 = por %p461, %p462
      %p465 = scmp.ne.s32.totalorder %s450, %s464
      %p466 = scmp.eq.s32.totalorder %s41, 0
      %p467 = por %p465, %p466
      %s469 = sadd.s32 %s468, 1
      %p472 = scmp.eq.s32.totalorder %s35, 1
      %p473 = scmp.ne.s32.totalorder %s468, %s470
      %p474 = scmp.eq.s32.totalorder %s35, 0
      %p475 = por %p473, %p474
      %p476 = scmp.ne.s32.totalorder %s468, %s470
      %p477 = scmp.eq.s32.totalorder %s40, 1
      %p478 = por %p476, %p477
      %p479 = scmp.ne.s32.totalorder %s470, %s471
      %p480 = scmp.eq.s32.totalorder %s40, 0
      %p481 = por %p479, %p480
      %p482 = scmp.ne.s32.totalorder %s470, %s471
      %p483 = scmp.eq.s32.totalorder %s41, 1
      %p484 = por %p482, %p483
      %p486 = scmp.ne.s32.totalorder %s471, %s485
      %p487 = scmp.eq.s32.totalorder %s41, 0
      %p488 = por %p486, %p487
      %s490 = sadd.s32 %s489, 1
      %p493 = scmp.eq.s32.totalorder %s35, 1
      %p494 = scmp.ne.s32.totalorder %s489, %s491
      %p495 = scmp.eq.s32.totalorder %s35, 0
      %p496 = por %p494, %p495
      %p497 = scmp.ne.s32.totalorder %s489, %s491
      %p498 = scmp.eq.s32.totalorder %s40, 1
      %p499 = por %p497, %p498
      %p500 = scmp.ne.s32.totalorder %s491, %s492
      %p501 = scmp.eq.s32.totalorder %s40, 0
      %p502 = por %p500, %p501
      %p503 = scmp.ne.s32.totalorder %s491, %s492
      %p504 = scmp.eq.s32.totalorder %s41, 1
      %p505 = por %p503, %p504
      %p507 = scmp.ne.s32.totalorder %s492, %s506
      %p508 = scmp.eq.s32.totalorder %s41, 0
      %p509 = por %p507, %p508
      %s511 = sadd.s32 %s510, 1
      %p514 = scmp.eq.s32.totalorder %s35, 1
      %p515 = scmp.ne.s32.totalorder %s510, %s512
      %p516 = scmp.eq.s32.totalorder %s35, 0
      %p517 = por %p515, %p516
      %p518 = scmp.ne.s32.totalorder %s510, %s512
      %p519 = scmp.eq.s32.totalorder %s40, 1
      %p520 = por %p518, %p519
      %p521 = scmp.ne.s32.totalorder %s512, %s513
      %p522 = scmp.eq.s32.totalorder %s40, 0
      %p523 = por %p521, %p522
      %p524 = scmp.ne.s32.totalorder %s512, %s513
      %p525 = scmp.eq.s32.totalorder %s41, 1
      %p526 = por %p524, %p525
      %p528 = scmp.ne.s32.totalorder %s513, %s527
      %p529 = scmp.eq.s32.totalorder %s41, 0
      %p530 = por %p528, %p529
      %s532 = sadd.s32 %s531, 1
      %p535 = scmp.eq.s32.totalorder %s35, 1
      %p536 = scmp.ne.s32.totalorder %s531, %s533
      %p537 = scmp.eq.s32.totalorder %s35, 0
      %p538 = por %p536, %p537
      %p539 = scmp.ne.s32.totalorder %s531, %s533
      %p540 = scmp.eq.s32.totalorder %s40, 1
      %p541 = por %p539, %p540
      %p542 = scmp.ne.s32.totalorder %s533, %s534
      %p543 = scmp.eq.s32.totalorder %s40, 0
      %p544 = por %p542, %p543
      %p545 = scmp.ne.s32.totalorder %s533, %s534
      %p546 = scmp.eq.s32.totalorder %s41, 1
      %p547 = por %p545, %p546
      %p549 = scmp.ne.s32.totalorder %s534, %s548
      %p550 = scmp.eq.s32.totalorder %s41, 0
      %p551 = por %p549, %p550
      %s553 = sadd.s32 %s552, 1
      %p556 = scmp.eq.s32.totalorder %s35, 1
      %p557 = scmp.ne.s32.totalorder %s552, %s554
      %p558 = scmp.eq.s32.totalorder %s35, 0
      %p559 = por %p557, %p558
      %p560 = scmp.ne.s32.totalorder %s552, %s554
      %p561 = scmp.eq.s32.totalorder %s40, 1
      %p562 = por %p560, %p561
      %p563 = scmp.ne.s32.totalorder %s554, %s555
      %p564 = scmp.eq.s32.totalorder %s40, 0
      %p565 = por %p563, %p564
      %p566 = scmp.ne.s32.totalorder %s554, %s555
      %p567 = scmp.eq.s32.totalorder %s41, 1
      %p568 = por %p566, %p567
      %p570 = scmp.ne.s32.totalorder %s555, %s569
      %p571 = scmp.eq.s32.totalorder %s41, 0
      %p572 = por %p570, %p571
      %s574 = sadd.s32 %s573, 1
      %p577 = scmp.eq.s32.totalorder %s35, 1
      %p578 = scmp.ne.s32.totalorder %s573, %s575
      %p579 = scmp.eq.s32.totalorder %s35, 0
      %p580 = por %p578, %p579
      %p581 = scmp.ne.s32.totalorder %s573, %s575
      %p582 = scmp.eq.s32.totalorder %s40, 1
      %p583 = por %p581, %p582
      %p584 = scmp.ne.s32.totalorder %s575, %s576
      %p585 = scmp.eq.s32.totalorder %s40, 0
      %p586 = por %p584, %p585
      %p587 = scmp.ne.s32.totalorder %s575, %s576
      %p588 = scmp.eq.s32.totalorder %s41, 1
      %p589 = por %p587, %p588
      %p591 = scmp.ne.s32.totalorder %s576, %s590
      %p592 = scmp.eq.s32.totalorder %s41, 0
      %p593 = por %p591, %p592
      %s594 = ssub.s32 %s35, %s42
      %p595 = scmp.eq.s32.totalorder %s594, 0
      %s597 = sadd.s32 %s596, 1
      %s598 = scalar_select %p595, %s596, %s597
      %p601 = pneg %p595
      %p602 = scmp.eq.s32.totalorder %s35, 1
      %p603 = por %p601, %p602
      %p604 = scmp.ne.s32.totalorder %s596, %s599
      %p605 = scmp.eq.s32.totalorder %s35, 0
      %p606 = por %p604, %p605
      %p607 = scmp.ne.s32.totalorder %s596, %s599
      %p608 = scmp.eq.s32.totalorder %s40, 1
      %p609 = por %p607, %p608
      %p610 = scmp.ne.s32.totalorder %s599, %s600
      %p611 = scmp.eq.s32.totalorder %s40, 0
      %p612 = por %p610, %p611
      %p613 = scmp.ne.s32.totalorder %s599, %s600
      %p614 = scmp.eq.s32.totalorder %s41, 1
      %p615 = por %p613, %p614
      %p617 = scmp.ne.s32.totalorder %s600, %s616
      %p618 = scmp.eq.s32.totalorder %s41, 0
      %p619 = por %p617, %p618
      %p620 = scmp.le.s32.totalorder 1, %s35
      %p621 = scmp.lt.s32.totalorder %s35, 3
      %p622 = pnand %p620, %p621
      %p623 = pneg %p622
      // Predicated region
      $region9: #{lcznet_forward.1} parent=5 // pred_check
        _
      $region10: #{lcznet_forward.1} parent=5 // pred_check_branch
        %625 = sbr.rel (%p622) target = $region12
      $region11: #{lcznet_forward.1} parent=5 // pred_region
        %s626 = ssub.s32 %s35, 1
        // Predicated region
        $region13: #{lcznet_forward.1} parent=11 // pred_check
          %p627 = pneg %p82
        $region14: #{lcznet_forward.1} parent=11 // pred_check_branch
          %629 = sbr.rel (%p627) target = $region16
        $region15: #{lcznet_forward.1} parent=11 // pred_region
          _
        $region16: #{lcznet_forward.1} parent=11 // pred_fallthru
          _
        // Predicated region
        $region17: #{lcznet_forward.1} parent=11 // pred_check
          %p630 = pneg %p103
        $region18: #{lcznet_forward.1} parent=11 // pred_check_branch
          %632 = sbr.rel (%p630) target = $region20
        $region19: #{lcznet_forward.1} parent=11 // pred_region
          _
        $region20: #{lcznet_forward.1} parent=11 // pred_fallthru
          _
        // Predicated region
        $region21: #{lcznet_forward.1} parent=11 // pred_check
          %p633 = pneg %p124
        $region22: #{lcznet_forward.1} parent=11 // pred_check_branch
          %635 = sbr.rel (%p633) target = $region24
        $region23: #{lcznet_forward.1} parent=11 // pred_region
          _
        $region24: #{lcznet_forward.1} parent=11 // pred_fallthru
          _
        // Predicated region
        $region25: #{lcznet_forward.1} parent=11 // pred_check
          %p636 = pneg %p145
        $region26: #{lcznet_forward.1} parent=11 // pred_check_branch
          %638 = sbr.rel (%p636) target = $region28
        $region27: #{lcznet_forward.1} parent=11 // pred_region
          _
        $region28: #{lcznet_forward.1} parent=11 // pred_fallthru
          _
        // Predicated region
        $region29: #{lcznet_forward.1} parent=11 // pred_check
          %p639 = pneg %p166
        $region30: #{lcznet_forward.1} parent=11 // pred_check_branch
          %641 = sbr.rel (%p639) target = $region32
        $region31: #{lcznet_forward.1} parent=11 // pred_region
          _
        $region32: #{lcznet_forward.1} parent=11 // pred_fallthru
          _
        // Predicated region
        $region33: #{lcznet_forward.1} parent=11 // pred_check
          %p642 = pneg %p187
        $region34: #{lcznet_forward.1} parent=11 // pred_check_branch
          %644 = sbr.rel (%p642) target = $region36
        $region35: #{lcznet_forward.1} parent=11 // pred_region
          _
        $region36: #{lcznet_forward.1} parent=11 // pred_fallthru
          _
        // Predicated region
        $region37: #{lcznet_forward.1} parent=11 // pred_check
          %p645 = pneg %p208
        $region38: #{lcznet_forward.1} parent=11 // pred_check_branch
          %647 = sbr.rel (%p645) target = $region40
        $region39: #{lcznet_forward.1} parent=11 // pred_region
          _
        $region40: #{lcznet_forward.1} parent=11 // pred_fallthru
          _
        // Predicated region
        $region41: #{lcznet_forward.1} parent=11 // pred_check
          %p648 = pneg %p229
        $region42: #{lcznet_forward.1} parent=11 // pred_check_branch
          %650 = sbr.rel (%p648) target = $region44
        $region43: #{lcznet_forward.1} parent=11 // pred_region
          _
        $region44: #{lcznet_forward.1} parent=11 // pred_fallthru
          _
        // Predicated region
        $region45: #{lcznet_forward.1} parent=11 // pred_check
          %p651 = pneg %p250
        $region46: #{lcznet_forward.1} parent=11 // pred_check_branch
          %653 = sbr.rel (%p651) target = $region48
        $region47: #{lcznet_forward.1} parent=11 // pred_region
          _
        $region48: #{lcznet_forward.1} parent=11 // pred_fallthru
          _
        // Predicated region
        $region49: #{lcznet_forward.1} parent=11 // pred_check
          %p654 = pneg %p271
        $region50: #{lcznet_forward.1} parent=11 // pred_check_branch
          %656 = sbr.rel (%p654) target = $region52
        $region51: #{lcznet_forward.1} parent=11 // pred_region
          _
        $region52: #{lcznet_forward.1} parent=11 // pred_fallthru
          _
        // Predicated region
        $region53: #{lcznet_forward.1} parent=11 // pred_check
          %p657 = pneg %p292
        $region54: #{lcznet_forward.1} parent=11 // pred_check_branch
          %659 = sbr.rel (%p657) target = $region56
        $region55: #{lcznet_forward.1} parent=11 // pred_region
          _
        $region56: #{lcznet_forward.1} parent=11 // pred_fallthru
          _
        // Predicated region
        $region57: #{lcznet_forward.1} parent=11 // pred_check
          %p660 = pneg %p313
        $region58: #{lcznet_forward.1} parent=11 // pred_check_branch
          %662 = sbr.rel (%p660) target = $region60
        $region59: #{lcznet_forward.1} parent=11 // pred_region
          _
        $region60: #{lcznet_forward.1} parent=11 // pred_fallthru
          _
        // Predicated region
        $region61: #{lcznet_forward.1} parent=11 // pred_check
          %p663 = pneg %p334
        $region62: #{lcznet_forward.1} parent=11 // pred_check_branch
          %665 = sbr.rel (%p663) target = $region64
        $region63: #{lcznet_forward.1} parent=11 // pred_region
          _
        $region64: #{lcznet_forward.1} parent=11 // pred_fallthru
          _
        // Predicated region
        $region65: #{lcznet_forward.1} parent=11 // pred_check
          %p666 = pneg %p355
        $region66: #{lcznet_forward.1} parent=11 // pred_check_branch
          %668 = sbr.rel (%p666) target = $region68
        $region67: #{lcznet_forward.1} parent=11 // pred_region
          _
        $region68: #{lcznet_forward.1} parent=11 // pred_fallthru
          _
        // Predicated region
        $region69: #{lcznet_forward.1} parent=11 // pred_check
          %p669 = pneg %p376
        $region70: #{lcznet_forward.1} parent=11 // pred_check_branch
          %671 = sbr.rel (%p669) target = $region72
        $region71: #{lcznet_forward.1} parent=11 // pred_region
          _
        $region72: #{lcznet_forward.1} parent=11 // pred_fallthru
          _
        // Predicated region
        $region73: #{lcznet_forward.1} parent=11 // pred_check
          %p672 = pneg %p397
        $region74: #{lcznet_forward.1} parent=11 // pred_check_branch
          %674 = sbr.rel (%p672) target = $region76
        $region75: #{lcznet_forward.1} parent=11 // pred_region
          _
        $region76: #{lcznet_forward.1} parent=11 // pred_fallthru
          _
        // Predicated region
        $region77: #{lcznet_forward.1} parent=11 // pred_check
          %p675 = pneg %p418
        $region78: #{lcznet_forward.1} parent=11 // pred_check_branch
          %677 = sbr.rel (%p675) target = $region80
        $region79: #{lcznet_forward.1} parent=11 // pred_region
          _
        $region80: #{lcznet_forward.1} parent=11 // pred_fallthru
          _
        // Predicated region
        $region81: #{lcznet_forward.1} parent=11 // pred_check
          %p678 = pneg %p439
        $region82: #{lcznet_forward.1} parent=11 // pred_check_branch
          %680 = sbr.rel (%p678) target = $region84
        $region83: #{lcznet_forward.1} parent=11 // pred_region
          _
        $region84: #{lcznet_forward.1} parent=11 // pred_fallthru
          _
        // Predicated region
        $region85: #{lcznet_forward.1} parent=11 // pred_check
          %p681 = pneg %p460
        $region86: #{lcznet_forward.1} parent=11 // pred_check_branch
          %683 = sbr.rel (%p681) target = $region88
        $region87: #{lcznet_forward.1} parent=11 // pred_region
          _
        $region88: #{lcznet_forward.1} parent=11 // pred_fallthru
          _
        // Predicated region
        $region89: #{lcznet_forward.1} parent=11 // pred_check
          %p684 = pneg %p481
        $region90: #{lcznet_forward.1} parent=11 // pred_check_branch
          %686 = sbr.rel (%p684) target = $region92
        $region91: #{lcznet_forward.1} parent=11 // pred_region
          _
        $region92: #{lcznet_forward.1} parent=11 // pred_fallthru
          _
        // Predicated region
        $region93: #{lcznet_forward.1} parent=11 // pred_check
          %p687 = pneg %p502
        $region94: #{lcznet_forward.1} parent=11 // pred_check_branch
          %689 = sbr.rel (%p687) target = $region96
        $region95: #{lcznet_forward.1} parent=11 // pred_region
          _
        $region96: #{lcznet_forward.1} parent=11 // pred_fallthru
          _
        // Predicated region
        $region97: #{lcznet_forward.1} parent=11 // pred_check
          %p690 = pneg %p523
        $region98: #{lcznet_forward.1} parent=11 // pred_check_branch
          %692 = sbr.rel (%p690) target = $region100
        $region99: #{lcznet_forward.1} parent=11 // pred_region
          _
        $region100: #{lcznet_forward.1} parent=11 // pred_fallthru
          _
        // Predicated region
        $region101: #{lcznet_forward.1} parent=11 // pred_check
          %p693 = pneg %p544
        $region102: #{lcznet_forward.1} parent=11 // pred_check_branch
          %695 = sbr.rel (%p693) target = $region104
        $region103: #{lcznet_forward.1} parent=11 // pred_region
          _
        $region104: #{lcznet_forward.1} parent=11 // pred_fallthru
          _
        // Predicated region
        $region105: #{lcznet_forward.1} parent=11 // pred_check
          %p696 = pneg %p565
        $region106: #{lcznet_forward.1} parent=11 // pred_check_branch
          %698 = sbr.rel (%p696) target = $region108
        $region107: #{lcznet_forward.1} parent=11 // pred_region
          _
        $region108: #{lcznet_forward.1} parent=11 // pred_fallthru
          _
        // Predicated region
        $region109: #{lcznet_forward.1} parent=11 // pred_check
          %p699 = pneg %p586
        $region110: #{lcznet_forward.1} parent=11 // pred_check_branch
          %701 = sbr.rel (%p699) target = $region112
        $region111: #{lcznet_forward.1} parent=11 // pred_region
          _
        $region112: #{lcznet_forward.1} parent=11 // pred_fallthru
          _
      $region12: #{lcznet_forward.1} parent=5 // pred_fallthru
        _
      %p702 = scmp.lt.s32.totalorder %s35, 2
      // Predicated region
      $region113: #{lcznet_forward.1} parent=5 // pred_check
        %p703 = pneg %p702
      $region114: #{lcznet_forward.1} parent=5 // pred_check_branch
        %705 = sbr.rel (%p703) target = $region116
      $region115: #{lcznet_forward.1} parent=5 // pred_region
        // Predicated region
        $region117: #{lcznet_forward.1} parent=115 // pred_check
          %p706 = pneg %p55
        $region118: #{lcznet_forward.1} parent=115 // pred_check_branch
          %708 = sbr.rel (%p706) target = $region120
        $region119: #{lcznet_forward.1} parent=115 // pred_region
          %p709 = scmp.lt.s32.totalorder %s35, 1
          %s710 = scalar_select %p709, %s35, 1
          %s711 = smul.addr %s710, 4
          %s712 = scalar_lea.vmem %s0, %s711
        $region120: #{lcznet_forward.1} parent=115 // pred_fallthru
          _
      $region116: #{lcznet_forward.1} parent=5 // pred_fallthru
        _
      %p713 = scmp.le.s32.totalorder 1, %s35
      %p714 = scmp.lt.s32.totalorder %s35, 3
      %p715 = pnand %p713, %p714
      %p716 = pneg %p715
      // Predicated region
      $region121: #{lcznet_forward.1} parent=5 // pred_check
        _
      $region122: #{lcznet_forward.1} parent=5 // pred_check_branch
        %718 = sbr.rel (%p715) target = $region124
      $region123: #{lcznet_forward.1} parent=5 // pred_region
        %s719 = ssub.s32 %s35, 1
        %p720 = scmp.lt.s32.totalorder %s40, 1
        %s721 = scalar_select %p720, %s40, 1
        %s722 = smul.addr %s721, 4
        %s723 = scalar_lea.vmem %s0, %s722
        %p724 = pneg %p61
        %p725 = pneg %p58
        %p726 = pneg %p82
        %p727 = pneg %p79
        %p728 = pneg %p103
        %p729 = pneg %p100
        %p730 = pneg %p124
        %p731 = pneg %p121
        %p732 = pneg %p145
        %p733 = pneg %p142
        %p734 = pneg %p166
        %p735 = pneg %p163
        %p736 = pneg %p187
        %p737 = pneg %p184
        %p738 = pneg %p208
        %p739 = pneg %p205
        %p740 = pneg %p229
        %p741 = pneg %p226
        %p742 = pneg %p250
        %p743 = pneg %p247
        %p744 = pneg %p271
        %p745 = pneg %p268
        %p746 = pneg %p292
        %p747 = pneg %p289
        %p748 = pneg %p313
        %p749 = pneg %p310
        %p750 = pneg %p334
        %p751 = pneg %p331
        %p752 = pneg %p355
        %p753 = pneg %p352
        %p754 = pneg %p376
        %p755 = pneg %p373
        %p756 = pneg %p397
        %p757 = pneg %p394
        %p758 = pneg %p418
        %p759 = pneg %p415
        %p760 = pneg %p439
        %p761 = pneg %p436
        %p762 = pneg %p460
        %p763 = pneg %p457
        %p764 = pneg %p481
        %p765 = pneg %p478
        %p766 = pneg %p502
        %p767 = pneg %p499
        %p768 = pneg %p523
        %p769 = pneg %p520
        %p770 = pneg %p544
        %p771 = pneg %p541
        %p772 = pneg %p565
        %p773 = pneg %p562
        %p774 = pneg %p586
        %p775 = pneg %p583
        %p776 = pneg %p612
        %p777 = pneg %p609
        %s778 = sand.u32 %s599, 1
        %s779 = scalar_lea.sflag [#allocation3], %s778
        %s780 = sand.u32 %s599, 1
        %s781 = scalar_lea.vmem [#allocation2], %s780
        %p782 = scmp.lt.s32.totalorder %s40, 1
        %s783 = scalar_select %p782, %s40, 1
        %s784 = smul.addr %s783, 4
        %s785 = scalar_lea.vmem %s0, %s784
        %v787 = vld [vmem:[%s785] sm:$0xf]
        %v788 = vld [vmem:[%s2] sm:$0xf]
        %v789 = vld [vmem:[%s2 + $0x4] sm:$0xf]
        %v790 = vpack.c.bf16 %v787, %v787
        %v791 = vld [vmem:[%s1] sm:$0xf]
        %v792 = vld [vmem:[%s1 + $0x4] sm:$0xf]
        %v793 = vld [vmem:[%s1 + $0x8] sm:$0xf]
        %v794 = vld [vmem:[%s1 + $0xc] sm:$0xf]
        %v795 = vld [vmem:[%s1 + $0x10] sm:$0xf]
        %v796 = vld [vmem:[%s1 + $0x14] sm:$0xf]
        %v797 = vld [vmem:[%s1 + $0x18] sm:$0xf]
        %v798 = vld [vmem:[%s1 + $0x1c] sm:$0xf]
        %v799 = vld [vmem:[%s1 + $0x20] sm:$0xf]
        %v800 = vld [vmem:[%s1 + $0x24] sm:$0xf]
        %v801 = vld [vmem:[%s1 + $0x28] sm:$0xf]
        %v802 = vld [vmem:[%s1 + $0x2c] sm:$0xf]
        %v803 = vld [vmem:[%s1 + $0x30] sm:$0xf]
        %v804 = vld [vmem:[%s1 + $0x34] sm:$0xf]
        %v805 = vld [vmem:[%s1 + $0x38] sm:$0xf]
        %v806 = vld [vmem:[%s1 + $0x3c] sm:$0xf]
        %v823 = vunpack.c.l.b16 %v791
        %v824 = vunpack.c.l.b16 %v792
        %v825 = vunpack.c.l.b16 %v793
        %v826 = vunpack.c.l.b16 %v794
        %v827 = vunpack.c.l.b16 %v795
        %v828 = vunpack.c.l.b16 %v796
        %v829 = vunpack.c.l.b16 %v797
        %v830 = vunpack.c.l.b16 %v798
        %v831 = vunpack.c.l.b16 %v799
        %v832 = vunpack.c.l.b16 %v800
        %v833 = vunpack.c.l.b16 %v801
        %v834 = vunpack.c.l.b16 %v802
        %v835 = vunpack.c.l.b16 %v803
        %v836 = vunpack.c.l.b16 %v804
        %v837 = vunpack.c.l.b16 %v805
        %v838 = vunpack.c.l.b16 %v806
        %v839 = vpack.c.b16 %v824, %v823
        %v840 = vpack.c.b16 %v826, %v825
        %v841 = vpack.c.b16 %v828, %v827
        %v842 = vpack.c.b16 %v830, %v829
        %v843 = vpack.c.b16 %v832, %v831
        %v844 = vpack.c.b16 %v834, %v833
        %v845 = vpack.c.b16 %v836, %v835
        %v846 = vpack.c.b16 %v838, %v837
        %855 = vmatprep.subr.bf16.mxu0 0
        %856 = vmatpush1.bf16.msra.mxu0 %v839
        %857 = vmatprep.subr.bf16.mxu0 0
        %858 = vmatpush1.bf16.msra.mxu0 %v840
        %859 = vmatprep.subr.bf16.mxu0 0
        %860 = vmatpush1.bf16.msra.mxu0 %v841
        %861 = vmatprep.subr.bf16.mxu0 0
        %862 = vmatpush1.bf16.msra.mxu0 %v842
        %863 = vmatprep.subr.bf16.mxu0 0
        %864 = vmatpush1.bf16.msra.mxu0 %v843
        %865 = vmatprep.subr.bf16.mxu0 0
        %866 = vmatpush1.bf16.msra.mxu0 %v844
        %867 = vmatprep.subr.bf16.mxu0 0
        %868 = vmatpush1.bf16.msra.mxu0 %v845
        %869 = vmatprep.subr.bf16.mxu0 0
        %870 = vmatpush1.bf16.msra.mxu0 %v846
        %871 = vmatprep.subr.bf16.mxu0 0
        %872 = vmatpush1.bf16.msra.mxu0 0
        %873 = vmatprep.subr.bf16.mxu0 0
        %874 = vmatpush1.bf16.msra.mxu0 0
        %875 = vmatprep.subr.bf16.mxu0 0
        %876 = vmatpush1.bf16.msra.mxu0 0
        %877 = vmatprep.subr.bf16.mxu0 0
        %878 = vmatpush1.bf16.msra.mxu0 0
        %879 = vmatprep.subr.bf16.mxu0 0
        %880 = vmatpush1.bf16.msra.mxu0 0
        %881 = vmatprep.subr.bf16.mxu0 0
        %882 = vmatpush1.bf16.msra.mxu0 0
        %883 = vmatprep.subr.bf16.mxu0 0
        %884 = vmatpush1.bf16.msra.mxu0 0
        %885 = vmatprep.subr.bf16.mxu0 0
        %886 = vmatpush1.bf16.msra.mxu0 0
        %887 = vmatprep.mubr.bf16.mxu0 0
        %888 = vmatmul.mubr.bf16.gmra.mrb[0].mxu0 %v790
        %v889 = vpop.f32.mrb[0].mxu0
        %v890 = vadd.f32 0.0, %v889
        %v891 = vpop.f32.mrb[0].mxu0
        %v892 = vpop.f32.mrb[0].mxu0
        %v893 = vpop.f32.mrb[0].mxu0
        %894 = vdwg.mxu0
        %s895 = scalar_lea.vmem %s1, 64
        %v896 = vld [vmem:[%s895] sm:$0xf]
        %v897 = vld [vmem:[%s895 + $0x4] sm:$0xf]
        %v898 = vld [vmem:[%s895 + $0x8] sm:$0xf]
        %v899 = vld [vmem:[%s895 + $0xc] sm:$0xf]
        %v900 = vld [vmem:[%s895 + $0x10] sm:$0xf]
        %v901 = vld [vmem:[%s895 + $0x14] sm:$0xf]
        %v902 = vld [vmem:[%s895 + $0x18] sm:$0xf]
        %v903 = vld [vmem:[%s895 + $0x1c] sm:$0xf]
        %v904 = vld [vmem:[%s895 + $0x20] sm:$0xf]
        %v905 = vld [vmem:[%s895 + $0x24] sm:$0xf]
        %v906 = vld [vmem:[%s895 + $0x28] sm:$0xf]
        %v907 = vld [vmem:[%s895 + $0x2c] sm:$0xf]
        %v908 = vld [vmem:[%s895 + $0x30] sm:$0xf]
        %v909 = vld [vmem:[%s895 + $0x34] sm:$0xf]
        %v910 = vld [vmem:[%s895 + $0x38] sm:$0xf]
        %v911 = vld [vmem:[%s895 + $0x3c] sm:$0xf]
        %v928 = vunpack.c.l.b16 %v896
        %v929 = vunpack.c.l.b16 %v897
        %v930 = vunpack.c.l.b16 %v898
        %v931 = vunpack.c.l.b16 %v899
        %v932 = vunpack.c.l.b16 %v900
        %v933 = vunpack.c.l.b16 %v901
        %v934 = vunpack.c.l.b16 %v902
        %v935 = vunpack.c.l.b16 %v903
        %v936 = vunpack.c.l.b16 %v904
        %v937 = vunpack.c.l.b16 %v905
        %v938 = vunpack.c.l.b16 %v906
        %v939 = vunpack.c.l.b16 %v907
        %v940 = vunpack.c.l.b16 %v908
        %v941 = vunpack.c.l.b16 %v909
        %v942 = vunpack.c.l.b16 %v910
        %v943 = vunpack.c.l.b16 %v911
        %v944 = vpack.c.b16 %v929, %v928
        %v945 = vpack.c.b16 %v931, %v930
        %v946 = vpack.c.b16 %v933, %v932
        %v947 = vpack.c.b16 %v935, %v934
        %v948 = vpack.c.b16 %v937, %v936
        %v949 = vpack.c.b16 %v939, %v938
        %v950 = vpack.c.b16 %v941, %v940
        %v951 = vpack.c.b16 %v943, %v942
        %960 = vmatprep.subr.bf16.mxu0 0
        %961 = vmatpush1.bf16.msra.mxu0 %v944
        %962 = vmatprep.subr.bf16.mxu0 0
        %963 = vmatpush1.bf16.msra.mxu0 %v945
        %964 = vmatprep.subr.bf16.mxu0 0
        %965 = vmatpush1.bf16.msra.mxu0 %v946
        %966 = vmatprep.subr.bf16.mxu0 0
        %967 = vmatpush1.bf16.msra.mxu0 %v947
        %968 = vmatprep.subr.bf16.mxu0 0
        %969 = vmatpush1.bf16.msra.mxu0 %v948
        %970 = vmatprep.subr.bf16.mxu0 0
        %971 = vmatpush1.bf16.msra.mxu0 %v949
        %972 = vmatprep.subr.bf16.mxu0 0
        %973 = vmatpush1.bf16.msra.mxu0 %v950
        %974 = vmatprep.subr.bf16.mxu0 0
        %975 = vmatpush1.bf16.msra.mxu0 %v951
        %976 = vmatprep.subr.bf16.mxu0 0
        %977 = vmatpush1.bf16.msra.mxu0 0
        %978 = vmatprep.subr.bf16.mxu0 0
        %979 = vmatpush1.bf16.msra.mxu0 0
        %980 = vmatprep.subr.bf16.mxu0 0
        %981 = vmatpush1.bf16.msra.mxu0 0
        %982 = vmatprep.subr.bf16.mxu0 0
        %983 = vmatpush1.bf16.msra.mxu0 0
        %984 = vmatprep.subr.bf16.mxu0 0
        %985 = vmatpush1.bf16.msra.mxu0 0
        %986 = vmatprep.subr.bf16.mxu0 0
        %987 = vmatpush1.bf16.msra.mxu0 0
        %988 = vmatprep.subr.bf16.mxu0 0
        %989 = vmatpush1.bf16.msra.mxu0 0
        %990 = vmatprep.subr.bf16.mxu0 0
        %991 = vmatpush1.bf16.msra.mxu0 0
        %992 = vmatprep.mubr.bf16.mxu0 0
        %993 = vmatmul.mubr.bf16.gmra.mrb[0].mxu0 %v790
        %v994 = vpop.f32.mrb[0].mxu0
        %v995 = vadd.f32 0.0, %v994
        %v996 = vpop.f32.mrb[0].mxu0
        %v997 = vpop.f32.mrb[0].mxu0
        %v998 = vpop.f32.mrb[0].mxu0
        %999 = vdwg.mxu0
        %s1000 = scalar_lea.vmem %s1, 128
        %v1001 = vld [vmem:[%s1000] sm:$0xf]
        %v1002 = vld [vmem:[%s1000 + $0x4] sm:$0xf]
        %v1003 = vld [vmem:[%s1000 + $0x8] sm:$0xf]
        %v1004 = vld [vmem:[%s1000 + $0xc] sm:$0xf]
        %v1005 = vld [vmem:[%s1000 + $0x10] sm:$0xf]
        %v1006 = vld [vmem:[%s1000 + $0x14] sm:$0xf]
        %v1007 = vld [vmem:[%s1000 + $0x18] sm:$0xf]
        %v1008 = vld [vmem:[%s1000 + $0x1c] sm:$0xf]
        %v1009 = vld [vmem:[%s1000 + $0x20] sm:$0xf]
        %v1010 = vld [vmem:[%s1000 + $0x24] sm:$0xf]
        %v1011 = vld [vmem:[%s1000 + $0x28] sm:$0xf]
        %v1012 = vld [vmem:[%s1000 + $0x2c] sm:$0xf]
        %v1013 = vld [vmem:[%s1000 + $0x30] sm:$0xf]
        %v1014 = vld [vmem:[%s1000 + $0x34] sm:$0xf]
        %v1015 = vld [vmem:[%s1000 + $0x38] sm:$0xf]
        %v1016 = vld [vmem:[%s1000 + $0x3c] sm:$0xf]
        %v1033 = vunpack.c.l.b16 %v1001
        %v1034 = vunpack.c.l.b16 %v1002
        %v1035 = vunpack.c.l.b16 %v1003
        %v1036 = vunpack.c.l.b16 %v1004
        %v1037 = vunpack.c.l.b16 %v1005
        %v1038 = vunpack.c.l.b16 %v1006
        %v1039 = vunpack.c.l.b16 %v1007
        %v1040 = vunpack.c.l.b16 %v1008
        %v1041 = vunpack.c.l.b16 %v1009
        %v1042 = vunpack.c.l.b16 %v1010
        %v1043 = vunpack.c.l.b16 %v1011
        %v1044 = vunpack.c.l.b16 %v1012
        %v1045 = vunpack.c.l.b16 %v1013
        %v1046 = vunpack.c.l.b16 %v1014
        %v1047 = vunpack.c.l.b16 %v1015
        %v1048 = vunpack.c.l.b16 %v1016
        %v1049 = vpack.c.b16 %v1034, %v1033
        %v1050 = vpack.c.b16 %v1036, %v1035
        %v1051 = vpack.c.b16 %v1038, %v1037
        %v1052 = vpack.c.b16 %v1040, %v1039
        %v1053 = vpack.c.b16 %v1042, %v1041
        %v1054 = vpack.c.b16 %v1044, %v1043
        %v1055 = vpack.c.b16 %v1046, %v1045
        %v1056 = vpack.c.b16 %v1048, %v1047
        %1065 = vmatprep.subr.bf16.mxu0 0
        %1066 = vmatpush1.bf16.msra.mxu0 %v1049
        %1067 = vmatprep.subr.bf16.mxu0 0
        %1068 = vmatpush1.bf16.msra.mxu0 %v1050
        %1069 = vmatprep.subr.bf16.mxu0 0
        %1070 = vmatpush1.bf16.msra.mxu0 %v1051
        %1071 = vmatprep.subr.bf16.mxu0 0
        %1072 = vmatpush1.bf16.msra.mxu0 %v1052
        %1073 = vmatprep.subr.bf16.mxu0 0
        %1074 = vmatpush1.bf16.msra.mxu0 %v1053
        %1075 = vmatprep.subr.bf16.mxu0 0
        %1076 = vmatpush1.bf16.msra.mxu0 %v1054
        %1077 = vmatprep.subr.bf16.mxu0 0
        %1078 = vmatpush1.bf16.msra.mxu0 %v1055
        %1079 = vmatprep.subr.bf16.mxu0 0
        %1080 = vmatpush1.bf16.msra.mxu0 %v1056
        %1081 = vmatprep.subr.bf16.mxu0 0
        %1082 = vmatpush1.bf16.msra.mxu0 0
        %1083 = vmatprep.subr.bf16.mxu0 0
        %1084 = vmatpush1.bf16.msra.mxu0 0
        %1085 = vmatprep.subr.bf16.mxu0 0
        %1086 = vmatpush1.bf16.msra.mxu0 0
        %1087 = vmatprep.subr.bf16.mxu0 0
        %1088 = vmatpush1.bf16.msra.mxu0 0
        %1089 = vmatprep.subr.bf16.mxu0 0
        %1090 = vmatpush1.bf16.msra.mxu0 0
        %1091 = vmatprep.subr.bf16.mxu0 0
        %1092 = vmatpush1.bf16.msra.mxu0 0
        %1093 = vmatprep.subr.bf16.mxu0 0
        %1094 = vmatpush1.bf16.msra.mxu0 0
        %1095 = vmatprep.subr.bf16.mxu0 0
        %1096 = vmatpush1.bf16.msra.mxu0 0
        %1097 = vmatprep.mubr.bf16.mxu0 0
        %1098 = vmatmul.mubr.bf16.gmra.mrb[0].mxu0 %v790
        %v1099 = vpop.f32.mrb[0].mxu0
        %v1100 = vadd.f32 0.0, %v1099
        %v1101 = vpop.f32.mrb[0].mxu0
        %v1102 = vpop.f32.mrb[0].mxu0
        %v1103 = vpop.f32.mrb[0].mxu0
        %1104 = vdwg.mxu0
        %s1105 = scalar_lea.vmem %s1, 192
        %v1106 = vld [vmem:[%s1105] sm:$0xf]
        %v1107 = vld [vmem:[%s1105 + $0x4] sm:$0xf]
        %v1108 = vld [vmem:[%s1105 + $0x8] sm:$0xf]
        %v1109 = vld [vmem:[%s1105 + $0xc] sm:$0xf]
        %v1110 = vld [vmem:[%s1105 + $0x10] sm:$0xf]
        %v1111 = vld [vmem:[%s1105 + $0x14] sm:$0xf]
        %v1112 = vld [vmem:[%s1105 + $0x18] sm:$0xf]
        %v1113 = vld [vmem:[%s1105 + $0x1c] sm:$0xf]
        %v1114 = vld [vmem:[%s1105 + $0x20] sm:$0xf]
        %v1115 = vld [vmem:[%s1105 + $0x24] sm:$0xf]
        %v1116 = vld [vmem:[%s1105 + $0x28] sm:$0xf]
        %v1117 = vld [vmem:[%s1105 + $0x2c] sm:$0xf]
        %v1118 = vld [vmem:[%s1105 + $0x30] sm:$0xf]
        %v1119 = vld [vmem:[%s1105 + $0x34] sm:$0xf]
        %v1120 = vld [vmem:[%s1105 + $0x38] sm:$0xf]
        %v1121 = vld [vmem:[%s1105 + $0x3c] sm:$0xf]
        %v1138 = vunpack.c.l.b16 %v1106
        %v1139 = vunpack.c.l.b16 %v1107
        %v1140 = vunpack.c.l.b16 %v1108
        %v1141 = vunpack.c.l.b16 %v1109
        %v1142 = vunpack.c.l.b16 %v1110
        %v1143 = vunpack.c.l.b16 %v1111
        %v1144 = vunpack.c.l.b16 %v1112
        %v1145 = vunpack.c.l.b16 %v1113
        %v1146 = vunpack.c.l.b16 %v1114
        %v1147 = vunpack.c.l.b16 %v1115
        %v1148 = vunpack.c.l.b16 %v1116
        %v1149 = vunpack.c.l.b16 %v1117
        %v1150 = vunpack.c.l.b16 %v1118
        %v1151 = vunpack.c.l.b16 %v1119
        %v1152 = vunpack.c.l.b16 %v1120
        %v1153 = vunpack.c.l.b16 %v1121
        %v1154 = vpack.c.b16 %v1139, %v1138
        %v1155 = vpack.c.b16 %v1141, %v1140
        %v1156 = vpack.c.b16 %v1143, %v1142
        %v1157 = vpack.c.b16 %v1145, %v1144
        %v1158 = vpack.c.b16 %v1147, %v1146
        %v1159 = vpack.c.b16 %v1149, %v1148
        %v1160 = vpack.c.b16 %v1151, %v1150
        %v1161 = vpack.c.b16 %v1153, %v1152
        %1170 = vmatprep.subr.bf16.mxu0 0
        %1171 = vmatpush1.bf16.msra.mxu0 %v1154
        %1172 = vmatprep.subr.bf16.mxu0 0
        %1173 = vmatpush1.bf16.msra.mxu0 %v1155
        %1174 = vmatprep.subr.bf16.mxu0 0
        %1175 = vmatpush1.bf16.msra.mxu0 %v1156
        %1176 = vmatprep.subr.bf16.mxu0 0
        %1177 = vmatpush1.bf16.msra.mxu0 %v1157
        %1178 = vmatprep.subr.bf16.mxu0 0
        %1179 = vmatpush1.bf16.msra.mxu0 %v1158
        %1180 = vmatprep.subr.bf16.mxu0 0
        %1181 = vmatpush1.bf16.msra.mxu0 %v1159
        %1182 = vmatprep.subr.bf16.mxu0 0
        %1183 = vmatpush1.bf16.msra.mxu0 %v1160
        %1184 = vmatprep.subr.bf16.mxu0 0
        %1185 = vmatpush1.bf16.msra.mxu0 %v1161
        %1186 = vmatprep.subr.bf16.mxu0 0
        %1187 = vmatpush1.bf16.msra.mxu0 0
        %1188 = vmatprep.subr.bf16.mxu0 0
        %1189 = vmatpush1.bf16.msra.mxu0 0
        %1190 = vmatprep.subr.bf16.mxu0 0
        %1191 = vmatpush1.bf16.msra.mxu0 0
        %1192 = vmatprep.subr.bf16.mxu0 0
        %1193 = vmatpush1.bf16.msra.mxu0 0
        %1194 = vmatprep.subr.bf16.mxu0 0
        %1195 = vmatpush1.bf16.msra.mxu0 0
        %1196 = vmatprep.subr.bf16.mxu0 0
        %1197 = vmatpush1.bf16.msra.mxu0 0
        %1198 = vmatprep.subr.bf16.mxu0 0
        %1199 = vmatpush1.bf16.msra.mxu0 0
        %1200 = vmatprep.subr.bf16.mxu0 0
        %1201 = vmatpush1.bf16.msra.mxu0 0
        %1202 = vmatprep.mubr.bf16.mxu0 0
        %1203 = vmatmul.mubr.bf16.gmra.mrb[0].mxu0 %v790
        %v1204 = vpop.f32.mrb[0].mxu0
        %v1205 = vadd.f32 0.0, %v1204
        %v1206 = vpop.f32.mrb[0].mxu0
        %v1207 = vpop.f32.mrb[0].mxu0
        %v1208 = vpop.f32.mrb[0].mxu0
        %1209 = vdwg.mxu0
        %s1210 = scalar_lea.vmem %s1, 256
        %v1211 = vld [vmem:[%s1210] sm:$0xf]
        %v1212 = vld [vmem:[%s1210 + $0x4] sm:$0xf]
        %v1213 = vld [vmem:[%s1210 + $0x8] sm:$0xf]
        %v1214 = vld [vmem:[%s1210 + $0xc] sm:$0xf]
        %v1215 = vld [vmem:[%s1210 + $0x10] sm:$0xf]
        %v1216 = vld [vmem:[%s1210 + $0x14] sm:$0xf]
        %v1217 = vld [vmem:[%s1210 + $0x18] sm:$0xf]
        %v1218 = vld [vmem:[%s1210 + $0x1c] sm:$0xf]
        %v1219 = vld [vmem:[%s1210 + $0x20] sm:$0xf]
        %v1220 = vld [vmem:[%s1210 + $0x24] sm:$0xf]
        %v1221 = vld [vmem:[%s1210 + $0x28] sm:$0xf]
        %v1222 = vld [vmem:[%s1210 + $0x2c] sm:$0xf]
        %v1223 = vld [vmem:[%s1210 + $0x30] sm:$0xf]
        %v1224 = vld [vmem:[%s1210 + $0x34] sm:$0xf]
        %v1225 = vld [vmem:[%s1210 + $0x38] sm:$0xf]
        %v1226 = vld [vmem:[%s1210 + $0x3c] sm:$0xf]
        %v1243 = vunpack.c.l.b16 %v1211
        %v1244 = vunpack.c.l.b16 %v1212
        %v1245 = vunpack.c.l.b16 %v1213
        %v1246 = vunpack.c.l.b16 %v1214
        %v1247 = vunpack.c.l.b16 %v1215
        %v1248 = vunpack.c.l.b16 %v1216
        %v1249 = vunpack.c.l.b16 %v1217
        %v1250 = vunpack.c.l.b16 %v1218
        %v1251 = vunpack.c.l.b16 %v1219
        %v1252 = vunpack.c.l.b16 %v1220
        %v1253 = vunpack.c.l.b16 %v1221
        %v1254 = vunpack.c.l.b16 %v1222
        %v1255 = vunpack.c.l.b16 %v1223
        %v1256 = vunpack.c.l.b16 %v1224
        %v1257 = vunpack.c.l.b16 %v1225
        %v1258 = vunpack.c.l.b16 %v1226
        %v1259 = vpack.c.b16 %v1244, %v1243
        %v1260 = vpack.c.b16 %v1246, %v1245
        %v1261 = vpack.c.b16 %v1248, %v1247
        %v1262 = vpack.c.b16 %v1250, %v1249
        %v1263 = vpack.c.b16 %v1252, %v1251
        %v1264 = vpack.c.b16 %v1254, %v1253
        %v1265 = vpack.c.b16 %v1256, %v1255
        %v1266 = vpack.c.b16 %v1258, %v1257
        %1275 = vmatprep.subr.bf16.mxu0 0
        %1276 = vmatpush1.bf16.msra.mxu0 %v1259
        %1277 = vmatprep.subr.bf16.mxu0 0
        %1278 = vmatpush1.bf16.msra.mxu0 %v1260
        %1279 = vmatprep.subr.bf16.mxu0 0
        %1280 = vmatpush1.bf16.msra.mxu0 %v1261
        %1281 = vmatprep.subr.bf16.mxu0 0
        %1282 = vmatpush1.bf16.msra.mxu0 %v1262
        %1283 = vmatprep.subr.bf16.mxu0 0
        %1284 = vmatpush1.bf16.msra.mxu0 %v1263
        %1285 = vmatprep.subr.bf16.mxu0 0
        %1286 = vmatpush1.bf16.msra.mxu0 %v1264
        %1287 = vmatprep.subr.bf16.mxu0 0
        %1288 = vmatpush1.bf16.msra.mxu0 %v1265
        %1289 = vmatprep.subr.bf16.mxu0 0
        %1290 = vmatpush1.bf16.msra.mxu0 %v1266
        %1291 = vmatprep.subr.bf16.mxu0 0
        %1292 = vmatpush1.bf16.msra.mxu0 0
        %1293 = vmatprep.subr.bf16.mxu0 0
        %1294 = vmatpush1.bf16.msra.mxu0 0
        %1295 = vmatprep.subr.bf16.mxu0 0
        %1296 = vmatpush1.bf16.msra.mxu0 0
        %1297 = vmatprep.subr.bf16.mxu0 0
        %1298 = vmatpush1.bf16.msra.mxu0 0
        %1299 = vmatprep.subr.bf16.mxu0 0
        %1300 = vmatpush1.bf16.msra.mxu0 0
        %1301 = vmatprep.subr.bf16.mxu0 0
        %1302 = vmatpush1.bf16.msra.mxu0 0
        %1303 = vmatprep.subr.bf16.mxu0 0
        %1304 = vmatpush1.bf16.msra.mxu0 0
        %1305 = vmatprep.subr.bf16.mxu0 0
        %1306 = vmatpush1.bf16.msra.mxu0 0
        %1307 = vmatprep.mubr.bf16.mxu0 0
        %1308 = vmatmul.mubr.bf16.gmra.mrb[0].mxu0 %v790
        %v1309 = vpop.f32.mrb[0].mxu0
        %v1310 = vadd.f32 0.0, %v1309
        %v1311 = vpop.f32.mrb[0].mxu0
        %v1312 = vpop.f32.mrb[0].mxu0
        %v1313 = vpop.f32.mrb[0].mxu0
        %1314 = vdwg.mxu0
        %s1315 = scalar_lea.vmem %s1, 320
        %v1316 = vld [vmem:[%s1315] sm:$0xf]
        %v1317 = vld [vmem:[%s1315 + $0x4] sm:$0xf]
        %v1318 = vld [vmem:[%s1315 + $0x8] sm:$0xf]
        %v1319 = vld [vmem:[%s1315 + $0xc] sm:$0xf]
        %v1320 = vld [vmem:[%s1315 + $0x10] sm:$0xf]
        %v1321 = vld [vmem:[%s1315 + $0x14] sm:$0xf]
        %v1322 = vld [vmem:[%s1315 + $0x18] sm:$0xf]
        %v1323 = vld [vmem:[%s1315 + $0x1c] sm:$0xf]
        %v1324 = vld [vmem:[%s1315 + $0x20] sm:$0xf]
        %v1325 = vld [vmem:[%s1315 + $0x24] sm:$0xf]
        %v1326 = vld [vmem:[%s1315 + $0x28] sm:$0xf]
        %v1327 = vld [vmem:[%s1315 + $0x2c] sm:$0xf]
        %v1328 = vld [vmem:[%s1315 + $0x30] sm:$0xf]
        %v1329 = vld [vmem:[%s1315 + $0x34] sm:$0xf]
        %v1330 = vld [vmem:[%s1315 + $0x38] sm:$0xf]
        %v1331 = vld [vmem:[%s1315 + $0x3c] sm:$0xf]
        %v1348 = vunpack.c.l.b16 %v1316
        %v1349 = vunpack.c.l.b16 %v1317
        %v1350 = vunpack.c.l.b16 %v1318
        %v1351 = vunpack.c.l.b16 %v1319
        %v1352 = vunpack.c.l.b16 %v1320
        %v1353 = vunpack.c.l.b16 %v1321
        %v1354 = vunpack.c.l.b16 %v1322
        %v1355 = vunpack.c.l.b16 %v1323
        %v1356 = vunpack.c.l.b16 %v1324
        %v1357 = vunpack.c.l.b16 %v1325
        %v1358 = vunpack.c.l.b16 %v1326
        %v1359 = vunpack.c.l.b16 %v1327
        %v1360 = vunpack.c.l.b16 %v1328
        %v1361 = vunpack.c.l.b16 %v1329
        %v1362 = vunpack.c.l.b16 %v1330
        %v1363 = vunpack.c.l.b16 %v1331
        %v1364 = vpack.c.b16 %v1349, %v1348
        %v1365 = vpack.c.b16 %v1351, %v1350
        %v1366 = vpack.c.b16 %v1353, %v1352
        %v1367 = vpack.c.b16 %v1355, %v1354
        %v1368 = vpack.c.b16 %v1357, %v1356
        %v1369 = vpack.c.b16 %v1359, %v1358
        %v1370 = vpack.c.b16 %v1361, %v1360
        %v1371 = vpack.c.b16 %v1363, %v1362
        %1380 = vmatprep.subr.bf16.mxu0 0
        %1381 = vmatpush1.bf16.msra.mxu0 %v1364
        %1382 = vmatprep.subr.bf16.mxu0 0
        %1383 = vmatpush1.bf16.msra.mxu0 %v1365
        %1384 = vmatprep.subr.bf16.mxu0 0
        %1385 = vmatpush1.bf16.msra.mxu0 %v1366
        %1386 = vmatprep.subr.bf16.mxu0 0
        %1387 = vmatpush1.bf16.msra.mxu0 %v1367
        %1388 = vmatprep.subr.bf16.mxu0 0
        %1389 = vmatpush1.bf16.msra.mxu0 %v1368
        %1390 = vmatprep.subr.bf16.mxu0 0
        %1391 = vmatpush1.bf16.msra.mxu0 %v1369
        %1392 = vmatprep.subr.bf16.mxu0 0
        %1393 = vmatpush1.bf16.msra.mxu0 %v1370
        %1394 = vmatprep.subr.bf16.mxu0 0
        %1395 = vmatpush1.bf16.msra.mxu0 %v1371
        %1396 = vmatprep.subr.bf16.mxu0 0
        %1397 = vmatpush1.bf16.msra.mxu0 0
        %1398 = vmatprep.subr.bf16.mxu0 0
        %1399 = vmatpush1.bf16.msra.mxu0 0
        %1400 = vmatprep.subr.bf16.mxu0 0
        %1401 = vmatpush1.bf16.msra.mxu0 0
        %1402 = vmatprep.subr.bf16.mxu0 0
        %1403 = vmatpush1.bf16.msra.mxu0 0
        %1404 = vmatprep.subr.bf16.mxu0 0
        %1405 = vmatpush1.bf16.msra.mxu0 0
        %1406 = vmatprep.subr.bf16.mxu0 0
        %1407 = vmatpush1.bf16.msra.mxu0 0
        %1408 = vmatprep.subr.bf16.mxu0 0
        %1409 = vmatpush1.bf16.msra.mxu0 0
        %1410 = vmatprep.subr.bf16.mxu0 0
        %1411 = vmatpush1.bf16.msra.mxu0 0
        %1412 = vmatprep.mubr.bf16.mxu0 0
        %1413 = vmatmul.mubr.bf16.gmra.mrb[0].mxu0 %v790
        %v1414 = vpop.f32.mrb[0].mxu0
        %v1415 = vadd.f32 0.0, %v1414
        %v1416 = vpop.f32.mrb[0].mxu0
        %v1417 = vpop.f32.mrb[0].mxu0
        %v1418 = vpop.f32.mrb[0].mxu0
        %1419 = vdwg.mxu0
        %s1420 = scalar_lea.vmem %s1, 384
        %v1421 = vld [vmem:[%s1420] sm:$0xf]
        %v1422 = vld [vmem:[%s1420 + $0x4] sm:$0xf]
        %v1423 = vld [vmem:[%s1420 + $0x8] sm:$0xf]
        %v1424 = vld [vmem:[%s1420 + $0xc] sm:$0xf]
        %v1425 = vld [vmem:[%s1420 + $0x10] sm:$0xf]
        %v1426 = vld [vmem:[%s1420 + $0x14] sm:$0xf]
        %v1427 = vld [vmem:[%s1420 + $0x18] sm:$0xf]
        %v1428 = vld [vmem:[%s1420 + $0x1c] sm:$0xf]
        %v1429 = vld [vmem:[%s1420 + $0x20] sm:$0xf]
        %v1430 = vld [vmem:[%s1420 + $0x24] sm:$0xf]
        %v1431 = vld [vmem:[%s1420 + $0x28] sm:$0xf]
        %v1432 = vld [vmem:[%s1420 + $0x2c] sm:$0xf]
        %v1433 = vld [vmem:[%s1420 + $0x30] sm:$0xf]
        %v1434 = vld [vmem:[%s1420 + $0x34] sm:$0xf]
        %v1435 = vld [vmem:[%s1420 + $0x38] sm:$0xf]
        %v1436 = vld [vmem:[%s1420 + $0x3c] sm:$0xf]
        %v1453 = vunpack.c.l.b16 %v1421
        %v1454 = vunpack.c.l.b16 %v1422
        %v1455 = vunpack.c.l.b16 %v1423
        %v1456 = vunpack.c.l.b16 %v1424
        %v1457 = vunpack.c.l.b16 %v1425
        %v1458 = vunpack.c.l.b16 %v1426
        %v1459 = vunpack.c.l.b16 %v1427
        %v1460 = vunpack.c.l.b16 %v1428
        %v1461 = vunpack.c.l.b16 %v1429
        %v1462 = vunpack.c.l.b16 %v1430
        %v1463 = vunpack.c.l.b16 %v1431
        %v1464 = vunpack.c.l.b16 %v1432
        %v1465 = vunpack.c.l.b16 %v1433
        %v1466 = vunpack.c.l.b16 %v1434
        %v1467 = vunpack.c.l.b16 %v1435
        %v1468 = vunpack.c.l.b16 %v1436
        %v1469 = vpack.c.b16 %v1454, %v1453
        %v1470 = vpack.c.b16 %v1456, %v1455
        %v1471 = vpack.c.b16 %v1458, %v1457
        %v1472 = vpack.c.b16 %v1460, %v1459
        %v1473 = vpack.c.b16 %v1462, %v1461
        %v1474 = vpack.c.b16 %v1464, %v1463
        %v1475 = vpack.c.b16 %v1466, %v1465
        %v1476 = vpack.c.b16 %v1468, %v1467
        %1485 = vmatprep.subr.bf16.mxu0 0
        %1486 = vmatpush1.bf16.msra.mxu0 %v1469
        %1487 = vmatprep.subr.bf16.mxu0 0
        %1488 = vmatpush1.bf16.msra.mxu0 %v1470
        %1489 = vmatprep.subr.bf16.mxu0 0
        %1490 = vmatpush1.bf16.msra.mxu0 %v1471
        %1491 = vmatprep.subr.bf16.mxu0 0
        %1492 = vmatpush1.bf16.msra.mxu0 %v1472
        %1493 = vmatprep.subr.bf16.mxu0 0
        %1494 = vmatpush1.bf16.msra.mxu0 %v1473
        %1495 = vmatprep.subr.bf16.mxu0 0
        %1496 = vmatpush1.bf16.msra.mxu0 %v1474
        %1497 = vmatprep.subr.bf16.mxu0 0
        %1498 = vmatpush1.bf16.msra.mxu0 %v1475
        %1499 = vmatprep.subr.bf16.mxu0 0
        %1500 = vmatpush1.bf16.msra.mxu0 %v1476
        %1501 = vmatprep.subr.bf16.mxu0 0
        %1502 = vmatpush1.bf16.msra.mxu0 0
        %1503 = vmatprep.subr.bf16.mxu0 0
        %1504 = vmatpush1.bf16.msra.mxu0 0
        %1505 = vmatprep.subr.bf16.mxu0 0
        %1506 = vmatpush1.bf16.msra.mxu0 0
        %1507 = vmatprep.subr.bf16.mxu0 0
        %1508 = vmatpush1.bf16.msra.mxu0 0
        %1509 = vmatprep.subr.bf16.mxu0 0
        %1510 = vmatpush1.bf16.msra.mxu0 0
        %1511 = vmatprep.subr.bf16.mxu0 0
        %1512 = vmatpush1.bf16.msra.mxu0 0
        %1513 = vmatprep.subr.bf16.mxu0 0
        %1514 = vmatpush1.bf16.msra.mxu0 0
        %1515 = vmatprep.subr.bf16.mxu0 0
        %1516 = vmatpush1.bf16.msra.mxu0 0
        %1517 = vmatprep.mubr.bf16.mxu0 0
        %1518 = vmatmul.mubr.bf16.gmra.mrb[0].mxu0 %v790
        %v1519 = vpop.f32.mrb[0].mxu0
        %v1520 = vadd.f32 0.0, %v1519
        %v1521 = vpop.f32.mrb[0].mxu0
        %v1522 = vpop.f32.mrb[0].mxu0
        %v1523 = vpop.f32.mrb[0].mxu0
        %1524 = vdwg.mxu0
        %v1526 = vrot.slane %v995, 4
        %v1529 = vrot.slane %v1205, 4
        %v1532 = vrot.slane %v1415, 4
        %vm1534 = vcmask 1043456
        %v1535 = vsel %vm1534, %v890, %v1526
        %v1536 = vsel %vm1534, %v1100, %v1529
        %v1537 = vsel %vm1534, %v1310, %v1532
        %v1538 = vpack.c.bf16 %v1536, %v1535
        %v1539 = vpack.c.bf16 %v1520, %v1537
        %v1540 = vld [vmem:[%s3] sm:$0xff]
        %v1541 = vld [vmem:[%s3 + $0x8] sm:$0xff]
        %1543 = vset.pattern.permute.xlu0 0
        %1544 = vperm.xlu0 %1543, %v1540
        %v1545 = vpop.permute.xlu0 %1544
        %1548 = vset.pattern.permute.xlu0 0
        %1549 = vperm.xlu0 %1548, %v1541
        %v1550 = vpop.permute.xlu0 %1549
        %v1554 = vunpack.c.l.b16 %v788
        %v1555 = vunpack.c.l.b16 %v789
        %v1556 = vpack.c.b16 %v1555, %v1554
        %vm1557 = vcmask 228352
        %v1559 = vsel %vm1557, %v1556, 0
        %vm1561 = vcmask 1045504
        %v1563 = vsel %vm1561, %v1539, 0
        %1565 = vmatprep.subr.bf16.mxu0 0
        %1566 = vmatpush1.bf16.msra.mxu0 %v1538
        %1567 = vmatprep.subr.bf16.mxu0 0
        %1568 = vmatpush1.bf16.msra.mxu0 %v1563
        %1569 = vmatprep.subr.bf16.mxu0 0
        %1570 = vmatpush1.bf16.msra.mxu0 0
        %1571 = vmatprep.subr.bf16.mxu0 0
        %1572 = vmatpush1.bf16.msra.mxu0 0
        %1573 = vmatprep.subr.bf16.mxu0 0
        %1574 = vmatpush1.bf16.msra.mxu0 0
        %1575 = vmatprep.subr.bf16.mxu0 0
        %1576 = vmatpush1.bf16.msra.mxu0 0
        %1577 = vmatprep.subr.bf16.mxu0 0
        %1578 = vmatpush1.bf16.msra.mxu0 0
        %1579 = vmatprep.subr.bf16.mxu0 0
        %1580 = vmatpush1.bf16.msra.mxu0 0
        %1581 = vmatprep.subr.bf16.mxu0 0
        %1582 = vmatpush1.bf16.msra.mxu0 0
        %1583 = vmatprep.subr.bf16.mxu0 0
        %1584 = vmatpush1.bf16.msra.mxu0 0
        %1585 = vmatprep.subr.bf16.mxu0 0
        %1586 = vmatpush1.bf16.msra.mxu0 0
        %1587 = vmatprep.subr.bf16.mxu0 0
        %1588 = vmatpush1.bf16.msra.mxu0 0
        %1589 = vmatprep.subr.bf16.mxu0 0
        %1590 = vmatpush1.bf16.msra.mxu0 0
        %1591 = vmatprep.subr.bf16.mxu0 0
        %1592 = vmatpush1.bf16.msra.mxu0 0
        %1593 = vmatprep.subr.bf16.mxu0 0
        %1594 = vmatpush1.bf16.msra.mxu0 0
        %1595 = vmatprep.subr.bf16.mxu0 0
        %1596 = vmatpush1.bf16.msra.mxu0 0
        %1597 = vmatprep.mubr.bf16.mxu0 0
        %1598 = vmatmul.mubr.bf16.gmra.mrb[0].mxu0 %v1559
        %v1599 = vpop.f32.mrb[0].mxu0
        %v1600 = vadd.f32 %v1545, %v1599
        %v1601 = vpop.f32.mrb[0].mxu0
        %v1602 = vpop.f32.mrb[0].mxu0
        %v1603 = vadd.f32 %v1550, %v1602
        %v1604 = vpop.f32.mrb[0].mxu0
        %1605 = vdwg.mxu0
        %v1606 = vmax.f32 %v1600, 0.0
        %v1607 = vmax.f32 %v1603, 0.0
        %v1608 = vld [vmem:[%s4] sm:$0xf]
        %v1609 = vld [vmem:[%s4 + $0x4] sm:$0xf]
        %v1610 = vpack.c.bf16 %v1607, %v1606
        %v1611 = vld [vmem:[%s5] sm:$0xff]
        %v1612 = vld [vmem:[%s5 + $0x8] sm:$0xff]
        %1614 = vset.pattern.permute.xlu0 0
        %1615 = vperm.xlu0 %1614, %v1611
        %v1616 = vpop.permute.xlu0 %1615
        %1619 = vset.pattern.permute.xlu0 0
        %1620 = vperm.xlu0 %1619, %v1612
        %v1621 = vpop.permute.xlu0 %1620
        %v1625 = vunpack.c.l.b16 %v1608
        %v1626 = vunpack.c.l.b16 %v1609
        %v1627 = vpack.c.b16 %v1626, %v1625
        %vm1628 = vcmask 130048
        %v1630 = vsel %vm1628, %v1627, 0
        %1632 = vmatprep.subr.bf16.mxu0 0
        %1633 = vmatpush1.bf16.msra.mxu0 %v1610
        %1634 = vmatprep.subr.bf16.mxu0 0
        %1635 = vmatpush1.bf16.msra.mxu0 0
        %1636 = vmatprep.subr.bf16.mxu0 0
        %1637 = vmatpush1.bf16.msra.mxu0 0
        %1638 = vmatprep.subr.bf16.mxu0 0
        %1639 = vmatpush1.bf16.msra.mxu0 0
        %1640 = vmatprep.subr.bf16.mxu0 0
        %1641 = vmatpush1.bf16.msra.mxu0 0
        %1642 = vmatprep.subr.bf16.mxu0 0
        %1643 = vmatpush1.bf16.msra.mxu0 0
        %1644 = vmatprep.subr.bf16.mxu0 0
        %1645 = vmatpush1.bf16.msra.mxu0 0
        %1646 = vmatprep.subr.bf16.mxu0 0
        %1647 = vmatpush1.bf16.msra.mxu0 0
        %1648 = vmatprep.subr.bf16.mxu0 0
        %1649 = vmatpush1.bf16.msra.mxu0 0
        %1650 = vmatprep.subr.bf16.mxu0 0
        %1651 = vmatpush1.bf16.msra.mxu0 0
        %1652 = vmatprep.subr.bf16.mxu0 0
        %1653 = vmatpush1.bf16.msra.mxu0 0
        %1654 = vmatprep.subr.bf16.mxu0 0
        %1655 = vmatpush1.bf16.msra.mxu0 0
        %1656 = vmatprep.subr.bf16.mxu0 0
        %1657 = vmatpush1.bf16.msra.mxu0 0
        %1658 = vmatprep.subr.bf16.mxu0 0
        %1659 = vmatpush1.bf16.msra.mxu0 0
        %1660 = vmatprep.subr.bf16.mxu0 0
        %1661 = vmatpush1.bf16.msra.mxu0 0
        %1662 = vmatprep.subr.bf16.mxu0 0
        %1663 = vmatpush1.bf16.msra.mxu0 0
        %1664 = vmatprep.mubr.bf16.mxu0 0
        %1665 = vmatmul.mubr.bf16.gmra.mrb[0].mxu0 %v1630
        %v1666 = vpop.f32.mrb[0].mxu0
        %v1667 = vadd.f32 %v1616, %v1666
        %v1668 = vpop.f32.mrb[0].mxu0
        %v1669 = vpop.f32.mrb[0].mxu0
        %v1670 = vadd.f32 %v1621, %v1669
        %v1671 = vpop.f32.mrb[0].mxu0
        %1672 = vdwg.mxu0
        %v1673 = vmax.f32 %v1667, 0.0
        %v1674 = vmax.f32 %v1670, 0.0
        %s1675 = scalar_lea.vmem %s6, 24
        %v1676 = vld [vmem:[%s1675] sm:$0xf]
        %v1677 = vld [vmem:[%s1675 + $0x4] sm:$0xf]
        %v1678 = vld [vmem:[%s1675 + $0x8] sm:$0x3]
        %v1679 = vpack.c.bf16 %v1674, %v1673
        %s1680 = scalar_lea.vmem %s7, 48
        %v1681 = vld [vmem:[%s1680] sm:$0xff]
        %v1682 = vld [vmem:[%s1680 + $0x8] sm:$0xff]
        %v1683 = vld [vmem:[%s1680 + $0x10] sm:$0xf]
        %1685 = vset.pattern.permute.xlu0 0
        %1686 = vperm.xlu0 %1685, %v1681
        %v1687 = vpop.permute.xlu0 %1686
        %1690 = vset.pattern.permute.xlu0 0
        %1691 = vperm.xlu0 %1690, %v1682
        %v1692 = vpop.permute.xlu0 %1691
        %1695 = vset.pattern.permute.xlu0 0
        %1696 = vperm.xlu0 %1695, %v1683
        %v1697 = vpop.permute.xlu0 %1696
        %v1702 = vunpack.c.l.b16 %v1676
        %v1703 = vunpack.c.l.b16 %v1677
        %v1704 = vunpack.c.l.b16 %v1678
        %v1705 = vpack.c.b16 %v1703, %v1702
        %v1706 = vpack.c.b16 %v1704, %v1704
        %v1708 = vsel %vm1628, %v1705, 0
        %v1711 = vsel %vm1628, %v1706, 0
        %1713 = vmatprep.subr.bf16.mxu0 0
        %1714 = vmatpush1.bf16.msra.mxu0 %v1679
        %1715 = vmatprep.subr.bf16.mxu0 0
        %1716 = vmatpush1.bf16.msra.mxu0 0
        %1717 = vmatprep.subr.bf16.mxu0 0
        %1718 = vmatpush1.bf16.msra.mxu0 0
        %1719 = vmatprep.subr.bf16.mxu0 0
        %1720 = vmatpush1.bf16.msra.mxu0 0
        %1721 = vmatprep.subr.bf16.mxu0 0
        %1722 = vmatpush1.bf16.msra.mxu0 0
        %1723 = vmatprep.subr.bf16.mxu0 0
        %1724 = vmatpush1.bf16.msra.mxu0 0
        %1725 = vmatprep.subr.bf16.mxu0 0
        %1726 = vmatpush1.bf16.msra.mxu0 0
        %1727 = vmatprep.subr.bf16.mxu0 0
        %1728 = vmatpush1.bf16.msra.mxu0 0
        %1729 = vmatprep.subr.bf16.mxu0 0
        %1730 = vmatpush1.bf16.msra.mxu0 0
        %1731 = vmatprep.subr.bf16.mxu0 0
        %1732 = vmatpush1.bf16.msra.mxu0 0
        %1733 = vmatprep.subr.bf16.mxu0 0
        %1734 = vmatpush1.bf16.msra.mxu0 0
        %1735 = vmatprep.subr.bf16.mxu0 0
        %1736 = vmatpush1.bf16.msra.mxu0 0
        %1737 = vmatprep.subr.bf16.mxu0 0
        %1738 = vmatpush1.bf16.msra.mxu0 0
        %1739 = vmatprep.subr.bf16.mxu0 0
        %1740 = vmatpush1.bf16.msra.mxu0 0
        %1741 = vmatprep.subr.bf16.mxu0 0
        %1742 = vmatpush1.bf16.msra.mxu0 0
        %1743 = vmatprep.subr.bf16.mxu0 0
        %1744 = vmatpush1.bf16.msra.mxu0 0
        %1745 = vmatprep.mubr.bf16.mxu0 0
        %1746 = vmatmul.mubr.bf16.gmra.mrb[0].mxu0 %v1708
        %v1747 = vpop.f32.mrb[0].mxu0
        %v1748 = vadd.f32 %v1687, %v1747
        %v1749 = vpop.f32.mrb[0].mxu0
        %v1750 = vpop.f32.mrb[0].mxu0
        %v1751 = vadd.f32 %v1692, %v1750
        %v1752 = vpop.f32.mrb[0].mxu0
        %1753 = vmatprep.mubr.bf16.mxu0 0
        %1754 = vmatmul.mubr.bf16.gmra.mrb[0].mxu0 %v1711
        %v1755 = vpop.f32.mrb[0].mxu0
        %v1756 = vadd.f32 %v1697, %v1755
        %v1757 = vpop.f32.mrb[0].mxu0
        %v1758 = vpop.f32.mrb[0].mxu0
        %v1759 = vpop.f32.mrb[0].mxu0
        %1760 = vdwg.mxu0
        %v1761 = vmax.f32 %v1748, 0.0
        %v1762 = vmax.f32 %v1751, 0.0
        %v1763 = vmax.f32 %v1756, 0.0
        %s1764 = scalar_lea.vmem %s8, 704
        %v1765 = vld [vmem:[%s1764] sm:$0x1f]
        %v1766 = vld [vmem:[%s1764 + $0x8] sm:$0x1f]
        %v1767 = vld [vmem:[%s1764 + $0x10] sm:$0x1f]
        %v1768 = vld [vmem:[%s1764 + $0x18] sm:$0x1f]
        %v1769 = vmul.f32 %v1765, %v1761
        %v1770 = vmul.f32 %v1766, %v1761
        %v1771 = vmul.f32 %v1767, %v1761
        %v1772 = vmul.f32 %v1768, %v1761
        %v1773 = vadd.f32 %v1769, 0.0
        %v1774 = vadd.f32 %v1770, 0.0
        %v1775 = vadd.f32 %v1771, 0.0
        %v1776 = vadd.f32 %v1772, 0.0
        %s1777 = scalar_lea.vmem %s8, 736
        %v1778 = vld [vmem:[%s1777] sm:$0x1f]
        %v1779 = vld [vmem:[%s1777 + $0x8] sm:$0x1f]
        %v1780 = vld [vmem:[%s1777 + $0x10] sm:$0x1f]
        %v1781 = vld [vmem:[%s1777 + $0x18] sm:$0x1f]
        %vm1784 = vcmask 1042432
        %v1785 = vrot.slane %v1761, 5
        %v1786 = vrot.slane %v1762, 5
        %v1787 = vsel %vm1784, %v1785, %v1786
        %v1789 = vmul.f32 %v1778, %v1787
        %v1790 = vmul.f32 %v1779, %v1787
        %v1791 = vmul.f32 %v1780, %v1787
        %v1792 = vmul.f32 %v1781, %v1787
        %v1793 = vadd.f32 %v1773, %v1789
        %v1794 = vadd.f32 %v1774, %v1790
        %v1795 = vadd.f32 %v1775, %v1791
        %v1796 = vadd.f32 %v1776, %v1792
        %s1797 = scalar_lea.vmem %s8, 768
        %v1798 = vld [vmem:[%s1797] sm:$0x1f]
        %v1799 = vld [vmem:[%s1797 + $0x8] sm:$0x1f]
        %v1800 = vld [vmem:[%s1797 + $0x10] sm:$0x1f]
        %v1801 = vld [vmem:[%s1797 + $0x18] sm:$0x1f]
        %v1802 = vrot.slane %v1762, 2
        %v1804 = vmul.f32 %v1798, %v1802
        %v1805 = vmul.f32 %v1799, %v1802
        %v1806 = vmul.f32 %v1800, %v1802
        %v1807 = vmul.f32 %v1801, %v1802
        %v1808 = vadd.f32 %v1793, %v1804
        %v1809 = vadd.f32 %v1794, %v1805
        %v1810 = vadd.f32 %v1795, %v1806
        %v1811 = vadd.f32 %v1796, %v1807
        %s1812 = scalar_lea.vmem %s8, 800
        %v1813 = vld [vmem:[%s1812] sm:$0x1f]
        %v1814 = vld [vmem:[%s1812 + $0x8] sm:$0x1f]
        %v1815 = vld [vmem:[%s1812 + $0x10] sm:$0x1f]
        %v1816 = vld [vmem:[%s1812 + $0x18] sm:$0x1f]
        %vm1818 = vcmask 1040384
        %v1819 = vrot.slane %v1762, 7
        %v1820 = vrot.slane %v1763, 7
        %v1821 = vsel %vm1818, %v1819, %v1820
        %v1823 = vmul.f32 %v1813, %v1821
        %v1824 = vmul.f32 %v1814, %v1821
        %v1825 = vmul.f32 %v1815, %v1821
        %v1826 = vmul.f32 %v1816, %v1821
        %v1827 = vadd.f32 %v1808, %v1823
        %v1828 = vadd.f32 %v1809, %v1824
        %v1829 = vadd.f32 %v1810, %v1825
        %v1830 = vadd.f32 %v1811, %v1826
        %vm1831 = vcmask 1044480
        %v1832 = vsel %vm1831, %v1827, 0.0
        %1833 = vadd.xlane.f32.xlu0 %v1832
        %v1834 = vpop.xlane.xlu0 %1833
        %v1835 = vsel %vm1831, %v1828, 0.0
        %1836 = vadd.xlane.f32.xlu0 %v1835
        %v1837 = vpop.xlane.xlu0 %1836
        %v1838 = vsel %vm1831, %v1829, 0.0
        %1839 = vadd.xlane.f32.xlu0 %v1838
        %v1840 = vpop.xlane.xlu0 %1839
        %v1841 = vsel %vm1831, %v1830, 0.0
        %1842 = vadd.xlane.f32.xlu0 %v1841
        %v1843 = vpop.xlane.xlu0 %1842
        %v1848 = vlaneseq
        %v1849 = vand.u32 %v1848, 127
        %v1850 = vlaneseq
        %v1851 = vshrl.u32 %v1850, 7
        %v1852 = vsub.s32 %v1849, %v1851
        %v1853 = vrot.slane %v1834, %v1852
        %v1854 = vlaneseq
        %v1855 = vshrl.u32 %v1854, 7
        %v1856 = vsub.s32 %v1849, %v1855
        %v1857 = vrot.slane %v1837, %v1856
        %v1858 = vlaneseq
        %v1859 = vshrl.u32 %v1858, 7
        %v1860 = vsub.s32 %v1849, %v1859
        %v1861 = vrot.slane %v1840, %v1860
        %v1862 = vlaneseq
        %v1863 = vshrl.u32 %v1862, 7
        %v1864 = vsub.s32 %v1849, %v1863
        %v1865 = vrot.slane %v1843, %v1864
        %vm1866 = vcmask 1041409
        %v1867 = vsel %vm1866, %v1857, %v1853
        %vm1868 = vcmask 1042434
        %v1869 = vsel %vm1868, %v1861, %v1867
        %vm1870 = vcmask 1043459
        %v1871 = vsel %vm1870, %v1865, %v1869
        %vm1873 = vcmask 35840
        %v1874 = vsel %vm1873, %v1871, 0.0
        %1875 = vadd.xlane.f32.xlu0 %v1874
        %v1876 = vpop.xlane.xlu0 %1875
        %s1877 = scalar_lea.vmem %s9, 8
        %v1878 = vld [vmem:[%s1877] sm:$0xf]
        %v1879 = vadd.f32 %v1876, %v1878
        %v1880 = vmax.f32 %v1879, 0.0
        %s1881 = scalar_lea.vmem %s8, 672
        %v1882 = vld [vmem:[%s1881] sm:$0x1f]
        %v1883 = vld [vmem:[%s1881 + $0x8] sm:$0x1f]
        %v1884 = vld [vmem:[%s1881 + $0x10] sm:$0x1f]
        %v1885 = vld [vmem:[%s1881 + $0x18] sm:$0x1f]
        %v1886 = vmul.f32 %v1882, %v1761
        %v1887 = vmul.f32 %v1883, %v1761
        %v1888 = vmul.f32 %v1884, %v1761
        %v1889 = vmul.f32 %v1885, %v1761
        %v1890 = vadd.f32 %v1886, 0.0
        %v1891 = vadd.f32 %v1887, 0.0
        %v1892 = vadd.f32 %v1888, 0.0
        %v1893 = vadd.f32 %v1889, 0.0
        %v1894 = vmul.f32 %v1765, %v1787
        %v1895 = vmul.f32 %v1766, %v1787
        %v1896 = vmul.f32 %v1767, %v1787
        %v1897 = vmul.f32 %v1768, %v1787
        %v1898 = vadd.f32 %v1890, %v1894
        %v1899 = vadd.f32 %v1891, %v1895
        %v1900 = vadd.f32 %v1892, %v1896
        %v1901 = vadd.f32 %v1893, %v1897
        %v1902 = vmul.f32 %v1778, %v1802
        %v1903 = vmul.f32 %v1779, %v1802
        %v1904 = vmul.f32 %v1780, %v1802
        %v1905 = vmul.f32 %v1781, %v1802
        %v1906 = vadd.f32 %v1898, %v1902
        %v1907 = vadd.f32 %v1899, %v1903
        %v1908 = vadd.f32 %v1900, %v1904
        %v1909 = vadd.f32 %v1901, %v1905
        %v1910 = vmul.f32 %v1798, %v1821
        %v1911 = vmul.f32 %v1799, %v1821
        %v1912 = vmul.f32 %v1800, %v1821
        %v1913 = vmul.f32 %v1801, %v1821
        %v1914 = vadd.f32 %v1906, %v1910
        %v1915 = vadd.f32 %v1907, %v1911
        %v1916 = vadd.f32 %v1908, %v1912
        %v1917 = vadd.f32 %v1909, %v1913
        %v1918 = vsel %vm1831, %v1914, 0.0
        %1919 = vadd.xlane.f32.xlu0 %v1918
        %v1920 = vpop.xlane.xlu0 %1919
        %v1921 = vsel %vm1831, %v1915, 0.0
        %1922 = vadd.xlane.f32.xlu0 %v1921
        %v1923 = vpop.xlane.xlu0 %1922
        %v1924 = vsel %vm1831, %v1916, 0.0
        %1925 = vadd.xlane.f32.xlu0 %v1924
        %v1926 = vpop.xlane.xlu0 %1925
        %v1927 = vsel %vm1831, %v1917, 0.0
        %1928 = vadd.xlane.f32.xlu0 %v1927
        %v1929 = vpop.xlane.xlu0 %1928
        %v1934 = vlaneseq
        %v1935 = vshrl.u32 %v1934, 7
        %v1936 = vsub.s32 %v1849, %v1935
        %v1937 = vrot.slane %v1920, %v1936
        %v1938 = vlaneseq
        %v1939 = vshrl.u32 %v1938, 7
        %v1940 = vsub.s32 %v1849, %v1939
        %v1941 = vrot.slane %v1923, %v1940
        %v1942 = vlaneseq
        %v1943 = vshrl.u32 %v1942, 7
        %v1944 = vsub.s32 %v1849, %v1943
        %v1945 = vrot.slane %v1926, %v1944
        %v1946 = vlaneseq
        %v1947 = vshrl.u32 %v1946, 7
        %v1948 = vsub.s32 %v1849, %v1947
        %v1949 = vrot.slane %v1929, %v1948
        %v1950 = vsel %vm1866, %v1941, %v1937
        %v1951 = vsel %vm1868, %v1945, %v1950
        %v1952 = vsel %vm1870, %v1949, %v1951
        %v1954 = vsel %vm1873, %v1952, 0.0
        %1955 = vadd.xlane.f32.xlu0 %v1954
        %v1956 = vpop.xlane.xlu0 %1955
        %v1957 = vadd.f32 %v1956, %v1878
        %v1958 = vmax.f32 %v1957, 0.0
        %s1959 = scalar_lea.vmem %s8, 640
        %v1960 = vld [vmem:[%s1959] sm:$0x1f]
        %v1961 = vld [vmem:[%s1959 + $0x8] sm:$0x1f]
        %v1962 = vld [vmem:[%s1959 + $0x10] sm:$0x1f]
        %v1963 = vld [vmem:[%s1959 + $0x18] sm:$0x1f]
        %v1964 = vmul.f32 %v1960, %v1761
        %v1965 = vmul.f32 %v1961, %v1761
        %v1966 = vmul.f32 %v1962, %v1761
        %v1967 = vmul.f32 %v1963, %v1761
        %v1968 = vadd.f32 %v1964, 0.0
        %v1969 = vadd.f32 %v1965, 0.0
        %v1970 = vadd.f32 %v1966, 0.0
        %v1971 = vadd.f32 %v1967, 0.0
        %v1972 = vmul.f32 %v1882, %v1787
        %v1973 = vmul.f32 %v1883, %v1787
        %v1974 = vmul.f32 %v1884, %v1787
        %v1975 = vmul.f32 %v1885, %v1787
        %v1976 = vadd.f32 %v1968, %v1972
        %v1977 = vadd.f32 %v1969, %v1973
        %v1978 = vadd.f32 %v1970, %v1974
        %v1979 = vadd.f32 %v1971, %v1975
        %v1980 = vmul.f32 %v1765, %v1802
        %v1981 = vmul.f32 %v1766, %v1802
        %v1982 = vmul.f32 %v1767, %v1802
        %v1983 = vmul.f32 %v1768, %v1802
        %v1984 = vadd.f32 %v1976, %v1980
        %v1985 = vadd.f32 %v1977, %v1981
        %v1986 = vadd.f32 %v1978, %v1982
        %v1987 = vadd.f32 %v1979, %v1983
        %v1988 = vmul.f32 %v1778, %v1821
        %v1989 = vmul.f32 %v1779, %v1821
        %v1990 = vmul.f32 %v1780, %v1821
        %v1991 = vmul.f32 %v1781, %v1821
        %v1992 = vadd.f32 %v1984, %v1988
        %v1993 = vadd.f32 %v1985, %v1989
        %v1994 = vadd.f32 %v1986, %v1990
        %v1995 = vadd.f32 %v1987, %v1991
        %v1996 = vsel %vm1831, %v1992, 0.0
        %1997 = vadd.xlane.f32.xlu0 %v1996
        %v1998 = vpop.xlane.xlu0 %1997
        %v1999 = vsel %vm1831, %v1993, 0.0
        %2000 = vadd.xlane.f32.xlu0 %v1999
        %v2001 = vpop.xlane.xlu0 %2000
        %v2002 = vsel %vm1831, %v1994, 0.0
        %2003 = vadd.xlane.f32.xlu0 %v2002
        %v2004 = vpop.xlane.xlu0 %2003
        %v2005 = vsel %vm1831, %v1995, 0.0
        %2006 = vadd.xlane.f32.xlu0 %v2005
        %v2007 = vpop.xlane.xlu0 %2006
        %v2012 = vlaneseq
        %v2013 = vshrl.u32 %v2012, 7
        %v2014 = vsub.s32 %v1849, %v2013
        %v2015 = vrot.slane %v1998, %v2014
        %v2016 = vlaneseq
        %v2017 = vshrl.u32 %v2016, 7
        %v2018 = vsub.s32 %v1849, %v2017
        %v2019 = vrot.slane %v2001, %v2018
        %v2020 = vlaneseq
        %v2021 = vshrl.u32 %v2020, 7
        %v2022 = vsub.s32 %v1849, %v2021
        %v2023 = vrot.slane %v2004, %v2022
        %v2024 = vlaneseq
        %v2025 = vshrl.u32 %v2024, 7
        %v2026 = vsub.s32 %v1849, %v2025
        %v2027 = vrot.slane %v2007, %v2026
        %v2028 = vsel %vm1866, %v2019, %v2015
        %v2029 = vsel %vm1868, %v2023, %v2028
        %v2030 = vsel %vm1870, %v2027, %v2029
        %v2032 = vsel %vm1873, %v2030, 0.0
        %2033 = vadd.xlane.f32.xlu0 %v2032
        %v2034 = vpop.xlane.xlu0 %2033
        %v2035 = vadd.f32 %v2034, %v1878
        %v2036 = vmax.f32 %v2035, 0.0
        %s2037 = scalar_lea.vmem %s8, 608
        %v2038 = vld [vmem:[%s2037] sm:$0x1f]
        %v2039 = vld [vmem:[%s2037 + $0x8] sm:$0x1f]
        %v2040 = vld [vmem:[%s2037 + $0x10] sm:$0x1f]
        %v2041 = vld [vmem:[%s2037 + $0x18] sm:$0x1f]
        %v2042 = vmul.f32 %v2038, %v1761
        %v2043 = vmul.f32 %v2039, %v1761
        %v2044 = vmul.f32 %v2040, %v1761
        %v2045 = vmul.f32 %v2041, %v1761
        %v2046 = vadd.f32 %v2042, 0.0
        %v2047 = vadd.f32 %v2043, 0.0
        %v2048 = vadd.f32 %v2044, 0.0
        %v2049 = vadd.f32 %v2045, 0.0
        %v2050 = vmul.f32 %v1960, %v1787
        %v2051 = vmul.f32 %v1961, %v1787
        %v2052 = vmul.f32 %v1962, %v1787
        %v2053 = vmul.f32 %v1963, %v1787
        %v2054 = vadd.f32 %v2046, %v2050
        %v2055 = vadd.f32 %v2047, %v2051
        %v2056 = vadd.f32 %v2048, %v2052
        %v2057 = vadd.f32 %v2049, %v2053
        %v2058 = vmul.f32 %v1882, %v1802
        %v2059 = vmul.f32 %v1883, %v1802
        %v2060 = vmul.f32 %v1884, %v1802
        %v2061 = vmul.f32 %v1885, %v1802
        %v2062 = vadd.f32 %v2054, %v2058
        %v2063 = vadd.f32 %v2055, %v2059
        %v2064 = vadd.f32 %v2056, %v2060
        %v2065 = vadd.f32 %v2057, %v2061
        %v2066 = vmul.f32 %v1765, %v1821
        %v2067 = vmul.f32 %v1766, %v1821
        %v2068 = vmul.f32 %v1767, %v1821
        %v2069 = vmul.f32 %v1768, %v1821
        %v2070 = vadd.f32 %v2062, %v2066
        %v2071 = vadd.f32 %v2063, %v2067
        %v2072 = vadd.f32 %v2064, %v2068
        %v2073 = vadd.f32 %v2065, %v2069
        %v2074 = vsel %vm1831, %v2070, 0.0
        %2075 = vadd.xlane.f32.xlu0 %v2074
        %v2076 = vpop.xlane.xlu0 %2075
        %v2077 = vsel %vm1831, %v2071, 0.0
        %2078 = vadd.xlane.f32.xlu0 %v2077
        %v2079 = vpop.xlane.xlu0 %2078
        %v2080 = vsel %vm1831, %v2072, 0.0
        %2081 = vadd.xlane.f32.xlu0 %v2080
        %v2082 = vpop.xlane.xlu0 %2081
        %v2083 = vsel %vm1831, %v2073, 0.0
        %2084 = vadd.xlane.f32.xlu0 %v2083
        %v2085 = vpop.xlane.xlu0 %2084
        %v2090 = vlaneseq
        %v2091 = vshrl.u32 %v2090, 7
        %v2092 = vsub.s32 %v1849, %v2091
        %v2093 = vrot.slane %v2076, %v2092
        %v2094 = vlaneseq
        %v2095 = vshrl.u32 %v2094, 7
        %v2096 = vsub.s32 %v1849, %v2095
        %v2097 = vrot.slane %v2079, %v2096
        %v2098 = vlaneseq
        %v2099 = vshrl.u32 %v2098, 7
        %v2100 = vsub.s32 %v1849, %v2099
        %v2101 = vrot.slane %v2082, %v2100
        %v2102 = vlaneseq
        %v2103 = vshrl.u32 %v2102, 7
        %v2104 = vsub.s32 %v1849, %v2103
        %v2105 = vrot.slane %v2085, %v2104
        %v2106 = vsel %vm1866, %v2097, %v2093
        %v2107 = vsel %vm1868, %v2101, %v2106
        %v2108 = vsel %vm1870, %v2105, %v2107
        %v2110 = vsel %vm1873, %v2108, 0.0
        %2111 = vadd.xlane.f32.xlu0 %v2110
        %v2112 = vpop.xlane.xlu0 %2111
        %v2113 = vadd.f32 %v2112, %v1878
        %v2114 = vmax.f32 %v2113, 0.0
        %v2116 = vrot.slane %v1958, 4
        %v2119 = vrot.slane %v2114, 4
        %v2121 = vsel %vm1534, %v1880, %v2116
        %v2122 = vsel %vm1534, %v2036, %v2119
        %2124 = vset.pattern.permute.xlu0 0
        %2125 = vperm.xlu0 %2124, %v2121
        %v2126 = vpop.permute.xlu0 %2125
        %2129 = vset.pattern.permute.xlu0 0
        %2130 = vperm.xlu0 %2129, %v2122
        %v2131 = vpop.permute.xlu0 %2130
        %v2133 = vmul.f32 %v2126, %v1673
        %v2134 = vmul.f32 %v2131, %v1674
        %v2135 = vpack.c.bf16 %v2134, %v2133
        %s2136 = scalar_lea.vmem %s10, 128
        %v2137 = vld [vmem:[%s2136] sm:$0xf]
        %v2138 = vld [vmem:[%s2136 + $0x4] sm:$0xf]
        %v2139 = vld [vmem:[%s2136 + $0x8] sm:$0xf]
        %v2140 = vld [vmem:[%s2136 + $0xc] sm:$0xf]
        %v2141 = vld [vmem:[%s2136 + $0x10] sm:$0xf]
        %v2142 = vld [vmem:[%s2136 + $0x14] sm:$0xf]
        %v2143 = vld [vmem:[%s2136 + $0x18] sm:$0xf]
        %v2144 = vld [vmem:[%s2136 + $0x1c] sm:$0xf]
        %v2145 = vld [vmem:[%s2136 + $0x20] sm:$0xf]
        %v2146 = vld [vmem:[%s2136 + $0x24] sm:$0xf]
        %v2147 = vld [vmem:[%s2136 + $0x28] sm:$0xf]
        %v2148 = vld [vmem:[%s2136 + $0x2c] sm:$0xf]
        %v2149 = vld [vmem:[%s2136 + $0x30] sm:$0xf]
        %v2150 = vld [vmem:[%s2136 + $0x34] sm:$0xf]
        %v2151 = vld [vmem:[%s2136 + $0x38] sm:$0xf]
        %v2152 = vld [vmem:[%s2136 + $0x3c] sm:$0xf]
        %v2169 = vunpack.c.l.b16 %v2137
        %v2170 = vunpack.c.l.b16 %v2138
        %v2171 = vunpack.c.l.b16 %v2139
        %v2172 = vunpack.c.l.b16 %v2140
        %v2173 = vunpack.c.l.b16 %v2141
        %v2174 = vunpack.c.l.b16 %v2142
        %v2175 = vunpack.c.l.b16 %v2143
        %v2176 = vunpack.c.l.b16 %v2144
        %v2177 = vunpack.c.l.b16 %v2145
        %v2178 = vunpack.c.l.b16 %v2146
        %v2179 = vunpack.c.l.b16 %v2147
        %v2180 = vunpack.c.l.b16 %v2148
        %v2181 = vunpack.c.l.b16 %v2149
        %v2182 = vunpack.c.l.b16 %v2150
        %v2183 = vunpack.c.l.b16 %v2151
        %v2184 = vunpack.c.l.b16 %v2152
        %v2185 = vpack.c.b16 %v2170, %v2169
        %v2186 = vpack.c.b16 %v2172, %v2171
        %v2187 = vpack.c.b16 %v2174, %v2173
        %v2188 = vpack.c.b16 %v2176, %v2175
        %v2189 = vpack.c.b16 %v2178, %v2177
        %v2190 = vpack.c.b16 %v2180, %v2179
        %v2191 = vpack.c.b16 %v2182, %v2181
        %v2192 = vpack.c.b16 %v2184, %v2183
        %2201 = vmatprep.subr.bf16.mxu0 0
        %2202 = vmatpush1.bf16.msra.mxu0 %v2185
        %2203 = vmatprep.subr.bf16.mxu0 0
        %2204 = vmatpush1.bf16.msra.mxu0 %v2186
        %2205 = vmatprep.subr.bf16.mxu0 0
        %2206 = vmatpush1.bf16.msra.mxu0 %v2187
        %2207 = vmatprep.subr.bf16.mxu0 0
        %2208 = vmatpush1.bf16.msra.mxu0 %v2188
        %2209 = vmatprep.subr.bf16.mxu0 0
        %2210 = vmatpush1.bf16.msra.mxu0 %v2189
        %2211 = vmatprep.subr.bf16.mxu0 0
        %2212 = vmatpush1.bf16.msra.mxu0 %v2190
        %2213 = vmatprep.subr.bf16.mxu0 0
        %2214 = vmatpush1.bf16.msra.mxu0 %v2191
        %2215 = vmatprep.subr.bf16.mxu0 0
        %2216 = vmatpush1.bf16.msra.mxu0 %v2192
        %2217 = vmatprep.subr.bf16.mxu0 0
        %2218 = vmatpush1.bf16.msra.mxu0 0
        %2219 = vmatprep.subr.bf16.mxu0 0
        %2220 = vmatpush1.bf16.msra.mxu0 0
        %2221 = vmatprep.subr.bf16.mxu0 0
        %2222 = vmatpush1.bf16.msra.mxu0 0
        %2223 = vmatprep.subr.bf16.mxu0 0
        %2224 = vmatpush1.bf16.msra.mxu0 0
        %2225 = vmatprep.subr.bf16.mxu0 0
        %2226 = vmatpush1.bf16.msra.mxu0 0
        %2227 = vmatprep.subr.bf16.mxu0 0
        %2228 = vmatpush1.bf16.msra.mxu0 0
        %2229 = vmatprep.subr.bf16.mxu0 0
        %2230 = vmatpush1.bf16.msra.mxu0 0
        %2231 = vmatprep.subr.bf16.mxu0 0
        %2232 = vmatpush1.bf16.msra.mxu0 0
        %2233 = vmatprep.mubr.bf16.mxu0 0
        %2234 = vmatmul.mubr.bf16.gmra.mrb[0].mxu0 %v2135
        %v2235 = vpop.f32.mrb[0].mxu0
        %v2236 = vadd.f32 0.0, %v2235
        %v2237 = vpop.f32.mrb[0].mxu0
        %v2238 = vpop.f32.mrb[0].mxu0
        %v2239 = vadd.f32 0.0, %v2238
        %v2240 = vpop.f32.mrb[0].mxu0
        %2241 = vdwg.mxu0
        %s2242 = scalar_lea.vmem %s11, 16
        %v2243 = vld [vmem:[%s2242] sm:$0xf]
        %v2244 = vld [vmem:[%s2242 + $0x4] sm:$0xf]
        %v2245 = vpack.c.bf16 %v2239, %v2236
        %s2246 = scalar_lea.vmem %s12, 16
        %v2247 = vld [vmem:[%s2246] sm:$0xf]
        %v2248 = vld [vmem:[%s2246 + $0x4] sm:$0xf]
        %v2251 = vunpack.c.l.b16 %v2247
        %v2252 = vunpack.c.l.b16 %v2248
        %v2253 = vpack.c.b16 %v2252, %v2251
        %v2255 = vsel %vm1628, %v2253, 0
        %2257 = vmatprep.subr.bf16.mxu0 0
        %2258 = vmatpush1.bf16.msra.mxu0 %v1679
        %2259 = vmatprep.subr.bf16.mxu0 0
        %2260 = vmatpush1.bf16.msra.mxu0 0
        %2261 = vmatprep.subr.bf16.mxu0 0
        %2262 = vmatpush1.bf16.msra.mxu0 0
        %2263 = vmatprep.subr.bf16.mxu0 0
        %2264 = vmatpush1.bf16.msra.mxu0 0
        %2265 = vmatprep.subr.bf16.mxu0 0
        %2266 = vmatpush1.bf16.msra.mxu0 0
        %2267 = vmatprep.subr.bf16.mxu0 0
        %2268 = vmatpush1.bf16.msra.mxu0 0
        %2269 = vmatprep.subr.bf16.mxu0 0
        %2270 = vmatpush1.bf16.msra.mxu0 0
        %2271 = vmatprep.subr.bf16.mxu0 0
        %2272 = vmatpush1.bf16.msra.mxu0 0
        %2273 = vmatprep.subr.bf16.mxu0 0
        %2274 = vmatpush1.bf16.msra.mxu0 0
        %2275 = vmatprep.subr.bf16.mxu0 0
        %2276 = vmatpush1.bf16.msra.mxu0 0
        %2277 = vmatprep.subr.bf16.mxu0 0
        %2278 = vmatpush1.bf16.msra.mxu0 0
        %2279 = vmatprep.subr.bf16.mxu0 0
        %2280 = vmatpush1.bf16.msra.mxu0 0
        %2281 = vmatprep.subr.bf16.mxu0 0
        %2282 = vmatpush1.bf16.msra.mxu0 0
        %2283 = vmatprep.subr.bf16.mxu0 0
        %2284 = vmatpush1.bf16.msra.mxu0 0
        %2285 = vmatprep.subr.bf16.mxu0 0
        %2286 = vmatpush1.bf16.msra.mxu0 0
        %2287 = vmatprep.subr.bf16.mxu0 0
        %2288 = vmatpush1.bf16.msra.mxu0 0
        %2289 = vmatprep.mubr.bf16.mxu0 0
        %2290 = vmatmul.mubr.bf16.gmra.mrb[0].mxu0 %v2255
        %v2291 = vpop.f32.mrb[0].mxu0
        %v2292 = vadd.f32 0.0, %v2291
        %v2293 = vpop.f32.mrb[0].mxu0
        %v2294 = vpop.f32.mrb[0].mxu0
        %v2295 = vadd.f32 0.0, %v2294
        %v2296 = vpop.f32.mrb[0].mxu0
        %2297 = vdwg.mxu0
        %v2300 = vunpack.c.l.b16 %v2243
        %v2301 = vunpack.c.l.b16 %v2244
        %v2302 = vpack.c.b16 %v2301, %v2300
        %v2304 = vsel %vm1628, %v2302, 0
        %2306 = vmatprep.subr.bf16.mxu0 0
        %2307 = vmatpush1.bf16.msra.mxu0 %v2245
        %2308 = vmatprep.subr.bf16.mxu0 0
        %2309 = vmatpush1.bf16.msra.mxu0 0
        %2310 = vmatprep.subr.bf16.mxu0 0
        %2311 = vmatpush1.bf16.msra.mxu0 0
        %2312 = vmatprep.subr.bf16.mxu0 0
        %2313 = vmatpush1.bf16.msra.mxu0 0
        %2314 = vmatprep.subr.bf16.mxu0 0
        %2315 = vmatpush1.bf16.msra.mxu0 0
        %2316 = vmatprep.subr.bf16.mxu0 0
        %2317 = vmatpush1.bf16.msra.mxu0 0
        %2318 = vmatprep.subr.bf16.mxu0 0
        %2319 = vmatpush1.bf16.msra.mxu0 0
        %2320 = vmatprep.subr.bf16.mxu0 0
        %2321 = vmatpush1.bf16.msra.mxu0 0
        %2322 = vmatprep.subr.bf16.mxu0 0
        %2323 = vmatpush1.bf16.msra.mxu0 0
        %2324 = vmatprep.subr.bf16.mxu0 0
        %2325 = vmatpush1.bf16.msra.mxu0 0
        %2326 = vmatprep.subr.bf16.mxu0 0
        %2327 = vmatpush1.bf16.msra.mxu0 0
        %2328 = vmatprep.subr.bf16.mxu0 0
        %2329 = vmatpush1.bf16.msra.mxu0 0
        %2330 = vmatprep.subr.bf16.mxu0 0
        %2331 = vmatpush1.bf16.msra.mxu0 0
        %2332 = vmatprep.subr.bf16.mxu0 0
        %2333 = vmatpush1.bf16.msra.mxu0 0
        %2334 = vmatprep.subr.bf16.mxu0 0
        %2335 = vmatpush1.bf16.msra.mxu0 0
        %2336 = vmatprep.subr.bf16.mxu0 0
        %2337 = vmatpush1.bf16.msra.mxu0 0
        %2338 = vmatprep.mubr.bf16.mxu0 0
        %2339 = vmatmul.mubr.bf16.gmra.mrb[0].mxu0 %v2304
        %v2340 = vpop.f32.mrb[0].mxu0
        %v2341 = vadd.f32 %v2292, %v2340
        %v2342 = vpop.f32.mrb[0].mxu0
        %v2343 = vpop.f32.mrb[0].mxu0
        %v2344 = vadd.f32 %v2295, %v2343
        %v2345 = vpop.f32.mrb[0].mxu0
        %2346 = vdwg.mxu0
        %s2347 = scalar_lea.vmem %s13, 32
        %v2348 = vld [vmem:[%s2347] sm:$0xff]
        %v2349 = vld [vmem:[%s2347 + $0x8] sm:$0xff]
        %2351 = vset.pattern.permute.xlu0 0
        %2352 = vperm.xlu0 %2351, %v2348
        %v2353 = vpop.permute.xlu0 %2352
        %2356 = vset.pattern.permute.xlu0 0
        %2357 = vperm.xlu0 %2356, %v2349
        %v2358 = vpop.permute.xlu0 %2357
        %v2360 = vadd.f32 %v2341, %v2353
        %v2361 = vadd.f32 %v2344, %v2358
        %v2362 = vmax.f32 %v2360, 0.0
        %v2363 = vmax.f32 %v2361, 0.0
        %s2364 = scalar_lea.vmem %s14, 8
        %v2365 = vld [vmem:[%s2364] sm:$0xf]
        %v2366 = vld [vmem:[%s2364 + $0x4] sm:$0xf]
        %v2367 = vpack.c.bf16 %v2363, %v2362
        %2368 = vmatprep.subr.bf16.mxu0 0
        %2369 = vmatpush1.bf16.msra.mxu0 %v944
        %2370 = vmatprep.subr.bf16.mxu0 0
        %2371 = vmatpush1.bf16.msra.mxu0 %v945
        %2372 = vmatprep.subr.bf16.mxu0 0
        %2373 = vmatpush1.bf16.msra.mxu0 %v946
        %2374 = vmatprep.subr.bf16.mxu0 0
        %2375 = vmatpush1.bf16.msra.mxu0 %v947
        %2376 = vmatprep.subr.bf16.mxu0 0
        %2377 = vmatpush1.bf16.msra.mxu0 %v948
        %2378 = vmatprep.subr.bf16.mxu0 0
        %2379 = vmatpush1.bf16.msra.mxu0 %v949
        %2380 = vmatprep.subr.bf16.mxu0 0
        %2381 = vmatpush1.bf16.msra.mxu0 %v950
        %2382 = vmatprep.subr.bf16.mxu0 0
        %2383 = vmatpush1.bf16.msra.mxu0 %v951
        %2384 = vmatprep.subr.bf16.mxu0 0
        %2385 = vmatpush1.bf16.msra.mxu0 0
        %2386 = vmatprep.subr.bf16.mxu0 0
        %2387 = vmatpush1.bf16.msra.mxu0 0
        %2388 = vmatprep.subr.bf16.mxu0 0
        %2389 = vmatpush1.bf16.msra.mxu0 0
        %2390 = vmatprep.subr.bf16.mxu0 0
        %2391 = vmatpush1.bf16.msra.mxu0 0
        %2392 = vmatprep.subr.bf16.mxu0 0
        %2393 = vmatpush1.bf16.msra.mxu0 0
        %2394 = vmatprep.subr.bf16.mxu0 0
        %2395 = vmatpush1.bf16.msra.mxu0 0
        %2396 = vmatprep.subr.bf16.mxu0 0
        %2397 = vmatpush1.bf16.msra.mxu0 0
        %2398 = vmatprep.subr.bf16.mxu0 0
        %2399 = vmatpush1.bf16.msra.mxu0 0
        %2400 = vmatprep.mubr.bf16.mxu0 0
        %2401 = vmatmul.mubr.bf16.gmra.mrb[0].mxu0 %v2367
        %v2402 = vpop.f32.mrb[0].mxu0
        %v2403 = vadd.f32 0.0, %v2402
        %v2404 = vpop.f32.mrb[0].mxu0
        %v2405 = vpop.f32.mrb[0].mxu0
        %v2406 = vadd.f32 0.0, %v2405
        %v2407 = vpop.f32.mrb[0].mxu0
        %2408 = vdwg.mxu0
        %2409 = vmatprep.subr.bf16.mxu0 0
        %2410 = vmatpush1.bf16.msra.mxu0 %v1049
        %2411 = vmatprep.subr.bf16.mxu0 0
        %2412 = vmatpush1.bf16.msra.mxu0 %v1050
        %2413 = vmatprep.subr.bf16.mxu0 0
        %2414 = vmatpush1.bf16.msra.mxu0 %v1051
        %2415 = vmatprep.subr.bf16.mxu0 0
        %2416 = vmatpush1.bf16.msra.mxu0 %v1052
        %2417 = vmatprep.subr.bf16.mxu0 0
        %2418 = vmatpush1.bf16.msra.mxu0 %v1053
        %2419 = vmatprep.subr.bf16.mxu0 0
        %2420 = vmatpush1.bf16.msra.mxu0 %v1054
        %2421 = vmatprep.subr.bf16.mxu0 0
        %2422 = vmatpush1.bf16.msra.mxu0 %v1055
        %2423 = vmatprep.subr.bf16.mxu0 0
        %2424 = vmatpush1.bf16.msra.mxu0 %v1056
        %2425 = vmatprep.subr.bf16.mxu0 0
        %2426 = vmatpush1.bf16.msra.mxu0 0
        %2427 = vmatprep.subr.bf16.mxu0 0
        %2428 = vmatpush1.bf16.msra.mxu0 0
        %2429 = vmatprep.subr.bf16.mxu0 0
        %2430 = vmatpush1.bf16.msra.mxu0 0
        %2431 = vmatprep.subr.bf16.mxu0 0
        %2432 = vmatpush1.bf16.msra.mxu0 0
        %2433 = vmatprep.subr.bf16.mxu0 0
        %2434 = vmatpush1.bf16.msra.mxu0 0
        %2435 = vmatprep.subr.bf16.mxu0 0
        %2436 = vmatpush1.bf16.msra.mxu0 0
        %2437 = vmatprep.subr.bf16.mxu0 0
        %2438 = vmatpush1.bf16.msra.mxu0 0
        %2439 = vmatprep.subr.bf16.mxu0 0
        %2440 = vmatpush1.bf16.msra.mxu0 0
        %2441 = vmatprep.mubr.bf16.mxu0 0
        %2442 = vmatmul.mubr.bf16.gmra.mrb[0].mxu0 %v2367
        %v2443 = vpop.f32.mrb[0].mxu0
        %v2444 = vadd.f32 0.0, %v2443
        %v2445 = vpop.f32.mrb[0].mxu0
        %v2446 = vpop.f32.mrb[0].mxu0
        %v2447 = vadd.f32 0.0, %v2446
        %v2448 = vpop.f32.mrb[0].mxu0
        %2449 = vdwg.mxu0
        %2450 = vmatprep.subr.bf16.mxu0 0
        %2451 = vmatpush1.bf16.msra.mxu0 %v1154
        %2452 = vmatprep.subr.bf16.mxu0 0
        %2453 = vmatpush1.bf16.msra.mxu0 %v1155
        %2454 = vmatprep.subr.bf16.mxu0 0
        %2455 = vmatpush1.bf16.msra.mxu0 %v1156
        %2456 = vmatprep.subr.bf16.mxu0 0
        %2457 = vmatpush1.bf16.msra.mxu0 %v1157
        %2458 = vmatprep.subr.bf16.mxu0 0
        %2459 = vmatpush1.bf16.msra.mxu0 %v1158
        %2460 = vmatprep.subr.bf16.mxu0 0
        %2461 = vmatpush1.bf16.msra.mxu0 %v1159
        %2462 = vmatprep.subr.bf16.mxu0 0
        %2463 = vmatpush1.bf16.msra.mxu0 %v1160
        %2464 = vmatprep.subr.bf16.mxu0 0
        %2465 = vmatpush1.bf16.msra.mxu0 %v1161
        %2466 = vmatprep.subr.bf16.mxu0 0
        %2467 = vmatpush1.bf16.msra.mxu0 0
        %2468 = vmatprep.subr.bf16.mxu0 0
        %2469 = vmatpush1.bf16.msra.mxu0 0
        %2470 = vmatprep.subr.bf16.mxu0 0
        %2471 = vmatpush1.bf16.msra.mxu0 0
        %2472 = vmatprep.subr.bf16.mxu0 0
        %2473 = vmatpush1.bf16.msra.mxu0 0
        %2474 = vmatprep.subr.bf16.mxu0 0
        %2475 = vmatpush1.bf16.msra.mxu0 0
        %2476 = vmatprep.subr.bf16.mxu0 0
        %2477 = vmatpush1.bf16.msra.mxu0 0
        %2478 = vmatprep.subr.bf16.mxu0 0
        %2479 = vmatpush1.bf16.msra.mxu0 0
        %2480 = vmatprep.subr.bf16.mxu0 0
        %2481 = vmatpush1.bf16.msra.mxu0 0
        %2482 = vmatprep.mubr.bf16.mxu0 0
        %2483 = vmatmul.mubr.bf16.gmra.mrb[0].mxu0 %v2367
        %v2484 = vpop.f32.mrb[0].mxu0
        %v2485 = vadd.f32 0.0, %v2484
        %v2486 = vpop.f32.mrb[0].mxu0
        %v2487 = vpop.f32.mrb[0].mxu0
        %v2488 = vadd.f32 0.0, %v2487
        %v2489 = vpop.f32.mrb[0].mxu0
        %2490 = vdwg.mxu0
        %2491 = vmatprep.subr.bf16.mxu0 0
        %2492 = vmatpush1.bf16.msra.mxu0 %v1259
        %2493 = vmatprep.subr.bf16.mxu0 0
        %2494 = vmatpush1.bf16.msra.mxu0 %v1260
        %2495 = vmatprep.subr.bf16.mxu0 0
        %2496 = vmatpush1.bf16.msra.mxu0 %v1261
        %2497 = vmatprep.subr.bf16.mxu0 0
        %2498 = vmatpush1.bf16.msra.mxu0 %v1262
        %2499 = vmatprep.subr.bf16.mxu0 0
        %2500 = vmatpush1.bf16.msra.mxu0 %v1263
        %2501 = vmatprep.subr.bf16.mxu0 0
        %2502 = vmatpush1.bf16.msra.mxu0 %v1264
        %2503 = vmatprep.subr.bf16.mxu0 0
        %2504 = vmatpush1.bf16.msra.mxu0 %v1265
        %2505 = vmatprep.subr.bf16.mxu0 0
        %2506 = vmatpush1.bf16.msra.mxu0 %v1266
        %2507 = vmatprep.subr.bf16.mxu0 0
        %2508 = vmatpush1.bf16.msra.mxu0 0
        %2509 = vmatprep.subr.bf16.mxu0 0
        %2510 = vmatpush1.bf16.msra.mxu0 0
        %2511 = vmatprep.subr.bf16.mxu0 0
        %2512 = vmatpush1.bf16.msra.mxu0 0
        %2513 = vmatprep.subr.bf16.mxu0 0
        %2514 = vmatpush1.bf16.msra.mxu0 0
        %2515 = vmatprep.subr.bf16.mxu0 0
        %2516 = vmatpush1.bf16.msra.mxu0 0
        %2517 = vmatprep.subr.bf16.mxu0 0
        %2518 = vmatpush1.bf16.msra.mxu0 0
        %2519 = vmatprep.subr.bf16.mxu0 0
        %2520 = vmatpush1.bf16.msra.mxu0 0
        %2521 = vmatprep.subr.bf16.mxu0 0
        %2522 = vmatpush1.bf16.msra.mxu0 0
        %2523 = vmatprep.mubr.bf16.mxu0 0
        %2524 = vmatmul.mubr.bf16.gmra.mrb[0].mxu0 %v2367
        %v2525 = vpop.f32.mrb[0].mxu0
        %v2526 = vadd.f32 0.0, %v2525
        %v2527 = vpop.f32.mrb[0].mxu0
        %v2528 = vpop.f32.mrb[0].mxu0
        %v2529 = vadd.f32 0.0, %v2528
        %v2530 = vpop.f32.mrb[0].mxu0
        %2531 = vdwg.mxu0
        %2532 = vmatprep.subr.bf16.mxu0 0
        %2533 = vmatpush1.bf16.msra.mxu0 %v1364
        %2534 = vmatprep.subr.bf16.mxu0 0
        %2535 = vmatpush1.bf16.msra.mxu0 %v1365
        %2536 = vmatprep.subr.bf16.mxu0 0
        %2537 = vmatpush1.bf16.msra.mxu0 %v1366
        %2538 = vmatprep.subr.bf16.mxu0 0
        %2539 = vmatpush1.bf16.msra.mxu0 %v1367
        %2540 = vmatprep.subr.bf16.mxu0 0
        %2541 = vmatpush1.bf16.msra.mxu0 %v1368
        %2542 = vmatprep.subr.bf16.mxu0 0
        %2543 = vmatpush1.bf16.msra.mxu0 %v1369
        %2544 = vmatprep.subr.bf16.mxu0 0
        %2545 = vmatpush1.bf16.msra.mxu0 %v1370
        %2546 = vmatprep.subr.bf16.mxu0 0
        %2547 = vmatpush1.bf16.msra.mxu0 %v1371
        %2548 = vmatprep.subr.bf16.mxu0 0
        %2549 = vmatpush1.bf16.msra.mxu0 0
        %2550 = vmatprep.subr.bf16.mxu0 0
        %2551 = vmatpush1.bf16.msra.mxu0 0
        %2552 = vmatprep.subr.bf16.mxu0 0
        %2553 = vmatpush1.bf16.msra.mxu0 0
        %2554 = vmatprep.subr.bf16.mxu0 0
        %2555 = vmatpush1.bf16.msra.mxu0 0
        %2556 = vmatprep.subr.bf16.mxu0 0
        %2557 = vmatpush1.bf16.msra.mxu0 0
        %2558 = vmatprep.subr.bf16.mxu0 0
        %2559 = vmatpush1.bf16.msra.mxu0 0
        %2560 = vmatprep.subr.bf16.mxu0 0
        %2561 = vmatpush1.bf16.msra.mxu0 0
        %2562 = vmatprep.subr.bf16.mxu0 0
        %2563 = vmatpush1.bf16.msra.mxu0 0
        %2564 = vmatprep.mubr.bf16.mxu0 0
        %2565 = vmatmul.mubr.bf16.gmra.mrb[0].mxu0 %v2367
        %v2566 = vpop.f32.mrb[0].mxu0
        %v2567 = vadd.f32 0.0, %v2566
        %v2568 = vpop.f32.mrb[0].mxu0
        %v2569 = vpop.f32.mrb[0].mxu0
        %v2570 = vadd.f32 0.0, %v2569
        %v2571 = vpop.f32.mrb[0].mxu0
        %2572 = vdwg.mxu0
        %v2573 = vpack.c.bf16 %v2406, %v2403
        %v2574 = vpack.c.bf16 %v2447, %v2444
        %v2575 = vpack.c.bf16 %v2488, %v2485
        %v2576 = vpack.c.bf16 %v2529, %v2526
        %v2577 = vpack.c.bf16 %v2570, %v2567
        %s2578 = scalar_lea.vmem %s15, 16
        %v2579 = vld [vmem:[%s2578] sm:$0xff]
        %v2580 = vld [vmem:[%s2578 + $0x8] sm:$0xff]
        %2582 = vset.pattern.permute.xlu0 0
        %2583 = vperm.xlu0 %2582, %v2579
        %v2584 = vpop.permute.xlu0 %2583
        %2587 = vset.pattern.permute.xlu0 0
        %2588 = vperm.xlu0 %2587, %v2580
        %v2589 = vpop.permute.xlu0 %2588
        %v2593 = vunpack.c.l.b16 %v2365
        %v2594 = vunpack.c.l.b16 %v2366
        %v2595 = vpack.c.b16 %v2594, %v2593
        %vm2596 = vcmask 654336
        %v2598 = vsel %vm2596, %v2595, 0
        %2600 = vmatprep.subr.bf16.mxu0 0
        %2601 = vmatpush1.bf16.msra.mxu0 %v2573
        %2602 = vmatprep.subr.bf16.mxu0 0
        %2603 = vmatpush1.bf16.msra.mxu0 %v2574
        %2604 = vmatprep.subr.bf16.mxu0 0
        %2605 = vmatpush1.bf16.msra.mxu0 %v2575
        %2606 = vmatprep.subr.bf16.mxu0 0
        %2607 = vmatpush1.bf16.msra.mxu0 %v2576
        %2608 = vmatprep.subr.bf16.mxu0 0
        %2609 = vmatpush1.bf16.msra.mxu0 %v2577
        %2610 = vmatprep.subr.bf16.mxu0 0
        %2611 = vmatpush1.bf16.msra.mxu0 0
        %2612 = vmatprep.subr.bf16.mxu0 0
        %2613 = vmatpush1.bf16.msra.mxu0 0
        %2614 = vmatprep.subr.bf16.mxu0 0
        %2615 = vmatpush1.bf16.msra.mxu0 0
        %2616 = vmatprep.subr.bf16.mxu0 0
        %2617 = vmatpush1.bf16.msra.mxu0 0
        %2618 = vmatprep.subr.bf16.mxu0 0
        %2619 = vmatpush1.bf16.msra.mxu0 0
        %2620 = vmatprep.subr.bf16.mxu0 0
        %2621 = vmatpush1.bf16.msra.mxu0 0
        %2622 = vmatprep.subr.bf16.mxu0 0
        %2623 = vmatpush1.bf16.msra.mxu0 0
        %2624 = vmatprep.subr.bf16.mxu0 0
        %2625 = vmatpush1.bf16.msra.mxu0 0
        %2626 = vmatprep.subr.bf16.mxu0 0
        %2627 = vmatpush1.bf16.msra.mxu0 0
        %2628 = vmatprep.subr.bf16.mxu0 0
        %2629 = vmatpush1.bf16.msra.mxu0 0
        %2630 = vmatprep.subr.bf16.mxu0 0
        %2631 = vmatpush1.bf16.msra.mxu0 0
        %2632 = vmatprep.mubr.bf16.mxu0 0
        %2633 = vmatmul.mubr.bf16.gmra.mrb[0].mxu0 %v2598
        %v2634 = vpop.f32.mrb[0].mxu0
        %v2635 = vadd.f32 %v2584, %v2634
        %v2636 = vpop.f32.mrb[0].mxu0
        %v2637 = vpop.f32.mrb[0].mxu0
        %v2638 = vadd.f32 %v2589, %v2637
        %v2639 = vpop.f32.mrb[0].mxu0
        %2640 = vdwg.mxu0
        %v2641 = vmax.f32 %v2635, 0.0
        %v2642 = vmax.f32 %v2638, 0.0
        %s2643 = scalar_lea.vmem %s16, 8
        %v2644 = vld [vmem:[%s2643] sm:$0xf]
        %v2645 = vld [vmem:[%s2643 + $0x4] sm:$0xf]
        %v2646 = vpack.c.bf16 %v2642, %v2641
        %s2647 = scalar_lea.vmem %s17, 16
        %v2648 = vld [vmem:[%s2647] sm:$0xff]
        %v2649 = vld [vmem:[%s2647 + $0x8] sm:$0xff]
        %2651 = vset.pattern.permute.xlu0 0
        %2652 = vperm.xlu0 %2651, %v2648
        %v2653 = vpop.permute.xlu0 %2652
        %2656 = vset.pattern.permute.xlu0 0
        %2657 = vperm.xlu0 %2656, %v2649
        %v2658 = vpop.permute.xlu0 %2657
        %v2662 = vunpack.c.l.b16 %v2644
        %v2663 = vunpack.c.l.b16 %v2645
        %v2664 = vpack.c.b16 %v2663, %v2662
        %v2666 = vsel %vm1628, %v2664, 0
        %2668 = vmatprep.subr.bf16.mxu0 0
        %2669 = vmatpush1.bf16.msra.mxu0 %v2646
        %2670 = vmatprep.subr.bf16.mxu0 0
        %2671 = vmatpush1.bf16.msra.mxu0 0
        %2672 = vmatprep.subr.bf16.mxu0 0
        %2673 = vmatpush1.bf16.msra.mxu0 0
        %2674 = vmatprep.subr.bf16.mxu0 0
        %2675 = vmatpush1.bf16.msra.mxu0 0
        %2676 = vmatprep.subr.bf16.mxu0 0
        %2677 = vmatpush1.bf16.msra.mxu0 0
        %2678 = vmatprep.subr.bf16.mxu0 0
        %2679 = vmatpush1.bf16.msra.mxu0 0
        %2680 = vmatprep.subr.bf16.mxu0 0
        %2681 = vmatpush1.bf16.msra.mxu0 0
        %2682 = vmatprep.subr.bf16.mxu0 0
        %2683 = vmatpush1.bf16.msra.mxu0 0
        %2684 = vmatprep.subr.bf16.mxu0 0
        %2685 = vmatpush1.bf16.msra.mxu0 0
        %2686 = vmatprep.subr.bf16.mxu0 0
        %2687 = vmatpush1.bf16.msra.mxu0 0
        %2688 = vmatprep.subr.bf16.mxu0 0
        %2689 = vmatpush1.bf16.msra.mxu0 0
        %2690 = vmatprep.subr.bf16.mxu0 0
        %2691 = vmatpush1.bf16.msra.mxu0 0
        %2692 = vmatprep.subr.bf16.mxu0 0
        %2693 = vmatpush1.bf16.msra.mxu0 0
        %2694 = vmatprep.subr.bf16.mxu0 0
        %2695 = vmatpush1.bf16.msra.mxu0 0
        %2696 = vmatprep.subr.bf16.mxu0 0
        %2697 = vmatpush1.bf16.msra.mxu0 0
        %2698 = vmatprep.subr.bf16.mxu0 0
        %2699 = vmatpush1.bf16.msra.mxu0 0
        %2700 = vmatprep.mubr.bf16.mxu0 0
        %2701 = vmatmul.mubr.bf16.gmra.mrb[0].mxu0 %v2666
        %v2702 = vpop.f32.mrb[0].mxu0
        %v2703 = vadd.f32 %v2653, %v2702
        %v2704 = vpop.f32.mrb[0].mxu0
        %v2705 = vpop.f32.mrb[0].mxu0
        %v2706 = vadd.f32 %v2658, %v2705
        %v2707 = vpop.f32.mrb[0].mxu0
        %2708 = vdwg.mxu0
        %v2709 = vmax.f32 %v2703, 0.0
        %v2710 = vmax.f32 %v2706, 0.0
        %s2711 = scalar_lea.vmem %s18, 8
        %v2712 = vld [vmem:[%s2711] sm:$0xf]
        %v2713 = vld [vmem:[%s2711 + $0x4] sm:$0xf]
        %v2714 = vpack.c.bf16 %v2710, %v2709
        %2715 = vmatprep.subr.bf16.mxu0 0
        %2716 = vmatpush1.bf16.msra.mxu0 %v944
        %2717 = vmatprep.subr.bf16.mxu0 0
        %2718 = vmatpush1.bf16.msra.mxu0 %v945
        %2719 = vmatprep.subr.bf16.mxu0 0
        %2720 = vmatpush1.bf16.msra.mxu0 %v946
        %2721 = vmatprep.subr.bf16.mxu0 0
        %2722 = vmatpush1.bf16.msra.mxu0 %v947
        %2723 = vmatprep.subr.bf16.mxu0 0
        %2724 = vmatpush1.bf16.msra.mxu0 %v948
        %2725 = vmatprep.subr.bf16.mxu0 0
        %2726 = vmatpush1.bf16.msra.mxu0 %v949
        %2727 = vmatprep.subr.bf16.mxu0 0
        %2728 = vmatpush1.bf16.msra.mxu0 %v950
        %2729 = vmatprep.subr.bf16.mxu0 0
        %2730 = vmatpush1.bf16.msra.mxu0 %v951
        %2731 = vmatprep.subr.bf16.mxu0 0
        %2732 = vmatpush1.bf16.msra.mxu0 0
        %2733 = vmatprep.subr.bf16.mxu0 0
        %2734 = vmatpush1.bf16.msra.mxu0 0
        %2735 = vmatprep.subr.bf16.mxu0 0
        %2736 = vmatpush1.bf16.msra.mxu0 0
        %2737 = vmatprep.subr.bf16.mxu0 0
        %2738 = vmatpush1.bf16.msra.mxu0 0
        %2739 = vmatprep.subr.bf16.mxu0 0
        %2740 = vmatpush1.bf16.msra.mxu0 0
        %2741 = vmatprep.subr.bf16.mxu0 0
        %2742 = vmatpush1.bf16.msra.mxu0 0
        %2743 = vmatprep.subr.bf16.mxu0 0
        %2744 = vmatpush1.bf16.msra.mxu0 0
        %2745 = vmatprep.subr.bf16.mxu0 0
        %2746 = vmatpush1.bf16.msra.mxu0 0
        %2747 = vmatprep.mubr.bf16.mxu0 0
        %2748 = vmatmul.mubr.bf16.gmra.mrb[0].mxu0 %v2714
        %v2749 = vpop.f32.mrb[0].mxu0
        %v2750 = vadd.f32 0.0, %v2749
        %v2751 = vpop.f32.mrb[0].mxu0
        %v2752 = vpop.f32.mrb[0].mxu0
        %v2753 = vadd.f32 0.0, %v2752
        %v2754 = vpop.f32.mrb[0].mxu0
        %2755 = vdwg.mxu0
        %2756 = vmatprep.subr.bf16.mxu0 0
        %2757 = vmatpush1.bf16.msra.mxu0 %v1049
        %2758 = vmatprep.subr.bf16.mxu0 0
        %2759 = vmatpush1.bf16.msra.mxu0 %v1050
        %2760 = vmatprep.subr.bf16.mxu0 0
        %2761 = vmatpush1.bf16.msra.mxu0 %v1051
        %2762 = vmatprep.subr.bf16.mxu0 0
        %2763 = vmatpush1.bf16.msra.mxu0 %v1052
        %2764 = vmatprep.subr.bf16.mxu0 0
        %2765 = vmatpush1.bf16.msra.mxu0 %v1053
        %2766 = vmatprep.subr.bf16.mxu0 0
        %2767 = vmatpush1.bf16.msra.mxu0 %v1054
        %2768 = vmatprep.subr.bf16.mxu0 0
        %2769 = vmatpush1.bf16.msra.mxu0 %v1055
        %2770 = vmatprep.subr.bf16.mxu0 0
        %2771 = vmatpush1.bf16.msra.mxu0 %v1056
        %2772 = vmatprep.subr.bf16.mxu0 0
        %2773 = vmatpush1.bf16.msra.mxu0 0
        %2774 = vmatprep.subr.bf16.mxu0 0
        %2775 = vmatpush1.bf16.msra.mxu0 0
        %2776 = vmatprep.subr.bf16.mxu0 0
        %2777 = vmatpush1.bf16.msra.mxu0 0
        %2778 = vmatprep.subr.bf16.mxu0 0
        %2779 = vmatpush1.bf16.msra.mxu0 0
        %2780 = vmatprep.subr.bf16.mxu0 0
        %2781 = vmatpush1.bf16.msra.mxu0 0
        %2782 = vmatprep.subr.bf16.mxu0 0
        %2783 = vmatpush1.bf16.msra.mxu0 0
        %2784 = vmatprep.subr.bf16.mxu0 0
        %2785 = vmatpush1.bf16.msra.mxu0 0
        %2786 = vmatprep.subr.bf16.mxu0 0
        %2787 = vmatpush1.bf16.msra.mxu0 0
        %2788 = vmatprep.mubr.bf16.mxu0 0
        %2789 = vmatmul.mubr.bf16.gmra.mrb[0].mxu0 %v2714
        %v2790 = vpop.f32.mrb[0].mxu0
        %v2791 = vadd.f32 0.0, %v2790
        %v2792 = vpop.f32.mrb[0].mxu0
        %v2793 = vpop.f32.mrb[0].mxu0
        %v2794 = vadd.f32 0.0, %v2793
        %v2795 = vpop.f32.mrb[0].mxu0
        %2796 = vdwg.mxu0
        %2797 = vmatprep.subr.bf16.mxu0 0
        %2798 = vmatpush1.bf16.msra.mxu0 %v1154
        %2799 = vmatprep.subr.bf16.mxu0 0
        %2800 = vmatpush1.bf16.msra.mxu0 %v1155
        %2801 = vmatprep.subr.bf16.mxu0 0
        %2802 = vmatpush1.bf16.msra.mxu0 %v1156
        %2803 = vmatprep.subr.bf16.mxu0 0
        %2804 = vmatpush1.bf16.msra.mxu0 %v1157
        %2805 = vmatprep.subr.bf16.mxu0 0
        %2806 = vmatpush1.bf16.msra.mxu0 %v1158
        %2807 = vmatprep.subr.bf16.mxu0 0
        %2808 = vmatpush1.bf16.msra.mxu0 %v1159
        %2809 = vmatprep.subr.bf16.mxu0 0
        %2810 = vmatpush1.bf16.msra.mxu0 %v1160
        %2811 = vmatprep.subr.bf16.mxu0 0
        %2812 = vmatpush1.bf16.msra.mxu0 %v1161
        %2813 = vmatprep.subr.bf16.mxu0 0
        %2814 = vmatpush1.bf16.msra.mxu0 0
        %2815 = vmatprep.subr.bf16.mxu0 0
        %2816 = vmatpush1.bf16.msra.mxu0 0
        %2817 = vmatprep.subr.bf16.mxu0 0
        %2818 = vmatpush1.bf16.msra.mxu0 0
        %2819 = vmatprep.subr.bf16.mxu0 0
        %2820 = vmatpush1.bf16.msra.mxu0 0
        %2821 = vmatprep.subr.bf16.mxu0 0
        %2822 = vmatpush1.bf16.msra.mxu0 0
        %2823 = vmatprep.subr.bf16.mxu0 0
        %2824 = vmatpush1.bf16.msra.mxu0 0
        %2825 = vmatprep.subr.bf16.mxu0 0
        %2826 = vmatpush1.bf16.msra.mxu0 0
        %2827 = vmatprep.subr.bf16.mxu0 0
        %2828 = vmatpush1.bf16.msra.mxu0 0
        %2829 = vmatprep.mubr.bf16.mxu0 0
        %2830 = vmatmul.mubr.bf16.gmra.mrb[0].mxu0 %v2714
        %v2831 = vpop.f32.mrb[0].mxu0
        %v2832 = vadd.f32 0.0, %v2831
        %v2833 = vpop.f32.mrb[0].mxu0
        %v2834 = vpop.f32.mrb[0].mxu0
        %v2835 = vadd.f32 0.0, %v2834
        %v2836 = vpop.f32.mrb[0].mxu0
        %2837 = vdwg.mxu0
        %2838 = vmatprep.subr.bf16.mxu0 0
        %2839 = vmatpush1.bf16.msra.mxu0 %v1259
        %2840 = vmatprep.subr.bf16.mxu0 0
        %2841 = vmatpush1.bf16.msra.mxu0 %v1260
        %2842 = vmatprep.subr.bf16.mxu0 0
        %2843 = vmatpush1.bf16.msra.mxu0 %v1261
        %2844 = vmatprep.subr.bf16.mxu0 0
        %2845 = vmatpush1.bf16.msra.mxu0 %v1262
        %2846 = vmatprep.subr.bf16.mxu0 0
        %2847 = vmatpush1.bf16.msra.mxu0 %v1263
        %2848 = vmatprep.subr.bf16.mxu0 0
        %2849 = vmatpush1.bf16.msra.mxu0 %v1264
        %2850 = vmatprep.subr.bf16.mxu0 0
        %2851 = vmatpush1.bf16.msra.mxu0 %v1265
        %2852 = vmatprep.subr.bf16.mxu0 0
        %2853 = vmatpush1.bf16.msra.mxu0 %v1266
        %2854 = vmatprep.subr.bf16.mxu0 0
        %2855 = vmatpush1.bf16.msra.mxu0 0
        %2856 = vmatprep.subr.bf16.mxu0 0
        %2857 = vmatpush1.bf16.msra.mxu0 0
        %2858 = vmatprep.subr.bf16.mxu0 0
        %2859 = vmatpush1.bf16.msra.mxu0 0
        %2860 = vmatprep.subr.bf16.mxu0 0
        %2861 = vmatpush1.bf16.msra.mxu0 0
        %2862 = vmatprep.subr.bf16.mxu0 0
        %2863 = vmatpush1.bf16.msra.mxu0 0
        %2864 = vmatprep.subr.bf16.mxu0 0
        %2865 = vmatpush1.bf16.msra.mxu0 0
        %2866 = vmatprep.subr.bf16.mxu0 0
        %2867 = vmatpush1.bf16.msra.mxu0 0
        %2868 = vmatprep.subr.bf16.mxu0 0
        %2869 = vmatpush1.bf16.msra.mxu0 0
        %2870 = vmatprep.mubr.bf16.mxu0 0
        %2871 = vmatmul.mubr.bf16.gmra.mrb[0].mxu0 %v2714
        %v2872 = vpop.f32.mrb[0].mxu0
        %v2873 = vadd.f32 0.0, %v2872
        %v2874 = vpop.f32.mrb[0].mxu0
        %v2875 = vpop.f32.mrb[0].mxu0
        %v2876 = vadd.f32 0.0, %v2875
        %v2877 = vpop.f32.mrb[0].mxu0
        %2878 = vdwg.mxu0
        %2879 = vmatprep.subr.bf16.mxu0 0
        %2880 = vmatpush1.bf16.msra.mxu0 %v1364
        %2881 = vmatprep.subr.bf16.mxu0 0
        %2882 = vmatpush1.bf16.msra.mxu0 %v1365
        %2883 = vmatprep.subr.bf16.mxu0 0
        %2884 = vmatpush1.bf16.msra.mxu0 %v1366
        %2885 = vmatprep.subr.bf16.mxu0 0
        %2886 = vmatpush1.bf16.msra.mxu0 %v1367
        %2887 = vmatprep.subr.bf16.mxu0 0
        %2888 = vmatpush1.bf16.msra.mxu0 %v1368
        %2889 = vmatprep.subr.bf16.mxu0 0
        %2890 = vmatpush1.bf16.msra.mxu0 %v1369
        %2891 = vmatprep.subr.bf16.mxu0 0
        %2892 = vmatpush1.bf16.msra.mxu0 %v1370
        %2893 = vmatprep.subr.bf16.mxu0 0
        %2894 = vmatpush1.bf16.msra.mxu0 %v1371
        %2895 = vmatprep.subr.bf16.mxu0 0
        %2896 = vmatpush1.bf16.msra.mxu0 0
        %2897 = vmatprep.subr.bf16.mxu0 0
        %2898 = vmatpush1.bf16.msra.mxu0 0
        %2899 = vmatprep.subr.bf16.mxu0 0
        %2900 = vmatpush1.bf16.msra.mxu0 0
        %2901 = vmatprep.subr.bf16.mxu0 0
        %2902 = vmatpush1.bf16.msra.mxu0 0
        %2903 = vmatprep.subr.bf16.mxu0 0
        %2904 = vmatpush1.bf16.msra.mxu0 0
        %2905 = vmatprep.subr.bf16.mxu0 0
        %2906 = vmatpush1.bf16.msra.mxu0 0
        %2907 = vmatprep.subr.bf16.mxu0 0
        %2908 = vmatpush1.bf16.msra.mxu0 0
        %2909 = vmatprep.subr.bf16.mxu0 0
        %2910 = vmatpush1.bf16.msra.mxu0 0
        %2911 = vmatprep.mubr.bf16.mxu0 0
        %2912 = vmatmul.mubr.bf16.gmra.mrb[0].mxu0 %v2714
        %v2913 = vpop.f32.mrb[0].mxu0
        %v2914 = vadd.f32 0.0, %v2913
        %v2915 = vpop.f32.mrb[0].mxu0
        %v2916 = vpop.f32.mrb[0].mxu0
        %v2917 = vadd.f32 0.0, %v2916
        %v2918 = vpop.f32.mrb[0].mxu0
        %2919 = vdwg.mxu0
        %v2920 = vpack.c.bf16 %v2753, %v2750
        %v2921 = vpack.c.bf16 %v2794, %v2791
        %v2922 = vpack.c.bf16 %v2835, %v2832
        %v2923 = vpack.c.bf16 %v2876, %v2873
        %v2924 = vpack.c.bf16 %v2917, %v2914
        %s2925 = scalar_lea.vmem %s19, 16
        %v2926 = vld [vmem:[%s2925] sm:$0xff]
        %v2927 = vld [vmem:[%s2925 + $0x8] sm:$0xff]
        %2929 = vset.pattern.permute.xlu0 0
        %2930 = vperm.xlu0 %2929, %v2926
        %v2931 = vpop.permute.xlu0 %2930
        %2934 = vset.pattern.permute.xlu0 0
        %2935 = vperm.xlu0 %2934, %v2927
        %v2936 = vpop.permute.xlu0 %2935
        %v2940 = vunpack.c.l.b16 %v2712
        %v2941 = vunpack.c.l.b16 %v2713
        %v2942 = vpack.c.b16 %v2941, %v2940
        %v2944 = vsel %vm2596, %v2942, 0
        %2946 = vmatprep.subr.bf16.mxu0 0
        %2947 = vmatpush1.bf16.msra.mxu0 %v2920
        %2948 = vmatprep.subr.bf16.mxu0 0
        %2949 = vmatpush1.bf16.msra.mxu0 %v2921
        %2950 = vmatprep.subr.bf16.mxu0 0
        %2951 = vmatpush1.bf16.msra.mxu0 %v2922
        %2952 = vmatprep.subr.bf16.mxu0 0
        %2953 = vmatpush1.bf16.msra.mxu0 %v2923
        %2954 = vmatprep.subr.bf16.mxu0 0
        %2955 = vmatpush1.bf16.msra.mxu0 %v2924
        %2956 = vmatprep.subr.bf16.mxu0 0
        %2957 = vmatpush1.bf16.msra.mxu0 0
        %2958 = vmatprep.subr.bf16.mxu0 0
        %2959 = vmatpush1.bf16.msra.mxu0 0
        %2960 = vmatprep.subr.bf16.mxu0 0
        %2961 = vmatpush1.bf16.msra.mxu0 0
        %2962 = vmatprep.subr.bf16.mxu0 0
        %2963 = vmatpush1.bf16.msra.mxu0 0
        %2964 = vmatprep.subr.bf16.mxu0 0
        %2965 = vmatpush1.bf16.msra.mxu0 0
        %2966 = vmatprep.subr.bf16.mxu0 0
        %2967 = vmatpush1.bf16.msra.mxu0 0
        %2968 = vmatprep.subr.bf16.mxu0 0
        %2969 = vmatpush1.bf16.msra.mxu0 0
        %2970 = vmatprep.subr.bf16.mxu0 0
        %2971 = vmatpush1.bf16.msra.mxu0 0
        %2972 = vmatprep.subr.bf16.mxu0 0
        %2973 = vmatpush1.bf16.msra.mxu0 0
        %2974 = vmatprep.subr.bf16.mxu0 0
        %2975 = vmatpush1.bf16.msra.mxu0 0
        %2976 = vmatprep.subr.bf16.mxu0 0
        %2977 = vmatpush1.bf16.msra.mxu0 0
        %2978 = vmatprep.mubr.bf16.mxu0 0
        %2979 = vmatmul.mubr.bf16.gmra.mrb[0].mxu0 %v2944
        %v2980 = vpop.f32.mrb[0].mxu0
        %v2981 = vadd.f32 %v2931, %v2980
        %v2982 = vpop.f32.mrb[0].mxu0
        %v2983 = vpop.f32.mrb[0].mxu0
        %v2984 = vadd.f32 %v2936, %v2983
        %v2985 = vpop.f32.mrb[0].mxu0
        %2986 = vdwg.mxu0
        %v2987 = vmax.f32 %v2981, 0.0
        %v2988 = vmax.f32 %v2984, 0.0
        %s2989 = scalar_lea.vmem %s6, 36
        %v2990 = vld [vmem:[%s2989] sm:$0xf]
        %v2991 = vld [vmem:[%s2989 + $0x4] sm:$0xf]
        %v2992 = vld [vmem:[%s2989 + $0x8] sm:$0x3]
        %v2993 = vpack.c.bf16 %v2988, %v2987
        %s2994 = scalar_lea.vmem %s7, 72
        %v2995 = vld [vmem:[%s2994] sm:$0xff]
        %v2996 = vld [vmem:[%s2994 + $0x8] sm:$0xff]
        %v2997 = vld [vmem:[%s2994 + $0x10] sm:$0xf]
        %2999 = vset.pattern.permute.xlu0 0
        %3000 = vperm.xlu0 %2999, %v2995
        %v3001 = vpop.permute.xlu0 %3000
        %3004 = vset.pattern.permute.xlu0 0
        %3005 = vperm.xlu0 %3004, %v2996
        %v3006 = vpop.permute.xlu0 %3005
        %3009 = vset.pattern.permute.xlu0 0
        %3010 = vperm.xlu0 %3009, %v2997
        %v3011 = vpop.permute.xlu0 %3010
        %v3016 = vunpack.c.l.b16 %v2990
        %v3017 = vunpack.c.l.b16 %v2991
        %v3018 = vunpack.c.l.b16 %v2992
        %v3019 = vpack.c.b16 %v3017, %v3016
        %v3020 = vpack.c.b16 %v3018, %v3018
        %v3022 = vsel %vm1628, %v3019, 0
        %v3025 = vsel %vm1628, %v3020, 0
        %3027 = vmatprep.subr.bf16.mxu0 0
        %3028 = vmatpush1.bf16.msra.mxu0 %v2993
        %3029 = vmatprep.subr.bf16.mxu0 0
        %3030 = vmatpush1.bf16.msra.mxu0 0
        %3031 = vmatprep.subr.bf16.mxu0 0
        %3032 = vmatpush1.bf16.msra.mxu0 0
        %3033 = vmatprep.subr.bf16.mxu0 0
        %3034 = vmatpush1.bf16.msra.mxu0 0
        %3035 = vmatprep.subr.bf16.mxu0 0
        %3036 = vmatpush1.bf16.msra.mxu0 0
        %3037 = vmatprep.subr.bf16.mxu0 0
        %3038 = vmatpush1.bf16.msra.mxu0 0
        %3039 = vmatprep.subr.bf16.mxu0 0
        %3040 = vmatpush1.bf16.msra.mxu0 0
        %3041 = vmatprep.subr.bf16.mxu0 0
        %3042 = vmatpush1.bf16.msra.mxu0 0
        %3043 = vmatprep.subr.bf16.mxu0 0
        %3044 = vmatpush1.bf16.msra.mxu0 0
        %3045 = vmatprep.subr.bf16.mxu0 0
        %3046 = vmatpush1.bf16.msra.mxu0 0
        %3047 = vmatprep.subr.bf16.mxu0 0
        %3048 = vmatpush1.bf16.msra.mxu0 0
        %3049 = vmatprep.subr.bf16.mxu0 0
        %3050 = vmatpush1.bf16.msra.mxu0 0
        %3051 = vmatprep.subr.bf16.mxu0 0
        %3052 = vmatpush1.bf16.msra.mxu0 0
        %3053 = vmatprep.subr.bf16.mxu0 0
        %3054 = vmatpush1.bf16.msra.mxu0 0
        %3055 = vmatprep.subr.bf16.mxu0 0
        %3056 = vmatpush1.bf16.msra.mxu0 0
        %3057 = vmatprep.subr.bf16.mxu0 0
        %3058 = vmatpush1.bf16.msra.mxu0 0
        %3059 = vmatprep.mubr.bf16.mxu0 0
        %3060 = vmatmul.mubr.bf16.gmra.mrb[0].mxu0 %v3022
        %v3061 = vpop.f32.mrb[0].mxu0
        %v3062 = vadd.f32 %v3001, %v3061
        %v3063 = vpop.f32.mrb[0].mxu0
        %v3064 = vpop.f32.mrb[0].mxu0
        %v3065 = vadd.f32 %v3006, %v3064
        %v3066 = vpop.f32.mrb[0].mxu0
        %3067 = vmatprep.mubr.bf16.mxu0 0
        %3068 = vmatmul.mubr.bf16.gmra.mrb[0].mxu0 %v3025
        %v3069 = vpop.f32.mrb[0].mxu0
        %v3070 = vadd.f32 %v3011, %v3069
        %v3071 = vpop.f32.mrb[0].mxu0
        %v3072 = vpop.f32.mrb[0].mxu0
        %v3073 = vpop.f32.mrb[0].mxu0
        %3074 = vdwg.mxu0
        %v3075 = vmax.f32 %v3062, 0.0
        %v3076 = vmax.f32 %v3065, 0.0
        %v3077 = vmax.f32 %v3070, 0.0
        %s3078 = scalar_lea.vmem %s8, 992
        %v3079 = vld [vmem:[%s3078] sm:$0x1f]
        %v3080 = vld [vmem:[%s3078 + $0x8] sm:$0x1f]
        %v3081 = vld [vmem:[%s3078 + $0x10] sm:$0x1f]
        %v3082 = vld [vmem:[%s3078 + $0x18] sm:$0x1f]
        %v3083 = vmul.f32 %v3079, %v3075
        %v3084 = vmul.f32 %v3080, %v3075
        %v3085 = vmul.f32 %v3081, %v3075
        %v3086 = vmul.f32 %v3082, %v3075
        %v3087 = vadd.f32 %v3083, 0.0
        %v3088 = vadd.f32 %v3084, 0.0
        %v3089 = vadd.f32 %v3085, 0.0
        %v3090 = vadd.f32 %v3086, 0.0
        %s3091 = scalar_lea.vmem %s8, 1024
        %v3092 = vld [vmem:[%s3091] sm:$0x1f]
        %v3093 = vld [vmem:[%s3091 + $0x8] sm:$0x1f]
        %v3094 = vld [vmem:[%s3091 + $0x10] sm:$0x1f]
        %v3095 = vld [vmem:[%s3091 + $0x18] sm:$0x1f]
        %v3098 = vrot.slane %v3075, 5
        %v3099 = vrot.slane %v3076, 5
        %v3100 = vsel %vm1784, %v3098, %v3099
        %v3102 = vmul.f32 %v3092, %v3100
        %v3103 = vmul.f32 %v3093, %v3100
        %v3104 = vmul.f32 %v3094, %v3100
        %v3105 = vmul.f32 %v3095, %v3100
        %v3106 = vadd.f32 %v3087, %v3102
        %v3107 = vadd.f32 %v3088, %v3103
        %v3108 = vadd.f32 %v3089, %v3104
        %v3109 = vadd.f32 %v3090, %v3105
        %s3110 = scalar_lea.vmem %s8, 1056
        %v3111 = vld [vmem:[%s3110] sm:$0x1f]
        %v3112 = vld [vmem:[%s3110 + $0x8] sm:$0x1f]
        %v3113 = vld [vmem:[%s3110 + $0x10] sm:$0x1f]
        %v3114 = vld [vmem:[%s3110 + $0x18] sm:$0x1f]
        %v3115 = vrot.slane %v3076, 2
        %v3117 = vmul.f32 %v3111, %v3115
        %v3118 = vmul.f32 %v3112, %v3115
        %v3119 = vmul.f32 %v3113, %v3115
        %v3120 = vmul.f32 %v3114, %v3115
        %v3121 = vadd.f32 %v3106, %v3117
        %v3122 = vadd.f32 %v3107, %v3118
        %v3123 = vadd.f32 %v3108, %v3119
        %v3124 = vadd.f32 %v3109, %v3120
        %s3125 = scalar_lea.vmem %s8, 1088
        %v3126 = vld [vmem:[%s3125] sm:$0x1f]
        %v3127 = vld [vmem:[%s3125 + $0x8] sm:$0x1f]
        %v3128 = vld [vmem:[%s3125 + $0x10] sm:$0x1f]
        %v3129 = vld [vmem:[%s3125 + $0x18] sm:$0x1f]
        %v3131 = vrot.slane %v3076, 7
        %v3132 = vrot.slane %v3077, 7
        %v3133 = vsel %vm1818, %v3131, %v3132
        %v3135 = vmul.f32 %v3126, %v3133
        %v3136 = vmul.f32 %v3127, %v3133
        %v3137 = vmul.f32 %v3128, %v3133
        %v3138 = vmul.f32 %v3129, %v3133
        %v3139 = vadd.f32 %v3121, %v3135
        %v3140 = vadd.f32 %v3122, %v3136
        %v3141 = vadd.f32 %v3123, %v3137
        %v3142 = vadd.f32 %v3124, %v3138
        %v3143 = vsel %vm1831, %v3139, 0.0
        %3144 = vadd.xlane.f32.xlu0 %v3143
        %v3145 = vpop.xlane.xlu0 %3144
        %v3146 = vsel %vm1831, %v3140, 0.0
        %3147 = vadd.xlane.f32.xlu0 %v3146
        %v3148 = vpop.xlane.xlu0 %3147
        %v3149 = vsel %vm1831, %v3141, 0.0
        %3150 = vadd.xlane.f32.xlu0 %v3149
        %v3151 = vpop.xlane.xlu0 %3150
        %v3152 = vsel %vm1831, %v3142, 0.0
        %3153 = vadd.xlane.f32.xlu0 %v3152
        %v3154 = vpop.xlane.xlu0 %3153
        %v3159 = vlaneseq
        %v3160 = vshrl.u32 %v3159, 7
        %v3161 = vsub.s32 %v1849, %v3160
        %v3162 = vrot.slane %v3145, %v3161
        %v3163 = vlaneseq
        %v3164 = vshrl.u32 %v3163, 7
        %v3165 = vsub.s32 %v1849, %v3164
        %v3166 = vrot.slane %v3148, %v3165
        %v3167 = vlaneseq
        %v3168 = vshrl.u32 %v3167, 7
        %v3169 = vsub.s32 %v1849, %v3168
        %v3170 = vrot.slane %v3151, %v3169
        %v3171 = vlaneseq
        %v3172 = vshrl.u32 %v3171, 7
        %v3173 = vsub.s32 %v1849, %v3172
        %v3174 = vrot.slane %v3154, %v3173
        %v3175 = vsel %vm1866, %v3166, %v3162
        %v3176 = vsel %vm1868, %v3170, %v3175
        %v3177 = vsel %vm1870, %v3174, %v3176
        %v3179 = vsel %vm1873, %v3177, 0.0
        %3180 = vadd.xlane.f32.xlu0 %v3179
        %v3181 = vpop.xlane.xlu0 %3180
        %s3182 = scalar_lea.vmem %s9, 12
        %v3183 = vld [vmem:[%s3182] sm:$0xf]
        %v3184 = vadd.f32 %v3181, %v3183
        %v3185 = vmax.f32 %v3184, 0.0
        %s3186 = scalar_lea.vmem %s8, 960
        %v3187 = vld [vmem:[%s3186] sm:$0x1f]
        %v3188 = vld [vmem:[%s3186 + $0x8] sm:$0x1f]
        %v3189 = vld [vmem:[%s3186 + $0x10] sm:$0x1f]
        %v3190 = vld [vmem:[%s3186 + $0x18] sm:$0x1f]
        %v3191 = vmul.f32 %v3187, %v3075
        %v3192 = vmul.f32 %v3188, %v3075
        %v3193 = vmul.f32 %v3189, %v3075
        %v3194 = vmul.f32 %v3190, %v3075
        %v3195 = vadd.f32 %v3191, 0.0
        %v3196 = vadd.f32 %v3192, 0.0
        %v3197 = vadd.f32 %v3193, 0.0
        %v3198 = vadd.f32 %v3194, 0.0
        %v3199 = vmul.f32 %v3079, %v3100
        %v3200 = vmul.f32 %v3080, %v3100
        %v3201 = vmul.f32 %v3081, %v3100
        %v3202 = vmul.f32 %v3082, %v3100
        %v3203 = vadd.f32 %v3195, %v3199
        %v3204 = vadd.f32 %v3196, %v3200
        %v3205 = vadd.f32 %v3197, %v3201
        %v3206 = vadd.f32 %v3198, %v3202
        %v3207 = vmul.f32 %v3092, %v3115
        %v3208 = vmul.f32 %v3093, %v3115
        %v3209 = vmul.f32 %v3094, %v3115
        %v3210 = vmul.f32 %v3095, %v3115
        %v3211 = vadd.f32 %v3203, %v3207
        %v3212 = vadd.f32 %v3204, %v3208
        %v3213 = vadd.f32 %v3205, %v3209
        %v3214 = vadd.f32 %v3206, %v3210
        %v3215 = vmul.f32 %v3111, %v3133
        %v3216 = vmul.f32 %v3112, %v3133
        %v3217 = vmul.f32 %v3113, %v3133
        %v3218 = vmul.f32 %v3114, %v3133
        %v3219 = vadd.f32 %v3211, %v3215
        %v3220 = vadd.f32 %v3212, %v3216
        %v3221 = vadd.f32 %v3213, %v3217
        %v3222 = vadd.f32 %v3214, %v3218
        %v3223 = vsel %vm1831, %v3219, 0.0
        %3224 = vadd.xlane.f32.xlu0 %v3223
        %v3225 = vpop.xlane.xlu0 %3224
        %v3226 = vsel %vm1831, %v3220, 0.0
        %3227 = vadd.xlane.f32.xlu0 %v3226
        %v3228 = vpop.xlane.xlu0 %3227
        %v3229 = vsel %vm1831, %v3221, 0.0
        %3230 = vadd.xlane.f32.xlu0 %v3229
        %v3231 = vpop.xlane.xlu0 %3230
        %v3232 = vsel %vm1831, %v3222, 0.0
        %3233 = vadd.xlane.f32.xlu0 %v3232
        %v3234 = vpop.xlane.xlu0 %3233
        %v3239 = vlaneseq
        %v3240 = vshrl.u32 %v3239, 7
        %v3241 = vsub.s32 %v1849, %v3240
        %v3242 = vrot.slane %v3225, %v3241
        %v3243 = vlaneseq
        %v3244 = vshrl.u32 %v3243, 7
        %v3245 = vsub.s32 %v1849, %v3244
        %v3246 = vrot.slane %v3228, %v3245
        %v3247 = vlaneseq
        %v3248 = vshrl.u32 %v3247, 7
        %v3249 = vsub.s32 %v1849, %v3248
        %v3250 = vrot.slane %v3231, %v3249
        %v3251 = vlaneseq
        %v3252 = vshrl.u32 %v3251, 7
        %v3253 = vsub.s32 %v1849, %v3252
        %v3254 = vrot.slane %v3234, %v3253
        %v3255 = vsel %vm1866, %v3246, %v3242
        %v3256 = vsel %vm1868, %v3250, %v3255
        %v3257 = vsel %vm1870, %v3254, %v3256
        %v3259 = vsel %vm1873, %v3257, 0.0
        %3260 = vadd.xlane.f32.xlu0 %v3259
        %v3261 = vpop.xlane.xlu0 %3260
        %v3262 = vadd.f32 %v3261, %v3183
        %v3263 = vmax.f32 %v3262, 0.0
        %s3264 = scalar_lea.vmem %s8, 928
        %v3265 = vld [vmem:[%s3264] sm:$0x1f]
        %v3266 = vld [vmem:[%s3264 + $0x8] sm:$0x1f]
        %v3267 = vld [vmem:[%s3264 + $0x10] sm:$0x1f]
        %v3268 = vld [vmem:[%s3264 + $0x18] sm:$0x1f]
        %v3269 = vmul.f32 %v3265, %v3075
        %v3270 = vmul.f32 %v3266, %v3075
        %v3271 = vmul.f32 %v3267, %v3075
        %v3272 = vmul.f32 %v3268, %v3075
        %v3273 = vadd.f32 %v3269, 0.0
        %v3274 = vadd.f32 %v3270, 0.0
        %v3275 = vadd.f32 %v3271, 0.0
        %v3276 = vadd.f32 %v3272, 0.0
        %v3277 = vmul.f32 %v3187, %v3100
        %v3278 = vmul.f32 %v3188, %v3100
        %v3279 = vmul.f32 %v3189, %v3100
        %v3280 = vmul.f32 %v3190, %v3100
        %v3281 = vadd.f32 %v3273, %v3277
        %v3282 = vadd.f32 %v3274, %v3278
        %v3283 = vadd.f32 %v3275, %v3279
        %v3284 = vadd.f32 %v3276, %v3280
        %v3285 = vmul.f32 %v3079, %v3115
        %v3286 = vmul.f32 %v3080, %v3115
        %v3287 = vmul.f32 %v3081, %v3115
        %v3288 = vmul.f32 %v3082, %v3115
        %v3289 = vadd.f32 %v3281, %v3285
        %v3290 = vadd.f32 %v3282, %v3286
        %v3291 = vadd.f32 %v3283, %v3287
        %v3292 = vadd.f32 %v3284, %v3288
        %v3293 = vmul.f32 %v3092, %v3133
        %v3294 = vmul.f32 %v3093, %v3133
        %v3295 = vmul.f32 %v3094, %v3133
        %v3296 = vmul.f32 %v3095, %v3133
        %v3297 = vadd.f32 %v3289, %v3293
        %v3298 = vadd.f32 %v3290, %v3294
        %v3299 = vadd.f32 %v3291, %v3295
        %v3300 = vadd.f32 %v3292, %v3296
        %v3301 = vsel %vm1831, %v3297, 0.0
        %3302 = vadd.xlane.f32.xlu0 %v3301
        %v3303 = vpop.xlane.xlu0 %3302
        %v3304 = vsel %vm1831, %v3298, 0.0
        %3305 = vadd.xlane.f32.xlu0 %v3304
        %v3306 = vpop.xlane.xlu0 %3305
        %v3307 = vsel %vm1831, %v3299, 0.0
        %3308 = vadd.xlane.f32.xlu0 %v3307
        %v3309 = vpop.xlane.xlu0 %3308
        %v3310 = vsel %vm1831, %v3300, 0.0
        %3311 = vadd.xlane.f32.xlu0 %v3310
        %v3312 = vpop.xlane.xlu0 %3311
        %v3317 = vlaneseq
        %v3318 = vshrl.u32 %v3317, 7
        %v3319 = vsub.s32 %v1849, %v3318
        %v3320 = vrot.slane %v3303, %v3319
        %v3321 = vlaneseq
        %v3322 = vshrl.u32 %v3321, 7
        %v3323 = vsub.s32 %v1849, %v3322
        %v3324 = vrot.slane %v3306, %v3323
        %v3325 = vlaneseq
        %v3326 = vshrl.u32 %v3325, 7
        %v3327 = vsub.s32 %v1849, %v3326
        %v3328 = vrot.slane %v3309, %v3327
        %v3329 = vlaneseq
        %v3330 = vshrl.u32 %v3329, 7
        %v3331 = vsub.s32 %v1849, %v3330
        %v3332 = vrot.slane %v3312, %v3331
        %v3333 = vsel %vm1866, %v3324, %v3320
        %v3334 = vsel %vm1868, %v3328, %v3333
        %v3335 = vsel %vm1870, %v3332, %v3334
        %v3337 = vsel %vm1873, %v3335, 0.0
        %3338 = vadd.xlane.f32.xlu0 %v3337
        %v3339 = vpop.xlane.xlu0 %3338
        %v3340 = vadd.f32 %v3339, %v3183
        %v3341 = vmax.f32 %v3340, 0.0
        %s3342 = scalar_lea.vmem %s8, 896
        %v3343 = vld [vmem:[%s3342] sm:$0x1f]
        %v3344 = vld [vmem:[%s3342 + $0x8] sm:$0x1f]
        %v3345 = vld [vmem:[%s3342 + $0x10] sm:$0x1f]
        %v3346 = vld [vmem:[%s3342 + $0x18] sm:$0x1f]
        %v3347 = vmul.f32 %v3343, %v3075
        %v3348 = vmul.f32 %v3344, %v3075
        %v3349 = vmul.f32 %v3345, %v3075
        %v3350 = vmul.f32 %v3346, %v3075
        %v3351 = vadd.f32 %v3347, 0.0
        %v3352 = vadd.f32 %v3348, 0.0
        %v3353 = vadd.f32 %v3349, 0.0
        %v3354 = vadd.f32 %v3350, 0.0
        %v3355 = vmul.f32 %v3265, %v3100
        %v3356 = vmul.f32 %v3266, %v3100
        %v3357 = vmul.f32 %v3267, %v3100
        %v3358 = vmul.f32 %v3268, %v3100
        %v3359 = vadd.f32 %v3351, %v3355
        %v3360 = vadd.f32 %v3352, %v3356
        %v3361 = vadd.f32 %v3353, %v3357
        %v3362 = vadd.f32 %v3354, %v3358
        %v3363 = vmul.f32 %v3187, %v3115
        %v3364 = vmul.f32 %v3188, %v3115
        %v3365 = vmul.f32 %v3189, %v3115
        %v3366 = vmul.f32 %v3190, %v3115
        %v3367 = vadd.f32 %v3359, %v3363
        %v3368 = vadd.f32 %v3360, %v3364
        %v3369 = vadd.f32 %v3361, %v3365
        %v3370 = vadd.f32 %v3362, %v3366
        %v3371 = vmul.f32 %v3079, %v3133
        %v3372 = vmul.f32 %v3080, %v3133
        %v3373 = vmul.f32 %v3081, %v3133
        %v3374 = vmul.f32 %v3082, %v3133
        %v3375 = vadd.f32 %v3367, %v3371
        %v3376 = vadd.f32 %v3368, %v3372
        %v3377 = vadd.f32 %v3369, %v3373
        %v3378 = vadd.f32 %v3370, %v3374
        %v3379 = vsel %vm1831, %v3375, 0.0
        %3380 = vadd.xlane.f32.xlu0 %v3379
        %v3381 = vpop.xlane.xlu0 %3380
        %v3382 = vsel %vm1831, %v3376, 0.0
        %3383 = vadd.xlane.f32.xlu0 %v3382
        %v3384 = vpop.xlane.xlu0 %3383
        %v3385 = vsel %vm1831, %v3377, 0.0
        %3386 = vadd.xlane.f32.xlu0 %v3385
        %v3387 = vpop.xlane.xlu0 %3386
        %v3388 = vsel %vm1831, %v3378, 0.0
        %3389 = vadd.xlane.f32.xlu0 %v3388
        %v3390 = vpop.xlane.xlu0 %3389
        %v3395 = vlaneseq
        %v3396 = vshrl.u32 %v3395, 7
        %v3397 = vsub.s32 %v1849, %v3396
        %v3398 = vrot.slane %v3381, %v3397
        %v3399 = vlaneseq
        %v3400 = vshrl.u32 %v3399, 7
        %v3401 = vsub.s32 %v1849, %v3400
        %v3402 = vrot.slane %v3384, %v3401
        %v3403 = vlaneseq
        %v3404 = vshrl.u32 %v3403, 7
        %v3405 = vsub.s32 %v1849, %v3404
        %v3406 = vrot.slane %v3387, %v3405
        %v3407 = vlaneseq
        %v3408 = vshrl.u32 %v3407, 7
        %v3409 = vsub.s32 %v1849, %v3408
        %v3410 = vrot.slane %v3390, %v3409
        %v3411 = vsel %vm1866, %v3402, %v3398
        %v3412 = vsel %vm1868, %v3406, %v3411
        %v3413 = vsel %vm1870, %v3410, %v3412
        %v3415 = vsel %vm1873, %v3413, 0.0
        %3416 = vadd.xlane.f32.xlu0 %v3415
        %v3417 = vpop.xlane.xlu0 %3416
        %v3418 = vadd.f32 %v3417, %v3183
        %v3419 = vmax.f32 %v3418, 0.0
        %v3421 = vrot.slane %v3263, 4
        %v3424 = vrot.slane %v3419, 4
        %v3426 = vsel %vm1534, %v3185, %v3421
        %v3427 = vsel %vm1534, %v3341, %v3424
        %3429 = vset.pattern.permute.xlu0 0
        %3430 = vperm.xlu0 %3429, %v3426
        %v3431 = vpop.permute.xlu0 %3430
        %3434 = vset.pattern.permute.xlu0 0
        %3435 = vperm.xlu0 %3434, %v3427
        %v3436 = vpop.permute.xlu0 %3435
        %v3438 = vmul.f32 %v3431, %v2987
        %v3439 = vmul.f32 %v3436, %v2988
        %v3440 = vpack.c.bf16 %v3439, %v3438
        %s3441 = scalar_lea.vmem %s10, 192
        %v3442 = vld [vmem:[%s3441] sm:$0xf]
        %v3443 = vld [vmem:[%s3441 + $0x4] sm:$0xf]
        %v3444 = vld [vmem:[%s3441 + $0x8] sm:$0xf]
        %v3445 = vld [vmem:[%s3441 + $0xc] sm:$0xf]
        %v3446 = vld [vmem:[%s3441 + $0x10] sm:$0xf]
        %v3447 = vld [vmem:[%s3441 + $0x14] sm:$0xf]
        %v3448 = vld [vmem:[%s3441 + $0x18] sm:$0xf]
        %v3449 = vld [vmem:[%s3441 + $0x1c] sm:$0xf]
        %v3450 = vld [vmem:[%s3441 + $0x20] sm:$0xf]
        %v3451 = vld [vmem:[%s3441 + $0x24] sm:$0xf]
        %v3452 = vld [vmem:[%s3441 + $0x28] sm:$0xf]
        %v3453 = vld [vmem:[%s3441 + $0x2c] sm:$0xf]
        %v3454 = vld [vmem:[%s3441 + $0x30] sm:$0xf]
        %v3455 = vld [vmem:[%s3441 + $0x34] sm:$0xf]
        %v3456 = vld [vmem:[%s3441 + $0x38] sm:$0xf]
        %v3457 = vld [vmem:[%s3441 + $0x3c] sm:$0xf]
        %v3474 = vunpack.c.l.b16 %v3442
        %v3475 = vunpack.c.l.b16 %v3443
        %v3476 = vunpack.c.l.b16 %v3444
        %v3477 = vunpack.c.l.b16 %v3445
        %v3478 = vunpack.c.l.b16 %v3446
        %v3479 = vunpack.c.l.b16 %v3447
        %v3480 = vunpack.c.l.b16 %v3448
        %v3481 = vunpack.c.l.b16 %v3449
        %v3482 = vunpack.c.l.b16 %v3450
        %v3483 = vunpack.c.l.b16 %v3451
        %v3484 = vunpack.c.l.b16 %v3452
        %v3485 = vunpack.c.l.b16 %v3453
        %v3486 = vunpack.c.l.b16 %v3454
        %v3487 = vunpack.c.l.b16 %v3455
        %v3488 = vunpack.c.l.b16 %v3456
        %v3489 = vunpack.c.l.b16 %v3457
        %v3490 = vpack.c.b16 %v3475, %v3474
        %v3491 = vpack.c.b16 %v3477, %v3476
        %v3492 = vpack.c.b16 %v3479, %v3478
        %v3493 = vpack.c.b16 %v3481, %v3480
        %v3494 = vpack.c.b16 %v3483, %v3482
        %v3495 = vpack.c.b16 %v3485, %v3484
        %v3496 = vpack.c.b16 %v3487, %v3486
        %v3497 = vpack.c.b16 %v3489, %v3488
        %3506 = vmatprep.subr.bf16.mxu0 0
        %3507 = vmatpush1.bf16.msra.mxu0 %v3490
        %3508 = vmatprep.subr.bf16.mxu0 0
        %3509 = vmatpush1.bf16.msra.mxu0 %v3491
        %3510 = vmatprep.subr.bf16.mxu0 0
        %3511 = vmatpush1.bf16.msra.mxu0 %v3492
        %3512 = vmatprep.subr.bf16.mxu0 0
        %3513 = vmatpush1.bf16.msra.mxu0 %v3493
        %3514 = vmatprep.subr.bf16.mxu0 0
        %3515 = vmatpush1.bf16.msra.mxu0 %v3494
        %3516 = vmatprep.subr.bf16.mxu0 0
        %3517 = vmatpush1.bf16.msra.mxu0 %v3495
        %3518 = vmatprep.subr.bf16.mxu0 0
        %3519 = vmatpush1.bf16.msra.mxu0 %v3496
        %3520 = vmatprep.subr.bf16.mxu0 0
        %3521 = vmatpush1.bf16.msra.mxu0 %v3497
        %3522 = vmatprep.subr.bf16.mxu0 0
        %3523 = vmatpush1.bf16.msra.mxu0 0
        %3524 = vmatprep.subr.bf16.mxu0 0
        %3525 = vmatpush1.bf16.msra.mxu0 0
        %3526 = vmatprep.subr.bf16.mxu0 0
        %3527 = vmatpush1.bf16.msra.mxu0 0
        %3528 = vmatprep.subr.bf16.mxu0 0
        %3529 = vmatpush1.bf16.msra.mxu0 0
        %3530 = vmatprep.subr.bf16.mxu0 0
        %3531 = vmatpush1.bf16.msra.mxu0 0
        %3532 = vmatprep.subr.bf16.mxu0 0
        %3533 = vmatpush1.bf16.msra.mxu0 0
        %3534 = vmatprep.subr.bf16.mxu0 0
        %3535 = vmatpush1.bf16.msra.mxu0 0
        %3536 = vmatprep.subr.bf16.mxu0 0
        %3537 = vmatpush1.bf16.msra.mxu0 0
        %3538 = vmatprep.mubr.bf16.mxu0 0
        %3539 = vmatmul.mubr.bf16.gmra.mrb[0].mxu0 %v3440
        %v3540 = vpop.f32.mrb[0].mxu0
        %v3541 = vadd.f32 0.0, %v3540
        %v3542 = vpop.f32.mrb[0].mxu0
        %v3543 = vpop.f32.mrb[0].mxu0
        %v3544 = vadd.f32 0.0, %v3543
        %v3545 = vpop.f32.mrb[0].mxu0
        %3546 = vdwg.mxu0
        %s3547 = scalar_lea.vmem %s11, 24
        %v3548 = vld [vmem:[%s3547] sm:$0xf]
        %v3549 = vld [vmem:[%s3547 + $0x4] sm:$0xf]
        %v3550 = vpack.c.bf16 %v3544, %v3541
        %s3551 = scalar_lea.vmem %s12, 24
        %v3552 = vld [vmem:[%s3551] sm:$0xf]
        %v3553 = vld [vmem:[%s3551 + $0x4] sm:$0xf]
        %v3556 = vunpack.c.l.b16 %v3552
        %v3557 = vunpack.c.l.b16 %v3553
        %v3558 = vpack.c.b16 %v3557, %v3556
        %v3560 = vsel %vm1628, %v3558, 0
        %3562 = vmatprep.subr.bf16.mxu0 0
        %3563 = vmatpush1.bf16.msra.mxu0 %v2993
        %3564 = vmatprep.subr.bf16.mxu0 0
        %3565 = vmatpush1.bf16.msra.mxu0 0
        %3566 = vmatprep.subr.bf16.mxu0 0
        %3567 = vmatpush1.bf16.msra.mxu0 0
        %3568 = vmatprep.subr.bf16.mxu0 0
        %3569 = vmatpush1.bf16.msra.mxu0 0
        %3570 = vmatprep.subr.bf16.mxu0 0
        %3571 = vmatpush1.bf16.msra.mxu0 0
        %3572 = vmatprep.subr.bf16.mxu0 0
        %3573 = vmatpush1.bf16.msra.mxu0 0
        %3574 = vmatprep.subr.bf16.mxu0 0
        %3575 = vmatpush1.bf16.msra.mxu0 0
        %3576 = vmatprep.subr.bf16.mxu0 0
        %3577 = vmatpush1.bf16.msra.mxu0 0
        %3578 = vmatprep.subr.bf16.mxu0 0
        %3579 = vmatpush1.bf16.msra.mxu0 0
        %3580 = vmatprep.subr.bf16.mxu0 0
        %3581 = vmatpush1.bf16.msra.mxu0 0
        %3582 = vmatprep.subr.bf16.mxu0 0
        %3583 = vmatpush1.bf16.msra.mxu0 0
        %3584 = vmatprep.subr.bf16.mxu0 0
        %3585 = vmatpush1.bf16.msra.mxu0 0
        %3586 = vmatprep.subr.bf16.mxu0 0
        %3587 = vmatpush1.bf16.msra.mxu0 0
        %3588 = vmatprep.subr.bf16.mxu0 0
        %3589 = vmatpush1.bf16.msra.mxu0 0
        %3590 = vmatprep.subr.bf16.mxu0 0
        %3591 = vmatpush1.bf16.msra.mxu0 0
        %3592 = vmatprep.subr.bf16.mxu0 0
        %3593 = vmatpush1.bf16.msra.mxu0 0
        %3594 = vmatprep.mubr.bf16.mxu0 0
        %3595 = vmatmul.mubr.bf16.gmra.mrb[0].mxu0 %v3560
        %v3596 = vpop.f32.mrb[0].mxu0
        %v3597 = vadd.f32 0.0, %v3596
        %v3598 = vpop.f32.mrb[0].mxu0
        %v3599 = vpop.f32.mrb[0].mxu0
        %v3600 = vadd.f32 0.0, %v3599
        %v3601 = vpop.f32.mrb[0].mxu0
        %3602 = vdwg.mxu0
        %v3605 = vunpack.c.l.b16 %v3548
        %v3606 = vunpack.c.l.b16 %v3549
        %v3607 = vpack.c.b16 %v3606, %v3605
        %v3609 = vsel %vm1628, %v3607, 0
        %3611 = vmatprep.subr.bf16.mxu0 0
        %3612 = vmatpush1.bf16.msra.mxu0 %v3550
        %3613 = vmatprep.subr.bf16.mxu0 0
        %3614 = vmatpush1.bf16.msra.mxu0 0
        %3615 = vmatprep.subr.bf16.mxu0 0
        %3616 = vmatpush1.bf16.msra.mxu0 0
        %3617 = vmatprep.subr.bf16.mxu0 0
        %3618 = vmatpush1.bf16.msra.mxu0 0
        %3619 = vmatprep.subr.bf16.mxu0 0
        %3620 = vmatpush1.bf16.msra.mxu0 0
        %3621 = vmatprep.subr.bf16.mxu0 0
        %3622 = vmatpush1.bf16.msra.mxu0 0
        %3623 = vmatprep.subr.bf16.mxu0 0
        %3624 = vmatpush1.bf16.msra.mxu0 0
        %3625 = vmatprep.subr.bf16.mxu0 0
        %3626 = vmatpush1.bf16.msra.mxu0 0
        %3627 = vmatprep.subr.bf16.mxu0 0
        %3628 = vmatpush1.bf16.msra.mxu0 0
        %3629 = vmatprep.subr.bf16.mxu0 0
        %3630 = vmatpush1.bf16.msra.mxu0 0
        %3631 = vmatprep.subr.bf16.mxu0 0
        %3632 = vmatpush1.bf16.msra.mxu0 0
        %3633 = vmatprep.subr.bf16.mxu0 0
        %3634 = vmatpush1.bf16.msra.mxu0 0
        %3635 = vmatprep.subr.bf16.mxu0 0
        %3636 = vmatpush1.bf16.msra.mxu0 0
        %3637 = vmatprep.subr.bf16.mxu0 0
        %3638 = vmatpush1.bf16.msra.mxu0 0
        %3639 = vmatprep.subr.bf16.mxu0 0
        %3640 = vmatpush1.bf16.msra.mxu0 0
        %3641 = vmatprep.subr.bf16.mxu0 0
        %3642 = vmatpush1.bf16.msra.mxu0 0
        %3643 = vmatprep.mubr.bf16.mxu0 0
        %3644 = vmatmul.mubr.bf16.gmra.mrb[0].mxu0 %v3609
        %v3645 = vpop.f32.mrb[0].mxu0
        %v3646 = vadd.f32 %v3597, %v3645
        %v3647 = vpop.f32.mrb[0].mxu0
        %v3648 = vpop.f32.mrb[0].mxu0
        %v3649 = vadd.f32 %v3600, %v3648
        %v3650 = vpop.f32.mrb[0].mxu0
        %3651 = vdwg.mxu0
        %s3652 = scalar_lea.vmem %s13, 48
        %v3653 = vld [vmem:[%s3652] sm:$0xff]
        %v3654 = vld [vmem:[%s3652 + $0x8] sm:$0xff]
        %3656 = vset.pattern.permute.xlu0 0
        %3657 = vperm.xlu0 %3656, %v3653
        %v3658 = vpop.permute.xlu0 %3657
        %3661 = vset.pattern.permute.xlu0 0
        %3662 = vperm.xlu0 %3661, %v3654
        %v3663 = vpop.permute.xlu0 %3662
        %v3665 = vadd.f32 %v3646, %v3658
        %v3666 = vadd.f32 %v3649, %v3663
        %v3667 = vmax.f32 %v3665, 0.0
        %v3668 = vmax.f32 %v3666, 0.0
        %v3669 = vld [vmem:[%s21] sm:$0x1]
        %v3670 = vpack.c.bf16 %v3667, %v3667
        %v3671 = vld [vmem:[%s20] sm:$0xf]
        %v3672 = vld [vmem:[%s20 + $0x4] sm:$0xf]
        %v3673 = vld [vmem:[%s20 + $0x8] sm:$0xf]
        %v3674 = vld [vmem:[%s20 + $0xc] sm:$0xf]
        %v3675 = vld [vmem:[%s20 + $0x10] sm:$0xf]
        %v3676 = vld [vmem:[%s20 + $0x14] sm:$0xf]
        %v3677 = vld [vmem:[%s20 + $0x18] sm:$0xf]
        %v3678 = vld [vmem:[%s20 + $0x1c] sm:$0xf]
        %v3679 = vld [vmem:[%s20 + $0x20] sm:$0xf]
        %v3680 = vld [vmem:[%s20 + $0x24] sm:$0xf]
        %v3681 = vld [vmem:[%s20 + $0x28] sm:$0xf]
        %v3682 = vld [vmem:[%s20 + $0x2c] sm:$0xf]
        %v3683 = vld [vmem:[%s20 + $0x30] sm:$0xf]
        %v3684 = vld [vmem:[%s20 + $0x34] sm:$0xf]
        %v3685 = vld [vmem:[%s20 + $0x38] sm:$0xf]
        %v3686 = vld [vmem:[%s20 + $0x3c] sm:$0xf]
        %v3703 = vunpack.c.l.b16 %v3671
        %v3704 = vunpack.c.l.b16 %v3672
        %v3705 = vunpack.c.l.b16 %v3673
        %v3706 = vunpack.c.l.b16 %v3674
        %v3707 = vunpack.c.l.b16 %v3675
        %v3708 = vunpack.c.l.b16 %v3676
        %v3709 = vunpack.c.l.b16 %v3677
        %v3710 = vunpack.c.l.b16 %v3678
        %v3711 = vunpack.c.l.b16 %v3679
        %v3712 = vunpack.c.l.b16 %v3680
        %v3713 = vunpack.c.l.b16 %v3681
        %v3714 = vunpack.c.l.b16 %v3682
        %v3715 = vunpack.c.l.b16 %v3683
        %v3716 = vunpack.c.l.b16 %v3684
        %v3717 = vunpack.c.l.b16 %v3685
        %v3718 = vunpack.c.l.b16 %v3686
        %v3719 = vpack.c.b16 %v3704, %v3703
        %v3720 = vpack.c.b16 %v3706, %v3705
        %v3721 = vpack.c.b16 %v3708, %v3707
        %v3722 = vpack.c.b16 %v3710, %v3709
        %v3723 = vpack.c.b16 %v3712, %v3711
        %v3724 = vpack.c.b16 %v3714, %v3713
        %v3725 = vpack.c.b16 %v3716, %v3715
        %v3726 = vpack.c.b16 %v3718, %v3717
        %3735 = vmatprep.subr.bf16.mxu0 0
        %3736 = vmatpush1.bf16.msra.mxu0 %v3719
        %3737 = vmatprep.subr.bf16.mxu0 0
        %3738 = vmatpush1.bf16.msra.mxu0 %v3720
        %3739 = vmatprep.subr.bf16.mxu0 0
        %3740 = vmatpush1.bf16.msra.mxu0 %v3721
        %3741 = vmatprep.subr.bf16.mxu0 0
        %3742 = vmatpush1.bf16.msra.mxu0 %v3722
        %3743 = vmatprep.subr.bf16.mxu0 0
        %3744 = vmatpush1.bf16.msra.mxu0 %v3723
        %3745 = vmatprep.subr.bf16.mxu0 0
        %3746 = vmatpush1.bf16.msra.mxu0 %v3724
        %3747 = vmatprep.subr.bf16.mxu0 0
        %3748 = vmatpush1.bf16.msra.mxu0 %v3725
        %3749 = vmatprep.subr.bf16.mxu0 0
        %3750 = vmatpush1.bf16.msra.mxu0 %v3726
        %3751 = vmatprep.subr.bf16.mxu0 0
        %3752 = vmatpush1.bf16.msra.mxu0 0
        %3753 = vmatprep.subr.bf16.mxu0 0
        %3754 = vmatpush1.bf16.msra.mxu0 0
        %3755 = vmatprep.subr.bf16.mxu0 0
        %3756 = vmatpush1.bf16.msra.mxu0 0
        %3757 = vmatprep.subr.bf16.mxu0 0
        %3758 = vmatpush1.bf16.msra.mxu0 0
        %3759 = vmatprep.subr.bf16.mxu0 0
        %3760 = vmatpush1.bf16.msra.mxu0 0
        %3761 = vmatprep.subr.bf16.mxu0 0
        %3762 = vmatpush1.bf16.msra.mxu0 0
        %3763 = vmatprep.subr.bf16.mxu0 0
        %3764 = vmatpush1.bf16.msra.mxu0 0
        %3765 = vmatprep.subr.bf16.mxu0 0
        %3766 = vmatpush1.bf16.msra.mxu0 0
        %3767 = vmatprep.mubr.bf16.mxu0 0
        %3768 = vmatmul.mubr.bf16.gmra.mrb[0].mxu0 %v3670
        %v3769 = vpop.f32.mrb[0].mxu0
        %v3770 = vadd.f32 0.0, %v3769
        %v3771 = vpop.f32.mrb[0].mxu0
        %v3772 = vpop.f32.mrb[0].mxu0
        %v3773 = vpop.f32.mrb[0].mxu0
        %3774 = vdwg.mxu0
        %v3775 = vadd.f32 %v3669, %v3770
        %s3776 = scalar_lea.vmem %s20, 64
        %v3777 = vld [vmem:[%s3776] sm:$0xf]
        %v3778 = vld [vmem:[%s3776 + $0x4] sm:$0xf]
        %v3779 = vld [vmem:[%s3776 + $0x8] sm:$0xf]
        %v3780 = vld [vmem:[%s3776 + $0xc] sm:$0xf]
        %v3781 = vld [vmem:[%s3776 + $0x10] sm:$0xf]
        %v3782 = vld [vmem:[%s3776 + $0x14] sm:$0xf]
        %v3783 = vld [vmem:[%s3776 + $0x18] sm:$0xf]
        %v3784 = vld [vmem:[%s3776 + $0x1c] sm:$0xf]
        %v3785 = vld [vmem:[%s3776 + $0x20] sm:$0xf]
        %v3786 = vld [vmem:[%s3776 + $0x24] sm:$0xf]
        %v3787 = vld [vmem:[%s3776 + $0x28] sm:$0xf]
        %v3788 = vld [vmem:[%s3776 + $0x2c] sm:$0xf]
        %v3789 = vld [vmem:[%s3776 + $0x30] sm:$0xf]
        %v3790 = vld [vmem:[%s3776 + $0x34] sm:$0xf]
        %v3791 = vld [vmem:[%s3776 + $0x38] sm:$0xf]
        %v3792 = vld [vmem:[%s3776 + $0x3c] sm:$0xf]
        %v3794 = vshrl.u32 %v3670, 16
        %v3813 = vunpack.c.l.b16 %v3777
        %v3814 = vunpack.c.l.b16 %v3778
        %v3815 = vunpack.c.l.b16 %v3779
        %v3816 = vunpack.c.l.b16 %v3780
        %v3817 = vunpack.c.l.b16 %v3781
        %v3818 = vunpack.c.l.b16 %v3782
        %v3819 = vunpack.c.l.b16 %v3783
        %v3820 = vunpack.c.l.b16 %v3784
        %v3821 = vunpack.c.l.b16 %v3785
        %v3822 = vunpack.c.l.b16 %v3786
        %v3823 = vunpack.c.l.b16 %v3787
        %v3824 = vunpack.c.l.b16 %v3788
        %v3825 = vunpack.c.l.b16 %v3789
        %v3826 = vunpack.c.l.b16 %v3790
        %v3827 = vunpack.c.l.b16 %v3791
        %v3828 = vunpack.c.l.b16 %v3792
        %v3829 = vpack.c.b16 %v3814, %v3813
        %v3830 = vpack.c.b16 %v3816, %v3815
        %v3831 = vpack.c.b16 %v3818, %v3817
        %v3832 = vpack.c.b16 %v3820, %v3819
        %v3833 = vpack.c.b16 %v3822, %v3821
        %v3834 = vpack.c.b16 %v3824, %v3823
        %v3835 = vpack.c.b16 %v3826, %v3825
        %v3836 = vpack.c.b16 %v3828, %v3827
        %3845 = vmatprep.subr.bf16.mxu0 0
        %3846 = vmatpush1.bf16.msra.mxu0 %v3829
        %3847 = vmatprep.subr.bf16.mxu0 0
        %3848 = vmatpush1.bf16.msra.mxu0 %v3830
        %3849 = vmatprep.subr.bf16.mxu0 0
        %3850 = vmatpush1.bf16.msra.mxu0 %v3831
        %3851 = vmatprep.subr.bf16.mxu0 0
        %3852 = vmatpush1.bf16.msra.mxu0 %v3832
        %3853 = vmatprep.subr.bf16.mxu0 0
        %3854 = vmatpush1.bf16.msra.mxu0 %v3833
        %3855 = vmatprep.subr.bf16.mxu0 0
        %3856 = vmatpush1.bf16.msra.mxu0 %v3834
        %3857 = vmatprep.subr.bf16.mxu0 0
        %3858 = vmatpush1.bf16.msra.mxu0 %v3835
        %3859 = vmatprep.subr.bf16.mxu0 0
        %3860 = vmatpush1.bf16.msra.mxu0 %v3836
        %3861 = vmatprep.subr.bf16.mxu0 0
        %3862 = vmatpush1.bf16.msra.mxu0 0
        %3863 = vmatprep.subr.bf16.mxu0 0
        %3864 = vmatpush1.bf16.msra.mxu0 0
        %3865 = vmatprep.subr.bf16.mxu0 0
        %3866 = vmatpush1.bf16.msra.mxu0 0
        %3867 = vmatprep.subr.bf16.mxu0 0
        %3868 = vmatpush1.bf16.msra.mxu0 0
        %3869 = vmatprep.subr.bf16.mxu0 0
        %3870 = vmatpush1.bf16.msra.mxu0 0
        %3871 = vmatprep.subr.bf16.mxu0 0
        %3872 = vmatpush1.bf16.msra.mxu0 0
        %3873 = vmatprep.subr.bf16.mxu0 0
        %3874 = vmatpush1.bf16.msra.mxu0 0
        %3875 = vmatprep.subr.bf16.mxu0 0
        %3876 = vmatpush1.bf16.msra.mxu0 0
        %3877 = vmatprep.mubr.bf16.mxu0 0
        %3878 = vmatmul.mubr.bf16.gmra.mrb[0].mxu0 %v3794
        %v3879 = vpop.f32.mrb[0].mxu0
        %v3880 = vadd.f32 0.0, %v3879
        %v3881 = vpop.f32.mrb[0].mxu0
        %v3882 = vpop.f32.mrb[0].mxu0
        %v3883 = vpop.f32.mrb[0].mxu0
        %3884 = vdwg.mxu0
        %v3885 = vadd.f32 %v3775, %v3880
        %s3886 = scalar_lea.vmem %s20, 128
        %v3887 = vld [vmem:[%s3886] sm:$0xf]
        %v3888 = vld [vmem:[%s3886 + $0x4] sm:$0xf]
        %v3889 = vld [vmem:[%s3886 + $0x8] sm:$0xf]
        %v3890 = vld [vmem:[%s3886 + $0xc] sm:$0xf]
        %v3891 = vld [vmem:[%s3886 + $0x10] sm:$0xf]
        %v3892 = vld [vmem:[%s3886 + $0x14] sm:$0xf]
        %v3893 = vld [vmem:[%s3886 + $0x18] sm:$0xf]
        %v3894 = vld [vmem:[%s3886 + $0x1c] sm:$0xf]
        %v3895 = vld [vmem:[%s3886 + $0x20] sm:$0xf]
        %v3896 = vld [vmem:[%s3886 + $0x24] sm:$0xf]
        %v3897 = vld [vmem:[%s3886 + $0x28] sm:$0xf]
        %v3898 = vld [vmem:[%s3886 + $0x2c] sm:$0xf]
        %v3899 = vld [vmem:[%s3886 + $0x30] sm:$0xf]
        %v3900 = vld [vmem:[%s3886 + $0x34] sm:$0xf]
        %v3901 = vld [vmem:[%s3886 + $0x38] sm:$0xf]
        %v3902 = vld [vmem:[%s3886 + $0x3c] sm:$0xf]
        %v3904 = vrot.slane %v3670, 1
        %v3922 = vunpack.c.l.b16 %v3887
        %v3923 = vunpack.c.l.b16 %v3888
        %v3924 = vunpack.c.l.b16 %v3889
        %v3925 = vunpack.c.l.b16 %v3890
        %v3926 = vunpack.c.l.b16 %v3891
        %v3927 = vunpack.c.l.b16 %v3892
        %v3928 = vunpack.c.l.b16 %v3893
        %v3929 = vunpack.c.l.b16 %v3894
        %v3930 = vunpack.c.l.b16 %v3895
        %v3931 = vunpack.c.l.b16 %v3896
        %v3932 = vunpack.c.l.b16 %v3897
        %v3933 = vunpack.c.l.b16 %v3898
        %v3934 = vunpack.c.l.b16 %v3899
        %v3935 = vunpack.c.l.b16 %v3900
        %v3936 = vunpack.c.l.b16 %v3901
        %v3937 = vunpack.c.l.b16 %v3902
        %v3938 = vpack.c.b16 %v3923, %v3922
        %v3939 = vpack.c.b16 %v3925, %v3924
        %v3940 = vpack.c.b16 %v3927, %v3926
        %v3941 = vpack.c.b16 %v3929, %v3928
        %v3942 = vpack.c.b16 %v3931, %v3930
        %v3943 = vpack.c.b16 %v3933, %v3932
        %v3944 = vpack.c.b16 %v3935, %v3934
        %v3945 = vpack.c.b16 %v3937, %v3936
        %3954 = vmatprep.subr.bf16.mxu0 0
        %3955 = vmatpush1.bf16.msra.mxu0 %v3938
        %3956 = vmatprep.subr.bf16.mxu0 0
        %3957 = vmatpush1.bf16.msra.mxu0 %v3939
        %3958 = vmatprep.subr.bf16.mxu0 0
        %3959 = vmatpush1.bf16.msra.mxu0 %v3940
        %3960 = vmatprep.subr.bf16.mxu0 0
        %3961 = vmatpush1.bf16.msra.mxu0 %v3941
        %3962 = vmatprep.subr.bf16.mxu0 0
        %3963 = vmatpush1.bf16.msra.mxu0 %v3942
        %3964 = vmatprep.subr.bf16.mxu0 0
        %3965 = vmatpush1.bf16.msra.mxu0 %v3943
        %3966 = vmatprep.subr.bf16.mxu0 0
        %3967 = vmatpush1.bf16.msra.mxu0 %v3944
        %3968 = vmatprep.subr.bf16.mxu0 0
        %3969 = vmatpush1.bf16.msra.mxu0 %v3945
        %3970 = vmatprep.subr.bf16.mxu0 0
        %3971 = vmatpush1.bf16.msra.mxu0 0
        %3972 = vmatprep.subr.bf16.mxu0 0
        %3973 = vmatpush1.bf16.msra.mxu0 0
        %3974 = vmatprep.subr.bf16.mxu0 0
        %3975 = vmatpush1.bf16.msra.mxu0 0
        %3976 = vmatprep.subr.bf16.mxu0 0
        %3977 = vmatpush1.bf16.msra.mxu0 0
        %3978 = vmatprep.subr.bf16.mxu0 0
        %3979 = vmatpush1.bf16.msra.mxu0 0
        %3980 = vmatprep.subr.bf16.mxu0 0
        %3981 = vmatpush1.bf16.msra.mxu0 0
        %3982 = vmatprep.subr.bf16.mxu0 0
        %3983 = vmatpush1.bf16.msra.mxu0 0
        %3984 = vmatprep.subr.bf16.mxu0 0
        %3985 = vmatpush1.bf16.msra.mxu0 0
        %3986 = vmatprep.mubr.bf16.mxu0 0
        %3987 = vmatmul.mubr.bf16.gmra.mrb[0].mxu0 %v3904
        %v3988 = vpop.f32.mrb[0].mxu0
        %v3989 = vadd.f32 0.0, %v3988
        %v3990 = vpop.f32.mrb[0].mxu0
        %v3991 = vpop.f32.mrb[0].mxu0
        %v3992 = vpop.f32.mrb[0].mxu0
        %3993 = vdwg.mxu0
        %v3994 = vadd.f32 %v3885, %v3989
        %s3995 = scalar_lea.vmem %s20, 192
        %v3996 = vld [vmem:[%s3995] sm:$0xf]
        %v3997 = vld [vmem:[%s3995 + $0x4] sm:$0xf]
        %v3998 = vld [vmem:[%s3995 + $0x8] sm:$0xf]
        %v3999 = vld [vmem:[%s3995 + $0xc] sm:$0xf]
        %v4000 = vld [vmem:[%s3995 + $0x10] sm:$0xf]
        %v4001 = vld [vmem:[%s3995 + $0x14] sm:$0xf]
        %v4002 = vld [vmem:[%s3995 + $0x18] sm:$0xf]
        %v4003 = vld [vmem:[%s3995 + $0x1c] sm:$0xf]
        %v4004 = vld [vmem:[%s3995 + $0x20] sm:$0xf]
        %v4005 = vld [vmem:[%s3995 + $0x24] sm:$0xf]
        %v4006 = vld [vmem:[%s3995 + $0x28] sm:$0xf]
        %v4007 = vld [vmem:[%s3995 + $0x2c] sm:$0xf]
        %v4008 = vld [vmem:[%s3995 + $0x30] sm:$0xf]
        %v4009 = vld [vmem:[%s3995 + $0x34] sm:$0xf]
        %v4010 = vld [vmem:[%s3995 + $0x38] sm:$0xf]
        %v4011 = vld [vmem:[%s3995 + $0x3c] sm:$0xf]
        %v4012 = vrot.slane %v3794, 1
        %v4030 = vunpack.c.l.b16 %v3996
        %v4031 = vunpack.c.l.b16 %v3997
        %v4032 = vunpack.c.l.b16 %v3998
        %v4033 = vunpack.c.l.b16 %v3999
        %v4034 = vunpack.c.l.b16 %v4000
        %v4035 = vunpack.c.l.b16 %v4001
        %v4036 = vunpack.c.l.b16 %v4002
        %v4037 = vunpack.c.l.b16 %v4003
        %v4038 = vunpack.c.l.b16 %v4004
        %v4039 = vunpack.c.l.b16 %v4005
        %v4040 = vunpack.c.l.b16 %v4006
        %v4041 = vunpack.c.l.b16 %v4007
        %v4042 = vunpack.c.l.b16 %v4008
        %v4043 = vunpack.c.l.b16 %v4009
        %v4044 = vunpack.c.l.b16 %v4010
        %v4045 = vunpack.c.l.b16 %v4011
        %v4046 = vpack.c.b16 %v4031, %v4030
        %v4047 = vpack.c.b16 %v4033, %v4032
        %v4048 = vpack.c.b16 %v4035, %v4034
        %v4049 = vpack.c.b16 %v4037, %v4036
        %v4050 = vpack.c.b16 %v4039, %v4038
        %v4051 = vpack.c.b16 %v4041, %v4040
        %v4052 = vpack.c.b16 %v4043, %v4042
        %v4053 = vpack.c.b16 %v4045, %v4044
        %4062 = vmatprep.subr.bf16.mxu0 0
        %4063 = vmatpush1.bf16.msra.mxu0 %v4046
        %4064 = vmatprep.subr.bf16.mxu0 0
        %4065 = vmatpush1.bf16.msra.mxu0 %v4047
        %4066 = vmatprep.subr.bf16.mxu0 0
        %4067 = vmatpush1.bf16.msra.mxu0 %v4048
        %4068 = vmatprep.subr.bf16.mxu0 0
        %4069 = vmatpush1.bf16.msra.mxu0 %v4049
        %4070 = vmatprep.subr.bf16.mxu0 0
        %4071 = vmatpush1.bf16.msra.mxu0 %v4050
        %4072 = vmatprep.subr.bf16.mxu0 0
        %4073 = vmatpush1.bf16.msra.mxu0 %v4051
        %4074 = vmatprep.subr.bf16.mxu0 0
        %4075 = vmatpush1.bf16.msra.mxu0 %v4052
        %4076 = vmatprep.subr.bf16.mxu0 0
        %4077 = vmatpush1.bf16.msra.mxu0 %v4053
        %4078 = vmatprep.subr.bf16.mxu0 0
        %4079 = vmatpush1.bf16.msra.mxu0 0
        %4080 = vmatprep.subr.bf16.mxu0 0
        %4081 = vmatpush1.bf16.msra.mxu0 0
        %4082 = vmatprep.subr.bf16.mxu0 0
        %4083 = vmatpush1.bf16.msra.mxu0 0
        %4084 = vmatprep.subr.bf16.mxu0 0
        %4085 = vmatpush1.bf16.msra.mxu0 0
        %4086 = vmatprep.subr.bf16.mxu0 0
        %4087 = vmatpush1.bf16.msra.mxu0 0
        %4088 = vmatprep.subr.bf16.mxu0 0
        %4089 = vmatpush1.bf16.msra.mxu0 0
        %4090 = vmatprep.subr.bf16.mxu0 0
        %4091 = vmatpush1.bf16.msra.mxu0 0
        %4092 = vmatprep.subr.bf16.mxu0 0
        %4093 = vmatpush1.bf16.msra.mxu0 0
        %4094 = vmatprep.mubr.bf16.mxu0 0
        %4095 = vmatmul.mubr.bf16.gmra.mrb[0].mxu0 %v4012
        %v4096 = vpop.f32.mrb[0].mxu0
        %v4097 = vadd.f32 0.0, %v4096
        %v4098 = vpop.f32.mrb[0].mxu0
        %v4099 = vpop.f32.mrb[0].mxu0
        %v4100 = vpop.f32.mrb[0].mxu0
        %4101 = vdwg.mxu0
        %v4102 = vadd.f32 %v3994, %v4097
        %s4103 = scalar_lea.vmem %s20, 256
        %v4104 = vld [vmem:[%s4103] sm:$0xf]
        %v4105 = vld [vmem:[%s4103 + $0x4] sm:$0xf]
        %v4106 = vld [vmem:[%s4103 + $0x8] sm:$0xf]
        %v4107 = vld [vmem:[%s4103 + $0xc] sm:$0xf]
        %v4108 = vld [vmem:[%s4103 + $0x10] sm:$0xf]
        %v4109 = vld [vmem:[%s4103 + $0x14] sm:$0xf]
        %v4110 = vld [vmem:[%s4103 + $0x18] sm:$0xf]
        %v4111 = vld [vmem:[%s4103 + $0x1c] sm:$0xf]
        %v4112 = vld [vmem:[%s4103 + $0x20] sm:$0xf]
        %v4113 = vld [vmem:[%s4103 + $0x24] sm:$0xf]
        %v4114 = vld [vmem:[%s4103 + $0x28] sm:$0xf]
        %v4115 = vld [vmem:[%s4103 + $0x2c] sm:$0xf]
        %v4116 = vld [vmem:[%s4103 + $0x30] sm:$0xf]
        %v4117 = vld [vmem:[%s4103 + $0x34] sm:$0xf]
        %v4118 = vld [vmem:[%s4103 + $0x38] sm:$0xf]
        %v4119 = vld [vmem:[%s4103 + $0x3c] sm:$0xf]
        %v4120 = vrot.slane %v3670, 2
        %v4138 = vunpack.c.l.b16 %v4104
        %v4139 = vunpack.c.l.b16 %v4105
        %v4140 = vunpack.c.l.b16 %v4106
        %v4141 = vunpack.c.l.b16 %v4107
        %v4142 = vunpack.c.l.b16 %v4108
        %v4143 = vunpack.c.l.b16 %v4109
        %v4144 = vunpack.c.l.b16 %v4110
        %v4145 = vunpack.c.l.b16 %v4111
        %v4146 = vunpack.c.l.b16 %v4112
        %v4147 = vunpack.c.l.b16 %v4113
        %v4148 = vunpack.c.l.b16 %v4114
        %v4149 = vunpack.c.l.b16 %v4115
        %v4150 = vunpack.c.l.b16 %v4116
        %v4151 = vunpack.c.l.b16 %v4117
        %v4152 = vunpack.c.l.b16 %v4118
        %v4153 = vunpack.c.l.b16 %v4119
        %v4154 = vpack.c.b16 %v4139, %v4138
        %v4155 = vpack.c.b16 %v4141, %v4140
        %v4156 = vpack.c.b16 %v4143, %v4142
        %v4157 = vpack.c.b16 %v4145, %v4144
        %v4158 = vpack.c.b16 %v4147, %v4146
        %v4159 = vpack.c.b16 %v4149, %v4148
        %v4160 = vpack.c.b16 %v4151, %v4150
        %v4161 = vpack.c.b16 %v4153, %v4152
        %4170 = vmatprep.subr.bf16.mxu0 0
        %4171 = vmatpush1.bf16.msra.mxu0 %v4154
        %4172 = vmatprep.subr.bf16.mxu0 0
        %4173 = vmatpush1.bf16.msra.mxu0 %v4155
        %4174 = vmatprep.subr.bf16.mxu0 0
        %4175 = vmatpush1.bf16.msra.mxu0 %v4156
        %4176 = vmatprep.subr.bf16.mxu0 0
        %4177 = vmatpush1.bf16.msra.mxu0 %v4157
        %4178 = vmatprep.subr.bf16.mxu0 0
        %4179 = vmatpush1.bf16.msra.mxu0 %v4158
        %4180 = vmatprep.subr.bf16.mxu0 0
        %4181 = vmatpush1.bf16.msra.mxu0 %v4159
        %4182 = vmatprep.subr.bf16.mxu0 0
        %4183 = vmatpush1.bf16.msra.mxu0 %v4160
        %4184 = vmatprep.subr.bf16.mxu0 0
        %4185 = vmatpush1.bf16.msra.mxu0 %v4161
        %4186 = vmatprep.subr.bf16.mxu0 0
        %4187 = vmatpush1.bf16.msra.mxu0 0
        %4188 = vmatprep.subr.bf16.mxu0 0
        %4189 = vmatpush1.bf16.msra.mxu0 0
        %4190 = vmatprep.subr.bf16.mxu0 0
        %4191 = vmatpush1.bf16.msra.mxu0 0
        %4192 = vmatprep.subr.bf16.mxu0 0
        %4193 = vmatpush1.bf16.msra.mxu0 0
        %4194 = vmatprep.subr.bf16.mxu0 0
        %4195 = vmatpush1.bf16.msra.mxu0 0
        %4196 = vmatprep.subr.bf16.mxu0 0
        %4197 = vmatpush1.bf16.msra.mxu0 0
        %4198 = vmatprep.subr.bf16.mxu0 0
        %4199 = vmatpush1.bf16.msra.mxu0 0
        %4200 = vmatprep.subr.bf16.mxu0 0
        %4201 = vmatpush1.bf16.msra.mxu0 0
        %4202 = vmatprep.mubr.bf16.mxu0 0
        %4203 = vmatmul.mubr.bf16.gmra.mrb[0].mxu0 %v4120
        %v4204 = vpop.f32.mrb[0].mxu0
        %v4205 = vadd.f32 0.0, %v4204
        %v4206 = vpop.f32.mrb[0].mxu0
        %v4207 = vpop.f32.mrb[0].mxu0
        %v4208 = vpop.f32.mrb[0].mxu0
        %4209 = vdwg.mxu0
        %v4210 = vadd.f32 %v4102, %v4205
        %s4211 = scalar_lea.vmem %s20, 320
        %v4212 = vld [vmem:[%s4211] sm:$0xf]
        %v4213 = vld [vmem:[%s4211 + $0x4] sm:$0xf]
        %v4214 = vld [vmem:[%s4211 + $0x8] sm:$0xf]
        %v4215 = vld [vmem:[%s4211 + $0xc] sm:$0xf]
        %v4216 = vld [vmem:[%s4211 + $0x10] sm:$0xf]
        %v4217 = vld [vmem:[%s4211 + $0x14] sm:$0xf]
        %v4218 = vld [vmem:[%s4211 + $0x18] sm:$0xf]
        %v4219 = vld [vmem:[%s4211 + $0x1c] sm:$0xf]
        %v4220 = vld [vmem:[%s4211 + $0x20] sm:$0xf]
        %v4221 = vld [vmem:[%s4211 + $0x24] sm:$0xf]
        %v4222 = vld [vmem:[%s4211 + $0x28] sm:$0xf]
        %v4223 = vld [vmem:[%s4211 + $0x2c] sm:$0xf]
        %v4224 = vld [vmem:[%s4211 + $0x30] sm:$0xf]
        %v4225 = vld [vmem:[%s4211 + $0x34] sm:$0xf]
        %v4226 = vld [vmem:[%s4211 + $0x38] sm:$0xf]
        %v4227 = vld [vmem:[%s4211 + $0x3c] sm:$0xf]
        %v4228 = vrot.slane %v3794, 2
        %v4246 = vunpack.c.l.b16 %v4212
        %v4247 = vunpack.c.l.b16 %v4213
        %v4248 = vunpack.c.l.b16 %v4214
        %v4249 = vunpack.c.l.b16 %v4215
        %v4250 = vunpack.c.l.b16 %v4216
        %v4251 = vunpack.c.l.b16 %v4217
        %v4252 = vunpack.c.l.b16 %v4218
        %v4253 = vunpack.c.l.b16 %v4219
        %v4254 = vunpack.c.l.b16 %v4220
        %v4255 = vunpack.c.l.b16 %v4221
        %v4256 = vunpack.c.l.b16 %v4222
        %v4257 = vunpack.c.l.b16 %v4223
        %v4258 = vunpack.c.l.b16 %v4224
        %v4259 = vunpack.c.l.b16 %v4225
        %v4260 = vunpack.c.l.b16 %v4226
        %v4261 = vunpack.c.l.b16 %v4227
        %v4262 = vpack.c.b16 %v4247, %v4246
        %v4263 = vpack.c.b16 %v4249, %v4248
        %v4264 = vpack.c.b16 %v4251, %v4250
        %v4265 = vpack.c.b16 %v4253, %v4252
        %v4266 = vpack.c.b16 %v4255, %v4254
        %v4267 = vpack.c.b16 %v4257, %v4256
        %v4268 = vpack.c.b16 %v4259, %v4258
        %v4269 = vpack.c.b16 %v4261, %v4260
        %4278 = vmatprep.subr.bf16.mxu0 0
        %4279 = vmatpush1.bf16.msra.mxu0 %v4262
        %4280 = vmatprep.subr.bf16.mxu0 0
        %4281 = vmatpush1.bf16.msra.mxu0 %v4263
        %4282 = vmatprep.subr.bf16.mxu0 0
        %4283 = vmatpush1.bf16.msra.mxu0 %v4264
        %4284 = vmatprep.subr.bf16.mxu0 0
        %4285 = vmatpush1.bf16.msra.mxu0 %v4265
        %4286 = vmatprep.subr.bf16.mxu0 0
        %4287 = vmatpush1.bf16.msra.mxu0 %v4266
        %4288 = vmatprep.subr.bf16.mxu0 0
        %4289 = vmatpush1.bf16.msra.mxu0 %v4267
        %4290 = vmatprep.subr.bf16.mxu0 0
        %4291 = vmatpush1.bf16.msra.mxu0 %v4268
        %4292 = vmatprep.subr.bf16.mxu0 0
        %4293 = vmatpush1.bf16.msra.mxu0 %v4269
        %4294 = vmatprep.subr.bf16.mxu0 0
        %4295 = vmatpush1.bf16.msra.mxu0 0
        %4296 = vmatprep.subr.bf16.mxu0 0
        %4297 = vmatpush1.bf16.msra.mxu0 0
        %4298 = vmatprep.subr.bf16.mxu0 0
        %4299 = vmatpush1.bf16.msra.mxu0 0
        %4300 = vmatprep.subr.bf16.mxu0 0
        %4301 = vmatpush1.bf16.msra.mxu0 0
        %4302 = vmatprep.subr.bf16.mxu0 0
        %4303 = vmatpush1.bf16.msra.mxu0 0
        %4304 = vmatprep.subr.bf16.mxu0 0
        %4305 = vmatpush1.bf16.msra.mxu0 0
        %4306 = vmatprep.subr.bf16.mxu0 0
        %4307 = vmatpush1.bf16.msra.mxu0 0
        %4308 = vmatprep.subr.bf16.mxu0 0
        %4309 = vmatpush1.bf16.msra.mxu0 0
        %4310 = vmatprep.mubr.bf16.mxu0 0
        %4311 = vmatmul.mubr.bf16.gmra.mrb[0].mxu0 %v4228
        %v4312 = vpop.f32.mrb[0].mxu0
        %v4313 = vadd.f32 0.0, %v4312
        %v4314 = vpop.f32.mrb[0].mxu0
        %v4315 = vpop.f32.mrb[0].mxu0
        %v4316 = vpop.f32.mrb[0].mxu0
        %4317 = vdwg.mxu0
        %v4318 = vadd.f32 %v4210, %v4313
        %s4319 = scalar_lea.vmem %s20, 384
        %v4320 = vld [vmem:[%s4319] sm:$0xf]
        %v4321 = vld [vmem:[%s4319 + $0x4] sm:$0xf]
        %v4322 = vld [vmem:[%s4319 + $0x8] sm:$0xf]
        %v4323 = vld [vmem:[%s4319 + $0xc] sm:$0xf]
        %v4324 = vld [vmem:[%s4319 + $0x10] sm:$0xf]
        %v4325 = vld [vmem:[%s4319 + $0x14] sm:$0xf]
        %v4326 = vld [vmem:[%s4319 + $0x18] sm:$0xf]
        %v4327 = vld [vmem:[%s4319 + $0x1c] sm:$0xf]
        %v4328 = vld [vmem:[%s4319 + $0x20] sm:$0xf]
        %v4329 = vld [vmem:[%s4319 + $0x24] sm:$0xf]
        %v4330 = vld [vmem:[%s4319 + $0x28] sm:$0xf]
        %v4331 = vld [vmem:[%s4319 + $0x2c] sm:$0xf]
        %v4332 = vld [vmem:[%s4319 + $0x30] sm:$0xf]
        %v4333 = vld [vmem:[%s4319 + $0x34] sm:$0xf]
        %v4334 = vld [vmem:[%s4319 + $0x38] sm:$0xf]
        %v4335 = vld [vmem:[%s4319 + $0x3c] sm:$0xf]
        %v4336 = vrot.slane %v3670, 3
        %v4354 = vunpack.c.l.b16 %v4320
        %v4355 = vunpack.c.l.b16 %v4321
        %v4356 = vunpack.c.l.b16 %v4322
        %v4357 = vunpack.c.l.b16 %v4323
        %v4358 = vunpack.c.l.b16 %v4324
        %v4359 = vunpack.c.l.b16 %v4325
        %v4360 = vunpack.c.l.b16 %v4326
        %v4361 = vunpack.c.l.b16 %v4327
        %v4362 = vunpack.c.l.b16 %v4328
        %v4363 = vunpack.c.l.b16 %v4329
        %v4364 = vunpack.c.l.b16 %v4330
        %v4365 = vunpack.c.l.b16 %v4331
        %v4366 = vunpack.c.l.b16 %v4332
        %v4367 = vunpack.c.l.b16 %v4333
        %v4368 = vunpack.c.l.b16 %v4334
        %v4369 = vunpack.c.l.b16 %v4335
        %v4370 = vpack.c.b16 %v4355, %v4354
        %v4371 = vpack.c.b16 %v4357, %v4356
        %v4372 = vpack.c.b16 %v4359, %v4358
        %v4373 = vpack.c.b16 %v4361, %v4360
        %v4374 = vpack.c.b16 %v4363, %v4362
        %v4375 = vpack.c.b16 %v4365, %v4364
        %v4376 = vpack.c.b16 %v4367, %v4366
        %v4377 = vpack.c.b16 %v4369, %v4368
        %4386 = vmatprep.subr.bf16.mxu0 0
        %4387 = vmatpush1.bf16.msra.mxu0 %v4370
        %4388 = vmatprep.subr.bf16.mxu0 0
        %4389 = vmatpush1.bf16.msra.mxu0 %v4371
        %4390 = vmatprep.subr.bf16.mxu0 0
        %4391 = vmatpush1.bf16.msra.mxu0 %v4372
        %4392 = vmatprep.subr.bf16.mxu0 0
        %4393 = vmatpush1.bf16.msra.mxu0 %v4373
        %4394 = vmatprep.subr.bf16.mxu0 0
        %4395 = vmatpush1.bf16.msra.mxu0 %v4374
        %4396 = vmatprep.subr.bf16.mxu0 0
        %4397 = vmatpush1.bf16.msra.mxu0 %v4375
        %4398 = vmatprep.subr.bf16.mxu0 0
        %4399 = vmatpush1.bf16.msra.mxu0 %v4376
        %4400 = vmatprep.subr.bf16.mxu0 0
        %4401 = vmatpush1.bf16.msra.mxu0 %v4377
        %4402 = vmatprep.subr.bf16.mxu0 0
        %4403 = vmatpush1.bf16.msra.mxu0 0
        %4404 = vmatprep.subr.bf16.mxu0 0
        %4405 = vmatpush1.bf16.msra.mxu0 0
        %4406 = vmatprep.subr.bf16.mxu0 0
        %4407 = vmatpush1.bf16.msra.mxu0 0
        %4408 = vmatprep.subr.bf16.mxu0 0
        %4409 = vmatpush1.bf16.msra.mxu0 0
        %4410 = vmatprep.subr.bf16.mxu0 0
        %4411 = vmatpush1.bf16.msra.mxu0 0
        %4412 = vmatprep.subr.bf16.mxu0 0
        %4413 = vmatpush1.bf16.msra.mxu0 0
        %4414 = vmatprep.subr.bf16.mxu0 0
        %4415 = vmatpush1.bf16.msra.mxu0 0
        %4416 = vmatprep.subr.bf16.mxu0 0
        %4417 = vmatpush1.bf16.msra.mxu0 0
        %4418 = vmatprep.mubr.bf16.mxu0 0
        %4419 = vmatmul.mubr.bf16.gmra.mrb[0].mxu0 %v4336
        %v4420 = vpop.f32.mrb[0].mxu0
        %v4421 = vadd.f32 0.0, %v4420
        %v4422 = vpop.f32.mrb[0].mxu0
        %v4423 = vpop.f32.mrb[0].mxu0
        %v4424 = vpop.f32.mrb[0].mxu0
        %4425 = vdwg.mxu0
        %v4426 = vadd.f32 %v4318, %v4421
        %s4427 = scalar_lea.vmem %s20, 448
        %v4428 = vld [vmem:[%s4427] sm:$0xf]
        %v4429 = vld [vmem:[%s4427 + $0x4] sm:$0xf]
        %v4430 = vld [vmem:[%s4427 + $0x8] sm:$0xf]
        %v4431 = vld [vmem:[%s4427 + $0xc] sm:$0xf]
        %v4432 = vld [vmem:[%s4427 + $0x10] sm:$0xf]
        %v4433 = vld [vmem:[%s4427 + $0x14] sm:$0xf]
        %v4434 = vld [vmem:[%s4427 + $0x18] sm:$0xf]
        %v4435 = vld [vmem:[%s4427 + $0x1c] sm:$0xf]
        %v4436 = vld [vmem:[%s4427 + $0x20] sm:$0xf]
        %v4437 = vld [vmem:[%s4427 + $0x24] sm:$0xf]
        %v4438 = vld [vmem:[%s4427 + $0x28] sm:$0xf]
        %v4439 = vld [vmem:[%s4427 + $0x2c] sm:$0xf]
        %v4440 = vld [vmem:[%s4427 + $0x30] sm:$0xf]
        %v4441 = vld [vmem:[%s4427 + $0x34] sm:$0xf]
        %v4442 = vld [vmem:[%s4427 + $0x38] sm:$0xf]
        %v4443 = vld [vmem:[%s4427 + $0x3c] sm:$0xf]
        %v4444 = vrot.slane %v3794, 3
        %v4462 = vunpack.c.l.b16 %v4428
        %v4463 = vunpack.c.l.b16 %v4429
        %v4464 = vunpack.c.l.b16 %v4430
        %v4465 = vunpack.c.l.b16 %v4431
        %v4466 = vunpack.c.l.b16 %v4432
        %v4467 = vunpack.c.l.b16 %v4433
        %v4468 = vunpack.c.l.b16 %v4434
        %v4469 = vunpack.c.l.b16 %v4435
        %v4470 = vunpack.c.l.b16 %v4436
        %v4471 = vunpack.c.l.b16 %v4437
        %v4472 = vunpack.c.l.b16 %v4438
        %v4473 = vunpack.c.l.b16 %v4439
        %v4474 = vunpack.c.l.b16 %v4440
        %v4475 = vunpack.c.l.b16 %v4441
        %v4476 = vunpack.c.l.b16 %v4442
        %v4477 = vunpack.c.l.b16 %v4443
        %v4478 = vpack.c.b16 %v4463, %v4462
        %v4479 = vpack.c.b16 %v4465, %v4464
        %v4480 = vpack.c.b16 %v4467, %v4466
        %v4481 = vpack.c.b16 %v4469, %v4468
        %v4482 = vpack.c.b16 %v4471, %v4470
        %v4483 = vpack.c.b16 %v4473, %v4472
        %v4484 = vpack.c.b16 %v4475, %v4474
        %v4485 = vpack.c.b16 %v4477, %v4476
        %4494 = vmatprep.subr.bf16.mxu0 0
        %4495 = vmatpush1.bf16.msra.mxu0 %v4478
        %4496 = vmatprep.subr.bf16.mxu0 0
        %4497 = vmatpush1.bf16.msra.mxu0 %v4479
        %4498 = vmatprep.subr.bf16.mxu0 0
        %4499 = vmatpush1.bf16.msra.mxu0 %v4480
        %4500 = vmatprep.subr.bf16.mxu0 0
        %4501 = vmatpush1.bf16.msra.mxu0 %v4481
        %4502 = vmatprep.subr.bf16.mxu0 0
        %4503 = vmatpush1.bf16.msra.mxu0 %v4482
        %4504 = vmatprep.subr.bf16.mxu0 0
        %4505 = vmatpush1.bf16.msra.mxu0 %v4483
        %4506 = vmatprep.subr.bf16.mxu0 0
        %4507 = vmatpush1.bf16.msra.mxu0 %v4484
        %4508 = vmatprep.subr.bf16.mxu0 0
        %4509 = vmatpush1.bf16.msra.mxu0 %v4485
        %4510 = vmatprep.subr.bf16.mxu0 0
        %4511 = vmatpush1.bf16.msra.mxu0 0
        %4512 = vmatprep.subr.bf16.mxu0 0
        %4513 = vmatpush1.bf16.msra.mxu0 0
        %4514 = vmatprep.subr.bf16.mxu0 0
        %4515 = vmatpush1.bf16.msra.mxu0 0
        %4516 = vmatprep.subr.bf16.mxu0 0
        %4517 = vmatpush1.bf16.msra.mxu0 0
        %4518 = vmatprep.subr.bf16.mxu0 0
        %4519 = vmatpush1.bf16.msra.mxu0 0
        %4520 = vmatprep.subr.bf16.mxu0 0
        %4521 = vmatpush1.bf16.msra.mxu0 0
        %4522 = vmatprep.subr.bf16.mxu0 0
        %4523 = vmatpush1.bf16.msra.mxu0 0
        %4524 = vmatprep.subr.bf16.mxu0 0
        %4525 = vmatpush1.bf16.msra.mxu0 0
        %4526 = vmatprep.mubr.bf16.mxu0 0
        %4527 = vmatmul.mubr.bf16.gmra.mrb[0].mxu0 %v4444
        %v4528 = vpop.f32.mrb[0].mxu0
        %v4529 = vadd.f32 0.0, %v4528
        %v4530 = vpop.f32.mrb[0].mxu0
        %v4531 = vpop.f32.mrb[0].mxu0
        %v4532 = vpop.f32.mrb[0].mxu0
        %4533 = vdwg.mxu0
        %v4534 = vadd.f32 %v4426, %v4529
        %v4535 = vpack.c.bf16 %v3668, %v3668
        %s4536 = scalar_lea.vmem %s20, 512
        %v4537 = vld [vmem:[%s4536] sm:$0xf]
        %v4538 = vld [vmem:[%s4536 + $0x4] sm:$0xf]
        %v4539 = vld [vmem:[%s4536 + $0x8] sm:$0xf]
        %v4540 = vld [vmem:[%s4536 + $0xc] sm:$0xf]
        %v4541 = vld [vmem:[%s4536 + $0x10] sm:$0xf]
        %v4542 = vld [vmem:[%s4536 + $0x14] sm:$0xf]
        %v4543 = vld [vmem:[%s4536 + $0x18] sm:$0xf]
        %v4544 = vld [vmem:[%s4536 + $0x1c] sm:$0xf]
        %v4545 = vld [vmem:[%s4536 + $0x20] sm:$0xf]
        %v4546 = vld [vmem:[%s4536 + $0x24] sm:$0xf]
        %v4547 = vld [vmem:[%s4536 + $0x28] sm:$0xf]
        %v4548 = vld [vmem:[%s4536 + $0x2c] sm:$0xf]
        %v4549 = vld [vmem:[%s4536 + $0x30] sm:$0xf]
        %v4550 = vld [vmem:[%s4536 + $0x34] sm:$0xf]
        %v4551 = vld [vmem:[%s4536 + $0x38] sm:$0xf]
        %v4552 = vld [vmem:[%s4536 + $0x3c] sm:$0xf]
        %v4569 = vunpack.c.l.b16 %v4537
        %v4570 = vunpack.c.l.b16 %v4538
        %v4571 = vunpack.c.l.b16 %v4539
        %v4572 = vunpack.c.l.b16 %v4540
        %v4573 = vunpack.c.l.b16 %v4541
        %v4574 = vunpack.c.l.b16 %v4542
        %v4575 = vunpack.c.l.b16 %v4543
        %v4576 = vunpack.c.l.b16 %v4544
        %v4577 = vunpack.c.l.b16 %v4545
        %v4578 = vunpack.c.l.b16 %v4546
        %v4579 = vunpack.c.l.b16 %v4547
        %v4580 = vunpack.c.l.b16 %v4548
        %v4581 = vunpack.c.l.b16 %v4549
        %v4582 = vunpack.c.l.b16 %v4550
        %v4583 = vunpack.c.l.b16 %v4551
        %v4584 = vunpack.c.l.b16 %v4552
        %v4585 = vpack.c.b16 %v4570, %v4569
        %v4586 = vpack.c.b16 %v4572, %v4571
        %v4587 = vpack.c.b16 %v4574, %v4573
        %v4588 = vpack.c.b16 %v4576, %v4575
        %v4589 = vpack.c.b16 %v4578, %v4577
        %v4590 = vpack.c.b16 %v4580, %v4579
        %v4591 = vpack.c.b16 %v4582, %v4581
        %v4592 = vpack.c.b16 %v4584, %v4583
        %4601 = vmatprep.subr.bf16.mxu0 0
        %4602 = vmatpush1.bf16.msra.mxu0 %v4585
        %4603 = vmatprep.subr.bf16.mxu0 0
        %4604 = vmatpush1.bf16.msra.mxu0 %v4586
        %4605 = vmatprep.subr.bf16.mxu0 0
        %4606 = vmatpush1.bf16.msra.mxu0 %v4587
        %4607 = vmatprep.subr.bf16.mxu0 0
        %4608 = vmatpush1.bf16.msra.mxu0 %v4588
        %4609 = vmatprep.subr.bf16.mxu0 0
        %4610 = vmatpush1.bf16.msra.mxu0 %v4589
        %4611 = vmatprep.subr.bf16.mxu0 0
        %4612 = vmatpush1.bf16.msra.mxu0 %v4590
        %4613 = vmatprep.subr.bf16.mxu0 0
        %4614 = vmatpush1.bf16.msra.mxu0 %v4591
        %4615 = vmatprep.subr.bf16.mxu0 0
        %4616 = vmatpush1.bf16.msra.mxu0 %v4592
        %4617 = vmatprep.subr.bf16.mxu0 0
        %4618 = vmatpush1.bf16.msra.mxu0 0
        %4619 = vmatprep.subr.bf16.mxu0 0
        %4620 = vmatpush1.bf16.msra.mxu0 0
        %4621 = vmatprep.subr.bf16.mxu0 0
        %4622 = vmatpush1.bf16.msra.mxu0 0
        %4623 = vmatprep.subr.bf16.mxu0 0
        %4624 = vmatpush1.bf16.msra.mxu0 0
        %4625 = vmatprep.subr.bf16.mxu0 0
        %4626 = vmatpush1.bf16.msra.mxu0 0
        %4627 = vmatprep.subr.bf16.mxu0 0
        %4628 = vmatpush1.bf16.msra.mxu0 0
        %4629 = vmatprep.subr.bf16.mxu0 0
        %4630 = vmatpush1.bf16.msra.mxu0 0
        %4631 = vmatprep.subr.bf16.mxu0 0
        %4632 = vmatpush1.bf16.msra.mxu0 0
        %4633 = vmatprep.mubr.bf16.mxu0 0
        %4634 = vmatmul.mubr.bf16.gmra.mrb[0].mxu0 %v4535
        %v4635 = vpop.f32.mrb[0].mxu0
        %v4636 = vadd.f32 0.0, %v4635
        %v4637 = vpop.f32.mrb[0].mxu0
        %v4638 = vpop.f32.mrb[0].mxu0
        %v4639 = vpop.f32.mrb[0].mxu0
        %4640 = vdwg.mxu0
        %v4641 = vadd.f32 %v4534, %v4636
        %s4642 = scalar_lea.vmem %s20, 576
        %v4643 = vld [vmem:[%s4642] sm:$0xf]
        %v4644 = vld [vmem:[%s4642 + $0x4] sm:$0xf]
        %v4645 = vld [vmem:[%s4642 + $0x8] sm:$0xf]
        %v4646 = vld [vmem:[%s4642 + $0xc] sm:$0xf]
        %v4647 = vld [vmem:[%s4642 + $0x10] sm:$0xf]
        %v4648 = vld [vmem:[%s4642 + $0x14] sm:$0xf]
        %v4649 = vld [vmem:[%s4642 + $0x18] sm:$0xf]
        %v4650 = vld [vmem:[%s4642 + $0x1c] sm:$0xf]
        %v4651 = vld [vmem:[%s4642 + $0x20] sm:$0xf]
        %v4652 = vld [vmem:[%s4642 + $0x24] sm:$0xf]
        %v4653 = vld [vmem:[%s4642 + $0x28] sm:$0xf]
        %v4654 = vld [vmem:[%s4642 + $0x2c] sm:$0xf]
        %v4655 = vld [vmem:[%s4642 + $0x30] sm:$0xf]
        %v4656 = vld [vmem:[%s4642 + $0x34] sm:$0xf]
        %v4657 = vld [vmem:[%s4642 + $0x38] sm:$0xf]
        %v4658 = vld [vmem:[%s4642 + $0x3c] sm:$0xf]
        %v4660 = vshrl.u32 %v4535, 16
        %v4679 = vunpack.c.l.b16 %v4643
        %v4680 = vunpack.c.l.b16 %v4644
        %v4681 = vunpack.c.l.b16 %v4645
        %v4682 = vunpack.c.l.b16 %v4646
        %v4683 = vunpack.c.l.b16 %v4647
        %v4684 = vunpack.c.l.b16 %v4648
        %v4685 = vunpack.c.l.b16 %v4649
        %v4686 = vunpack.c.l.b16 %v4650
        %v4687 = vunpack.c.l.b16 %v4651
        %v4688 = vunpack.c.l.b16 %v4652
        %v4689 = vunpack.c.l.b16 %v4653
        %v4690 = vunpack.c.l.b16 %v4654
        %v4691 = vunpack.c.l.b16 %v4655
        %v4692 = vunpack.c.l.b16 %v4656
        %v4693 = vunpack.c.l.b16 %v4657
        %v4694 = vunpack.c.l.b16 %v4658
        %v4695 = vpack.c.b16 %v4680, %v4679
        %v4696 = vpack.c.b16 %v4682, %v4681
        %v4697 = vpack.c.b16 %v4684, %v4683
        %v4698 = vpack.c.b16 %v4686, %v4685
        %v4699 = vpack.c.b16 %v4688, %v4687
        %v4700 = vpack.c.b16 %v4690, %v4689
        %v4701 = vpack.c.b16 %v4692, %v4691
        %v4702 = vpack.c.b16 %v4694, %v4693
        %4711 = vmatprep.subr.bf16.mxu0 0
        %4712 = vmatpush1.bf16.msra.mxu0 %v4695
        %4713 = vmatprep.subr.bf16.mxu0 0
        %4714 = vmatpush1.bf16.msra.mxu0 %v4696
        %4715 = vmatprep.subr.bf16.mxu0 0
        %4716 = vmatpush1.bf16.msra.mxu0 %v4697
        %4717 = vmatprep.subr.bf16.mxu0 0
        %4718 = vmatpush1.bf16.msra.mxu0 %v4698
        %4719 = vmatprep.subr.bf16.mxu0 0
        %4720 = vmatpush1.bf16.msra.mxu0 %v4699
        %4721 = vmatprep.subr.bf16.mxu0 0
        %4722 = vmatpush1.bf16.msra.mxu0 %v4700
        %4723 = vmatprep.subr.bf16.mxu0 0
        %4724 = vmatpush1.bf16.msra.mxu0 %v4701
        %4725 = vmatprep.subr.bf16.mxu0 0
        %4726 = vmatpush1.bf16.msra.mxu0 %v4702
        %4727 = vmatprep.subr.bf16.mxu0 0
        %4728 = vmatpush1.bf16.msra.mxu0 0
        %4729 = vmatprep.subr.bf16.mxu0 0
        %4730 = vmatpush1.bf16.msra.mxu0 0
        %4731 = vmatprep.subr.bf16.mxu0 0
        %4732 = vmatpush1.bf16.msra.mxu0 0
        %4733 = vmatprep.subr.bf16.mxu0 0
        %4734 = vmatpush1.bf16.msra.mxu0 0
        %4735 = vmatprep.subr.bf16.mxu0 0
        %4736 = vmatpush1.bf16.msra.mxu0 0
        %4737 = vmatprep.subr.bf16.mxu0 0
        %4738 = vmatpush1.bf16.msra.mxu0 0
        %4739 = vmatprep.subr.bf16.mxu0 0
        %4740 = vmatpush1.bf16.msra.mxu0 0
        %4741 = vmatprep.subr.bf16.mxu0 0
        %4742 = vmatpush1.bf16.msra.mxu0 0
        %4743 = vmatprep.mubr.bf16.mxu0 0
        %4744 = vmatmul.mubr.bf16.gmra.mrb[0].mxu0 %v4660
        %v4745 = vpop.f32.mrb[0].mxu0
        %v4746 = vadd.f32 0.0, %v4745
        %v4747 = vpop.f32.mrb[0].mxu0
        %v4748 = vpop.f32.mrb[0].mxu0
        %v4749 = vpop.f32.mrb[0].mxu0
        %4750 = vdwg.mxu0
        %v4751 = vadd.f32 %v4641, %v4746
        %s4752 = scalar_lea.vmem %s20, 640
        %v4753 = vld [vmem:[%s4752] sm:$0xf]
        %v4754 = vld [vmem:[%s4752 + $0x4] sm:$0xf]
        %v4755 = vld [vmem:[%s4752 + $0x8] sm:$0xf]
        %v4756 = vld [vmem:[%s4752 + $0xc] sm:$0xf]
        %v4757 = vld [vmem:[%s4752 + $0x10] sm:$0xf]
        %v4758 = vld [vmem:[%s4752 + $0x14] sm:$0xf]
        %v4759 = vld [vmem:[%s4752 + $0x18] sm:$0xf]
        %v4760 = vld [vmem:[%s4752 + $0x1c] sm:$0xf]
        %v4761 = vld [vmem:[%s4752 + $0x20] sm:$0xf]
        %v4762 = vld [vmem:[%s4752 + $0x24] sm:$0xf]
        %v4763 = vld [vmem:[%s4752 + $0x28] sm:$0xf]
        %v4764 = vld [vmem:[%s4752 + $0x2c] sm:$0xf]
        %v4765 = vld [vmem:[%s4752 + $0x30] sm:$0xf]
        %v4766 = vld [vmem:[%s4752 + $0x34] sm:$0xf]
        %v4767 = vld [vmem:[%s4752 + $0x38] sm:$0xf]
        %v4768 = vld [vmem:[%s4752 + $0x3c] sm:$0xf]
        %v4770 = vrot.slane %v4535, 1
        %v4788 = vunpack.c.l.b16 %v4753
        %v4789 = vunpack.c.l.b16 %v4754
        %v4790 = vunpack.c.l.b16 %v4755
        %v4791 = vunpack.c.l.b16 %v4756
        %v4792 = vunpack.c.l.b16 %v4757
        %v4793 = vunpack.c.l.b16 %v4758
        %v4794 = vunpack.c.l.b16 %v4759
        %v4795 = vunpack.c.l.b16 %v4760
        %v4796 = vunpack.c.l.b16 %v4761
        %v4797 = vunpack.c.l.b16 %v4762
        %v4798 = vunpack.c.l.b16 %v4763
        %v4799 = vunpack.c.l.b16 %v4764
        %v4800 = vunpack.c.l.b16 %v4765
        %v4801 = vunpack.c.l.b16 %v4766
        %v4802 = vunpack.c.l.b16 %v4767
        %v4803 = vunpack.c.l.b16 %v4768
        %v4804 = vpack.c.b16 %v4789, %v4788
        %v4805 = vpack.c.b16 %v4791, %v4790
        %v4806 = vpack.c.b16 %v4793, %v4792
        %v4807 = vpack.c.b16 %v4795, %v4794
        %v4808 = vpack.c.b16 %v4797, %v4796
        %v4809 = vpack.c.b16 %v4799, %v4798
        %v4810 = vpack.c.b16 %v4801, %v4800
        %v4811 = vpack.c.b16 %v4803, %v4802
        %4820 = vmatprep.subr.bf16.mxu0 0
        %4821 = vmatpush1.bf16.msra.mxu0 %v4804
        %4822 = vmatprep.subr.bf16.mxu0 0
        %4823 = vmatpush1.bf16.msra.mxu0 %v4805
        %4824 = vmatprep.subr.bf16.mxu0 0
        %4825 = vmatpush1.bf16.msra.mxu0 %v4806
        %4826 = vmatprep.subr.bf16.mxu0 0
        %4827 = vmatpush1.bf16.msra.mxu0 %v4807
        %4828 = vmatprep.subr.bf16.mxu0 0
        %4829 = vmatpush1.bf16.msra.mxu0 %v4808
        %4830 = vmatprep.subr.bf16.mxu0 0
        %4831 = vmatpush1.bf16.msra.mxu0 %v4809
        %4832 = vmatprep.subr.bf16.mxu0 0
        %4833 = vmatpush1.bf16.msra.mxu0 %v4810
        %4834 = vmatprep.subr.bf16.mxu0 0
        %4835 = vmatpush1.bf16.msra.mxu0 %v4811
        %4836 = vmatprep.subr.bf16.mxu0 0
        %4837 = vmatpush1.bf16.msra.mxu0 0
        %4838 = vmatprep.subr.bf16.mxu0 0
        %4839 = vmatpush1.bf16.msra.mxu0 0
        %4840 = vmatprep.subr.bf16.mxu0 0
        %4841 = vmatpush1.bf16.msra.mxu0 0
        %4842 = vmatprep.subr.bf16.mxu0 0
        %4843 = vmatpush1.bf16.msra.mxu0 0
        %4844 = vmatprep.subr.bf16.mxu0 0
        %4845 = vmatpush1.bf16.msra.mxu0 0
        %4846 = vmatprep.subr.bf16.mxu0 0
        %4847 = vmatpush1.bf16.msra.mxu0 0
        %4848 = vmatprep.subr.bf16.mxu0 0
        %4849 = vmatpush1.bf16.msra.mxu0 0
        %4850 = vmatprep.subr.bf16.mxu0 0
        %4851 = vmatpush1.bf16.msra.mxu0 0
        %4852 = vmatprep.mubr.bf16.mxu0 0
        %4853 = vmatmul.mubr.bf16.gmra.mrb[0].mxu0 %v4770
        %v4854 = vpop.f32.mrb[0].mxu0
        %v4855 = vadd.f32 0.0, %v4854
        %v4856 = vpop.f32.mrb[0].mxu0
        %v4857 = vpop.f32.mrb[0].mxu0
        %v4858 = vpop.f32.mrb[0].mxu0
        %4859 = vdwg.mxu0
        %v4860 = vadd.f32 %v4751, %v4855
        %s4861 = scalar_lea.vmem %s20, 704
        %v4862 = vld [vmem:[%s4861] sm:$0xf]
        %v4863 = vld [vmem:[%s4861 + $0x4] sm:$0xf]
        %v4864 = vld [vmem:[%s4861 + $0x8] sm:$0xf]
        %v4865 = vld [vmem:[%s4861 + $0xc] sm:$0xf]
        %v4866 = vld [vmem:[%s4861 + $0x10] sm:$0xf]
        %v4867 = vld [vmem:[%s4861 + $0x14] sm:$0xf]
        %v4868 = vld [vmem:[%s4861 + $0x18] sm:$0xf]
        %v4869 = vld [vmem:[%s4861 + $0x1c] sm:$0xf]
        %v4870 = vld [vmem:[%s4861 + $0x20] sm:$0xf]
        %v4871 = vld [vmem:[%s4861 + $0x24] sm:$0xf]
        %v4872 = vld [vmem:[%s4861 + $0x28] sm:$0xf]
        %v4873 = vld [vmem:[%s4861 + $0x2c] sm:$0xf]
        %v4874 = vld [vmem:[%s4861 + $0x30] sm:$0xf]
        %v4875 = vld [vmem:[%s4861 + $0x34] sm:$0xf]
        %v4876 = vld [vmem:[%s4861 + $0x38] sm:$0xf]
        %v4877 = vld [vmem:[%s4861 + $0x3c] sm:$0xf]
        %v4878 = vrot.slane %v4660, 1
        %v4896 = vunpack.c.l.b16 %v4862
        %v4897 = vunpack.c.l.b16 %v4863
        %v4898 = vunpack.c.l.b16 %v4864
        %v4899 = vunpack.c.l.b16 %v4865
        %v4900 = vunpack.c.l.b16 %v4866
        %v4901 = vunpack.c.l.b16 %v4867
        %v4902 = vunpack.c.l.b16 %v4868
        %v4903 = vunpack.c.l.b16 %v4869
        %v4904 = vunpack.c.l.b16 %v4870
        %v4905 = vunpack.c.l.b16 %v4871
        %v4906 = vunpack.c.l.b16 %v4872
        %v4907 = vunpack.c.l.b16 %v4873
        %v4908 = vunpack.c.l.b16 %v4874
        %v4909 = vunpack.c.l.b16 %v4875
        %v4910 = vunpack.c.l.b16 %v4876
        %v4911 = vunpack.c.l.b16 %v4877
        %v4912 = vpack.c.b16 %v4897, %v4896
        %v4913 = vpack.c.b16 %v4899, %v4898
        %v4914 = vpack.c.b16 %v4901, %v4900
        %v4915 = vpack.c.b16 %v4903, %v4902
        %v4916 = vpack.c.b16 %v4905, %v4904
        %v4917 = vpack.c.b16 %v4907, %v4906
        %v4918 = vpack.c.b16 %v4909, %v4908
        %v4919 = vpack.c.b16 %v4911, %v4910
        %4928 = vmatprep.subr.bf16.mxu0 0
        %4929 = vmatpush1.bf16.msra.mxu0 %v4912
        %4930 = vmatprep.subr.bf16.mxu0 0
        %4931 = vmatpush1.bf16.msra.mxu0 %v4913
        %4932 = vmatprep.subr.bf16.mxu0 0
        %4933 = vmatpush1.bf16.msra.mxu0 %v4914
        %4934 = vmatprep.subr.bf16.mxu0 0
        %4935 = vmatpush1.bf16.msra.mxu0 %v4915
        %4936 = vmatprep.subr.bf16.mxu0 0
        %4937 = vmatpush1.bf16.msra.mxu0 %v4916
        %4938 = vmatprep.subr.bf16.mxu0 0
        %4939 = vmatpush1.bf16.msra.mxu0 %v4917
        %4940 = vmatprep.subr.bf16.mxu0 0
        %4941 = vmatpush1.bf16.msra.mxu0 %v4918
        %4942 = vmatprep.subr.bf16.mxu0 0
        %4943 = vmatpush1.bf16.msra.mxu0 %v4919
        %4944 = vmatprep.subr.bf16.mxu0 0
        %4945 = vmatpush1.bf16.msra.mxu0 0
        %4946 = vmatprep.subr.bf16.mxu0 0
        %4947 = vmatpush1.bf16.msra.mxu0 0
        %4948 = vmatprep.subr.bf16.mxu0 0
        %4949 = vmatpush1.bf16.msra.mxu0 0
        %4950 = vmatprep.subr.bf16.mxu0 0
        %4951 = vmatpush1.bf16.msra.mxu0 0
        %4952 = vmatprep.subr.bf16.mxu0 0
        %4953 = vmatpush1.bf16.msra.mxu0 0
        %4954 = vmatprep.subr.bf16.mxu0 0
        %4955 = vmatpush1.bf16.msra.mxu0 0
        %4956 = vmatprep.subr.bf16.mxu0 0
        %4957 = vmatpush1.bf16.msra.mxu0 0
        %4958 = vmatprep.subr.bf16.mxu0 0
        %4959 = vmatpush1.bf16.msra.mxu0 0
        %4960 = vmatprep.mubr.bf16.mxu0 0
        %4961 = vmatmul.mubr.bf16.gmra.mrb[0].mxu0 %v4878
        %v4962 = vpop.f32.mrb[0].mxu0
        %v4963 = vadd.f32 0.0, %v4962
        %v4964 = vpop.f32.mrb[0].mxu0
        %v4965 = vpop.f32.mrb[0].mxu0
        %v4966 = vpop.f32.mrb[0].mxu0
        %4967 = vdwg.mxu0
        %v4968 = vadd.f32 %v4860, %v4963
        %s4969 = scalar_lea.vmem %s20, 768
        %v4970 = vld [vmem:[%s4969] sm:$0xf]
        %v4971 = vld [vmem:[%s4969 + $0x4] sm:$0xf]
        %v4972 = vld [vmem:[%s4969 + $0x8] sm:$0xf]
        %v4973 = vld [vmem:[%s4969 + $0xc] sm:$0xf]
        %v4974 = vld [vmem:[%s4969 + $0x10] sm:$0xf]
        %v4975 = vld [vmem:[%s4969 + $0x14] sm:$0xf]
        %v4976 = vld [vmem:[%s4969 + $0x18] sm:$0xf]
        %v4977 = vld [vmem:[%s4969 + $0x1c] sm:$0xf]
        %v4978 = vld [vmem:[%s4969 + $0x20] sm:$0xf]
        %v4979 = vld [vmem:[%s4969 + $0x24] sm:$0xf]
        %v4980 = vld [vmem:[%s4969 + $0x28] sm:$0xf]
        %v4981 = vld [vmem:[%s4969 + $0x2c] sm:$0xf]
        %v4982 = vld [vmem:[%s4969 + $0x30] sm:$0xf]
        %v4983 = vld [vmem:[%s4969 + $0x34] sm:$0xf]
        %v4984 = vld [vmem:[%s4969 + $0x38] sm:$0xf]
        %v4985 = vld [vmem:[%s4969 + $0x3c] sm:$0xf]
        %v4986 = vrot.slane %v4535, 2
        %v5004 = vunpack.c.l.b16 %v4970
        %v5005 = vunpack.c.l.b16 %v4971
        %v5006 = vunpack.c.l.b16 %v4972
        %v5007 = vunpack.c.l.b16 %v4973
        %v5008 = vunpack.c.l.b16 %v4974
        %v5009 = vunpack.c.l.b16 %v4975
        %v5010 = vunpack.c.l.b16 %v4976
        %v5011 = vunpack.c.l.b16 %v4977
        %v5012 = vunpack.c.l.b16 %v4978
        %v5013 = vunpack.c.l.b16 %v4979
        %v5014 = vunpack.c.l.b16 %v4980
        %v5015 = vunpack.c.l.b16 %v4981
        %v5016 = vunpack.c.l.b16 %v4982
        %v5017 = vunpack.c.l.b16 %v4983
        %v5018 = vunpack.c.l.b16 %v4984
        %v5019 = vunpack.c.l.b16 %v4985
        %v5020 = vpack.c.b16 %v5005, %v5004
        %v5021 = vpack.c.b16 %v5007, %v5006
        %v5022 = vpack.c.b16 %v5009, %v5008
        %v5023 = vpack.c.b16 %v5011, %v5010
        %v5024 = vpack.c.b16 %v5013, %v5012
        %v5025 = vpack.c.b16 %v5015, %v5014
        %v5026 = vpack.c.b16 %v5017, %v5016
        %v5027 = vpack.c.b16 %v5019, %v5018
        %5036 = vmatprep.subr.bf16.mxu0 0
        %5037 = vmatpush1.bf16.msra.mxu0 %v5020
        %5038 = vmatprep.subr.bf16.mxu0 0
        %5039 = vmatpush1.bf16.msra.mxu0 %v5021
        %5040 = vmatprep.subr.bf16.mxu0 0
        %5041 = vmatpush1.bf16.msra.mxu0 %v5022
        %5042 = vmatprep.subr.bf16.mxu0 0
        %5043 = vmatpush1.bf16.msra.mxu0 %v5023
        %5044 = vmatprep.subr.bf16.mxu0 0
        %5045 = vmatpush1.bf16.msra.mxu0 %v5024
        %5046 = vmatprep.subr.bf16.mxu0 0
        %5047 = vmatpush1.bf16.msra.mxu0 %v5025
        %5048 = vmatprep.subr.bf16.mxu0 0
        %5049 = vmatpush1.bf16.msra.mxu0 %v5026
        %5050 = vmatprep.subr.bf16.mxu0 0
        %5051 = vmatpush1.bf16.msra.mxu0 %v5027
        %5052 = vmatprep.subr.bf16.mxu0 0
        %5053 = vmatpush1.bf16.msra.mxu0 0
        %5054 = vmatprep.subr.bf16.mxu0 0
        %5055 = vmatpush1.bf16.msra.mxu0 0
        %5056 = vmatprep.subr.bf16.mxu0 0
        %5057 = vmatpush1.bf16.msra.mxu0 0
        %5058 = vmatprep.subr.bf16.mxu0 0
        %5059 = vmatpush1.bf16.msra.mxu0 0
        %5060 = vmatprep.subr.bf16.mxu0 0
        %5061 = vmatpush1.bf16.msra.mxu0 0
        %5062 = vmatprep.subr.bf16.mxu0 0
        %5063 = vmatpush1.bf16.msra.mxu0 0
        %5064 = vmatprep.subr.bf16.mxu0 0
        %5065 = vmatpush1.bf16.msra.mxu0 0
        %5066 = vmatprep.subr.bf16.mxu0 0
        %5067 = vmatpush1.bf16.msra.mxu0 0
        %5068 = vmatprep.mubr.bf16.mxu0 0
        %5069 = vmatmul.mubr.bf16.gmra.mrb[0].mxu0 %v4986
        %v5070 = vpop.f32.mrb[0].mxu0
        %v5071 = vadd.f32 0.0, %v5070
        %v5072 = vpop.f32.mrb[0].mxu0
        %v5073 = vpop.f32.mrb[0].mxu0
        %v5074 = vpop.f32.mrb[0].mxu0
        %5075 = vdwg.mxu0
        %v5076 = vadd.f32 %v4968, %v5071
        %s5077 = scalar_lea.vmem %s20, 832
        %v5078 = vld [vmem:[%s5077] sm:$0xf]
        %v5079 = vld [vmem:[%s5077 + $0x4] sm:$0xf]
        %v5080 = vld [vmem:[%s5077 + $0x8] sm:$0xf]
        %v5081 = vld [vmem:[%s5077 + $0xc] sm:$0xf]
        %v5082 = vld [vmem:[%s5077 + $0x10] sm:$0xf]
        %v5083 = vld [vmem:[%s5077 + $0x14] sm:$0xf]
        %v5084 = vld [vmem:[%s5077 + $0x18] sm:$0xf]
        %v5085 = vld [vmem:[%s5077 + $0x1c] sm:$0xf]
        %v5086 = vld [vmem:[%s5077 + $0x20] sm:$0xf]
        %v5087 = vld [vmem:[%s5077 + $0x24] sm:$0xf]
        %v5088 = vld [vmem:[%s5077 + $0x28] sm:$0xf]
        %v5089 = vld [vmem:[%s5077 + $0x2c] sm:$0xf]
        %v5090 = vld [vmem:[%s5077 + $0x30] sm:$0xf]
        %v5091 = vld [vmem:[%s5077 + $0x34] sm:$0xf]
        %v5092 = vld [vmem:[%s5077 + $0x38] sm:$0xf]
        %v5093 = vld [vmem:[%s5077 + $0x3c] sm:$0xf]
        %v5094 = vrot.slane %v4660, 2
        %v5112 = vunpack.c.l.b16 %v5078
        %v5113 = vunpack.c.l.b16 %v5079
        %v5114 = vunpack.c.l.b16 %v5080
        %v5115 = vunpack.c.l.b16 %v5081
        %v5116 = vunpack.c.l.b16 %v5082
        %v5117 = vunpack.c.l.b16 %v5083
        %v5118 = vunpack.c.l.b16 %v5084
        %v5119 = vunpack.c.l.b16 %v5085
        %v5120 = vunpack.c.l.b16 %v5086
        %v5121 = vunpack.c.l.b16 %v5087
        %v5122 = vunpack.c.l.b16 %v5088
        %v5123 = vunpack.c.l.b16 %v5089
        %v5124 = vunpack.c.l.b16 %v5090
        %v5125 = vunpack.c.l.b16 %v5091
        %v5126 = vunpack.c.l.b16 %v5092
        %v5127 = vunpack.c.l.b16 %v5093
        %v5128 = vpack.c.b16 %v5113, %v5112
        %v5129 = vpack.c.b16 %v5115, %v5114
        %v5130 = vpack.c.b16 %v5117, %v5116
        %v5131 = vpack.c.b16 %v5119, %v5118
        %v5132 = vpack.c.b16 %v5121, %v5120
        %v5133 = vpack.c.b16 %v5123, %v5122
        %v5134 = vpack.c.b16 %v5125, %v5124
        %v5135 = vpack.c.b16 %v5127, %v5126
        %5144 = vmatprep.subr.bf16.mxu0 0
        %5145 = vmatpush1.bf16.msra.mxu0 %v5128
        %5146 = vmatprep.subr.bf16.mxu0 0
        %5147 = vmatpush1.bf16.msra.mxu0 %v5129
        %5148 = vmatprep.subr.bf16.mxu0 0
        %5149 = vmatpush1.bf16.msra.mxu0 %v5130
        %5150 = vmatprep.subr.bf16.mxu0 0
        %5151 = vmatpush1.bf16.msra.mxu0 %v5131
        %5152 = vmatprep.subr.bf16.mxu0 0
        %5153 = vmatpush1.bf16.msra.mxu0 %v5132
        %5154 = vmatprep.subr.bf16.mxu0 0
        %5155 = vmatpush1.bf16.msra.mxu0 %v5133
        %5156 = vmatprep.subr.bf16.mxu0 0
        %5157 = vmatpush1.bf16.msra.mxu0 %v5134
        %5158 = vmatprep.subr.bf16.mxu0 0
        %5159 = vmatpush1.bf16.msra.mxu0 %v5135
        %5160 = vmatprep.subr.bf16.mxu0 0
        %5161 = vmatpush1.bf16.msra.mxu0 0
        %5162 = vmatprep.subr.bf16.mxu0 0
        %5163 = vmatpush1.bf16.msra.mxu0 0
        %5164 = vmatprep.subr.bf16.mxu0 0
        %5165 = vmatpush1.bf16.msra.mxu0 0
        %5166 = vmatprep.subr.bf16.mxu0 0
        %5167 = vmatpush1.bf16.msra.mxu0 0
        %5168 = vmatprep.subr.bf16.mxu0 0
        %5169 = vmatpush1.bf16.msra.mxu0 0
        %5170 = vmatprep.subr.bf16.mxu0 0
        %5171 = vmatpush1.bf16.msra.mxu0 0
        %5172 = vmatprep.subr.bf16.mxu0 0
        %5173 = vmatpush1.bf16.msra.mxu0 0
        %5174 = vmatprep.subr.bf16.mxu0 0
        %5175 = vmatpush1.bf16.msra.mxu0 0
        %5176 = vmatprep.mubr.bf16.mxu0 0
        %5177 = vmatmul.mubr.bf16.gmra.mrb[0].mxu0 %v5094
        %v5178 = vpop.f32.mrb[0].mxu0
        %v5179 = vadd.f32 0.0, %v5178
        %v5180 = vpop.f32.mrb[0].mxu0
        %v5181 = vpop.f32.mrb[0].mxu0
        %v5182 = vpop.f32.mrb[0].mxu0
        %5183 = vdwg.mxu0
        %v5184 = vadd.f32 %v5076, %v5179
        %s5185 = scalar_lea.vmem %s20, 896
        %v5186 = vld [vmem:[%s5185] sm:$0xf]
        %v5187 = vld [vmem:[%s5185 + $0x4] sm:$0xf]
        %v5188 = vld [vmem:[%s5185 + $0x8] sm:$0xf]
        %v5189 = vld [vmem:[%s5185 + $0xc] sm:$0xf]
        %v5190 = vld [vmem:[%s5185 + $0x10] sm:$0xf]
        %v5191 = vld [vmem:[%s5185 + $0x14] sm:$0xf]
        %v5192 = vld [vmem:[%s5185 + $0x18] sm:$0xf]
        %v5193 = vld [vmem:[%s5185 + $0x1c] sm:$0xf]
        %v5194 = vld [vmem:[%s5185 + $0x20] sm:$0xf]
        %v5195 = vld [vmem:[%s5185 + $0x24] sm:$0xf]
        %v5196 = vld [vmem:[%s5185 + $0x28] sm:$0xf]
        %v5197 = vld [vmem:[%s5185 + $0x2c] sm:$0xf]
        %v5198 = vld [vmem:[%s5185 + $0x30] sm:$0xf]
        %v5199 = vld [vmem:[%s5185 + $0x34] sm:$0xf]
        %v5200 = vld [vmem:[%s5185 + $0x38] sm:$0xf]
        %v5201 = vld [vmem:[%s5185 + $0x3c] sm:$0xf]
        %v5202 = vrot.slane %v4535, 3
        %v5220 = vunpack.c.l.b16 %v5186
        %v5221 = vunpack.c.l.b16 %v5187
        %v5222 = vunpack.c.l.b16 %v5188
        %v5223 = vunpack.c.l.b16 %v5189
        %v5224 = vunpack.c.l.b16 %v5190
        %v5225 = vunpack.c.l.b16 %v5191
        %v5226 = vunpack.c.l.b16 %v5192
        %v5227 = vunpack.c.l.b16 %v5193
        %v5228 = vunpack.c.l.b16 %v5194
        %v5229 = vunpack.c.l.b16 %v5195
        %v5230 = vunpack.c.l.b16 %v5196
        %v5231 = vunpack.c.l.b16 %v5197
        %v5232 = vunpack.c.l.b16 %v5198
        %v5233 = vunpack.c.l.b16 %v5199
        %v5234 = vunpack.c.l.b16 %v5200
        %v5235 = vunpack.c.l.b16 %v5201
        %v5236 = vpack.c.b16 %v5221, %v5220
        %v5237 = vpack.c.b16 %v5223, %v5222
        %v5238 = vpack.c.b16 %v5225, %v5224
        %v5239 = vpack.c.b16 %v5227, %v5226
        %v5240 = vpack.c.b16 %v5229, %v5228
        %v5241 = vpack.c.b16 %v5231, %v5230
        %v5242 = vpack.c.b16 %v5233, %v5232
        %v5243 = vpack.c.b16 %v5235, %v5234
        %5252 = vmatprep.subr.bf16.mxu0 0
        %5253 = vmatpush1.bf16.msra.mxu0 %v5236
        %5254 = vmatprep.subr.bf16.mxu0 0
        %5255 = vmatpush1.bf16.msra.mxu0 %v5237
        %5256 = vmatprep.subr.bf16.mxu0 0
        %5257 = vmatpush1.bf16.msra.mxu0 %v5238
        %5258 = vmatprep.subr.bf16.mxu0 0
        %5259 = vmatpush1.bf16.msra.mxu0 %v5239
        %5260 = vmatprep.subr.bf16.mxu0 0
        %5261 = vmatpush1.bf16.msra.mxu0 %v5240
        %5262 = vmatprep.subr.bf16.mxu0 0
        %5263 = vmatpush1.bf16.msra.mxu0 %v5241
        %5264 = vmatprep.subr.bf16.mxu0 0
        %5265 = vmatpush1.bf16.msra.mxu0 %v5242
        %5266 = vmatprep.subr.bf16.mxu0 0
        %5267 = vmatpush1.bf16.msra.mxu0 %v5243
        %5268 = vmatprep.subr.bf16.mxu0 0
        %5269 = vmatpush1.bf16.msra.mxu0 0
        %5270 = vmatprep.subr.bf16.mxu0 0
        %5271 = vmatpush1.bf16.msra.mxu0 0
        %5272 = vmatprep.subr.bf16.mxu0 0
        %5273 = vmatpush1.bf16.msra.mxu0 0
        %5274 = vmatprep.subr.bf16.mxu0 0
        %5275 = vmatpush1.bf16.msra.mxu0 0
        %5276 = vmatprep.subr.bf16.mxu0 0
        %5277 = vmatpush1.bf16.msra.mxu0 0
        %5278 = vmatprep.subr.bf16.mxu0 0
        %5279 = vmatpush1.bf16.msra.mxu0 0
        %5280 = vmatprep.subr.bf16.mxu0 0
        %5281 = vmatpush1.bf16.msra.mxu0 0
        %5282 = vmatprep.subr.bf16.mxu0 0
        %5283 = vmatpush1.bf16.msra.mxu0 0
        %5284 = vmatprep.mubr.bf16.mxu0 0
        %5285 = vmatmul.mubr.bf16.gmra.mrb[0].mxu0 %v5202
        %v5286 = vpop.f32.mrb[0].mxu0
        %v5287 = vadd.f32 0.0, %v5286
        %v5288 = vpop.f32.mrb[0].mxu0
        %v5289 = vpop.f32.mrb[0].mxu0
        %v5290 = vpop.f32.mrb[0].mxu0
        %5291 = vdwg.mxu0
        %v5292 = vadd.f32 %v5184, %v5287
        %s5293 = scalar_lea.vmem %s20, 960
        %v5294 = vld [vmem:[%s5293] sm:$0xf]
        %v5295 = vld [vmem:[%s5293 + $0x4] sm:$0xf]
        %v5296 = vld [vmem:[%s5293 + $0x8] sm:$0xf]
        %v5297 = vld [vmem:[%s5293 + $0xc] sm:$0xf]
        %v5298 = vld [vmem:[%s5293 + $0x10] sm:$0xf]
        %v5299 = vld [vmem:[%s5293 + $0x14] sm:$0xf]
        %v5300 = vld [vmem:[%s5293 + $0x18] sm:$0xf]
        %v5301 = vld [vmem:[%s5293 + $0x1c] sm:$0xf]
        %v5302 = vld [vmem:[%s5293 + $0x20] sm:$0xf]
        %v5303 = vld [vmem:[%s5293 + $0x24] sm:$0xf]
        %v5304 = vld [vmem:[%s5293 + $0x28] sm:$0xf]
        %v5305 = vld [vmem:[%s5293 + $0x2c] sm:$0xf]
        %v5306 = vld [vmem:[%s5293 + $0x30] sm:$0xf]
        %v5307 = vld [vmem:[%s5293 + $0x34] sm:$0xf]
        %v5308 = vld [vmem:[%s5293 + $0x38] sm:$0xf]
        %v5309 = vld [vmem:[%s5293 + $0x3c] sm:$0xf]
        %v5310 = vrot.slane %v4660, 3
        %v5328 = vunpack.c.l.b16 %v5294
        %v5329 = vunpack.c.l.b16 %v5295
        %v5330 = vunpack.c.l.b16 %v5296
        %v5331 = vunpack.c.l.b16 %v5297
        %v5332 = vunpack.c.l.b16 %v5298
        %v5333 = vunpack.c.l.b16 %v5299
        %v5334 = vunpack.c.l.b16 %v5300
        %v5335 = vunpack.c.l.b16 %v5301
        %v5336 = vunpack.c.l.b16 %v5302
        %v5337 = vunpack.c.l.b16 %v5303
        %v5338 = vunpack.c.l.b16 %v5304
        %v5339 = vunpack.c.l.b16 %v5305
        %v5340 = vunpack.c.l.b16 %v5306
        %v5341 = vunpack.c.l.b16 %v5307
        %v5342 = vunpack.c.l.b16 %v5308
        %v5343 = vunpack.c.l.b16 %v5309
        %v5344 = vpack.c.b16 %v5329, %v5328
        %v5345 = vpack.c.b16 %v5331, %v5330
        %v5346 = vpack.c.b16 %v5333, %v5332
        %v5347 = vpack.c.b16 %v5335, %v5334
        %v5348 = vpack.c.b16 %v5337, %v5336
        %v5349 = vpack.c.b16 %v5339, %v5338
        %v5350 = vpack.c.b16 %v5341, %v5340
        %v5351 = vpack.c.b16 %v5343, %v5342
        %5360 = vmatprep.subr.bf16.mxu0 0
        %5361 = vmatpush1.bf16.msra.mxu0 %v5344
        %5362 = vmatprep.subr.bf16.mxu0 0
        %5363 = vmatpush1.bf16.msra.mxu0 %v5345
        %5364 = vmatprep.subr.bf16.mxu0 0
        %5365 = vmatpush1.bf16.msra.mxu0 %v5346
        %5366 = vmatprep.subr.bf16.mxu0 0
        %5367 = vmatpush1.bf16.msra.mxu0 %v5347
        %5368 = vmatprep.subr.bf16.mxu0 0
        %5369 = vmatpush1.bf16.msra.mxu0 %v5348
        %5370 = vmatprep.subr.bf16.mxu0 0
        %5371 = vmatpush1.bf16.msra.mxu0 %v5349
        %5372 = vmatprep.subr.bf16.mxu0 0
        %5373 = vmatpush1.bf16.msra.mxu0 %v5350
        %5374 = vmatprep.subr.bf16.mxu0 0
        %5375 = vmatpush1.bf16.msra.mxu0 %v5351
        %5376 = vmatprep.subr.bf16.mxu0 0
        %5377 = vmatpush1.bf16.msra.mxu0 0
        %5378 = vmatprep.subr.bf16.mxu0 0
        %5379 = vmatpush1.bf16.msra.mxu0 0
        %5380 = vmatprep.subr.bf16.mxu0 0
        %5381 = vmatpush1.bf16.msra.mxu0 0
        %5382 = vmatprep.subr.bf16.mxu0 0
        %5383 = vmatpush1.bf16.msra.mxu0 0
        %5384 = vmatprep.subr.bf16.mxu0 0
        %5385 = vmatpush1.bf16.msra.mxu0 0
        %5386 = vmatprep.subr.bf16.mxu0 0
        %5387 = vmatpush1.bf16.msra.mxu0 0
        %5388 = vmatprep.subr.bf16.mxu0 0
        %5389 = vmatpush1.bf16.msra.mxu0 0
        %5390 = vmatprep.subr.bf16.mxu0 0
        %5391 = vmatpush1.bf16.msra.mxu0 0
        %5392 = vmatprep.mubr.bf16.mxu0 0
        %5393 = vmatmul.mubr.bf16.gmra.mrb[0].mxu0 %v5310
        %v5394 = vpop.f32.mrb[0].mxu0
        %v5395 = vadd.f32 0.0, %v5394
        %v5396 = vpop.f32.mrb[0].mxu0
        %v5397 = vpop.f32.mrb[0].mxu0
        %v5398 = vpop.f32.mrb[0].mxu0
        %5399 = vdwg.mxu0
        %v5400 = vadd.f32 %v5292, %v5395
        %v5401 = vmax.f32 %v5400, 0.0
        %v5402 = vpack.c.bf16 %v5401, %v5401
        %v5403 = vld [vmem:[%s22] sm:$0xf]
        %v5404 = vld [vmem:[%s22 + $0x4] sm:$0xf]
        %v5405 = vld [vmem:[%s22 + $0x8] sm:$0xf]
        %v5406 = vld [vmem:[%s22 + $0xc] sm:$0xf]
        %v5407 = vld [vmem:[%s22 + $0x10] sm:$0xf]
        %v5408 = vld [vmem:[%s22 + $0x14] sm:$0xf]
        %v5409 = vld [vmem:[%s22 + $0x18] sm:$0xf]
        %v5410 = vld [vmem:[%s22 + $0x1c] sm:$0xf]
        %v5411 = vld [vmem:[%s22 + $0x20] sm:$0xf]
        %v5412 = vld [vmem:[%s22 + $0x24] sm:$0xf]
        %v5413 = vld [vmem:[%s22 + $0x28] sm:$0xf]
        %v5414 = vld [vmem:[%s22 + $0x2c] sm:$0xf]
        %v5415 = vld [vmem:[%s22 + $0x30] sm:$0x3]
        %v5416 = vld [vmem:[%s23] sm:$0x1]
        %v5430 = vunpack.c.l.b16 %v5403
        %v5431 = vunpack.c.l.b16 %v5404
        %v5432 = vunpack.c.l.b16 %v5405
        %v5433 = vunpack.c.l.b16 %v5406
        %v5434 = vunpack.c.l.b16 %v5407
        %v5435 = vunpack.c.l.b16 %v5408
        %v5436 = vunpack.c.l.b16 %v5409
        %v5437 = vunpack.c.l.b16 %v5410
        %v5438 = vunpack.c.l.b16 %v5411
        %v5439 = vunpack.c.l.b16 %v5412
        %v5440 = vunpack.c.l.b16 %v5413
        %v5441 = vunpack.c.l.b16 %v5414
        %v5442 = vunpack.c.l.b16 %v5415
        %v5443 = vpack.c.b16 %v5431, %v5430
        %v5444 = vpack.c.b16 %v5433, %v5432
        %v5445 = vpack.c.b16 %v5435, %v5434
        %v5446 = vpack.c.b16 %v5437, %v5436
        %v5447 = vpack.c.b16 %v5439, %v5438
        %v5448 = vpack.c.b16 %v5441, %v5440
        %v5449 = vpack.c.b16 %v5442, %v5442
        %vm5456 = vcmask 818176
        %v5458 = vsel %vm5456, %v5402, 0
        %vm5460 = vcmask 1041408
        %v5462 = vsel %vm5460, %v5449, 0
        %5464 = vmatprep.subr.bf16.mxu0 0
        %5465 = vmatpush1.bf16.msra.mxu0 %v5443
        %5466 = vmatprep.subr.bf16.mxu0 0
        %5467 = vmatpush1.bf16.msra.mxu0 %v5444
        %5468 = vmatprep.subr.bf16.mxu0 0
        %5469 = vmatpush1.bf16.msra.mxu0 %v5445
        %5470 = vmatprep.subr.bf16.mxu0 0
        %5471 = vmatpush1.bf16.msra.mxu0 %v5446
        %5472 = vmatprep.subr.bf16.mxu0 0
        %5473 = vmatpush1.bf16.msra.mxu0 %v5447
        %5474 = vmatprep.subr.bf16.mxu0 0
        %5475 = vmatpush1.bf16.msra.mxu0 %v5448
        %5476 = vmatprep.subr.bf16.mxu0 0
        %5477 = vmatpush1.bf16.msra.mxu0 %v5462
        %5478 = vmatprep.subr.bf16.mxu0 0
        %5479 = vmatpush1.bf16.msra.mxu0 0
        %5480 = vmatprep.subr.bf16.mxu0 0
        %5481 = vmatpush1.bf16.msra.mxu0 0
        %5482 = vmatprep.subr.bf16.mxu0 0
        %5483 = vmatpush1.bf16.msra.mxu0 0
        %5484 = vmatprep.subr.bf16.mxu0 0
        %5485 = vmatpush1.bf16.msra.mxu0 0
        %5486 = vmatprep.subr.bf16.mxu0 0
        %5487 = vmatpush1.bf16.msra.mxu0 0
        %5488 = vmatprep.subr.bf16.mxu0 0
        %5489 = vmatpush1.bf16.msra.mxu0 0
        %5490 = vmatprep.subr.bf16.mxu0 0
        %5491 = vmatpush1.bf16.msra.mxu0 0
        %5492 = vmatprep.subr.bf16.mxu0 0
        %5493 = vmatpush1.bf16.msra.mxu0 0
        %5494 = vmatprep.subr.bf16.mxu0 0
        %5495 = vmatpush1.bf16.msra.mxu0 0
        %5496 = vmatprep.mubr.bf16.mxu0 0
        %5497 = vmatmul.mubr.bf16.gmra.mrb[0].mxu0 %v5458
        %v5498 = vpop.f32.mrb[0].mxu0
        %v5499 = vadd.f32 %v5416, %v5498
        %v5500 = vpop.f32.mrb[0].mxu0
        %v5501 = vpop.f32.mrb[0].mxu0
        %v5502 = vpop.f32.mrb[0].mxu0
        %5503 = vdwg.mxu0
        %v5504 = vmax.f32 %v5499, 0.0
        %v5505 = vpack.c.bf16 %v5504, %v5504
        %v5506 = vld [vmem:[%s24] sm:$0xf]
        %v5507 = vld [vmem:[%s24 + $0x4] sm:$0xf]
        %v5508 = vld [vmem:[%s24 + $0x8] sm:$0xf]
        %v5509 = vld [vmem:[%s24 + $0xc] sm:$0xf]
        %v5510 = vld [vmem:[%s24 + $0x10] sm:$0x1]
        %v5511 = vld [vmem:[%s25] sm:$0x1]
        %v5517 = vunpack.c.l.b16 %v5506
        %v5518 = vunpack.c.l.b16 %v5507
        %v5519 = vunpack.c.l.b16 %v5508
        %v5520 = vunpack.c.l.b16 %v5509
        %v5521 = vunpack.c.l.b16 %v5510
        %v5522 = vpack.c.b16 %v5518, %v5517
        %v5523 = vpack.c.b16 %v5520, %v5519
        %v5524 = vpack.c.b16 %v5521, %v5521
        %vm5527 = vcmask 269312
        %v5529 = vsel %vm5527, %v5505, 0
        %v5531 = vsel 0, 4294967295, 65535
        %v5532 = vsel %vm1818, %v5531, 0
        %v5534 = vand.u32 %v5524, %v5532
        %5536 = vmatprep.subr.bf16.mxu0 0
        %5537 = vmatpush1.bf16.msra.mxu0 %v5522
        %5538 = vmatprep.subr.bf16.mxu0 0
        %5539 = vmatpush1.bf16.msra.mxu0 %v5523
        %5540 = vmatprep.subr.bf16.mxu0 0
        %5541 = vmatpush1.bf16.msra.mxu0 %v5534
        %5542 = vmatprep.subr.bf16.mxu0 0
        %5543 = vmatpush1.bf16.msra.mxu0 0
        %5544 = vmatprep.subr.bf16.mxu0 0
        %5545 = vmatpush1.bf16.msra.mxu0 0
        %5546 = vmatprep.subr.bf16.mxu0 0
        %5547 = vmatpush1.bf16.msra.mxu0 0
        %5548 = vmatprep.subr.bf16.mxu0 0
        %5549 = vmatpush1.bf16.msra.mxu0 0
        %5550 = vmatprep.subr.bf16.mxu0 0
        %5551 = vmatpush1.bf16.msra.mxu0 0
        %5552 = vmatprep.subr.bf16.mxu0 0
        %5553 = vmatpush1.bf16.msra.mxu0 0
        %5554 = vmatprep.subr.bf16.mxu0 0
        %5555 = vmatpush1.bf16.msra.mxu0 0
        %5556 = vmatprep.subr.bf16.mxu0 0
        %5557 = vmatpush1.bf16.msra.mxu0 0
        %5558 = vmatprep.subr.bf16.mxu0 0
        %5559 = vmatpush1.bf16.msra.mxu0 0
        %5560 = vmatprep.subr.bf16.mxu0 0
        %5561 = vmatpush1.bf16.msra.mxu0 0
        %5562 = vmatprep.subr.bf16.mxu0 0
        %5563 = vmatpush1.bf16.msra.mxu0 0
        %5564 = vmatprep.subr.bf16.mxu0 0
        %5565 = vmatpush1.bf16.msra.mxu0 0
        %5566 = vmatprep.subr.bf16.mxu0 0
        %5567 = vmatpush1.bf16.msra.mxu0 0
        %5568 = vmatprep.mubr.bf16.mxu0 0
        %5569 = vmatmul.mubr.bf16.gmra.mrb[0].mxu0 %v5529
        %v5570 = vpop.f32.mrb[0].mxu0
        %v5571 = vadd.f32 %v5511, %v5570
        %v5572 = vpop.f32.mrb[0].mxu0
        %v5573 = vpop.f32.mrb[0].mxu0
        %v5574 = vpop.f32.mrb[0].mxu0
        %5575 = vdwg.mxu0
        %v5576 = vsub.f32 0.0, %v5571
        %v5577 = vmul.f32 %v5576, 1.442695
        %v5578 = vpow.pop %v5577
        %v5579 = vadd.f32 %v5578, 1.0
        %v5580 = vrcp.pop %v5579
        %v5581 = vmul.f32 1.0, %v5580
        %vm5582 = vcmask 16384
        %5583 = vst.msk [vmem:[%s781] sm:$0x1] %vm5582, %v5581
        %s5584 = sand.u32 %s599, 1
        %s5585 = scalar_lea.sflag [#allocation3], %s5584
        %s5586 = sand.u32 %s599, 1
        %s5587 = scalar_lea.vmem [#allocation2], %s5586
        // Predicated region
        $region125: #{lcznet_forward.1} parent=123 // pred_check
          %p5588 = pneg %p609
        $region126: #{lcznet_forward.1} parent=123 // pred_check_branch
          %5590 = sbr.rel (%p5588) target = $region128
        $region127: #{lcznet_forward.1} parent=123 // pred_region
          %s5592 = ssub.s32 16, 16
          %5593 = vsyncadd %s5585, %s5592
          %s5594 = smul.addr %s40, 16
          %s5595 = scalar_lea.hbm %s26, %s5594
          %s5597 = sshll.u32 %s5587, 4
          %s5598 = int_to_ptr.vmem [resolvable:$true] %s5597
          %5600 = dma.vmem_to_hbm [thread:$0]  %s5598, 16, %s5595, %s5585
        $region128: #{lcznet_forward.1} parent=123 // pred_fallthru
          _
      $region124: #{lcznet_forward.1} parent=5 // pred_fallthru
        _
      %p5601 = scmp.le.s32.totalorder 2, %s35
      // Predicated region
      $region129: #{lcznet_forward.1} parent=5 // pred_check
        %p5602 = pneg %p5601
      $region130: #{lcznet_forward.1} parent=5 // pred_check_branch
        %5604 = sbr.rel (%p5602) target = $region132
      $region131: #{lcznet_forward.1} parent=5 // pred_region
        %s5605 = ssub.s32 %s35, 2
        // Predicated region
        $region133: #{lcznet_forward.1} parent=131 // pred_check
          %p5606 = pneg %p615
        $region134: #{lcznet_forward.1} parent=131 // pred_check_branch
          %5608 = sbr.rel (%p5606) target = $region136
        $region135: #{lcznet_forward.1} parent=131 // pred_region
          %s5609 = sand.u32 %s600, 1
          %s5610 = scalar_lea.sflag [#allocation3], %s5609
          %s5611 = sand.u32 %s600, 1
          %s5612 = scalar_lea.vmem [#allocation2], %s5611
          %5613 = dma.done %s5610, 16
        $region136: #{lcznet_forward.1} parent=131 // pred_fallthru
          _
      $region132: #{lcznet_forward.1} parent=5 // pred_fallthru
        _
    $region6: #{lcznet_forward.1} parent=1 // loop_footer
      %s39 = sadd.s32 1, %s35
    $region7: #{lcznet_forward.1} parent=1 // loop_footer_branch
      %34 = sbr.rel target = $region3
    $region8: #{lcznet_forward.1} parent=1 // loop_exit
      _
    %5614 = vsyncpa [#allocation3], 1
    %s5615 = scalar_lea.sflag [#allocation3], 1
    %5616 = vsyncpa %s5615, 1

</llo_original>
